<compile_context>
chip_gen: v7x
topology: tpu7x:2x2x1
jax: 0.10.0
libtpu: 0.0.40
codegen_flags: <defaults>
</compile_context>

<pallas_src>
import functools

import jax
import jax.numpy as jnp
import numpy as np
from jax.experimental import pallas as pl
from jax.experimental.pallas import tpu as pltpu


_LRELU_SLOPE = 0.2
_BN_EPS = 1e-5
_VMEM_LIMIT = 32 * 1024 * 1024


def _rup(x, m):
    return ((x + m - 1) // m) * m


# ----------------------------------------------------------------------------
# Kernel 1: conv-as-matmul.  Single K step (weights resident in VMEM), f32
# accumulate, fused bias (+ optional LeakyReLU), bf16 store.  For BN layers it
# also emits per-tile partial sum / sum-of-squares so BN never re-reads HBM.
# ----------------------------------------------------------------------------
def _conv_matmul_kernel(x_ref, w_ref, b_ref, o_ref, *stats_refs, act, m_real, tm):
    acc = jnp.dot(x_ref[...], w_ref[...], preferred_element_type=jnp.float32)
    acc = acc + b_ref[...]                                  # f32 bias epilogue

    if stats_refs:                                          # fused BN statistics
        a = acc
        if m_real % tm != 0:                                # mask zero-padded rows
            rows = jax.lax.broadcasted_iota(jnp.int32, acc.shape, 0)
            a = jnp.where(rows < (m_real - pl.program_id(0) * tm), acc, 0.0)
        ssum = jnp.sum(a, axis=0, keepdims=True)
        ssq = jnp.sum(a * a, axis=0, keepdims=True)
        stats_refs[0][...] = jnp.concatenate([ssum, ssq], axis=0)[None, :, :]

    if act == "lrelu":
        acc = jnp.where(acc >= 0, acc, _LRELU_SLOPE * acc)
    o_ref[...] = acc.astype(o_ref.dtype)                    # bf16 activation store


def conv_matmul(x, wm, bias, act="none", want_stats=False):
    """x: (M, K) bf16 patches; wm: (K, Np) bf16 resident weights; bias: (1, Np) f32."""
    M, K = x.shape
    _, Np = wm.shape
    tm = 256 if M >= 256 else max(8, _rup(M, 8))
    Mp = _rup(M, tm)
    if Mp > M:
        x = jnp.pad(x, ((0, Mp - M), (0, 0)))
    tn = 128 if Np % 128 == 0 else Np                       # lane split -> v7x 2nd TC
    m_tiles, n_tiles = Mp // tm, Np // tn

    out_shape = [jax.ShapeDtypeStruct((Mp, Np), jnp.bfloat16)]
    out_specs = [pl.BlockSpec((tm, tn), lambda i, n: (i, n))]
    if want_stats:
        out_shape.append(jax.ShapeDtypeStruct((m_tiles, 2, Np), jnp.float32))
        out_specs.append(pl.BlockSpec((1, 2, tn), lambda i, n: (i, 0, n)))

    kern = functools.partial(_conv_matmul_kernel, act=act, m_real=M, tm=tm)
    res = pl.pallas_call(
        kern,
        out_shape=tuple(out_shape) if want_stats else out_shape[0],
        grid_spec=pltpu.PrefetchScalarGridSpec(
            num_scalar_prefetch=0,
            grid=(m_tiles, n_tiles),
            in_specs=[
                pl.BlockSpec((tm, K), lambda i, n: (i, 0)),
                pl.BlockSpec((K, tn), lambda i, n: (0, n)),
                pl.BlockSpec((1, tn), lambda i, n: (0, n)),
            ],
            out_specs=out_specs if want_stats else out_specs[0],
        ),
        compiler_params=pltpu.CompilerParams(
            dimension_semantics=("parallel", "parallel"),
            vmem_limit_bytes=_VMEM_LIMIT,
        ),
    )(x, wm, bias)
    if want_stats:
        out, stats = res
        return (out[:M] if Mp > M else out), stats
    return res[:M] if Mp > M else res


# ----------------------------------------------------------------------------
# Kernel 2: BatchNorm2d (batch stats, biased variance) + LeakyReLU normalize.
# Consumes the partial stats emitted by the conv kernel; bf16 in / bf16 out.
# ----------------------------------------------------------------------------
def _bn_lrelu_kernel(x_ref, s_ref, g_ref, b_ref, o_ref, *, inv_count, eps, slope):
    st = jnp.sum(s_ref[...], axis=0)                        # reduce tile partials
    mean = st[0:1, :] * inv_count
    var = st[1:2, :] * inv_count - mean * mean              # biased var (PyTorch fwd)
    inv_std = jax.lax.rsqrt(var + eps)
    scale = g_ref[...] * inv_std
    shift = b_ref[...] - mean * scale
    y = x_ref[...].astype(jnp.float32) * scale + shift
    o_ref[...] = jnp.where(y >= 0, y, slope * y).astype(o_ref.dtype)


def batchnorm_lrelu(h, stats, gamma_p, beta_p):
    """Training-mode BatchNorm2d + LeakyReLU(0.2) on (N, H, W, Cpad) bf16."""
    N, H, W, Cp = h.shape
    M = N * H * W
    x2 = h.reshape(M, Cp)
    tm = 256 if M >= 256 else max(8, _rup(M, 8))
    Mp = _rup(M, tm)
    if Mp > M:
        x2 = jnp.pad(x2, ((0, Mp - M), (0, 0)))
    n_t = stats.shape[0]
    kern = functools.partial(_bn_lrelu_kernel, inv_count=1.0 / M,
                             eps=_BN_EPS, slope=_LRELU_SLOPE)
    y = pl.pallas_call(
        kern,
        out_shape=jax.ShapeDtypeStruct((Mp, Cp), jnp.bfloat16),
        grid_spec=pltpu.PrefetchScalarGridSpec(
            num_scalar_prefetch=0,
            grid=(Mp // tm,),
            in_specs=[
                pl.BlockSpec((tm, Cp), lambda i: (i, 0)),
                pl.BlockSpec((n_t, 2, Cp), lambda i: (0, 0, 0)),
                pl.BlockSpec((1, Cp), lambda i: (0, 0)),
                pl.BlockSpec((1, Cp), lambda i: (0, 0)),
            ],
            out_specs=pl.BlockSpec((tm, Cp), lambda i: (i, 0)),
        ),
        compiler_params=pltpu.CompilerParams(
            dimension_semantics=("parallel",),
            vmem_limit_bytes=_VMEM_LIMIT,
        ),
    )(x2, stats, gamma_p, beta_p)
    y = y[:M] if Mp > M else y
    return y.reshape(N, H, W, Cp)


# ----------------------------------------------------------------------------
# Kernel 3: fused BN3 + LeakyReLU + final Conv2d(256->1, 4x4, valid).
# Because the 4x4 kernel spans the whole 4x4 map, im2col is a free XLA reshape
# to (N, 4*4*Cp); the per-channel stats / gamma / beta are lane-tiled to match.
# ----------------------------------------------------------------------------
def _bn_lrelu_head_kernel(x_ref, s_ref, g_ref, b_ref, w_ref, hb_ref, o_ref, *,
                          inv_count, eps, slope):
    st = jnp.sum(s_ref[...], axis=0)                        # (2, L) tiled channel stats
    mean = st[0:1, :] * inv_count
    var = st[1:2, :] * inv_count - mean * mean
    scale = g_ref[...] * jax.lax.rsqrt(var + eps)
    shift = b_ref[...] - mean * scale
    y = x_ref[...].astype(jnp.float32) * scale + shift
    y = jnp.where(y >= 0, y, slope * y)
    o_ref[...] = (jnp.dot(y.astype(jnp.bfloat16), w_ref[...],
                          preferred_element_type=jnp.float32)
                  + hb_ref[...]).astype(o_ref.dtype)


def bn_lrelu_head(x2, stats_t, g_t, b_t, w_head, bias_head, m_real):
    N, L = x2.shape
    K, Op = w_head.shape
    Nr = max(8, _rup(N, 8))                                 # sublane-align batch rows
    if Nr > N:
        x2 = jnp.pad(x2, ((0, Nr - N), (0, 0)))
    n_t = stats_t.shape[0]
    kern = functools.partial(_bn_lrelu_head_kernel, inv_count=1.0 / m_real,
                             eps=_BN_EPS, slope=_LRELU_SLOPE)
    out = pl.pallas_call(
        kern,
        out_shape=jax.ShapeDtypeStruct((Nr, Op), jnp.float32),
        grid_spec=pltpu.PrefetchScalarGridSpec(
            num_scalar_prefetch=0,
            grid=(1,),
            in_specs=[
                pl.BlockSpec((Nr, L), lambda i: (0, 0)),
                pl.BlockSpec((n_t, 2, L), lambda i: (0, 0, 0)),
                pl.BlockSpec((1, L), lambda i: (0, 0)),
                pl.BlockSpec((1, L), lambda i: (0, 0)),
                pl.BlockSpec((K, Op), lambda i: (0, 0)),
                pl.BlockSpec((1, Op), lambda i: (0, 0)),
            ],
            out_specs=pl.BlockSpec((Nr, Op), lambda i: (0, 0)),
        ),
        compiler_params=pltpu.CompilerParams(
            dimension_semantics=("arbitrary",),
            vmem_limit_bytes=_VMEM_LIMIT,
        ),
    )(x2, stats_t, g_t, b_t, w_head, bias_head)
    return out[:N]


# ----------------------------------------------------------------------------
# Plain-JAX glue: channels-last im2col on bf16 data
# ----------------------------------------------------------------------------
def _im2col_nhwc(x, kh, kw, stride, pad):
    # TODO(synk): replace with in-kernel row-slab DMAs (memory_space=pl.ANY).
    if pad:
        x = jnp.pad(x, ((0, 0), (pad, pad), (pad, pad), (0, 0)))
    N, H, W, C = x.shape
    oh = (H - kh) // stride + 1
    ow = (W - kw) // stride + 1
    cols = []
    for i in range(kh):
        for j in range(kw):
            cols.append(x[:, i:i + stride * oh:stride, j:j + stride * ow:stride, :])
    p = jnp.stack(cols, axis=3)                             # (N, oh, ow, kh*kw, C)
    return p.reshape(N * oh * ow, kh * kw * C), oh, ow


def conv_layer(x, wm, bias, stride, pad, act="none", want_stats=False, kh=4, kw=4):
    N = x.shape[0]
    patches, oh, ow = _im2col_nhwc(x, kh, kw, stride, pad)  # bf16 patch matrix
    res = conv_matmul(patches, wm, bias, act=act, want_stats=want_stats)
    if want_stats:
        out, stats = res
        return out.reshape(N, oh, ow, wm.shape[1]), stats
    return res.reshape(N, oh, ow, wm.shape[1])


# ----------------------------------------------------------------------------
# Parameters (PyTorch layout) + one-time packing into padded matmul form
# ----------------------------------------------------------------------------
def init_params(key):
    convs = [(3, 64), (64, 128), (128, 256), (256, 1)]
    params = {}
    keys = jax.random.split(key, 16)
    ki = 0
    for idx, (cin, cout) in enumerate(convs, start=1):
        scale = 1.0 / np.sqrt(cin * 16)
        params[f"conv{idx}_w"] = scale * jax.random.normal(
            keys[ki], (cout, cin, 4, 4), jnp.float32); ki += 1
        params[f"conv{idx}_b"] = 0.01 * jax.random.normal(
            keys[ki], (cout,), jnp.float32); ki += 1
    for idx, c in ((2, 128), (3, 256)):
        params[f"bn{idx}_g"] = 1.0 + 0.1 * jax.random.normal(keys[ki], (c,), jnp.float32); ki += 1
        params[f"bn{idx}_b"] = 0.1 * jax.random.normal(keys[ki], (c,), jnp.float32); ki += 1
    return params


def _pack_conv(w, b, cin_layout):
    """PyTorch (OutC,Cin,KH,KW) -> (K, OutCp) bf16 matmul matrix in (tap, channel)
    im2col K-order (K left UNPADDED) plus a (1, OutCp) f32 bias.  Padded input
    channel rows / padded output channel lanes are exactly zero."""
    OutC, Cin, KH, KW = w.shape
    OutCp = _rup(OutC, 128)
    wt = jnp.transpose(w, (2, 3, 1, 0))                     # (KH, KW, Cin, OutC)
    wfull = jnp.zeros((KH, KW, cin_layout, OutCp), jnp.float32)
    wfull = wfull.at[:, :, :Cin, :OutC].set(wt)
    wmat = wfull.reshape(KH * KW * cin_layout, OutCp)
    bias = jnp.zeros((1, OutCp), jnp.float32).at[0, :OutC].set(b)
    return wmat.astype(jnp.bfloat16), bias


def pack_params(params):
    packed = {}
    cin_layout = 3                                          # raw input channels
    for idx in (1, 2, 3, 4):
        wm, bp = _pack_conv(params[f"conv{idx}_w"], params[f"conv{idx}_b"], cin_layout)
        packed[f"w{idx}"] = wm
        packed[f"b{idx}"] = bp
        cin_layout = wm.shape[1]                            # next layer sees padded C
    for idx in (2, 3):
        c = params[f"conv{idx}_w"].shape[0]
        cp = _rup(c, 128)
        # zero-padded gamma/beta lanes keep padded channels exactly zero downstream
        packed[f"g{idx}"] = jnp.zeros((1, cp), jnp.float32).at[0, :c].set(params[f"bn{idx}_g"])
        packed[f"bt{idx}"] = jnp.zeros((1, cp), jnp.float32).at[0, :c].set(params[f"bn{idx}_b"])
    return packed


# ----------------------------------------------------------------------------
# Discriminator forward (Pallas path)
# ----------------------------------------------------------------------------
def discriminator_forward(packed, x_nchw):
    # NCHW -> NHWC once; cast to bf16 BEFORE any im2col.
    x = jnp.transpose(x_nchw, (0, 2, 3, 1)).astype(jnp.bfloat16)
    h = conv_layer(x, packed["w1"], packed["b1"], 2, 1, act="lrelu")
    h, s2 = conv_layer(h, packed["w2"], packed["b2"], 2, 1, want_stats=True)
    h = batchnorm_lrelu(h, s2, packed["g2"], packed["bt2"])
    h, s3 = conv_layer(h, packed["w3"], packed["b3"], 2, 1, want_stats=True)
    N, oh, ow, Cp = h.shape
    if (oh, ow) == (4, 4):
        # Fused BN3 + LReLU + head conv: the BN3 activation never touches HBM.
        taps = oh * ow
        x2 = h.reshape(N, taps * Cp)                        # free row-major reshape
        stats_t = jnp.tile(s3, (1, 1, taps))                # tiny per-channel tiling
        g_t = jnp.tile(packed["g3"], (1, taps))
        b_t = jnp.tile(packed["bt3"], (1, taps))
        out = bn_lrelu_head(x2, stats_t, g_t, b_t, packed["w4"], packed["b4"],
                            m_real=N * oh * ow)
        return out[:, 0]                                    # == .view(-1)
    # Generic fallback for input resolutions other than 32x32.
    h = batchnorm_lrelu(h, s3, packed["g3"], packed["bt3"])
    h = conv_layer(h, packed["w4"], packed["b4"], 1, 0)
    return h[..., 0].astype(jnp.float32).reshape(-1)


# ----------------------------------------------------------------------------
# Pure-JAX reference (lax.conv, bf16-matched operands) for correctness
# ----------------------------------------------------------------------------
def ref_forward(params, x):
    dn = ("NCHW", "OIHW", "NCHW")

    def conv(x, w, b, stride, pad):
        y = jax.lax.conv_general_dilated(
            x.astype(jnp.bfloat16), w.astype(jnp.bfloat16),
            (stride, stride), [(pad, pad), (pad, pad)],
            dimension_numbers=dn, preferred_element_type=jnp.float32)
        return y + b[None, :, None, None]

    def lrelu(x):
        return jnp.where(x >= 0, x, _LRELU_SLOPE * x)

    def bn(x, g, bt):
        m = x.mean(axis=(0, 2, 3), keepdims=True)
        v = ((x - m) ** 2).mean(axis=(0, 2, 3), keepdims=True)
        return ((x - m) * jax.lax.rsqrt(v + _BN_EPS) * g[None, :, None, None]
                + bt[None, :, None, None])

    h = lrelu(conv(x, params["conv1_w"], params["conv1_b"], 2, 1))
    h = lrelu(bn(conv(h, params["conv2_w"], params["conv2_b"], 2, 1),
                 params["bn2_g"], params["bn2_b"]))
    h = lrelu(bn(conv(h, params["conv3_w"], params["conv3_b"], 2, 1),
                 params["bn3_g"], params["bn3_b"]))
    h = conv(h, params["conv4_w"], params["conv4_b"], 1, 0)
    return h.reshape(-1)


if __name__ == "__main__":
    key = jax.random.PRNGKey(0)
    pkey, xkey = jax.random.split(key)
    params = init_params(pkey)
    packed = pack_params(params)
    # Small input: batch=2, 3 channels, 32x32 spatial (final conv sees 256 x 4x4 -> 1x1).
    x = jax.random.normal(xkey, (2, 3, 32, 32), jnp.float32)

    y = jax.jit(discriminator_forward)(packed, x)
    y = jax.block_until_ready(y)
    assert y.shape == (2,), y.shape
    assert bool(jnp.all(jnp.isfinite(y)))

    y_ref = jax.jit(ref_forward)(params, x)
    # Activations are bf16 end-to-end in the Pallas path (ref keeps f32 between
    # layers), so tolerance is slightly looser than pure-f32.
    np.testing.assert_allclose(np.asarray(y), np.asarray(y_ref), atol=3e-2, rtol=3e-2)

    print("KERNEL_OK")
</pallas_src>

<mosaic_0001>
module attributes {stable_mosaic.version = 11 : i64} {
  func.func @_conv_matmul_kernel(%arg0: i32, %arg1: i32, %arg2: memref<256x48xbf16, #tpu.memory_space<vmem>>, %arg3: memref<48x128xbf16, #tpu.memory_space<vmem>>, %arg4: memref<1x128xf32, #tpu.memory_space<vmem>>, %arg5: memref<256x128xbf16, #tpu.memory_space<vmem>>) attributes {dimension_semantics = [#tpu.dimension_semantics<parallel>, #tpu.dimension_semantics<parallel>], iteration_bounds = array<i64: 2, 1>, scalar_prefetch = 0 : i64, scratch_operands = 0 : i64, tpu.core_type = #tpu.core_type<tc>, window_params = [{transform_indices = @transform_0, window_bounds = array<i64: 256, 48>}, {transform_indices = @transform_1, window_bounds = array<i64: 48, 128>}, {transform_indices = @transform_2, window_bounds = array<i64: 1, 128>}, {transform_indices = @transform_3, window_bounds = array<i64: 256, 128>}]} {
    %c0 = arith.constant 0 : index
    %c0_0 = arith.constant 0 : index
    %0 = vector.load %arg2[%c0, %c0_0] : memref<256x48xbf16, #tpu.memory_space<vmem>>, vector<256x48xbf16>
    %c0_1 = arith.constant 0 : index
    %c0_2 = arith.constant 0 : index
    %1 = vector.load %arg3[%c0_1, %c0_2] : memref<48x128xbf16, #tpu.memory_space<vmem>>, vector<48x128xbf16>
    %cst = arith.constant dense<0.000000e+00> : vector<256x128xf32>
    %2 = tpu.matmul %0, %1, %cst {dimension_numbers = #tpu.dot_dimension_numbers<[1], [0], [0], [1], [0, 0, 1, 1], [], []>} : vector<256x48xbf16>, vector<48x128xbf16>, vector<256x128xf32> -> vector<256x128xf32>
    %c0_3 = arith.constant 0 : index
    %c0_4 = arith.constant 0 : index
    %3 = vector.load %arg4[%c0_3, %c0_4] : memref<1x128xf32, #tpu.memory_space<vmem>>, vector<1x128xf32>
    %4 = vector.broadcast %3 : vector<1x128xf32> to vector<256x128xf32>
    %5 = arith.addf %2, %4 : vector<256x128xf32>
    %cst_5 = arith.constant 0.000000e+00 : f32
    %6 = vector.broadcast %cst_5 : f32 to vector<256x128xf32>
    %7 = arith.cmpf oge, %5, %6 : vector<256x128xf32>
    %cst_6 = arith.constant 2.000000e-01 : f32
    %8 = vector.broadcast %cst_6 : f32 to vector<256x128xf32>
    %9 = arith.mulf %8, %5 : vector<256x128xf32>
    %10 = arith.select %7, %5, %9 : vector<256x128xi1>, vector<256x128xf32>
    %11 = arith.truncf %10 : vector<256x128xf32> to vector<256x128xbf16>
    %c0_7 = arith.constant 0 : index
    %c0_8 = arith.constant 0 : index
    %12 = vector.load %arg5[%c0_7, %c0_8] : memref<256x128xbf16, #tpu.memory_space<vmem>>, vector<256x128xbf16>
    tpu.vector_store %arg5[%c0_7, %c0_8], %11 {strides = array<i32>} : memref<256x128xbf16, #tpu.memory_space<vmem>>, vector<256x128xbf16>,
    return
  }
  func.func @transform_0(%arg0: i32, %arg1: i32) -> (i32, i32) {
    %c0_i32 = arith.constant 0 : i32
    %c0_i32_0 = arith.constant 0 : i32
    return %arg0, %c0_i32 : i32, i32
  }
  func.func @transform_1(%arg0: i32, %arg1: i32) -> (i32, i32) {
    %c0_i32 = arith.constant 0 : i32
    %c0_i32_0 = arith.constant 0 : i32
    return %c0_i32, %arg1 : i32, i32
  }
  func.func @transform_2(%arg0: i32, %arg1: i32) -> (i32, i32) {
    %c0_i32 = arith.constant 0 : i32
    %c0_i32_0 = arith.constant 0 : i32
    return %c0_i32, %arg1 : i32, i32
  }
  func.func @transform_3(%arg0: i32, %arg1: i32) -> (i32, i32) {
    %c0_i32 = arith.constant 0 : i32
    return %arg0, %arg1 : i32, i32
  }
}

module attributes {stable_mosaic.version = 11 : i64} {
  func.func @_conv_matmul_kernel(%arg0: i32, %arg1: i32, %arg2: memref<128x2048xbf16, #tpu.memory_space<vmem>>, %arg3: memref<2048x128xbf16, #tpu.memory_space<vmem>>, %arg4: memref<1x128xf32, #tpu.memory_space<vmem>>, %arg5: memref<128x128xbf16, #tpu.memory_space<vmem>>, %arg6: memref<1x2x128xf32, #tpu.memory_space<vmem>>) attributes {dimension_semantics = [#tpu.dimension_semantics<parallel>, #tpu.dimension_semantics<parallel>], iteration_bounds = array<i64: 1, 1>, scalar_prefetch = 0 : i64, scratch_operands = 0 : i64, tpu.core_type = #tpu.core_type<tc>, window_params = [{transform_indices = @transform_0, window_bounds = array<i64: 128, 2048>}, {transform_indices = @transform_1, window_bounds = array<i64: 2048, 128>}, {transform_indices = @transform_2, window_bounds = array<i64: 1, 128>}, {transform_indices = @transform_3, window_bounds = array<i64: 128, 128>}, {transform_indices = @transform_4, window_bounds = array<i64: 1, 2, 128>}]} {
    %c0 = arith.constant 0 : index
    %c0_0 = arith.constant 0 : index
    %0 = vector.load %arg2[%c0, %c0_0] : memref<128x2048xbf16, #tpu.memory_space<vmem>>, vector<128x2048xbf16>
    %c0_1 = arith.constant 0 : index
    %c0_2 = arith.constant 0 : index
    %1 = vector.load %arg3[%c0_1, %c0_2] : memref<2048x128xbf16, #tpu.memory_space<vmem>>, vector<2048x128xbf16>
    %cst = arith.constant dense<0.000000e+00> : vector<128x128xf32>
    %2 = tpu.matmul %0, %1, %cst {dimension_numbers = #tpu.dot_dimension_numbers<[1], [0], [0], [1], [0, 0, 1, 1], [], []>} : vector<128x2048xbf16>, vector<2048x128xbf16>, vector<128x128xf32> -> vector<128x128xf32>
    %c0_3 = arith.constant 0 : index
    %c0_4 = arith.constant 0 : index
    %3 = vector.load %arg4[%c0_3, %c0_4] : memref<1x128xf32, #tpu.memory_space<vmem>>, vector<1x128xf32>
    %4 = vector.broadcast %3 : vector<1x128xf32> to vector<128x128xf32>
    %5 = arith.addf %2, %4 : vector<128x128xf32>
    %cst_5 = arith.constant dense<0.000000e+00> : vector<128xf32>
    %6 = vector.multi_reduction <add>, %5, %cst_5 [0] : vector<128x128xf32> to vector<128xf32>
    %7 = vector.shape_cast %6 : vector<128xf32> to vector<1x128xf32>
    %8 = arith.mulf %5, %5 : vector<128x128xf32>
    %cst_6 = arith.constant dense<0.000000e+00> : vector<128xf32>
    %9 = vector.multi_reduction <add>, %8, %cst_6 [0] : vector<128x128xf32> to vector<128xf32>
    %10 = vector.shape_cast %9 : vector<128xf32> to vector<1x128xf32>
    %11 = tpu.concatenate %7, %10 in 0 : vector<1x128xf32>, vector<1x128xf32> -> vector<2x128xf32>
    %12 = vector.shape_cast %11 : vector<2x128xf32> to vector<1x2x128xf32>
    %c0_7 = arith.constant 0 : index
    %c0_8 = arith.constant 0 : index
    %c0_9 = arith.constant 0 : index
    %13 = vector.load %arg6[%c0_7, %c0_8, %c0_9] : memref<1x2x128xf32, #tpu.memory_space<vmem>>, vector<1x2x128xf32>
    tpu.vector_store %arg6[%c0_7, %c0_8, %c0_9], %12 {strides = array<i32>} : memref<1x2x128xf32, #tpu.memory_space<vmem>>, vector<1x2x128xf32>,
    %14 = arith.truncf %5 : vector<128x128xf32> to vector<128x128xbf16>
    %c0_10 = arith.constant 0 : index
    %c0_11 = arith.constant 0 : index
    %15 = vector.load %arg5[%c0_10, %c0_11] : memref<128x128xbf16, #tpu.memory_space<vmem>>, vector<128x128xbf16>
    tpu.vector_store %arg5[%c0_10, %c0_11], %14 {strides = array<i32>} : memref<128x128xbf16, #tpu.memory_space<vmem>>, vector<128x128xbf16>,
    return
  }
  func.func @transform_0(%arg0: i32, %arg1: i32) -> (i32, i32) {
    %c0_i32 = arith.constant 0 : i32
    %c0_i32_0 = arith.constant 0 : i32
    return %arg0, %c0_i32 : i32, i32
  }
  func.func @transform_1(%arg0: i32, %arg1: i32) -> (i32, i32) {
    %c0_i32 = arith.constant 0 : i32
    %c0_i32_0 = arith.constant 0 : i32
    return %c0_i32, %arg1 : i32, i32
  }
  func.func @transform_2(%arg0: i32, %arg1: i32) -> (i32, i32) {
    %c0_i32 = arith.constant 0 : i32
    %c0_i32_0 = arith.constant 0 : i32
    return %c0_i32, %arg1 : i32, i32
  }
  func.func @transform_3(%arg0: i32, %arg1: i32) -> (i32, i32) {
    %c0_i32 = arith.constant 0 : i32
    return %arg0, %arg1 : i32, i32
  }
  func.func @transform_4(%arg0: i32, %arg1: i32) -> (i32, i32, i32) {
    %c0_i32 = arith.constant 0 : i32
    %c0_i32_0 = arith.constant 0 : i32
    return %arg0, %c0_i32, %arg1 : i32, i32, i32
  }
}

module attributes {stable_mosaic.version = 11 : i64} {
  func.func @_bn_lrelu_kernel(%arg0: i32, %arg1: memref<128x128xbf16, #tpu.memory_space<vmem>>, %arg2: memref<1x2x128xf32, #tpu.memory_space<vmem>>, %arg3: memref<1x128xf32, #tpu.memory_space<vmem>>, %arg4: memref<1x128xf32, #tpu.memory_space<vmem>>, %arg5: memref<128x128xbf16, #tpu.memory_space<vmem>>) attributes {dimension_semantics = [#tpu.dimension_semantics<parallel>], iteration_bounds = array<i64: 1>, scalar_prefetch = 0 : i64, scratch_operands = 0 : i64, tpu.core_type = #tpu.core_type<tc>, window_params = [{transform_indices = @transform_0, window_bounds = array<i64: 128, 128>}, {pipeline_mode = #tpu.pipeline_mode<synchronous>, transform_indices = @transform_1, window_bounds = array<i64: 1, 2, 128>}, {pipeline_mode = #tpu.pipeline_mode<synchronous>, transform_indices = @transform_2, window_bounds = array<i64: 1, 128>}, {pipeline_mode = #tpu.pipeline_mode<synchronous>, transform_indices = @transform_3, window_bounds = array<i64: 1, 128>}, {transform_indices = @transform_4, window_bounds = array<i64: 128, 128>}]} {
    %c0 = arith.constant 0 : index
    %c0_0 = arith.constant 0 : index
    %c0_1 = arith.constant 0 : index
    %0 = vector.load %arg2[%c0, %c0_0, %c0_1] : memref<1x2x128xf32, #tpu.memory_space<vmem>>, vector<1x2x128xf32>
    %cst = arith.constant dense<0.000000e+00> : vector<2x128xf32>
    %1 = vector.multi_reduction <add>, %0, %cst [0] : vector<1x2x128xf32> to vector<2x128xf32>
    %2 = vector.extract_strided_slice %1 {offsets = [0, 0], sizes = [1, 128], strides = [1, 1]} : vector<2x128xf32> to vector<1x128xf32>
    %cst_2 = arith.constant 7.812500e-03 : f32
    %3 = vector.broadcast %cst_2 : f32 to vector<1x128xf32>
    %4 = arith.mulf %2, %3 : vector<1x128xf32>
    %5 = vector.extract_strided_slice %1 {offsets = [1, 0], sizes = [1, 128], strides = [1, 1]} : vector<2x128xf32> to vector<1x128xf32>
    %cst_3 = arith.constant 7.812500e-03 : f32
    %6 = vector.broadcast %cst_3 : f32 to vector<1x128xf32>
    %7 = arith.mulf %5, %6 : vector<1x128xf32>
    %8 = arith.mulf %4, %4 : vector<1x128xf32>
    %9 = arith.subf %7, %8 : vector<1x128xf32>
    %cst_4 = arith.constant 9.99999974E-6 : f32
    %10 = vector.broadcast %cst_4 : f32 to vector<1x128xf32>
    %11 = arith.addf %9, %10 : vector<1x128xf32>
    %12 = math.rsqrt %11 : vector<1x128xf32>
    %c0_5 = arith.constant 0 : index
    %c0_6 = arith.constant 0 : index
    %13 = vector.load %arg3[%c0_5, %c0_6] : memref<1x128xf32, #tpu.memory_space<vmem>>, vector<1x128xf32>
    %14 = arith.mulf %13, %12 : vector<1x128xf32>
    %c0_7 = arith.constant 0 : index
    %c0_8 = arith.constant 0 : index
    %15 = vector.load %arg4[%c0_7, %c0_8] : memref<1x128xf32, #tpu.memory_space<vmem>>, vector<1x128xf32>
    %16 = arith.mulf %4, %14 : vector<1x128xf32>
    %17 = arith.subf %15, %16 : vector<1x128xf32>
    %c0_9 = arith.constant 0 : index
    %c0_10 = arith.constant 0 : index
    %18 = vector.load %arg1[%c0_9, %c0_10] : memref<128x128xbf16, #tpu.memory_space<vmem>>, vector<128x128xbf16>
    %19 = arith.extf %18 : vector<128x128xbf16> to vector<128x128xf32>
    %20 = vector.broadcast %14 : vector<1x128xf32> to vector<128x128xf32>
    %21 = arith.mulf %19, %20 : vector<128x128xf32>
    %22 = vector.broadcast %17 : vector<1x128xf32> to vector<128x128xf32>
    %23 = arith.addf %21, %22 : vector<128x128xf32>
    %cst_11 = arith.constant 0.000000e+00 : f32
    %24 = vector.broadcast %cst_11 : f32 to vector<128x128xf32>
    %25 = arith.cmpf oge, %23, %24 : vector<128x128xf32>
    %cst_12 = arith.constant 2.000000e-01 : f32
    %26 = vector.broadcast %cst_12 : f32 to vector<128x128xf32>
    %27 = arith.mulf %26, %23 : vector<128x128xf32>
    %28 = arith.select %25, %23, %27 : vector<128x128xi1>, vector<128x128xf32>
    %29 = arith.truncf %28 : vector<128x128xf32> to vector<128x128xbf16>
    %c0_13 = arith.constant 0 : index
    %c0_14 = arith.constant 0 : index
    %30 = vector.load %arg5[%c0_13, %c0_14] : memref<128x128xbf16, #tpu.memory_space<vmem>>, vector<128x128xbf16>
    tpu.vector_store %arg5[%c0_13, %c0_14], %29 {strides = array<i32>} : memref<128x128xbf16, #tpu.memory_space<vmem>>, vector<128x128xbf16>,
    return
  }
  func.func @transform_0(%arg0: i32) -> (i32, i32) {
    %c0_i32 = arith.constant 0 : i32
    %c0_i32_0 = arith.constant 0 : i32
    return %arg0, %c0_i32 : i32, i32
  }
  func.func @transform_1(%arg0: i32) -> (i32, i32, i32) {
    %c0_i32 = arith.constant 0 : i32
    %c0_i32_0 = arith.constant 0 : i32
    %c0_i32_1 = arith.constant 0 : i32
    %c0_i32_2 = arith.constant 0 : i32
    return %c0_i32, %c0_i32_0, %c0_i32_1 : i32, i32, i32
  }
  func.func @transform_2(%arg0: i32) -> (i32, i32) {
    %c0_i32 = arith.constant 0 : i32
    %c0_i32_0 = arith.constant 0 : i32
    %c0_i32_1 = arith.constant 0 : i32
    return %c0_i32, %c0_i32_0 : i32, i32
  }
  func.func @transform_3(%arg0: i32) -> (i32, i32) {
    %c0_i32 = arith.constant 0 : i32
    %c0_i32_0 = arith.constant 0 : i32
    %c0_i32_1 = arith.constant 0 : i32
    return %c0_i32, %c0_i32_0 : i32, i32
  }
  func.func @transform_4(%arg0: i32) -> (i32, i32) {
    %c0_i32 = arith.constant 0 : i32
    %c0_i32_0 = arith.constant 0 : i32
    return %arg0, %c0_i32 : i32, i32
  }
}

module attributes {stable_mosaic.version = 11 : i64} {
  func.func @_conv_matmul_kernel(%arg0: i32, %arg1: i32, %arg2: memref<32x2048xbf16, #tpu.memory_space<vmem>>, %arg3: memref<2048x128xbf16, #tpu.memory_space<vmem>>, %arg4: memref<1x128xf32, #tpu.memory_space<vmem>>, %arg5: memref<32x128xbf16, #tpu.memory_space<vmem>>, %arg6: memref<1x2x128xf32, #tpu.memory_space<vmem>>) attributes {dimension_semantics = [#tpu.dimension_semantics<parallel>, #tpu.dimension_semantics<parallel>], iteration_bounds = array<i64: 1, 2>, scalar_prefetch = 0 : i64, scratch_operands = 0 : i64, tpu.core_type = #tpu.core_type<tc>, window_params = [{transform_indices = @transform_0, window_bounds = array<i64: 32, 2048>}, {transform_indices = @transform_1, window_bounds = array<i64: 2048, 128>}, {transform_indices = @transform_2, window_bounds = array<i64: 1, 128>}, {transform_indices = @transform_3, window_bounds = array<i64: 32, 128>}, {transform_indices = @transform_4, window_bounds = array<i64: 1, 2, 128>}]} {
    %c0 = arith.constant 0 : index
    %c0_0 = arith.constant 0 : index
    %0 = vector.load %arg2[%c0, %c0_0] : memref<32x2048xbf16, #tpu.memory_space<vmem>>, vector<32x2048xbf16>
    %c0_1 = arith.constant 0 : index
    %c0_2 = arith.constant 0 : index
    %1 = vector.load %arg3[%c0_1, %c0_2] : memref<2048x128xbf16, #tpu.memory_space<vmem>>, vector<2048x128xbf16>
    %cst = arith.constant dense<0.000000e+00> : vector<32x128xf32>
    %2 = tpu.matmul %0, %1, %cst {dimension_numbers = #tpu.dot_dimension_numbers<[1], [0], [0], [1], [0, 0, 1, 1], [], []>} : vector<32x2048xbf16>, vector<2048x128xbf16>, vector<32x128xf32> -> vector<32x128xf32>
    %c0_3 = arith.constant 0 : index
    %c0_4 = arith.constant 0 : index
    %3 = vector.load %arg4[%c0_3, %c0_4] : memref<1x128xf32, #tpu.memory_space<vmem>>, vector<1x128xf32>
    %4 = vector.broadcast %3 : vector<1x128xf32> to vector<32x128xf32>
    %5 = arith.addf %2, %4 : vector<32x128xf32>
    %cst_5 = arith.constant dense<0.000000e+00> : vector<128xf32>
    %6 = vector.multi_reduction <add>, %5, %cst_5 [0] : vector<32x128xf32> to vector<128xf32>
    %7 = vector.shape_cast %6 : vector<128xf32> to vector<1x128xf32>
    %8 = arith.mulf %5, %5 : vector<32x128xf32>
    %cst_6 = arith.constant dense<0.000000e+00> : vector<128xf32>
    %9 = vector.multi_reduction <add>, %8, %cst_6 [0] : vector<32x128xf32> to vector<128xf32>
    %10 = vector.shape_cast %9 : vector<128xf32> to vector<1x128xf32>
    %11 = tpu.concatenate %7, %10 in 0 : vector<1x128xf32>, vector<1x128xf32> -> vector<2x128xf32>
    %12 = vector.shape_cast %11 : vector<2x128xf32> to vector<1x2x128xf32>
    %c0_7 = arith.constant 0 : index
    %c0_8 = arith.constant 0 : index
    %c0_9 = arith.constant 0 : index
    %13 = vector.load %arg6[%c0_7, %c0_8, %c0_9] : memref<1x2x128xf32, #tpu.memory_space<vmem>>, vector<1x2x128xf32>
    tpu.vector_store %arg6[%c0_7, %c0_8, %c0_9], %12 {strides = array<i32>} : memref<1x2x128xf32, #tpu.memory_space<vmem>>, vector<1x2x128xf32>,
    %14 = arith.truncf %5 : vector<32x128xf32> to vector<32x128xbf16>
    %c0_10 = arith.constant 0 : index
    %c0_11 = arith.constant 0 : index
    %15 = vector.load %arg5[%c0_10, %c0_11] : memref<32x128xbf16, #tpu.memory_space<vmem>>, vector<32x128xbf16>
    tpu.vector_store %arg5[%c0_10, %c0_11], %14 {strides = array<i32>} : memref<32x128xbf16, #tpu.memory_space<vmem>>, vector<32x128xbf16>,
    return
  }
  func.func @transform_0(%arg0: i32, %arg1: i32) -> (i32, i32) {
    %c0_i32 = arith.constant 0 : i32
    %c0_i32_0 = arith.constant 0 : i32
    return %arg0, %c0_i32 : i32, i32
  }
  func.func @transform_1(%arg0: i32, %arg1: i32) -> (i32, i32) {
    %c0_i32 = arith.constant 0 : i32
    %c0_i32_0 = arith.constant 0 : i32
    return %c0_i32, %arg1 : i32, i32
  }
  func.func @transform_2(%arg0: i32, %arg1: i32) -> (i32, i32) {
    %c0_i32 = arith.constant 0 : i32
    %c0_i32_0 = arith.constant 0 : i32
    return %c0_i32, %arg1 : i32, i32
  }
  func.func @transform_3(%arg0: i32, %arg1: i32) -> (i32, i32) {
    %c0_i32 = arith.constant 0 : i32
    return %arg0, %arg1 : i32, i32
  }
  func.func @transform_4(%arg0: i32, %arg1: i32) -> (i32, i32, i32) {
    %c0_i32 = arith.constant 0 : i32
    %c0_i32_0 = arith.constant 0 : i32
    return %arg0, %c0_i32, %arg1 : i32, i32, i32
  }
}

module attributes {stable_mosaic.version = 11 : i64} {
  func.func @_bn_lrelu_head_kernel(%arg0: i32, %arg1: memref<8x4096xbf16, #tpu.memory_space<vmem>>, %arg2: memref<1x2x4096xf32, #tpu.memory_space<vmem>>, %arg3: memref<1x4096xf32, #tpu.memory_space<vmem>>, %arg4: memref<1x4096xf32, #tpu.memory_space<vmem>>, %arg5: memref<4096x128xbf16, #tpu.memory_space<vmem>>, %arg6: memref<1x128xf32, #tpu.memory_space<vmem>>, %arg7: memref<8x128xf32, #tpu.memory_space<vmem>>) attributes {dimension_semantics = [#tpu.dimension_semantics<arbitrary>], iteration_bounds = array<i64: 1>, scalar_prefetch = 0 : i64, scratch_operands = 0 : i64, tpu.core_type = #tpu.core_type<tc>, window_params = [{pipeline_mode = #tpu.pipeline_mode<synchronous>, transform_indices = @transform_0, window_bounds = array<i64: 8, 4096>}, {pipeline_mode = #tpu.pipeline_mode<synchronous>, transform_indices = @transform_1, window_bounds = array<i64: 1, 2, 4096>}, {pipeline_mode = #tpu.pipeline_mode<synchronous>, transform_indices = @transform_2, window_bounds = array<i64: 1, 4096>}, {pipeline_mode = #tpu.pipeline_mode<synchronous>, transform_indices = @transform_3, window_bounds = array<i64: 1, 4096>}, {pipeline_mode = #tpu.pipeline_mode<synchronous>, transform_indices = @transform_4, window_bounds = array<i64: 4096, 128>}, {pipeline_mode = #tpu.pipeline_mode<synchronous>, transform_indices = @transform_5, window_bounds = array<i64: 1, 128>}, {pipeline_mode = #tpu.pipeline_mode<synchronous>, transform_indices = @transform_6, window_bounds = array<i64: 8, 128>}]} {
    %c0 = arith.constant 0 : index
    %c0_0 = arith.constant 0 : index
    %c0_1 = arith.constant 0 : index
    %0 = vector.load %arg2[%c0, %c0_0, %c0_1] : memref<1x2x4096xf32, #tpu.memory_space<vmem>>, vector<1x2x4096xf32>
    %cst = arith.constant dense<0.000000e+00> : vector<2x4096xf32>
    %1 = vector.multi_reduction <add>, %0, %cst [0] : vector<1x2x4096xf32> to vector<2x4096xf32>
    %2 = vector.extract_strided_slice %1 {offsets = [0, 0], sizes = [1, 4096], strides = [1, 1]} : vector<2x4096xf32> to vector<1x4096xf32>
    %cst_2 = arith.constant 3.125000e-02 : f32
    %3 = vector.broadcast %cst_2 : f32 to vector<1x4096xf32>
    %4 = arith.mulf %2, %3 : vector<1x4096xf32>
    %5 = vector.extract_strided_slice %1 {offsets = [1, 0], sizes = [1, 4096], strides = [1, 1]} : vector<2x4096xf32> to vector<1x4096xf32>
    %cst_3 = arith.constant 3.125000e-02 : f32
    %6 = vector.broadcast %cst_3 : f32 to vector<1x4096xf32>
    %7 = arith.mulf %5, %6 : vector<1x4096xf32>
    %8 = arith.mulf %4, %4 : vector<1x4096xf32>
    %9 = arith.subf %7, %8 : vector<1x4096xf32>
    %c0_4 = arith.constant 0 : index
    %c0_5 = arith.constant 0 : index
    %10 = vector.load %arg3[%c0_4, %c0_5] : memref<1x4096xf32, #tpu.memory_space<vmem>>, vector<1x4096xf32>
    %cst_6 = arith.constant 9.99999974E-6 : f32
    %11 = vector.broadcast %cst_6 : f32 to vector<1x4096xf32>
    %12 = arith.addf %9, %11 : vector<1x4096xf32>
    %13 = math.rsqrt %12 : vector<1x4096xf32>
    %14 = arith.mulf %10, %13 : vector<1x4096xf32>
    %c0_7 = arith.constant 0 : index
    %c0_8 = arith.constant 0 : index
    %15 = vector.load %arg4[%c0_7, %c0_8] : memref<1x4096xf32, #tpu.memory_space<vmem>>, vector<1x4096xf32>
    %16 = arith.mulf %4, %14 : vector<1x4096xf32>
    %17 = arith.subf %15, %16 : vector<1x4096xf32>
    %c0_9 = arith.constant 0 : index
    %c0_10 = arith.constant 0 : index
    %18 = vector.load %arg1[%c0_9, %c0_10] : memref<8x4096xbf16, #tpu.memory_space<vmem>>, vector<8x4096xbf16>
    %19 = arith.extf %18 : vector<8x4096xbf16> to vector<8x4096xf32>
    %20 = vector.broadcast %14 : vector<1x4096xf32> to vector<8x4096xf32>
    %21 = arith.mulf %19, %20 : vector<8x4096xf32>
    %22 = vector.broadcast %17 : vector<1x4096xf32> to vector<8x4096xf32>
    %23 = arith.addf %21, %22 : vector<8x4096xf32>
    %cst_11 = arith.constant 0.000000e+00 : f32
    %24 = vector.broadcast %cst_11 : f32 to vector<8x4096xf32>
    %25 = arith.cmpf oge, %23, %24 : vector<8x4096xf32>
    %cst_12 = arith.constant 2.000000e-01 : f32
    %26 = vector.broadcast %cst_12 : f32 to vector<8x4096xf32>
    %27 = arith.mulf %26, %23 : vector<8x4096xf32>
    %28 = arith.select %25, %23, %27 : vector<8x4096xi1>, vector<8x4096xf32>
    %29 = arith.truncf %28 : vector<8x4096xf32> to vector<8x4096xbf16>
    %c0_13 = arith.constant 0 : index
    %c0_14 = arith.constant 0 : index
    %30 = vector.load %arg5[%c0_13, %c0_14] : memref<4096x128xbf16, #tpu.memory_space<vmem>>, vector<4096x128xbf16>
    %cst_15 = arith.constant dense<0.000000e+00> : vector<8x128xf32>
    %31 = tpu.matmul %29, %30, %cst_15 {dimension_numbers = #tpu.dot_dimension_numbers<[1], [0], [0], [1], [0, 0, 1, 1], [], []>} : vector<8x4096xbf16>, vector<4096x128xbf16>, vector<8x128xf32> -> vector<8x128xf32>
    %c0_16 = arith.constant 0 : index
    %c0_17 = arith.constant 0 : index
    %32 = vector.load %arg6[%c0_16, %c0_17] : memref<1x128xf32, #tpu.memory_space<vmem>>, vector<1x128xf32>
    %33 = vector.broadcast %32 : vector<1x128xf32> to vector<8x128xf32>
    %34 = arith.addf %31, %33 : vector<8x128xf32>
    %c0_18 = arith.constant 0 : index
    %c0_19 = arith.constant 0 : index
    %35 = vector.load %arg7[%c0_18, %c0_19] : memref<8x128xf32, #tpu.memory_space<vmem>>, vector<8x128xf32>
    tpu.vector_store %arg7[%c0_18, %c0_19], %34 {strides = array<i32>} : memref<8x128xf32, #tpu.memory_space<vmem>>, vector<8x128xf32>,
    return
  }
  func.func @transform_0(%arg0: i32) -> (i32, i32) {
    %c0_i32 = arith.constant 0 : i32
    %c0_i32_0 = arith.constant 0 : i32
    %c0_i32_1 = arith.constant 0 : i32
    return %c0_i32, %c0_i32_0 : i32, i32
  }
  func.func @transform_1(%arg0: i32) -> (i32, i32, i32) {
    %c0_i32 = arith.constant 0 : i32
    %c0_i32_0 = arith.constant 0 : i32
    %c0_i32_1 = arith.constant 0 : i32
    %c0_i32_2 = arith.constant 0 : i32
    return %c0_i32, %c0_i32_0, %c0_i32_1 : i32, i32, i32
  }
  func.func @transform_2(%arg0: i32) -> (i32, i32) {
    %c0_i32 = arith.constant 0 : i32
    %c0_i32_0 = arith.constant 0 : i32
    %c0_i32_1 = arith.constant 0 : i32
    return %c0_i32, %c0_i32_0 : i32, i32
  }
  func.func @transform_3(%arg0: i32) -> (i32, i32) {
    %c0_i32 = arith.constant 0 : i32
    %c0_i32_0 = arith.constant 0 : i32
    %c0_i32_1 = arith.constant 0 : i32
    return %c0_i32, %c0_i32_0 : i32, i32
  }
  func.func @transform_4(%arg0: i32) -> (i32, i32) {
    %c0_i32 = arith.constant 0 : i32
    %c0_i32_0 = arith.constant 0 : i32
    %c0_i32_1 = arith.constant 0 : i32
    return %c0_i32, %c0_i32_0 : i32, i32
  }
  func.func @transform_5(%arg0: i32) -> (i32, i32) {
    %c0_i32 = arith.constant 0 : i32
    %c0_i32_0 = arith.constant 0 : i32
    %c0_i32_1 = arith.constant 0 : i32
    return %c0_i32, %c0_i32_0 : i32, i32
  }
  func.func @transform_6(%arg0: i32) -> (i32, i32) {
    %c0_i32 = arith.constant 0 : i32
    %c0_i32_0 = arith.constant 0 : i32
    %c0_i32_1 = arith.constant 0 : i32
    return %c0_i32, %c0_i32_0 : i32, i32
  }
}

</mosaic_0001>

<llo_original>
// kernel: discriminator_forward.5
$region0: #{discriminator_forward.5}
  #allocation0 [shape = 'u32[]', space=smem, size = 0x4, offset = 0x4, fixed_abs, tag = 'smem constant byte address 0x4 - core index']
  #allocation1 [shape = 'u32[144,128]{1,0:T(1,128)}', space=vmem, size = 0x12000, scoped, tag = 'internal scratch']
  %s0 = inlined_call_operand.vmem [shape: bf16[512,48], index: 0, kind: input, shape index: {}]
  %s1 = inlined_call_operand.vmem [shape: bf16[48,128], index: 1, kind: input, shape index: {}]
  %s2 = inlined_call_operand.vmem [shape: f32[1,128], index: 2, kind: input, shape index: {}]
  %s3 = inlined_call_operand.vmem [shape: bf16[512,128], index: 3, kind: output, shape index: {}]
  %s4 = sld [smem:[#allocation0]]
  $region45: #{discriminator_forward.5} parent=0
    _
  %s6 = ssub.s32 1, %s4
  %s7 = scalar_select 0, %s6, %s4
  loop: start=0, step=1, limit=4
  $region2: #{discriminator_forward.5} parent=0 // loop_pre_header
    _
  $region3: #{discriminator_forward.5} parent=0 // loop_header
    %s9 = sphi 0, %s13
    %p10 = scmp.ge.s32.totalorder %s9, 4
    %s16 = sphi 0, %s28
    %s17 = sphi 0, %s24
    %s18 = sphi 0, %s16
    %s19 = sphi 0, %s17
    %s20 = sphi 0, %s18
    %s21 = sphi 0, %s19
    %s31 = sphi 0, %s33
    %s34 = sphi 0, %s31
    %s35 = sphi 0, %s34
    %s51 = sphi 0, %s35
    %s57 = sphi 0, %s59
    %s60 = sphi 0, %s57
    %s61 = sphi 0, %s60
    %s77 = sphi 0, %s61
    %s83 = sphi 0, %s85
    %s86 = sphi 0, %s83
    %s87 = sphi 0, %s86
    %s103 = sphi 0, %s87
    %s111 = sphi 0, %s113
    %s114 = sphi 0, %s111
    %s115 = sphi 0, %s114
    %s131 = sphi 0, %s115
  $region4: #{discriminator_forward.5} parent=0 // loop_header_branch
    %12 = sbr.rel (%p10) target = $region8
  $region5: #{discriminator_forward.5} parent=0 // loop_body
    %s14 = ssub.s32 %s9, 1
    %s15 = ssub.s32 %s9, 2
    %s22 = sadd.s32 1, %s17
    %p23 = scmp.ge.s32.totalorder %s22, 1
    %s24 = scalar_select %p23, 0, %s22
    %s25 = sadd.s32 1, %s16
    %s26 = scalar_select %p23, %s25, %s16
    %p27 = scmp.ge.s32.totalorder %s26, 2
    %s28 = scalar_select %p27, 0, %s26
    %s29 = ssub.s32 %s16, %s28
    %p30 = scmp.eq.s32.totalorder %s29, 0
    %s32 = sadd.s32 %s31, 1
    %s33 = scalar_select %p30, %s31, %s32
    %p36 = pneg %p30
    %p37 = scmp.eq.s32.totalorder %s9, 1
    %p38 = por %p36, %p37
    %p39 = scmp.ne.s32.totalorder %s31, %s34
    %p40 = scmp.eq.s32.totalorder %s9, 0
    %p41 = por %p39, %p40
    %p42 = scmp.ne.s32.totalorder %s31, %s34
    %p43 = scmp.eq.s32.totalorder %s14, 1
    %p44 = por %p42, %p43
    %p45 = scmp.ne.s32.totalorder %s34, %s35
    %p46 = scmp.eq.s32.totalorder %s14, 0
    %p47 = por %p45, %p46
    %p48 = scmp.ne.s32.totalorder %s34, %s35
    %p49 = scmp.eq.s32.totalorder %s15, 1
    %p50 = por %p48, %p49
    %p52 = scmp.ne.s32.totalorder %s35, %s51
    %p53 = scmp.eq.s32.totalorder %s15, 0
    %p54 = por %p52, %p53
    %s55 = ssub.s32 %s17, %s24
    %p56 = scmp.eq.s32.totalorder %s55, 0
    %s58 = sadd.s32 %s57, 1
    %s59 = scalar_select %p56, %s57, %s58
    %p62 = pneg %p56
    %p63 = scmp.eq.s32.totalorder %s9, 1
    %p64 = por %p62, %p63
    %p65 = scmp.ne.s32.totalorder %s57, %s60
    %p66 = scmp.eq.s32.totalorder %s9, 0
    %p67 = por %p65, %p66
    %p68 = scmp.ne.s32.totalorder %s57, %s60
    %p69 = scmp.eq.s32.totalorder %s14, 1
    %p70 = por %p68, %p69
    %p71 = scmp.ne.s32.totalorder %s60, %s61
    %p72 = scmp.eq.s32.totalorder %s14, 0
    %p73 = por %p71, %p72
    %p74 = scmp.ne.s32.totalorder %s60, %s61
    %p75 = scmp.eq.s32.totalorder %s15, 1
    %p76 = por %p74, %p75
    %p78 = scmp.ne.s32.totalorder %s61, %s77
    %p79 = scmp.eq.s32.totalorder %s15, 0
    %p80 = por %p78, %p79
    %s81 = ssub.s32 %s17, %s24
    %p82 = scmp.eq.s32.totalorder %s81, 0
    %s84 = sadd.s32 %s83, 1
    %s85 = scalar_select %p82, %s83, %s84
    %p88 = pneg %p82
    %p89 = scmp.eq.s32.totalorder %s9, 1
    %p90 = por %p88, %p89
    %p91 = scmp.ne.s32.totalorder %s83, %s86
    %p92 = scmp.eq.s32.totalorder %s9, 0
    %p93 = por %p91, %p92
    %p94 = scmp.ne.s32.totalorder %s83, %s86
    %p95 = scmp.eq.s32.totalorder %s14, 1
    %p96 = por %p94, %p95
    %p97 = scmp.ne.s32.totalorder %s86, %s87
    %p98 = scmp.eq.s32.totalorder %s14, 0
    %p99 = por %p97, %p98
    %p100 = scmp.ne.s32.totalorder %s86, %s87
    %p101 = scmp.eq.s32.totalorder %s15, 1
    %p102 = por %p100, %p101
    %p104 = scmp.ne.s32.totalorder %s87, %s103
    %p105 = scmp.eq.s32.totalorder %s15, 0
    %p106 = por %p104, %p105
    %s107 = ssub.s32 %s16, %s28
    %s108 = ssub.s32 %s17, %s24
    %s109 = sor.u32 %s107, %s108
    %p110 = scmp.eq.s32.totalorder %s109, 0
    %s112 = sadd.s32 %s111, 1
    %s113 = scalar_select %p110, %s111, %s112
    %p116 = pneg %p110
    %p117 = scmp.eq.s32.totalorder %s9, 1
    %p118 = por %p116, %p117
    %p119 = scmp.ne.s32.totalorder %s111, %s114
    %p120 = scmp.eq.s32.totalorder %s9, 0
    %p121 = por %p119, %p120
    %p122 = scmp.ne.s32.totalorder %s111, %s114
    %p123 = scmp.eq.s32.totalorder %s14, 1
    %p124 = por %p122, %p123
    %p125 = scmp.ne.s32.totalorder %s114, %s115
    %p126 = scmp.eq.s32.totalorder %s14, 0
    %p127 = por %p125, %p126
    %p128 = scmp.ne.s32.totalorder %s114, %s115
    %p129 = scmp.eq.s32.totalorder %s15, 1
    %p130 = por %p128, %p129
    %p132 = scmp.ne.s32.totalorder %s115, %s131
    %p133 = scmp.eq.s32.totalorder %s15, 0
    %p134 = por %p132, %p133
    %p135 = scmp.le.s32.totalorder 1, %s9
    %p136 = scmp.lt.s32.totalorder %s9, 3
    %p137 = pnand %p135, %p136
    %p138 = pneg %p137
    // Predicated region
    $region9: #{discriminator_forward.5} parent=5 // pred_check
      _
    $region10: #{discriminator_forward.5} parent=5 // pred_check_branch
      %140 = sbr.rel (%p137) target = $region12
    $region11: #{discriminator_forward.5} parent=5 // pred_region
      %s141 = ssub.s32 %s9, 1
      // Predicated region
      $region13: #{discriminator_forward.5} parent=11 // pred_check
        %p142 = pneg %p73
      $region14: #{discriminator_forward.5} parent=11 // pred_check_branch
        %144 = sbr.rel (%p142) target = $region16
      $region15: #{discriminator_forward.5} parent=11 // pred_region
        %p145 = scmp.lt.s32.totalorder %s19, 0
        %s146 = scalar_select %p145, %s19, 0
        %s147 = smul.addr %s146, 4
        %s148 = scalar_lea.vmem %s1, %s147
      $region16: #{discriminator_forward.5} parent=11 // pred_fallthru
        _
      // Predicated region
      $region17: #{discriminator_forward.5} parent=11 // pred_check
        %p149 = pneg %p99
      $region18: #{discriminator_forward.5} parent=11 // pred_check_branch
        %151 = sbr.rel (%p149) target = $region20
      $region19: #{discriminator_forward.5} parent=11 // pred_region
        %p152 = scmp.lt.s32.totalorder %s19, 0
        %s153 = scalar_select %p152, %s19, 0
        %s154 = scalar_lea.vmem %s2, %s153
      $region20: #{discriminator_forward.5} parent=11 // pred_fallthru
        _
    $region12: #{discriminator_forward.5} parent=5 // pred_fallthru
      _
    %p155 = scmp.lt.s32.totalorder %s9, 2
    // Predicated region
    $region21: #{discriminator_forward.5} parent=5 // pred_check
      %p156 = pneg %p155
    $region22: #{discriminator_forward.5} parent=5 // pred_check_branch
      %158 = sbr.rel (%p156) target = $region24
    $region23: #{discriminator_forward.5} parent=5 // pred_region
      // Predicated region
      $region25: #{discriminator_forward.5} parent=23 // pred_check
        %p159 = pneg %p41
      $region26: #{discriminator_forward.5} parent=23 // pred_check_branch
        %161 = sbr.rel (%p159) target = $region28
      $region27: #{discriminator_forward.5} parent=23 // pred_region
        %s162 = smul.u32 32, %s16
        %p163 = scmp.lt.s32.totalorder %s162, 63
        %s164 = scalar_select %p163, %s162, 63
        %s165 = smul.addr %s164, 4
        %s166 = scalar_lea.vmem %s0, %s165
        %s167 = smul.u32 32, %s16
      $region28: #{discriminator_forward.5} parent=23 // pred_fallthru
        _
    $region24: #{discriminator_forward.5} parent=5 // pred_fallthru
      _
    %p168 = scmp.le.s32.totalorder 1, %s9
    %p169 = scmp.lt.s32.totalorder %s9, 3
    %p170 = pnand %p168, %p169
    %p171 = pneg %p170
    // Predicated region
    $region29: #{discriminator_forward.5} parent=5 // pred_check
      _
    $region30: #{discriminator_forward.5} parent=5 // pred_check_branch
      %173 = sbr.rel (%p170) target = $region32
    $region31: #{discriminator_forward.5} parent=5 // pred_region
      %s174 = ssub.s32 %s9, 1
      %s175 = smul.u32 32, %s18
      %p176 = scmp.lt.s32.totalorder %s175, 63
      %s177 = scalar_select %p176, %s175, 63
      %s178 = smul.addr %s177, 4
      %s179 = scalar_lea.vmem %s0, %s178
      %p180 = pneg %p47
      %p181 = pneg %p44
      %p182 = scmp.lt.s32.totalorder %s19, 0
      %s183 = scalar_select %p182, %s19, 0
      %s184 = smul.addr %s183, 4
      %s185 = scalar_lea.vmem %s1, %s184
      %p186 = pneg %p73
      %p187 = pneg %p70
      %p188 = scmp.lt.s32.totalorder %s19, 0
      %s189 = scalar_select %p188, %s19, 0
      %s190 = scalar_lea.vmem %s2, %s189
      %p191 = pneg %p99
      %p192 = pneg %p96
      %p193 = pneg %p127
      %p194 = pneg %p124
      %s195 = smul.u32 32, %s18
      %p196 = scmp.lt.s32.totalorder %s195, 63
      %s197 = scalar_select %p196, %s195, 63
      %p198 = scmp.lt.s32.totalorder %s19, 0
      %s199 = scalar_select %p198, %s19, 0
      %s200 = sadd.s32 %s199, %s197
      %s201 = smul.addr %s200, 4
      %s202 = scalar_lea.vmem %s3, %s201
      %s203 = smul.u32 32, %s18
      %p204 = scmp.lt.s32.totalorder %s203, 63
      %s205 = scalar_select %p204, %s203, 63
      %s206 = smul.addr %s205, 4
      %s207 = scalar_lea.vmem %s0, %s206
      %s208 = smul.u32 32, %s18
      %p209 = scmp.lt.s32.totalorder %s19, 0
      %s210 = scalar_select %p209, %s19, 0
      %s211 = smul.addr %s210, 4
      %s212 = scalar_lea.vmem %s1, %s211
      %p213 = scmp.lt.s32.totalorder %s19, 0
      %s214 = scalar_select %p213, %s19, 0
      %s215 = scalar_lea.vmem %s2, %s214
      %s216 = smul.u32 32, %s18
      %p217 = scmp.lt.s32.totalorder %s216, 63
      %s218 = scalar_select %p217, %s216, 63
      %p219 = scmp.lt.s32.totalorder %s19, 0
      %s220 = scalar_select %p219, %s19, 0
      %s221 = sadd.s32 %s220, %s218
      %s222 = smul.addr %s221, 4
      %s223 = scalar_lea.vmem %s3, %s222
      %s224 = smul.u32 32, %s18
      %v226 = vld [vmem:[%s207] sm:$0xf]
      %v227 = vld [vmem:[%s207 + $0x4] sm:$0xf]
      %v228 = vld [vmem:[%s207 + $0x8] sm:$0xf]
      %v229 = vld [vmem:[%s207 + $0xc] sm:$0xf]
      %v230 = vld [vmem:[%s207 + $0x10] sm:$0xf]
      %v231 = vld [vmem:[%s207 + $0x14] sm:$0xf]
      %v232 = vld [vmem:[%s207 + $0x18] sm:$0xf]
      %v233 = vld [vmem:[%s207 + $0x1c] sm:$0xf]
      %v234 = vld [vmem:[%s207 + $0x20] sm:$0xf]
      %v235 = vld [vmem:[%s207 + $0x24] sm:$0xf]
      %v236 = vld [vmem:[%s207 + $0x28] sm:$0xf]
      %v237 = vld [vmem:[%s207 + $0x2c] sm:$0xf]
      %v238 = vld [vmem:[%s207 + $0x30] sm:$0xf]
      %v239 = vld [vmem:[%s207 + $0x34] sm:$0xf]
      %v240 = vld [vmem:[%s207 + $0x38] sm:$0xf]
      %v241 = vld [vmem:[%s207 + $0x3c] sm:$0xf]
      %v242 = vld [vmem:[%s207 + $0x40] sm:$0xf]
      %v243 = vld [vmem:[%s207 + $0x44] sm:$0xf]
      %v244 = vld [vmem:[%s207 + $0x48] sm:$0xf]
      %v245 = vld [vmem:[%s207 + $0x4c] sm:$0xf]
      %v246 = vld [vmem:[%s207 + $0x50] sm:$0xf]
      %v247 = vld [vmem:[%s207 + $0x54] sm:$0xf]
      %v248 = vld [vmem:[%s207 + $0x58] sm:$0xf]
      %v249 = vld [vmem:[%s207 + $0x5c] sm:$0xf]
      %v250 = vld [vmem:[%s207 + $0x60] sm:$0xf]
      %v251 = vld [vmem:[%s207 + $0x64] sm:$0xf]
      %v252 = vld [vmem:[%s207 + $0x68] sm:$0xf]
      %v253 = vld [vmem:[%s207 + $0x6c] sm:$0xf]
      %v254 = vld [vmem:[%s207 + $0x70] sm:$0xf]
      %v255 = vld [vmem:[%s207 + $0x74] sm:$0xf]
      %v256 = vld [vmem:[%s207 + $0x78] sm:$0xf]
      %v257 = vld [vmem:[%s207 + $0x7c] sm:$0xf]
      %v258 = vld [vmem:[%s212] sm:$0xf]
      %v259 = vld [vmem:[%s212 + $0x4] sm:$0xf]
      %v260 = vld [vmem:[%s212 + $0x8] sm:$0xf]
      %v261 = vld [vmem:[%s212 + $0xc] sm:$0xf]
      %v262 = vld [vmem:[%s212 + $0x10] sm:$0xf]
      %v263 = vld [vmem:[%s212 + $0x14] sm:$0xf]
      %v264 = vld [vmem:[%s215] sm:$0x1]
      %v266 = vlaneseq
      %v267 = vshrl.u32 %v266, 7
      %v268 = vsub.s32 0, %v267
      %v269 = vrot.slane %v264, %v268
      %v303 = vunpack.c.l.b16 %v226
      %v304 = vunpack.c.l.b16 %v227
      %v305 = vunpack.c.l.b16 %v228
      %v306 = vunpack.c.l.b16 %v229
      %v307 = vunpack.c.l.b16 %v230
      %v308 = vunpack.c.l.b16 %v231
      %v309 = vunpack.c.l.b16 %v232
      %v310 = vunpack.c.l.b16 %v233
      %v311 = vunpack.c.l.b16 %v234
      %v312 = vunpack.c.l.b16 %v235
      %v313 = vunpack.c.l.b16 %v236
      %v314 = vunpack.c.l.b16 %v237
      %v315 = vunpack.c.l.b16 %v238
      %v316 = vunpack.c.l.b16 %v239
      %v317 = vunpack.c.l.b16 %v240
      %v318 = vunpack.c.l.b16 %v241
      %v319 = vunpack.c.l.b16 %v242
      %v320 = vunpack.c.l.b16 %v243
      %v321 = vunpack.c.l.b16 %v244
      %v322 = vunpack.c.l.b16 %v245
      %v323 = vunpack.c.l.b16 %v246
      %v324 = vunpack.c.l.b16 %v247
      %v325 = vunpack.c.l.b16 %v248
      %v326 = vunpack.c.l.b16 %v249
      %v327 = vunpack.c.l.b16 %v250
      %v328 = vunpack.c.l.b16 %v251
      %v329 = vunpack.c.l.b16 %v252
      %v330 = vunpack.c.l.b16 %v253
      %v331 = vunpack.c.l.b16 %v254
      %v332 = vunpack.c.l.b16 %v255
      %v333 = vunpack.c.l.b16 %v256
      %v334 = vunpack.c.l.b16 %v257
      %v335 = vpack.c.b16 %v304, %v303
      %v336 = vpack.c.b16 %v306, %v305
      %v337 = vpack.c.b16 %v308, %v307
      %v338 = vpack.c.b16 %v310, %v309
      %v339 = vpack.c.b16 %v312, %v311
      %v340 = vpack.c.b16 %v314, %v313
      %v341 = vpack.c.b16 %v316, %v315
      %v342 = vpack.c.b16 %v318, %v317
      %v343 = vpack.c.b16 %v320, %v319
      %v344 = vpack.c.b16 %v322, %v321
      %v345 = vpack.c.b16 %v324, %v323
      %v346 = vpack.c.b16 %v326, %v325
      %v347 = vpack.c.b16 %v328, %v327
      %v348 = vpack.c.b16 %v330, %v329
      %v349 = vpack.c.b16 %v332, %v331
      %v350 = vpack.c.b16 %v334, %v333
      %v357 = vunpack.c.l.b16 %v258
      %v358 = vunpack.c.l.b16 %v259
      %v359 = vunpack.c.l.b16 %v260
      %v360 = vunpack.c.l.b16 %v261
      %v361 = vunpack.c.l.b16 %v262
      %v362 = vunpack.c.l.b16 %v263
      %v363 = vpack.c.b16 %v358, %v357
      %v364 = vpack.c.b16 %v360, %v359
      %v365 = vpack.c.b16 %v362, %v361
      %vm369 = vcmask 392192
      %v371 = vsel %vm369, %v335, 0
      %v374 = vsel %vm369, %v336, 0
      %v377 = vsel %vm369, %v337, 0
      %v380 = vsel %vm369, %v338, 0
      %v383 = vsel %vm369, %v339, 0
      %v386 = vsel %vm369, %v340, 0
      %v389 = vsel %vm369, %v341, 0
      %v392 = vsel %vm369, %v342, 0
      %v395 = vsel %vm369, %v343, 0
      %v398 = vsel %vm369, %v344, 0
      %v401 = vsel %vm369, %v345, 0
      %v404 = vsel %vm369, %v346, 0
      %v407 = vsel %vm369, %v347, 0
      %v410 = vsel %vm369, %v348, 0
      %v413 = vsel %vm369, %v349, 0
      %v416 = vsel %vm369, %v350, 0
      %418 = vmatprep.subr.bf16.mxu0 0
      %419 = vmatpush1.bf16.msra.mxu0 %v363
      %420 = vmatprep.subr.bf16.mxu0 0
      %421 = vmatpush1.bf16.msra.mxu0 %v364
      %422 = vmatprep.subr.bf16.mxu0 0
      %423 = vmatpush1.bf16.msra.mxu0 %v365
      %424 = vmatprep.subr.bf16.mxu0 0
      %425 = vmatpush1.bf16.msra.mxu0 0
      %426 = vmatprep.subr.bf16.mxu0 0
      %427 = vmatpush1.bf16.msra.mxu0 0
      %428 = vmatprep.subr.bf16.mxu0 0
      %429 = vmatpush1.bf16.msra.mxu0 0
      %430 = vmatprep.subr.bf16.mxu0 0
      %431 = vmatpush1.bf16.msra.mxu0 0
      %432 = vmatprep.subr.bf16.mxu0 0
      %433 = vmatpush1.bf16.msra.mxu0 0
      %434 = vmatprep.subr.bf16.mxu0 0
      %435 = vmatpush1.bf16.msra.mxu0 0
      %436 = vmatprep.subr.bf16.mxu0 0
      %437 = vmatpush1.bf16.msra.mxu0 0
      %438 = vmatprep.subr.bf16.mxu0 0
      %439 = vmatpush1.bf16.msra.mxu0 0
      %440 = vmatprep.subr.bf16.mxu0 0
      %441 = vmatpush1.bf16.msra.mxu0 0
      %442 = vmatprep.subr.bf16.mxu0 0
      %443 = vmatpush1.bf16.msra.mxu0 0
      %444 = vmatprep.subr.bf16.mxu0 0
      %445 = vmatpush1.bf16.msra.mxu0 0
      %446 = vmatprep.subr.bf16.mxu0 0
      %447 = vmatpush1.bf16.msra.mxu0 0
      %448 = vmatprep.subr.bf16.mxu0 0
      %449 = vmatpush1.bf16.msra.mxu0 0
      %450 = vmatprep.mubr.bf16.mxu0 0
      %451 = vmatmul.mubr.bf16.gmra.mrb[0].mxu0 %v371
      %v452 = vpop.f32.mrb[0].mxu0
      %v453 = vadd.f32 %v269, %v452
      %v454 = vpop.f32.mrb[0].mxu0
      %v455 = vpop.f32.mrb[0].mxu0
      %v456 = vadd.f32 %v269, %v455
      %v457 = vpop.f32.mrb[0].mxu0
      %458 = vmatprep.mubr.bf16.mxu0 0
      %459 = vmatmul.mubr.bf16.gmra.mrb[0].mxu0 %v374
      %v460 = vpop.f32.mrb[0].mxu0
      %v461 = vadd.f32 %v269, %v460
      %v462 = vpop.f32.mrb[0].mxu0
      %v463 = vpop.f32.mrb[0].mxu0
      %v464 = vadd.f32 %v269, %v463
      %v465 = vpop.f32.mrb[0].mxu0
      %466 = vmatprep.mubr.bf16.mxu0 0
      %467 = vmatmul.mubr.bf16.gmra.mrb[0].mxu0 %v377
      %v468 = vpop.f32.mrb[0].mxu0
      %v469 = vadd.f32 %v269, %v468
      %v470 = vpop.f32.mrb[0].mxu0
      %v471 = vpop.f32.mrb[0].mxu0
      %v472 = vadd.f32 %v269, %v471
      %v473 = vpop.f32.mrb[0].mxu0
      %474 = vmatprep.mubr.bf16.mxu0 0
      %475 = vmatmul.mubr.bf16.gmra.mrb[0].mxu0 %v380
      %v476 = vpop.f32.mrb[0].mxu0
      %v477 = vadd.f32 %v269, %v476
      %v478 = vpop.f32.mrb[0].mxu0
      %v479 = vpop.f32.mrb[0].mxu0
      %v480 = vadd.f32 %v269, %v479
      %v481 = vpop.f32.mrb[0].mxu0
      %482 = vmatprep.mubr.bf16.mxu0 0
      %483 = vmatmul.mubr.bf16.gmra.mrb[0].mxu0 %v383
      %v484 = vpop.f32.mrb[0].mxu0
      %v485 = vadd.f32 %v269, %v484
      %v486 = vpop.f32.mrb[0].mxu0
      %v487 = vpop.f32.mrb[0].mxu0
      %v488 = vadd.f32 %v269, %v487
      %v489 = vpop.f32.mrb[0].mxu0
      %490 = vmatprep.mubr.bf16.mxu0 0
      %491 = vmatmul.mubr.bf16.gmra.mrb[0].mxu0 %v386
      %v492 = vpop.f32.mrb[0].mxu0
      %v493 = vadd.f32 %v269, %v492
      %v494 = vpop.f32.mrb[0].mxu0
      %v495 = vpop.f32.mrb[0].mxu0
      %v496 = vadd.f32 %v269, %v495
      %v497 = vpop.f32.mrb[0].mxu0
      %498 = vmatprep.mubr.bf16.mxu0 0
      %499 = vmatmul.mubr.bf16.gmra.mrb[0].mxu0 %v389
      %v500 = vpop.f32.mrb[0].mxu0
      %v501 = vadd.f32 %v269, %v500
      %v502 = vpop.f32.mrb[0].mxu0
      %v503 = vpop.f32.mrb[0].mxu0
      %v504 = vadd.f32 %v269, %v503
      %v505 = vpop.f32.mrb[0].mxu0
      %506 = vmatprep.mubr.bf16.mxu0 0
      %507 = vmatmul.mubr.bf16.gmra.mrb[0].mxu0 %v392
      %v508 = vpop.f32.mrb[0].mxu0
      %v509 = vadd.f32 %v269, %v508
      %v510 = vpop.f32.mrb[0].mxu0
      %v511 = vpop.f32.mrb[0].mxu0
      %v512 = vadd.f32 %v269, %v511
      %v513 = vpop.f32.mrb[0].mxu0
      %514 = vmatprep.mubr.bf16.mxu0 0
      %515 = vmatmul.mubr.bf16.gmra.mrb[0].mxu0 %v395
      %v516 = vpop.f32.mrb[0].mxu0
      %v517 = vadd.f32 %v269, %v516
      %v518 = vpop.f32.mrb[0].mxu0
      %v519 = vpop.f32.mrb[0].mxu0
      %v520 = vadd.f32 %v269, %v519
      %v521 = vpop.f32.mrb[0].mxu0
      %522 = vmatprep.mubr.bf16.mxu0 0
      %523 = vmatmul.mubr.bf16.gmra.mrb[0].mxu0 %v398
      %v524 = vpop.f32.mrb[0].mxu0
      %v525 = vadd.f32 %v269, %v524
      %v526 = vpop.f32.mrb[0].mxu0
      %v527 = vpop.f32.mrb[0].mxu0
      %v528 = vadd.f32 %v269, %v527
      %v529 = vpop.f32.mrb[0].mxu0
      %530 = vmatprep.mubr.bf16.mxu0 0
      %531 = vmatmul.mubr.bf16.gmra.mrb[0].mxu0 %v401
      %v532 = vpop.f32.mrb[0].mxu0
      %v533 = vadd.f32 %v269, %v532
      %v534 = vpop.f32.mrb[0].mxu0
      %v535 = vpop.f32.mrb[0].mxu0
      %v536 = vadd.f32 %v269, %v535
      %v537 = vpop.f32.mrb[0].mxu0
      %538 = vmatprep.mubr.bf16.mxu0 0
      %539 = vmatmul.mubr.bf16.gmra.mrb[0].mxu0 %v404
      %v540 = vpop.f32.mrb[0].mxu0
      %v541 = vadd.f32 %v269, %v540
      %v542 = vpop.f32.mrb[0].mxu0
      %v543 = vpop.f32.mrb[0].mxu0
      %v544 = vadd.f32 %v269, %v543
      %v545 = vpop.f32.mrb[0].mxu0
      %546 = vmatprep.mubr.bf16.mxu0 0
      %547 = vmatmul.mubr.bf16.gmra.mrb[0].mxu0 %v407
      %v548 = vpop.f32.mrb[0].mxu0
      %v549 = vadd.f32 %v269, %v548
      %v550 = vpop.f32.mrb[0].mxu0
      %v551 = vpop.f32.mrb[0].mxu0
      %v552 = vadd.f32 %v269, %v551
      %v553 = vpop.f32.mrb[0].mxu0
      %554 = vmatprep.mubr.bf16.mxu0 0
      %555 = vmatmul.mubr.bf16.gmra.mrb[0].mxu0 %v410
      %v556 = vpop.f32.mrb[0].mxu0
      %v557 = vadd.f32 %v269, %v556
      %v558 = vpop.f32.mrb[0].mxu0
      %v559 = vpop.f32.mrb[0].mxu0
      %v560 = vadd.f32 %v269, %v559
      %v561 = vpop.f32.mrb[0].mxu0
      %562 = vmatprep.mubr.bf16.mxu0 0
      %563 = vmatmul.mubr.bf16.gmra.mrb[0].mxu0 %v413
      %v564 = vpop.f32.mrb[0].mxu0
      %v565 = vadd.f32 %v269, %v564
      %v566 = vpop.f32.mrb[0].mxu0
      %v567 = vpop.f32.mrb[0].mxu0
      %v568 = vadd.f32 %v269, %v567
      %v569 = vpop.f32.mrb[0].mxu0
      %570 = vmatprep.mubr.bf16.mxu0 0
      %571 = vmatmul.mubr.bf16.gmra.mrb[0].mxu0 %v416
      %v572 = vpop.f32.mrb[0].mxu0
      %v573 = vadd.f32 %v269, %v572
      %v574 = vpop.f32.mrb[0].mxu0
      %v575 = vpop.f32.mrb[0].mxu0
      %v576 = vadd.f32 %v269, %v575
      %v577 = vpop.f32.mrb[0].mxu0
      %578 = vdwg.mxu0
      %vm579 = vcmp.ge.f32.partialorder %v453, 0.0
      %vm580 = vcmp.ge.f32.partialorder %v456, 0.0
      %vm581 = vcmp.ge.f32.partialorder %v461, 0.0
      %vm582 = vcmp.ge.f32.partialorder %v464, 0.0
      %vm583 = vcmp.ge.f32.partialorder %v469, 0.0
      %vm584 = vcmp.ge.f32.partialorder %v472, 0.0
      %vm585 = vcmp.ge.f32.partialorder %v477, 0.0
      %vm586 = vcmp.ge.f32.partialorder %v480, 0.0
      %vm587 = vcmp.ge.f32.partialorder %v485, 0.0
      %vm588 = vcmp.ge.f32.partialorder %v488, 0.0
      %vm589 = vcmp.ge.f32.partialorder %v493, 0.0
      %vm590 = vcmp.ge.f32.partialorder %v496, 0.0
      %vm591 = vcmp.ge.f32.partialorder %v501, 0.0
      %vm592 = vcmp.ge.f32.partialorder %v504, 0.0
      %vm593 = vcmp.ge.f32.partialorder %v509, 0.0
      %vm594 = vcmp.ge.f32.partialorder %v512, 0.0
      %vm595 = vcmp.ge.f32.partialorder %v517, 0.0
      %vm596 = vcmp.ge.f32.partialorder %v520, 0.0
      %vm597 = vcmp.ge.f32.partialorder %v525, 0.0
      %vm598 = vcmp.ge.f32.partialorder %v528, 0.0
      %vm599 = vcmp.ge.f32.partialorder %v533, 0.0
      %vm600 = vcmp.ge.f32.partialorder %v536, 0.0
      %vm601 = vcmp.ge.f32.partialorder %v541, 0.0
      %vm602 = vcmp.ge.f32.partialorder %v544, 0.0
      %vm603 = vcmp.ge.f32.partialorder %v549, 0.0
      %vm604 = vcmp.ge.f32.partialorder %v552, 0.0
      %vm605 = vcmp.ge.f32.partialorder %v557, 0.0
      %vm606 = vcmp.ge.f32.partialorder %v560, 0.0
      %vm607 = vcmp.ge.f32.partialorder %v565, 0.0
      %vm608 = vcmp.ge.f32.partialorder %v568, 0.0
      %vm609 = vcmp.ge.f32.partialorder %v573, 0.0
      %vm610 = vcmp.ge.f32.partialorder %v576, 0.0
      %v611 = vmul.f32 %v453, 0.2
      %v612 = vmul.f32 %v456, 0.2
      %v613 = vmul.f32 %v461, 0.2
      %v614 = vmul.f32 %v464, 0.2
      %v615 = vmul.f32 %v469, 0.2
      %v616 = vmul.f32 %v472, 0.2
      %v617 = vmul.f32 %v477, 0.2
      %v618 = vmul.f32 %v480, 0.2
      %v619 = vmul.f32 %v485, 0.2
      %v620 = vmul.f32 %v488, 0.2
      %v621 = vmul.f32 %v493, 0.2
      %v622 = vmul.f32 %v496, 0.2
      %v623 = vmul.f32 %v501, 0.2
      %v624 = vmul.f32 %v504, 0.2
      %v625 = vmul.f32 %v509, 0.2
      %v626 = vmul.f32 %v512, 0.2
      %v627 = vmul.f32 %v517, 0.2
      %v628 = vmul.f32 %v520, 0.2
      %v629 = vmul.f32 %v525, 0.2
      %v630 = vmul.f32 %v528, 0.2
      %v631 = vmul.f32 %v533, 0.2
      %v632 = vmul.f32 %v536, 0.2
      %v633 = vmul.f32 %v541, 0.2
      %v634 = vmul.f32 %v544, 0.2
      %v635 = vmul.f32 %v549, 0.2
      %v636 = vmul.f32 %v552, 0.2
      %v637 = vmul.f32 %v557, 0.2
      %v638 = vmul.f32 %v560, 0.2
      %v639 = vmul.f32 %v565, 0.2
      %v640 = vmul.f32 %v568, 0.2
      %v641 = vmul.f32 %v573, 0.2
      %v642 = vmul.f32 %v576, 0.2
      %v643 = vsel %vm579, %v453, %v611
      %v644 = vsel %vm580, %v456, %v612
      %v645 = vsel %vm581, %v461, %v613
      %v646 = vsel %vm582, %v464, %v614
      %v647 = vsel %vm583, %v469, %v615
      %v648 = vsel %vm584, %v472, %v616
      %v649 = vsel %vm585, %v477, %v617
      %v650 = vsel %vm586, %v480, %v618
      %v651 = vsel %vm587, %v485, %v619
      %v652 = vsel %vm588, %v488, %v620
      %v653 = vsel %vm589, %v493, %v621
      %v654 = vsel %vm590, %v496, %v622
      %v655 = vsel %vm591, %v501, %v623
      %v656 = vsel %vm592, %v504, %v624
      %v657 = vsel %vm593, %v509, %v625
      %v658 = vsel %vm594, %v512, %v626
      %v659 = vsel %vm595, %v517, %v627
      %v660 = vsel %vm596, %v520, %v628
      %v661 = vsel %vm597, %v525, %v629
      %v662 = vsel %vm598, %v528, %v630
      %v663 = vsel %vm599, %v533, %v631
      %v664 = vsel %vm600, %v536, %v632
      %v665 = vsel %vm601, %v541, %v633
      %v666 = vsel %vm602, %v544, %v634
      %v667 = vsel %vm603, %v549, %v635
      %v668 = vsel %vm604, %v552, %v636
      %v669 = vsel %vm605, %v557, %v637
      %v670 = vsel %vm606, %v560, %v638
      %v671 = vsel %vm607, %v565, %v639
      %v672 = vsel %vm608, %v568, %v640
      %v673 = vsel %vm609, %v573, %v641
      %v674 = vsel %vm610, %v576, %v642
      %v675 = vpack.c.bf16 %v644, %v643
      %v676 = vpack.c.bf16 %v646, %v645
      %v677 = vpack.c.bf16 %v648, %v647
      %v678 = vpack.c.bf16 %v650, %v649
      %v679 = vpack.c.bf16 %v652, %v651
      %v680 = vpack.c.bf16 %v654, %v653
      %v681 = vpack.c.bf16 %v656, %v655
      %v682 = vpack.c.bf16 %v658, %v657
      %v683 = vpack.c.bf16 %v660, %v659
      %v684 = vpack.c.bf16 %v662, %v661
      %v685 = vpack.c.bf16 %v664, %v663
      %v686 = vpack.c.bf16 %v666, %v665
      %v687 = vpack.c.bf16 %v668, %v667
      %v688 = vpack.c.bf16 %v670, %v669
      %v689 = vpack.c.bf16 %v672, %v671
      %v690 = vpack.c.bf16 %v674, %v673
      %v707 = vunpack.c.l.b16 %v675
      %v708 = vunpack.c.h.b16 %v675
      %v709 = vunpack.c.l.b16 %v676
      %v710 = vunpack.c.h.b16 %v676
      %v711 = vunpack.c.l.b16 %v677
      %v712 = vunpack.c.h.b16 %v677
      %v713 = vunpack.c.l.b16 %v678
      %v714 = vunpack.c.h.b16 %v678
      %v715 = vunpack.c.l.b16 %v679
      %v716 = vunpack.c.h.b16 %v679
      %v717 = vunpack.c.l.b16 %v680
      %v718 = vunpack.c.h.b16 %v680
      %v719 = vunpack.c.l.b16 %v681
      %v720 = vunpack.c.h.b16 %v681
      %v721 = vunpack.c.l.b16 %v682
      %v722 = vunpack.c.h.b16 %v682
      %v723 = vunpack.c.l.b16 %v683
      %v724 = vunpack.c.h.b16 %v683
      %v725 = vunpack.c.l.b16 %v684
      %v726 = vunpack.c.h.b16 %v684
      %v727 = vunpack.c.l.b16 %v685
      %v728 = vunpack.c.h.b16 %v685
      %v729 = vunpack.c.l.b16 %v686
      %v730 = vunpack.c.h.b16 %v686
      %v731 = vunpack.c.l.b16 %v687
      %v732 = vunpack.c.h.b16 %v687
      %v733 = vunpack.c.l.b16 %v688
      %v734 = vunpack.c.h.b16 %v688
      %v735 = vunpack.c.l.b16 %v689
      %v736 = vunpack.c.h.b16 %v689
      %v737 = vunpack.c.l.b16 %v690
      %v738 = vunpack.c.h.b16 %v690
      %v739 = vpack.c.b16 %v707, %v707
      %v740 = vpack.c.b16 %v708, %v708
      %v741 = vpack.c.b16 %v709, %v709
      %v742 = vpack.c.b16 %v710, %v710
      %v743 = vpack.c.b16 %v711, %v711
      %v744 = vpack.c.b16 %v712, %v712
      %v745 = vpack.c.b16 %v713, %v713
      %v746 = vpack.c.b16 %v714, %v714
      %v747 = vpack.c.b16 %v715, %v715
      %v748 = vpack.c.b16 %v716, %v716
      %v749 = vpack.c.b16 %v717, %v717
      %v750 = vpack.c.b16 %v718, %v718
      %v751 = vpack.c.b16 %v719, %v719
      %v752 = vpack.c.b16 %v720, %v720
      %v753 = vpack.c.b16 %v721, %v721
      %v754 = vpack.c.b16 %v722, %v722
      %v755 = vpack.c.b16 %v723, %v723
      %v756 = vpack.c.b16 %v724, %v724
      %v757 = vpack.c.b16 %v725, %v725
      %v758 = vpack.c.b16 %v726, %v726
      %v759 = vpack.c.b16 %v727, %v727
      %v760 = vpack.c.b16 %v728, %v728
      %v761 = vpack.c.b16 %v729, %v729
      %v762 = vpack.c.b16 %v730, %v730
      %v763 = vpack.c.b16 %v731, %v731
      %v764 = vpack.c.b16 %v732, %v732
      %v765 = vpack.c.b16 %v733, %v733
      %v766 = vpack.c.b16 %v734, %v734
      %v767 = vpack.c.b16 %v735, %v735
      %v768 = vpack.c.b16 %v736, %v736
      %v769 = vpack.c.b16 %v737, %v737
      %v770 = vpack.c.b16 %v738, %v738
      %803 = vst [vmem:[%s223] sm:$0xf] %v739
      %804 = vst [vmem:[%s223 + $0x4] sm:$0xf] %v740
      %805 = vst [vmem:[%s223 + $0x8] sm:$0xf] %v741
      %806 = vst [vmem:[%s223 + $0xc] sm:$0xf] %v742
      %807 = vst [vmem:[%s223 + $0x10] sm:$0xf] %v743
      %808 = vst [vmem:[%s223 + $0x14] sm:$0xf] %v744
      %809 = vst [vmem:[%s223 + $0x18] sm:$0xf] %v745
      %810 = vst [vmem:[%s223 + $0x1c] sm:$0xf] %v746
      %811 = vst [vmem:[%s223 + $0x20] sm:$0xf] %v747
      %812 = vst [vmem:[%s223 + $0x24] sm:$0xf] %v748
      %813 = vst [vmem:[%s223 + $0x28] sm:$0xf] %v749
      %814 = vst [vmem:[%s223 + $0x2c] sm:$0xf] %v750
      %815 = vst [vmem:[%s223 + $0x30] sm:$0xf] %v751
      %816 = vst [vmem:[%s223 + $0x34] sm:$0xf] %v752
      %817 = vst [vmem:[%s223 + $0x38] sm:$0xf] %v753
      %818 = vst [vmem:[%s223 + $0x3c] sm:$0xf] %v754
      %819 = vst [vmem:[%s223 + $0x40] sm:$0xf] %v755
      %820 = vst [vmem:[%s223 + $0x44] sm:$0xf] %v756
      %821 = vst [vmem:[%s223 + $0x48] sm:$0xf] %v757
      %822 = vst [vmem:[%s223 + $0x4c] sm:$0xf] %v758
      %823 = vst [vmem:[%s223 + $0x50] sm:$0xf] %v759
      %824 = vst [vmem:[%s223 + $0x54] sm:$0xf] %v760
      %825 = vst [vmem:[%s223 + $0x58] sm:$0xf] %v761
      %826 = vst [vmem:[%s223 + $0x5c] sm:$0xf] %v762
      %827 = vst [vmem:[%s223 + $0x60] sm:$0xf] %v763
      %828 = vst [vmem:[%s223 + $0x64] sm:$0xf] %v764
      %829 = vst [vmem:[%s223 + $0x68] sm:$0xf] %v765
      %830 = vst [vmem:[%s223 + $0x6c] sm:$0xf] %v766
      %831 = vst [vmem:[%s223 + $0x70] sm:$0xf] %v767
      %832 = vst [vmem:[%s223 + $0x74] sm:$0xf] %v768
      %833 = vst [vmem:[%s223 + $0x78] sm:$0xf] %v769
      %834 = vst [vmem:[%s223 + $0x7c] sm:$0xf] %v770
      %s835 = smul.u32 32, %s18
      %p836 = scmp.lt.s32.totalorder %s835, 63
      %s837 = scalar_select %p836, %s835, 63
      %p838 = scmp.lt.s32.totalorder %s19, 0
      %s839 = scalar_select %p838, %s19, 0
      %s840 = sadd.s32 %s839, %s837
      %s841 = smul.addr %s840, 4
      %s842 = scalar_lea.vmem %s3, %s841
      // Predicated region
      $region33: #{discriminator_forward.5} parent=31 // pred_check
        %p843 = pneg %p124
      $region34: #{discriminator_forward.5} parent=31 // pred_check_branch
        %845 = sbr.rel (%p843) target = $region36
      $region35: #{discriminator_forward.5} parent=31 // pred_region
        %s846 = smul.u32 32, %s18
      $region36: #{discriminator_forward.5} parent=31 // pred_fallthru
        _
    $region32: #{discriminator_forward.5} parent=5 // pred_fallthru
      _
    %p847 = scmp.le.s32.totalorder 2, %s9
    // Predicated region
    $region37: #{discriminator_forward.5} parent=5 // pred_check
      %p848 = pneg %p847
    $region38: #{discriminator_forward.5} parent=5 // pred_check_branch
      %850 = sbr.rel (%p848) target = $region40
    $region39: #{discriminator_forward.5} parent=5 // pred_region
      %s851 = ssub.s32 %s9, 2
      // Predicated region
      $region41: #{discriminator_forward.5} parent=39 // pred_check
        %p852 = pneg %p130
      $region42: #{discriminator_forward.5} parent=39 // pred_check_branch
        %854 = sbr.rel (%p852) target = $region44
      $region43: #{discriminator_forward.5} parent=39 // pred_region
        %s855 = smul.u32 32, %s20
        %p856 = scmp.lt.s32.totalorder %s855, 63
        %s857 = scalar_select %p856, %s855, 63
        %p858 = scmp.lt.s32.totalorder %s21, 0
        %s859 = scalar_select %p858, %s21, 0
        %s860 = sadd.s32 %s859, %s857
        %s861 = smul.addr %s860, 4
        %s862 = scalar_lea.vmem %s3, %s861
      $region44: #{discriminator_forward.5} parent=39 // pred_fallthru
        _
    $region40: #{discriminator_forward.5} parent=5 // pred_fallthru
      _
  $region6: #{discriminator_forward.5} parent=0 // loop_footer
    %s13 = sadd.s32 1, %s9
  $region7: #{discriminator_forward.5} parent=0 // loop_footer_branch
    %8 = sbr.rel target = $region3
  $region8: #{discriminator_forward.5} parent=0 // loop_exit
    _

// kernel: discriminator_forward.7
$region0: #{discriminator_forward.7}
  #allocation0 [shape = 'u32[]', space=smem, size = 0x4, offset = 0x4, fixed_abs, tag = 'smem constant byte address 0x4 - core index']
  #allocation1 [shape = 'u32[144,128]{1,0:T(1,128)}', space=vmem, size = 0x12000, scoped, tag = 'internal scratch']
  %s0 = inlined_call_operand.vmem [shape: bf16[128,128], index: 0, kind: input, shape index: {}]
  %s1 = inlined_call_operand.vmem [shape: f32[1,2,128], index: 1, kind: input, shape index: {}]
  %s2 = inlined_call_operand.vmem [shape: f32[1,128], index: 2, kind: input, shape index: {}]
  %s3 = inlined_call_operand.vmem [shape: f32[1,128], index: 3, kind: input, shape index: {}]
  %s4 = inlined_call_operand.vmem [shape: bf16[128,128], index: 4, kind: output, shape index: {}]
  %s5 = sld [smem:[#allocation0]]
  $region26: #{discriminator_forward.7} parent=0
    _
  %s7 = ssub.s32 1, %s5
  %s8 = scalar_select 0, %s7, %s5
  // Predicated region
  $region2: #{discriminator_forward.7} parent=0 // pred_check
    _
  $region3: #{discriminator_forward.7} parent=0 // pred_check_branch
    %10 = sbr.rel (0) target = $region5
  $region4: #{discriminator_forward.7} parent=0 // pred_region
    _
  $region5: #{discriminator_forward.7} parent=0 // pred_fallthru
    _
  // Predicated region
  $region6: #{discriminator_forward.7} parent=0 // pred_check
    _
  $region7: #{discriminator_forward.7} parent=0 // pred_check_branch
    %12 = sbr.rel (0) target = $region9
  $region8: #{discriminator_forward.7} parent=0 // pred_region
    _
  $region9: #{discriminator_forward.7} parent=0 // pred_fallthru
    _
  // Predicated region
  $region10: #{discriminator_forward.7} parent=0 // pred_check
    _
  $region11: #{discriminator_forward.7} parent=0 // pred_check_branch
    %14 = sbr.rel (0) target = $region13
  $region12: #{discriminator_forward.7} parent=0 // pred_region
    _
  $region13: #{discriminator_forward.7} parent=0 // pred_fallthru
    _
  // Predicated region
  $region14: #{discriminator_forward.7} parent=0 // pred_check
    _
  $region15: #{discriminator_forward.7} parent=0 // pred_check_branch
    %16 = sbr.rel (0) target = $region17
  $region16: #{discriminator_forward.7} parent=0 // pred_region
    _
  $region17: #{discriminator_forward.7} parent=0 // pred_fallthru
    _
  %v17 = vld [vmem:[%s1] sm:$0x3]
  %v18 = vadd.f32 %v17, 0.0
  %v19 = vmul.f32 %v18, 0.0078125
  %v20 = vmul.f32 %v19, %v19
  %v22 = vrot.slane %v20, 7
  %v24 = vsub.f32 %v19, %v22
  %v25 = vadd.f32 %v24, 1e-05
  %v26 = vrsqrt.pop %v25
  %v27 = vld [vmem:[%s2] sm:$0x1]
  %v30 = vunpack.c.l.s4 1966171168
  %v31 = vunpack.c.0.s8 %v30
  %v32 = vlaneseq
  %v33 = vshrl.u32 %v32, 7
  %v34 = vsub.s32 %v31, %v33
  %v35 = vrot.slane %v26, %v34
  %v36 = vcombine.high %v35, %v35
  %v38 = vunpack.c.l.s4 1966171168
  %v39 = vunpack.c.0.s8 %v38
  %v40 = vlaneseq
  %v41 = vshrl.u32 %v40, 7
  %v42 = vsub.s32 %v39, %v41
  %v43 = vrot.slane %v36, %v42
  %v45 = vmul.f32 %v27, %v43
  %v46 = vld [vmem:[%s3] sm:$0x1]
  %v47 = vmul.f32 %v19, %v45
  %v48 = vsub.f32 %v46, %v47
  %v49 = vld [vmem:[%s0] sm:$0xf]
  %v50 = vld [vmem:[%s0 + $0x4] sm:$0xf]
  %v51 = vld [vmem:[%s0 + $0x8] sm:$0xf]
  %v52 = vld [vmem:[%s0 + $0xc] sm:$0xf]
  %v53 = vld [vmem:[%s0 + $0x10] sm:$0xf]
  %v54 = vld [vmem:[%s0 + $0x14] sm:$0xf]
  %v55 = vld [vmem:[%s0 + $0x18] sm:$0xf]
  %v56 = vld [vmem:[%s0 + $0x1c] sm:$0xf]
  %v57 = vld [vmem:[%s0 + $0x20] sm:$0xf]
  %v58 = vld [vmem:[%s0 + $0x24] sm:$0xf]
  %v59 = vld [vmem:[%s0 + $0x28] sm:$0xf]
  %v60 = vld [vmem:[%s0 + $0x2c] sm:$0xf]
  %v61 = vld [vmem:[%s0 + $0x30] sm:$0xf]
  %v62 = vld [vmem:[%s0 + $0x34] sm:$0xf]
  %v63 = vld [vmem:[%s0 + $0x38] sm:$0xf]
  %v64 = vld [vmem:[%s0 + $0x3c] sm:$0xf]
  %v65 = vunpack.c.l.bf16 %v49
  %v66 = vunpack.c.l.bf16 %v50
  %v67 = vunpack.c.l.bf16 %v51
  %v68 = vunpack.c.l.bf16 %v52
  %v69 = vunpack.c.l.bf16 %v53
  %v70 = vunpack.c.l.bf16 %v54
  %v71 = vunpack.c.l.bf16 %v55
  %v72 = vunpack.c.l.bf16 %v56
  %v73 = vunpack.c.l.bf16 %v57
  %v74 = vunpack.c.l.bf16 %v58
  %v75 = vunpack.c.l.bf16 %v59
  %v76 = vunpack.c.l.bf16 %v60
  %v77 = vunpack.c.l.bf16 %v61
  %v78 = vunpack.c.l.bf16 %v62
  %v79 = vunpack.c.l.bf16 %v63
  %v80 = vunpack.c.l.bf16 %v64
  %v82 = vlaneseq
  %v83 = vshrl.u32 %v82, 7
  %v84 = vsub.s32 0, %v83
  %v85 = vrot.slane %v45, %v84
  %v87 = vmul.f32 %v65, %v85
  %v88 = vmul.f32 %v66, %v85
  %v89 = vmul.f32 %v67, %v85
  %v90 = vmul.f32 %v68, %v85
  %v91 = vmul.f32 %v69, %v85
  %v92 = vmul.f32 %v70, %v85
  %v93 = vmul.f32 %v71, %v85
  %v94 = vmul.f32 %v72, %v85
  %v95 = vmul.f32 %v73, %v85
  %v96 = vmul.f32 %v74, %v85
  %v97 = vmul.f32 %v75, %v85
  %v98 = vmul.f32 %v76, %v85
  %v99 = vmul.f32 %v77, %v85
  %v100 = vmul.f32 %v78, %v85
  %v101 = vmul.f32 %v79, %v85
  %v102 = vmul.f32 %v80, %v85
  %v104 = vlaneseq
  %v105 = vshrl.u32 %v104, 7
  %v106 = vsub.s32 0, %v105
  %v107 = vrot.slane %v48, %v106
  %v109 = vadd.f32 %v87, %v107
  %v110 = vadd.f32 %v88, %v107
  %v111 = vadd.f32 %v89, %v107
  %v112 = vadd.f32 %v90, %v107
  %v113 = vadd.f32 %v91, %v107
  %v114 = vadd.f32 %v92, %v107
  %v115 = vadd.f32 %v93, %v107
  %v116 = vadd.f32 %v94, %v107
  %v117 = vadd.f32 %v95, %v107
  %v118 = vadd.f32 %v96, %v107
  %v119 = vadd.f32 %v97, %v107
  %v120 = vadd.f32 %v98, %v107
  %v121 = vadd.f32 %v99, %v107
  %v122 = vadd.f32 %v100, %v107
  %v123 = vadd.f32 %v101, %v107
  %v124 = vadd.f32 %v102, %v107
  %vm125 = vcmp.ge.f32.partialorder %v109, 0.0
  %vm126 = vcmp.ge.f32.partialorder %v110, 0.0
  %vm127 = vcmp.ge.f32.partialorder %v111, 0.0
  %vm128 = vcmp.ge.f32.partialorder %v112, 0.0
  %vm129 = vcmp.ge.f32.partialorder %v113, 0.0
  %vm130 = vcmp.ge.f32.partialorder %v114, 0.0
  %vm131 = vcmp.ge.f32.partialorder %v115, 0.0
  %vm132 = vcmp.ge.f32.partialorder %v116, 0.0
  %vm133 = vcmp.ge.f32.partialorder %v117, 0.0
  %vm134 = vcmp.ge.f32.partialorder %v118, 0.0
  %vm135 = vcmp.ge.f32.partialorder %v119, 0.0
  %vm136 = vcmp.ge.f32.partialorder %v120, 0.0
  %vm137 = vcmp.ge.f32.partialorder %v121, 0.0
  %vm138 = vcmp.ge.f32.partialorder %v122, 0.0
  %vm139 = vcmp.ge.f32.partialorder %v123, 0.0
  %vm140 = vcmp.ge.f32.partialorder %v124, 0.0
  %v141 = vmul.f32 %v109, 0.2
  %v142 = vmul.f32 %v110, 0.2
  %v143 = vmul.f32 %v111, 0.2
  %v144 = vmul.f32 %v112, 0.2
  %v145 = vmul.f32 %v113, 0.2
  %v146 = vmul.f32 %v114, 0.2
  %v147 = vmul.f32 %v115, 0.2
  %v148 = vmul.f32 %v116, 0.2
  %v149 = vmul.f32 %v117, 0.2
  %v150 = vmul.f32 %v118, 0.2
  %v151 = vmul.f32 %v119, 0.2
  %v152 = vmul.f32 %v120, 0.2
  %v153 = vmul.f32 %v121, 0.2
  %v154 = vmul.f32 %v122, 0.2
  %v155 = vmul.f32 %v123, 0.2
  %v156 = vmul.f32 %v124, 0.2
  %v157 = vsel %vm125, %v109, %v141
  %v158 = vsel %vm126, %v110, %v142
  %v159 = vsel %vm127, %v111, %v143
  %v160 = vsel %vm128, %v112, %v144
  %v161 = vsel %vm129, %v113, %v145
  %v162 = vsel %vm130, %v114, %v146
  %v163 = vsel %vm131, %v115, %v147
  %v164 = vsel %vm132, %v116, %v148
  %v165 = vsel %vm133, %v117, %v149
  %v166 = vsel %vm134, %v118, %v150
  %v167 = vsel %vm135, %v119, %v151
  %v168 = vsel %vm136, %v120, %v152
  %v169 = vsel %vm137, %v121, %v153
  %v170 = vsel %vm138, %v122, %v154
  %v171 = vsel %vm139, %v123, %v155
  %v172 = vsel %vm140, %v124, %v156
  %v173 = vpack.c.bf16 %v158, %v157
  %v174 = vpack.c.bf16 %v160, %v159
  %v175 = vpack.c.bf16 %v162, %v161
  %v176 = vpack.c.bf16 %v164, %v163
  %v177 = vpack.c.bf16 %v166, %v165
  %v178 = vpack.c.bf16 %v168, %v167
  %v179 = vpack.c.bf16 %v170, %v169
  %v180 = vpack.c.bf16 %v172, %v171
  %v189 = vunpack.c.l.b16 %v173
  %v190 = vunpack.c.h.b16 %v173
  %v191 = vunpack.c.l.b16 %v174
  %v192 = vunpack.c.h.b16 %v174
  %v193 = vunpack.c.l.b16 %v175
  %v194 = vunpack.c.h.b16 %v175
  %v195 = vunpack.c.l.b16 %v176
  %v196 = vunpack.c.h.b16 %v176
  %v197 = vunpack.c.l.b16 %v177
  %v198 = vunpack.c.h.b16 %v177
  %v199 = vunpack.c.l.b16 %v178
  %v200 = vunpack.c.h.b16 %v178
  %v201 = vunpack.c.l.b16 %v179
  %v202 = vunpack.c.h.b16 %v179
  %v203 = vunpack.c.l.b16 %v180
  %v204 = vunpack.c.h.b16 %v180
  %v205 = vpack.c.b16 %v189, %v189
  %v206 = vpack.c.b16 %v190, %v190
  %v207 = vpack.c.b16 %v191, %v191
  %v208 = vpack.c.b16 %v192, %v192
  %v209 = vpack.c.b16 %v193, %v193
  %v210 = vpack.c.b16 %v194, %v194
  %v211 = vpack.c.b16 %v195, %v195
  %v212 = vpack.c.b16 %v196, %v196
  %v213 = vpack.c.b16 %v197, %v197
  %v214 = vpack.c.b16 %v198, %v198
  %v215 = vpack.c.b16 %v199, %v199
  %v216 = vpack.c.b16 %v200, %v200
  %v217 = vpack.c.b16 %v201, %v201
  %v218 = vpack.c.b16 %v202, %v202
  %v219 = vpack.c.b16 %v203, %v203
  %v220 = vpack.c.b16 %v204, %v204
  %237 = vst [vmem:[%s4] sm:$0xf] %v205
  %238 = vst [vmem:[%s4 + $0x4] sm:$0xf] %v206
  %239 = vst [vmem:[%s4 + $0x8] sm:$0xf] %v207
  %240 = vst [vmem:[%s4 + $0xc] sm:$0xf] %v208
  %241 = vst [vmem:[%s4 + $0x10] sm:$0xf] %v209
  %242 = vst [vmem:[%s4 + $0x14] sm:$0xf] %v210
  %243 = vst [vmem:[%s4 + $0x18] sm:$0xf] %v211
  %244 = vst [vmem:[%s4 + $0x1c] sm:$0xf] %v212
  %245 = vst [vmem:[%s4 + $0x20] sm:$0xf] %v213
  %246 = vst [vmem:[%s4 + $0x24] sm:$0xf] %v214
  %247 = vst [vmem:[%s4 + $0x28] sm:$0xf] %v215
  %248 = vst [vmem:[%s4 + $0x2c] sm:$0xf] %v216
  %249 = vst [vmem:[%s4 + $0x30] sm:$0xf] %v217
  %250 = vst [vmem:[%s4 + $0x34] sm:$0xf] %v218
  %251 = vst [vmem:[%s4 + $0x38] sm:$0xf] %v219
  %252 = vst [vmem:[%s4 + $0x3c] sm:$0xf] %v220
  // Predicated region
  $region18: #{discriminator_forward.7} parent=0 // pred_check
    _
  $region19: #{discriminator_forward.7} parent=0 // pred_check_branch
    %254 = sbr.rel (0) target = $region21
  $region20: #{discriminator_forward.7} parent=0 // pred_region
    _
  $region21: #{discriminator_forward.7} parent=0 // pred_fallthru
    _
  // Predicated region
  $region22: #{discriminator_forward.7} parent=0 // pred_check
    _
  $region23: #{discriminator_forward.7} parent=0 // pred_check_branch
    %256 = sbr.rel (0) target = $region25
  $region24: #{discriminator_forward.7} parent=0 // pred_region
    _
  $region25: #{discriminator_forward.7} parent=0 // pred_fallthru
    _

// kernel: discriminator_forward.6
$region0: #{discriminator_forward.6}
  #allocation0 [shape = 'u32[]', space=smem, size = 0x4, offset = 0x4, fixed_abs, tag = 'smem constant byte address 0x4 - core index']
  #allocation1 [shape = 'u32[144,128]{1,0:T(1,128)}', space=vmem, size = 0x12000, scoped, tag = 'internal scratch']
  %s0 = inlined_call_operand.vmem [shape: bf16[128,2048], index: 0, kind: input, shape index: {}]
  %s1 = inlined_call_operand.vmem [shape: bf16[2048,128], index: 1, kind: input, shape index: {}]
  %s2 = inlined_call_operand.vmem [shape: f32[1,128], index: 2, kind: input, shape index: {}]
  %s3 = inlined_call_operand.vmem [shape: bf16[128,128], index: 3, kind: output, shape index: {0}]
  %s4 = inlined_call_operand.vmem [shape: f32[1,2,128], index: 4, kind: output, shape index: {1}]
  %5 = xla_tuple %s3, %s4
  %s6 = sld [smem:[#allocation0]]
  $region30: #{discriminator_forward.6} parent=0
    _
  %s8 = ssub.s32 1, %s6
  %s9 = scalar_select 0, %s8, %s6
  // Predicated region
  $region2: #{discriminator_forward.6} parent=0 // pred_check
    _
  $region3: #{discriminator_forward.6} parent=0 // pred_check_branch
    %11 = sbr.rel (0) target = $region5
  $region4: #{discriminator_forward.6} parent=0 // pred_region
    _
  $region5: #{discriminator_forward.6} parent=0 // pred_fallthru
    _
  // Predicated region
  $region6: #{discriminator_forward.6} parent=0 // pred_check
    _
  $region7: #{discriminator_forward.6} parent=0 // pred_check_branch
    %13 = sbr.rel (0) target = $region9
  $region8: #{discriminator_forward.6} parent=0 // pred_region
    _
  $region9: #{discriminator_forward.6} parent=0 // pred_fallthru
    _
  // Predicated region
  $region10: #{discriminator_forward.6} parent=0 // pred_check
    _
  $region11: #{discriminator_forward.6} parent=0 // pred_check_branch
    %15 = sbr.rel (0) target = $region13
  $region12: #{discriminator_forward.6} parent=0 // pred_region
    _
  $region13: #{discriminator_forward.6} parent=0 // pred_fallthru
    _
  %v17 = vld [vmem:[%s0] sm:$0xff]
  %v18 = vld [vmem:[%s0 + $0x8] sm:$0xff]
  %v19 = vld [vmem:[%s0 + $0x10] sm:$0xff]
  %v20 = vld [vmem:[%s0 + $0x18] sm:$0xff]
  %v21 = vld [vmem:[%s0 + $0x20] sm:$0xff]
  %v22 = vld [vmem:[%s0 + $0x28] sm:$0xff]
  %v23 = vld [vmem:[%s0 + $0x30] sm:$0xff]
  %v24 = vld [vmem:[%s0 + $0x38] sm:$0xff]
  %v25 = vld [vmem:[%s0 + $0x40] sm:$0xff]
  %v26 = vld [vmem:[%s0 + $0x48] sm:$0xff]
  %v27 = vld [vmem:[%s0 + $0x50] sm:$0xff]
  %v28 = vld [vmem:[%s0 + $0x58] sm:$0xff]
  %v29 = vld [vmem:[%s0 + $0x60] sm:$0xff]
  %v30 = vld [vmem:[%s0 + $0x68] sm:$0xff]
  %v31 = vld [vmem:[%s0 + $0x70] sm:$0xff]
  %v32 = vld [vmem:[%s0 + $0x78] sm:$0xff]
  %v33 = vld [vmem:[%s0 + $0x80] sm:$0xff]
  %v34 = vld [vmem:[%s0 + $0x88] sm:$0xff]
  %v35 = vld [vmem:[%s0 + $0x90] sm:$0xff]
  %v36 = vld [vmem:[%s0 + $0x98] sm:$0xff]
  %v37 = vld [vmem:[%s0 + $0xa0] sm:$0xff]
  %v38 = vld [vmem:[%s0 + $0xa8] sm:$0xff]
  %v39 = vld [vmem:[%s0 + $0xb0] sm:$0xff]
  %v40 = vld [vmem:[%s0 + $0xb8] sm:$0xff]
  %v41 = vld [vmem:[%s0 + $0xc0] sm:$0xff]
  %v42 = vld [vmem:[%s0 + $0xc8] sm:$0xff]
  %v43 = vld [vmem:[%s0 + $0xd0] sm:$0xff]
  %v44 = vld [vmem:[%s0 + $0xd8] sm:$0xff]
  %v45 = vld [vmem:[%s0 + $0xe0] sm:$0xff]
  %v46 = vld [vmem:[%s0 + $0xe8] sm:$0xff]
  %v47 = vld [vmem:[%s0 + $0xf0] sm:$0xff]
  %v48 = vld [vmem:[%s0 + $0xf8] sm:$0xff]
  %v49 = vld [vmem:[%s0 + $0x100] sm:$0xff]
  %v50 = vld [vmem:[%s0 + $0x108] sm:$0xff]
  %v51 = vld [vmem:[%s0 + $0x110] sm:$0xff]
  %v52 = vld [vmem:[%s0 + $0x118] sm:$0xff]
  %v53 = vld [vmem:[%s0 + $0x120] sm:$0xff]
  %v54 = vld [vmem:[%s0 + $0x128] sm:$0xff]
  %v55 = vld [vmem:[%s0 + $0x130] sm:$0xff]
  %v56 = vld [vmem:[%s0 + $0x138] sm:$0xff]
  %v57 = vld [vmem:[%s0 + $0x140] sm:$0xff]
  %v58 = vld [vmem:[%s0 + $0x148] sm:$0xff]
  %v59 = vld [vmem:[%s0 + $0x150] sm:$0xff]
  %v60 = vld [vmem:[%s0 + $0x158] sm:$0xff]
  %v61 = vld [vmem:[%s0 + $0x160] sm:$0xff]
  %v62 = vld [vmem:[%s0 + $0x168] sm:$0xff]
  %v63 = vld [vmem:[%s0 + $0x170] sm:$0xff]
  %v64 = vld [vmem:[%s0 + $0x178] sm:$0xff]
  %v65 = vld [vmem:[%s0 + $0x180] sm:$0xff]
  %v66 = vld [vmem:[%s0 + $0x188] sm:$0xff]
  %v67 = vld [vmem:[%s0 + $0x190] sm:$0xff]
  %v68 = vld [vmem:[%s0 + $0x198] sm:$0xff]
  %v69 = vld [vmem:[%s0 + $0x1a0] sm:$0xff]
  %v70 = vld [vmem:[%s0 + $0x1a8] sm:$0xff]
  %v71 = vld [vmem:[%s0 + $0x1b0] sm:$0xff]
  %v72 = vld [vmem:[%s0 + $0x1b8] sm:$0xff]
  %v73 = vld [vmem:[%s0 + $0x1c0] sm:$0xff]
  %v74 = vld [vmem:[%s0 + $0x1c8] sm:$0xff]
  %v75 = vld [vmem:[%s0 + $0x1d0] sm:$0xff]
  %v76 = vld [vmem:[%s0 + $0x1d8] sm:$0xff]
  %v77 = vld [vmem:[%s0 + $0x1e0] sm:$0xff]
  %v78 = vld [vmem:[%s0 + $0x1e8] sm:$0xff]
  %v79 = vld [vmem:[%s0 + $0x1f0] sm:$0xff]
  %v80 = vld [vmem:[%s0 + $0x1f8] sm:$0xff]
  %v81 = vld [vmem:[%s0 + $0x200] sm:$0xff]
  %v82 = vld [vmem:[%s0 + $0x208] sm:$0xff]
  %v83 = vld [vmem:[%s0 + $0x210] sm:$0xff]
  %v84 = vld [vmem:[%s0 + $0x218] sm:$0xff]
  %v85 = vld [vmem:[%s0 + $0x220] sm:$0xff]
  %v86 = vld [vmem:[%s0 + $0x228] sm:$0xff]
  %v87 = vld [vmem:[%s0 + $0x230] sm:$0xff]
  %v88 = vld [vmem:[%s0 + $0x238] sm:$0xff]
  %v89 = vld [vmem:[%s0 + $0x240] sm:$0xff]
  %v90 = vld [vmem:[%s0 + $0x248] sm:$0xff]
  %v91 = vld [vmem:[%s0 + $0x250] sm:$0xff]
  %v92 = vld [vmem:[%s0 + $0x258] sm:$0xff]
  %v93 = vld [vmem:[%s0 + $0x260] sm:$0xff]
  %v94 = vld [vmem:[%s0 + $0x268] sm:$0xff]
  %v95 = vld [vmem:[%s0 + $0x270] sm:$0xff]
  %v96 = vld [vmem:[%s0 + $0x278] sm:$0xff]
  %v97 = vld [vmem:[%s0 + $0x280] sm:$0xff]
  %v98 = vld [vmem:[%s0 + $0x288] sm:$0xff]
  %v99 = vld [vmem:[%s0 + $0x290] sm:$0xff]
  %v100 = vld [vmem:[%s0 + $0x298] sm:$0xff]
  %v101 = vld [vmem:[%s0 + $0x2a0] sm:$0xff]
  %v102 = vld [vmem:[%s0 + $0x2a8] sm:$0xff]
  %v103 = vld [vmem:[%s0 + $0x2b0] sm:$0xff]
  %v104 = vld [vmem:[%s0 + $0x2b8] sm:$0xff]
  %v105 = vld [vmem:[%s0 + $0x2c0] sm:$0xff]
  %v106 = vld [vmem:[%s0 + $0x2c8] sm:$0xff]
  %v107 = vld [vmem:[%s0 + $0x2d0] sm:$0xff]
  %v108 = vld [vmem:[%s0 + $0x2d8] sm:$0xff]
  %v109 = vld [vmem:[%s0 + $0x2e0] sm:$0xff]
  %v110 = vld [vmem:[%s0 + $0x2e8] sm:$0xff]
  %v111 = vld [vmem:[%s0 + $0x2f0] sm:$0xff]
  %v112 = vld [vmem:[%s0 + $0x2f8] sm:$0xff]
  %v113 = vld [vmem:[%s0 + $0x300] sm:$0xff]
  %v114 = vld [vmem:[%s0 + $0x308] sm:$0xff]
  %v115 = vld [vmem:[%s0 + $0x310] sm:$0xff]
  %v116 = vld [vmem:[%s0 + $0x318] sm:$0xff]
  %v117 = vld [vmem:[%s0 + $0x320] sm:$0xff]
  %v118 = vld [vmem:[%s0 + $0x328] sm:$0xff]
  %v119 = vld [vmem:[%s0 + $0x330] sm:$0xff]
  %v120 = vld [vmem:[%s0 + $0x338] sm:$0xff]
  %v121 = vld [vmem:[%s0 + $0x340] sm:$0xff]
  %v122 = vld [vmem:[%s0 + $0x348] sm:$0xff]
  %v123 = vld [vmem:[%s0 + $0x350] sm:$0xff]
  %v124 = vld [vmem:[%s0 + $0x358] sm:$0xff]
  %v125 = vld [vmem:[%s0 + $0x360] sm:$0xff]
  %v126 = vld [vmem:[%s0 + $0x368] sm:$0xff]
  %v127 = vld [vmem:[%s0 + $0x370] sm:$0xff]
  %v128 = vld [vmem:[%s0 + $0x378] sm:$0xff]
  %v129 = vld [vmem:[%s0 + $0x380] sm:$0xff]
  %v130 = vld [vmem:[%s0 + $0x388] sm:$0xff]
  %v131 = vld [vmem:[%s0 + $0x390] sm:$0xff]
  %v132 = vld [vmem:[%s0 + $0x398] sm:$0xff]
  %v133 = vld [vmem:[%s0 + $0x3a0] sm:$0xff]
  %v134 = vld [vmem:[%s0 + $0x3a8] sm:$0xff]
  %v135 = vld [vmem:[%s0 + $0x3b0] sm:$0xff]
  %v136 = vld [vmem:[%s0 + $0x3b8] sm:$0xff]
  %v137 = vld [vmem:[%s0 + $0x3c0] sm:$0xff]
  %v138 = vld [vmem:[%s0 + $0x3c8] sm:$0xff]
  %v139 = vld [vmem:[%s0 + $0x3d0] sm:$0xff]
  %v140 = vld [vmem:[%s0 + $0x3d8] sm:$0xff]
  %v141 = vld [vmem:[%s0 + $0x3e0] sm:$0xff]
  %v142 = vld [vmem:[%s0 + $0x3e8] sm:$0xff]
  %v143 = vld [vmem:[%s0 + $0x3f0] sm:$0xff]
  %v144 = vld [vmem:[%s0 + $0x3f8] sm:$0xff]
  %v145 = vld [vmem:[%s1] sm:$0xf]
  %v146 = vld [vmem:[%s1 + $0x4] sm:$0xf]
  %v147 = vld [vmem:[%s1 + $0x8] sm:$0xf]
  %v148 = vld [vmem:[%s1 + $0xc] sm:$0xf]
  %v149 = vld [vmem:[%s1 + $0x10] sm:$0xf]
  %v150 = vld [vmem:[%s1 + $0x14] sm:$0xf]
  %v151 = vld [vmem:[%s1 + $0x18] sm:$0xf]
  %v152 = vld [vmem:[%s1 + $0x1c] sm:$0xf]
  %v153 = vld [vmem:[%s1 + $0x20] sm:$0xf]
  %v154 = vld [vmem:[%s1 + $0x24] sm:$0xf]
  %v155 = vld [vmem:[%s1 + $0x28] sm:$0xf]
  %v156 = vld [vmem:[%s1 + $0x2c] sm:$0xf]
  %v157 = vld [vmem:[%s1 + $0x30] sm:$0xf]
  %v158 = vld [vmem:[%s1 + $0x34] sm:$0xf]
  %v159 = vld [vmem:[%s1 + $0x38] sm:$0xf]
  %v160 = vld [vmem:[%s1 + $0x3c] sm:$0xf]
  %v161 = vld [vmem:[%s1 + $0x40] sm:$0xf]
  %v162 = vld [vmem:[%s1 + $0x44] sm:$0xf]
  %v163 = vld [vmem:[%s1 + $0x48] sm:$0xf]
  %v164 = vld [vmem:[%s1 + $0x4c] sm:$0xf]
  %v165 = vld [vmem:[%s1 + $0x50] sm:$0xf]
  %v166 = vld [vmem:[%s1 + $0x54] sm:$0xf]
  %v167 = vld [vmem:[%s1 + $0x58] sm:$0xf]
  %v168 = vld [vmem:[%s1 + $0x5c] sm:$0xf]
  %v169 = vld [vmem:[%s1 + $0x60] sm:$0xf]
  %v170 = vld [vmem:[%s1 + $0x64] sm:$0xf]
  %v171 = vld [vmem:[%s1 + $0x68] sm:$0xf]
  %v172 = vld [vmem:[%s1 + $0x6c] sm:$0xf]
  %v173 = vld [vmem:[%s1 + $0x70] sm:$0xf]
  %v174 = vld [vmem:[%s1 + $0x74] sm:$0xf]
  %v175 = vld [vmem:[%s1 + $0x78] sm:$0xf]
  %v176 = vld [vmem:[%s1 + $0x7c] sm:$0xf]
  %v177 = vld [vmem:[%s1 + $0x80] sm:$0xf]
  %v178 = vld [vmem:[%s1 + $0x84] sm:$0xf]
  %v179 = vld [vmem:[%s1 + $0x88] sm:$0xf]
  %v180 = vld [vmem:[%s1 + $0x8c] sm:$0xf]
  %v181 = vld [vmem:[%s1 + $0x90] sm:$0xf]
  %v182 = vld [vmem:[%s1 + $0x94] sm:$0xf]
  %v183 = vld [vmem:[%s1 + $0x98] sm:$0xf]
  %v184 = vld [vmem:[%s1 + $0x9c] sm:$0xf]
  %v185 = vld [vmem:[%s1 + $0xa0] sm:$0xf]
  %v186 = vld [vmem:[%s1 + $0xa4] sm:$0xf]
  %v187 = vld [vmem:[%s1 + $0xa8] sm:$0xf]
  %v188 = vld [vmem:[%s1 + $0xac] sm:$0xf]
  %v189 = vld [vmem:[%s1 + $0xb0] sm:$0xf]
  %v190 = vld [vmem:[%s1 + $0xb4] sm:$0xf]
  %v191 = vld [vmem:[%s1 + $0xb8] sm:$0xf]
  %v192 = vld [vmem:[%s1 + $0xbc] sm:$0xf]
  %v193 = vld [vmem:[%s1 + $0xc0] sm:$0xf]
  %v194 = vld [vmem:[%s1 + $0xc4] sm:$0xf]
  %v195 = vld [vmem:[%s1 + $0xc8] sm:$0xf]
  %v196 = vld [vmem:[%s1 + $0xcc] sm:$0xf]
  %v197 = vld [vmem:[%s1 + $0xd0] sm:$0xf]
  %v198 = vld [vmem:[%s1 + $0xd4] sm:$0xf]
  %v199 = vld [vmem:[%s1 + $0xd8] sm:$0xf]
  %v200 = vld [vmem:[%s1 + $0xdc] sm:$0xf]
  %v201 = vld [vmem:[%s1 + $0xe0] sm:$0xf]
  %v202 = vld [vmem:[%s1 + $0xe4] sm:$0xf]
  %v203 = vld [vmem:[%s1 + $0xe8] sm:$0xf]
  %v204 = vld [vmem:[%s1 + $0xec] sm:$0xf]
  %v205 = vld [vmem:[%s1 + $0xf0] sm:$0xf]
  %v206 = vld [vmem:[%s1 + $0xf4] sm:$0xf]
  %v207 = vld [vmem:[%s1 + $0xf8] sm:$0xf]
  %v208 = vld [vmem:[%s1 + $0xfc] sm:$0xf]
  %v209 = vld [vmem:[%s1 + $0x100] sm:$0xf]
  %v210 = vld [vmem:[%s1 + $0x104] sm:$0xf]
  %v211 = vld [vmem:[%s1 + $0x108] sm:$0xf]
  %v212 = vld [vmem:[%s1 + $0x10c] sm:$0xf]
  %v213 = vld [vmem:[%s1 + $0x110] sm:$0xf]
  %v214 = vld [vmem:[%s1 + $0x114] sm:$0xf]
  %v215 = vld [vmem:[%s1 + $0x118] sm:$0xf]
  %v216 = vld [vmem:[%s1 + $0x11c] sm:$0xf]
  %v217 = vld [vmem:[%s1 + $0x120] sm:$0xf]
  %v218 = vld [vmem:[%s1 + $0x124] sm:$0xf]
  %v219 = vld [vmem:[%s1 + $0x128] sm:$0xf]
  %v220 = vld [vmem:[%s1 + $0x12c] sm:$0xf]
  %v221 = vld [vmem:[%s1 + $0x130] sm:$0xf]
  %v222 = vld [vmem:[%s1 + $0x134] sm:$0xf]
  %v223 = vld [vmem:[%s1 + $0x138] sm:$0xf]
  %v224 = vld [vmem:[%s1 + $0x13c] sm:$0xf]
  %v225 = vld [vmem:[%s1 + $0x140] sm:$0xf]
  %v226 = vld [vmem:[%s1 + $0x144] sm:$0xf]
  %v227 = vld [vmem:[%s1 + $0x148] sm:$0xf]
  %v228 = vld [vmem:[%s1 + $0x14c] sm:$0xf]
  %v229 = vld [vmem:[%s1 + $0x150] sm:$0xf]
  %v230 = vld [vmem:[%s1 + $0x154] sm:$0xf]
  %v231 = vld [vmem:[%s1 + $0x158] sm:$0xf]
  %v232 = vld [vmem:[%s1 + $0x15c] sm:$0xf]
  %v233 = vld [vmem:[%s1 + $0x160] sm:$0xf]
  %v234 = vld [vmem:[%s1 + $0x164] sm:$0xf]
  %v235 = vld [vmem:[%s1 + $0x168] sm:$0xf]
  %v236 = vld [vmem:[%s1 + $0x16c] sm:$0xf]
  %v237 = vld [vmem:[%s1 + $0x170] sm:$0xf]
  %v238 = vld [vmem:[%s1 + $0x174] sm:$0xf]
  %v239 = vld [vmem:[%s1 + $0x178] sm:$0xf]
  %v240 = vld [vmem:[%s1 + $0x17c] sm:$0xf]
  %v241 = vld [vmem:[%s1 + $0x180] sm:$0xf]
  %v242 = vld [vmem:[%s1 + $0x184] sm:$0xf]
  %v243 = vld [vmem:[%s1 + $0x188] sm:$0xf]
  %v244 = vld [vmem:[%s1 + $0x18c] sm:$0xf]
  %v245 = vld [vmem:[%s1 + $0x190] sm:$0xf]
  %v246 = vld [vmem:[%s1 + $0x194] sm:$0xf]
  %v247 = vld [vmem:[%s1 + $0x198] sm:$0xf]
  %v248 = vld [vmem:[%s1 + $0x19c] sm:$0xf]
  %v249 = vld [vmem:[%s1 + $0x1a0] sm:$0xf]
  %v250 = vld [vmem:[%s1 + $0x1a4] sm:$0xf]
  %v251 = vld [vmem:[%s1 + $0x1a8] sm:$0xf]
  %v252 = vld [vmem:[%s1 + $0x1ac] sm:$0xf]
  %v253 = vld [vmem:[%s1 + $0x1b0] sm:$0xf]
  %v254 = vld [vmem:[%s1 + $0x1b4] sm:$0xf]
  %v255 = vld [vmem:[%s1 + $0x1b8] sm:$0xf]
  %v256 = vld [vmem:[%s1 + $0x1bc] sm:$0xf]
  %v257 = vld [vmem:[%s1 + $0x1c0] sm:$0xf]
  %v258 = vld [vmem:[%s1 + $0x1c4] sm:$0xf]
  %v259 = vld [vmem:[%s1 + $0x1c8] sm:$0xf]
  %v260 = vld [vmem:[%s1 + $0x1cc] sm:$0xf]
  %v261 = vld [vmem:[%s1 + $0x1d0] sm:$0xf]
  %v262 = vld [vmem:[%s1 + $0x1d4] sm:$0xf]
  %v263 = vld [vmem:[%s1 + $0x1d8] sm:$0xf]
  %v264 = vld [vmem:[%s1 + $0x1dc] sm:$0xf]
  %v265 = vld [vmem:[%s1 + $0x1e0] sm:$0xf]
  %v266 = vld [vmem:[%s1 + $0x1e4] sm:$0xf]
  %v267 = vld [vmem:[%s1 + $0x1e8] sm:$0xf]
  %v268 = vld [vmem:[%s1 + $0x1ec] sm:$0xf]
  %v269 = vld [vmem:[%s1 + $0x1f0] sm:$0xf]
  %v270 = vld [vmem:[%s1 + $0x1f4] sm:$0xf]
  %v271 = vld [vmem:[%s1 + $0x1f8] sm:$0xf]
  %v272 = vld [vmem:[%s1 + $0x1fc] sm:$0xf]
  %v273 = vld [vmem:[%s1 + $0x200] sm:$0xf]
  %v274 = vld [vmem:[%s1 + $0x204] sm:$0xf]
  %v275 = vld [vmem:[%s1 + $0x208] sm:$0xf]
  %v276 = vld [vmem:[%s1 + $0x20c] sm:$0xf]
  %v277 = vld [vmem:[%s1 + $0x210] sm:$0xf]
  %v278 = vld [vmem:[%s1 + $0x214] sm:$0xf]
  %v279 = vld [vmem:[%s1 + $0x218] sm:$0xf]
  %v280 = vld [vmem:[%s1 + $0x21c] sm:$0xf]
  %v281 = vld [vmem:[%s1 + $0x220] sm:$0xf]
  %v282 = vld [vmem:[%s1 + $0x224] sm:$0xf]
  %v283 = vld [vmem:[%s1 + $0x228] sm:$0xf]
  %v284 = vld [vmem:[%s1 + $0x22c] sm:$0xf]
  %v285 = vld [vmem:[%s1 + $0x230] sm:$0xf]
  %v286 = vld [vmem:[%s1 + $0x234] sm:$0xf]
  %v287 = vld [vmem:[%s1 + $0x238] sm:$0xf]
  %v288 = vld [vmem:[%s1 + $0x23c] sm:$0xf]
  %v289 = vld [vmem:[%s1 + $0x240] sm:$0xf]
  %v290 = vld [vmem:[%s1 + $0x244] sm:$0xf]
  %v291 = vld [vmem:[%s1 + $0x248] sm:$0xf]
  %v292 = vld [vmem:[%s1 + $0x24c] sm:$0xf]
  %v293 = vld [vmem:[%s1 + $0x250] sm:$0xf]
  %v294 = vld [vmem:[%s1 + $0x254] sm:$0xf]
  %v295 = vld [vmem:[%s1 + $0x258] sm:$0xf]
  %v296 = vld [vmem:[%s1 + $0x25c] sm:$0xf]
  %v297 = vld [vmem:[%s1 + $0x260] sm:$0xf]
  %v298 = vld [vmem:[%s1 + $0x264] sm:$0xf]
  %v299 = vld [vmem:[%s1 + $0x268] sm:$0xf]
  %v300 = vld [vmem:[%s1 + $0x26c] sm:$0xf]
  %v301 = vld [vmem:[%s1 + $0x270] sm:$0xf]
  %v302 = vld [vmem:[%s1 + $0x274] sm:$0xf]
  %v303 = vld [vmem:[%s1 + $0x278] sm:$0xf]
  %v304 = vld [vmem:[%s1 + $0x27c] sm:$0xf]
  %v305 = vld [vmem:[%s1 + $0x280] sm:$0xf]
  %v306 = vld [vmem:[%s1 + $0x284] sm:$0xf]
  %v307 = vld [vmem:[%s1 + $0x288] sm:$0xf]
  %v308 = vld [vmem:[%s1 + $0x28c] sm:$0xf]
  %v309 = vld [vmem:[%s1 + $0x290] sm:$0xf]
  %v310 = vld [vmem:[%s1 + $0x294] sm:$0xf]
  %v311 = vld [vmem:[%s1 + $0x298] sm:$0xf]
  %v312 = vld [vmem:[%s1 + $0x29c] sm:$0xf]
  %v313 = vld [vmem:[%s1 + $0x2a0] sm:$0xf]
  %v314 = vld [vmem:[%s1 + $0x2a4] sm:$0xf]
  %v315 = vld [vmem:[%s1 + $0x2a8] sm:$0xf]
  %v316 = vld [vmem:[%s1 + $0x2ac] sm:$0xf]
  %v317 = vld [vmem:[%s1 + $0x2b0] sm:$0xf]
  %v318 = vld [vmem:[%s1 + $0x2b4] sm:$0xf]
  %v319 = vld [vmem:[%s1 + $0x2b8] sm:$0xf]
  %v320 = vld [vmem:[%s1 + $0x2bc] sm:$0xf]
  %v321 = vld [vmem:[%s1 + $0x2c0] sm:$0xf]
  %v322 = vld [vmem:[%s1 + $0x2c4] sm:$0xf]
  %v323 = vld [vmem:[%s1 + $0x2c8] sm:$0xf]
  %v324 = vld [vmem:[%s1 + $0x2cc] sm:$0xf]
  %v325 = vld [vmem:[%s1 + $0x2d0] sm:$0xf]
  %v326 = vld [vmem:[%s1 + $0x2d4] sm:$0xf]
  %v327 = vld [vmem:[%s1 + $0x2d8] sm:$0xf]
  %v328 = vld [vmem:[%s1 + $0x2dc] sm:$0xf]
  %v329 = vld [vmem:[%s1 + $0x2e0] sm:$0xf]
  %v330 = vld [vmem:[%s1 + $0x2e4] sm:$0xf]
  %v331 = vld [vmem:[%s1 + $0x2e8] sm:$0xf]
  %v332 = vld [vmem:[%s1 + $0x2ec] sm:$0xf]
  %v333 = vld [vmem:[%s1 + $0x2f0] sm:$0xf]
  %v334 = vld [vmem:[%s1 + $0x2f4] sm:$0xf]
  %v335 = vld [vmem:[%s1 + $0x2f8] sm:$0xf]
  %v336 = vld [vmem:[%s1 + $0x2fc] sm:$0xf]
  %v337 = vld [vmem:[%s1 + $0x300] sm:$0xf]
  %v338 = vld [vmem:[%s1 + $0x304] sm:$0xf]
  %v339 = vld [vmem:[%s1 + $0x308] sm:$0xf]
  %v340 = vld [vmem:[%s1 + $0x30c] sm:$0xf]
  %v341 = vld [vmem:[%s1 + $0x310] sm:$0xf]
  %v342 = vld [vmem:[%s1 + $0x314] sm:$0xf]
  %v343 = vld [vmem:[%s1 + $0x318] sm:$0xf]
  %v344 = vld [vmem:[%s1 + $0x31c] sm:$0xf]
  %v345 = vld [vmem:[%s1 + $0x320] sm:$0xf]
  %v346 = vld [vmem:[%s1 + $0x324] sm:$0xf]
  %v347 = vld [vmem:[%s1 + $0x328] sm:$0xf]
  %v348 = vld [vmem:[%s1 + $0x32c] sm:$0xf]
  %v349 = vld [vmem:[%s1 + $0x330] sm:$0xf]
  %v350 = vld [vmem:[%s1 + $0x334] sm:$0xf]
  %v351 = vld [vmem:[%s1 + $0x338] sm:$0xf]
  %v352 = vld [vmem:[%s1 + $0x33c] sm:$0xf]
  %v353 = vld [vmem:[%s1 + $0x340] sm:$0xf]
  %v354 = vld [vmem:[%s1 + $0x344] sm:$0xf]
  %v355 = vld [vmem:[%s1 + $0x348] sm:$0xf]
  %v356 = vld [vmem:[%s1 + $0x34c] sm:$0xf]
  %v357 = vld [vmem:[%s1 + $0x350] sm:$0xf]
  %v358 = vld [vmem:[%s1 + $0x354] sm:$0xf]
  %v359 = vld [vmem:[%s1 + $0x358] sm:$0xf]
  %v360 = vld [vmem:[%s1 + $0x35c] sm:$0xf]
  %v361 = vld [vmem:[%s1 + $0x360] sm:$0xf]
  %v362 = vld [vmem:[%s1 + $0x364] sm:$0xf]
  %v363 = vld [vmem:[%s1 + $0x368] sm:$0xf]
  %v364 = vld [vmem:[%s1 + $0x36c] sm:$0xf]
  %v365 = vld [vmem:[%s1 + $0x370] sm:$0xf]
  %v366 = vld [vmem:[%s1 + $0x374] sm:$0xf]
  %v367 = vld [vmem:[%s1 + $0x378] sm:$0xf]
  %v368 = vld [vmem:[%s1 + $0x37c] sm:$0xf]
  %v369 = vld [vmem:[%s1 + $0x380] sm:$0xf]
  %v370 = vld [vmem:[%s1 + $0x384] sm:$0xf]
  %v371 = vld [vmem:[%s1 + $0x388] sm:$0xf]
  %v372 = vld [vmem:[%s1 + $0x38c] sm:$0xf]
  %v373 = vld [vmem:[%s1 + $0x390] sm:$0xf]
  %v374 = vld [vmem:[%s1 + $0x394] sm:$0xf]
  %v375 = vld [vmem:[%s1 + $0x398] sm:$0xf]
  %v376 = vld [vmem:[%s1 + $0x39c] sm:$0xf]
  %v377 = vld [vmem:[%s1 + $0x3a0] sm:$0xf]
  %v378 = vld [vmem:[%s1 + $0x3a4] sm:$0xf]
  %v379 = vld [vmem:[%s1 + $0x3a8] sm:$0xf]
  %v380 = vld [vmem:[%s1 + $0x3ac] sm:$0xf]
  %v381 = vld [vmem:[%s1 + $0x3b0] sm:$0xf]
  %v382 = vld [vmem:[%s1 + $0x3b4] sm:$0xf]
  %v383 = vld [vmem:[%s1 + $0x3b8] sm:$0xf]
  %v384 = vld [vmem:[%s1 + $0x3bc] sm:$0xf]
  %v385 = vld [vmem:[%s1 + $0x3c0] sm:$0xf]
  %v386 = vld [vmem:[%s1 + $0x3c4] sm:$0xf]
  %v387 = vld [vmem:[%s1 + $0x3c8] sm:$0xf]
  %v388 = vld [vmem:[%s1 + $0x3cc] sm:$0xf]
  %v389 = vld [vmem:[%s1 + $0x3d0] sm:$0xf]
  %v390 = vld [vmem:[%s1 + $0x3d4] sm:$0xf]
  %v391 = vld [vmem:[%s1 + $0x3d8] sm:$0xf]
  %v392 = vld [vmem:[%s1 + $0x3dc] sm:$0xf]
  %v393 = vld [vmem:[%s1 + $0x3e0] sm:$0xf]
  %v394 = vld [vmem:[%s1 + $0x3e4] sm:$0xf]
  %v395 = vld [vmem:[%s1 + $0x3e8] sm:$0xf]
  %v396 = vld [vmem:[%s1 + $0x3ec] sm:$0xf]
  %v397 = vld [vmem:[%s1 + $0x3f0] sm:$0xf]
  %v398 = vld [vmem:[%s1 + $0x3f4] sm:$0xf]
  %v399 = vld [vmem:[%s1 + $0x3f8] sm:$0xf]
  %v400 = vld [vmem:[%s1 + $0x3fc] sm:$0xf]
  %v401 = vld [vmem:[%s2] sm:$0x1]
  %v403 = vlaneseq
  %v404 = vshrl.u32 %v403, 7
  %v405 = vsub.s32 0, %v404
  %v406 = vrot.slane %v401, %v405
  %v536 = vunpack.c.l.b16 %v17
  %v537 = vunpack.c.h.b16 %v17
  %v538 = vunpack.c.l.b16 %v18
  %v539 = vunpack.c.h.b16 %v18
  %v540 = vunpack.c.l.b16 %v19
  %v541 = vunpack.c.h.b16 %v19
  %v542 = vunpack.c.l.b16 %v20
  %v543 = vunpack.c.h.b16 %v20
  %v544 = vunpack.c.l.b16 %v21
  %v545 = vunpack.c.h.b16 %v21
  %v546 = vunpack.c.l.b16 %v22
  %v547 = vunpack.c.h.b16 %v22
  %v548 = vunpack.c.l.b16 %v23
  %v549 = vunpack.c.h.b16 %v23
  %v550 = vunpack.c.l.b16 %v24
  %v551 = vunpack.c.h.b16 %v24
  %v552 = vunpack.c.l.b16 %v25
  %v553 = vunpack.c.h.b16 %v25
  %v554 = vunpack.c.l.b16 %v26
  %v555 = vunpack.c.h.b16 %v26
  %v556 = vunpack.c.l.b16 %v27
  %v557 = vunpack.c.h.b16 %v27
  %v558 = vunpack.c.l.b16 %v28
  %v559 = vunpack.c.h.b16 %v28
  %v560 = vunpack.c.l.b16 %v29
  %v561 = vunpack.c.h.b16 %v29
  %v562 = vunpack.c.l.b16 %v30
  %v563 = vunpack.c.h.b16 %v30
  %v564 = vunpack.c.l.b16 %v31
  %v565 = vunpack.c.h.b16 %v31
  %v566 = vunpack.c.l.b16 %v32
  %v567 = vunpack.c.h.b16 %v32
  %v568 = vunpack.c.l.b16 %v33
  %v569 = vunpack.c.h.b16 %v33
  %v570 = vunpack.c.l.b16 %v34
  %v571 = vunpack.c.h.b16 %v34
  %v572 = vunpack.c.l.b16 %v35
  %v573 = vunpack.c.h.b16 %v35
  %v574 = vunpack.c.l.b16 %v36
  %v575 = vunpack.c.h.b16 %v36
  %v576 = vunpack.c.l.b16 %v37
  %v577 = vunpack.c.h.b16 %v37
  %v578 = vunpack.c.l.b16 %v38
  %v579 = vunpack.c.h.b16 %v38
  %v580 = vunpack.c.l.b16 %v39
  %v581 = vunpack.c.h.b16 %v39
  %v582 = vunpack.c.l.b16 %v40
  %v583 = vunpack.c.h.b16 %v40
  %v584 = vunpack.c.l.b16 %v41
  %v585 = vunpack.c.h.b16 %v41
  %v586 = vunpack.c.l.b16 %v42
  %v587 = vunpack.c.h.b16 %v42
  %v588 = vunpack.c.l.b16 %v43
  %v589 = vunpack.c.h.b16 %v43
  %v590 = vunpack.c.l.b16 %v44
  %v591 = vunpack.c.h.b16 %v44
  %v592 = vunpack.c.l.b16 %v45
  %v593 = vunpack.c.h.b16 %v45
  %v594 = vunpack.c.l.b16 %v46
  %v595 = vunpack.c.h.b16 %v46
  %v596 = vunpack.c.l.b16 %v47
  %v597 = vunpack.c.h.b16 %v47
  %v598 = vunpack.c.l.b16 %v48
  %v599 = vunpack.c.h.b16 %v48
  %v600 = vunpack.c.l.b16 %v49
  %v601 = vunpack.c.h.b16 %v49
  %v602 = vunpack.c.l.b16 %v50
  %v603 = vunpack.c.h.b16 %v50
  %v604 = vunpack.c.l.b16 %v51
  %v605 = vunpack.c.h.b16 %v51
  %v606 = vunpack.c.l.b16 %v52
  %v607 = vunpack.c.h.b16 %v52
  %v608 = vunpack.c.l.b16 %v53
  %v609 = vunpack.c.h.b16 %v53
  %v610 = vunpack.c.l.b16 %v54
  %v611 = vunpack.c.h.b16 %v54
  %v612 = vunpack.c.l.b16 %v55
  %v613 = vunpack.c.h.b16 %v55
  %v614 = vunpack.c.l.b16 %v56
  %v615 = vunpack.c.h.b16 %v56
  %v616 = vunpack.c.l.b16 %v57
  %v617 = vunpack.c.h.b16 %v57
  %v618 = vunpack.c.l.b16 %v58
  %v619 = vunpack.c.h.b16 %v58
  %v620 = vunpack.c.l.b16 %v59
  %v621 = vunpack.c.h.b16 %v59
  %v622 = vunpack.c.l.b16 %v60
  %v623 = vunpack.c.h.b16 %v60
  %v624 = vunpack.c.l.b16 %v61
  %v625 = vunpack.c.h.b16 %v61
  %v626 = vunpack.c.l.b16 %v62
  %v627 = vunpack.c.h.b16 %v62
  %v628 = vunpack.c.l.b16 %v63
  %v629 = vunpack.c.h.b16 %v63
  %v630 = vunpack.c.l.b16 %v64
  %v631 = vunpack.c.h.b16 %v64
  %v632 = vunpack.c.l.b16 %v65
  %v633 = vunpack.c.h.b16 %v65
  %v634 = vunpack.c.l.b16 %v66
  %v635 = vunpack.c.h.b16 %v66
  %v636 = vunpack.c.l.b16 %v67
  %v637 = vunpack.c.h.b16 %v67
  %v638 = vunpack.c.l.b16 %v68
  %v639 = vunpack.c.h.b16 %v68
  %v640 = vunpack.c.l.b16 %v69
  %v641 = vunpack.c.h.b16 %v69
  %v642 = vunpack.c.l.b16 %v70
  %v643 = vunpack.c.h.b16 %v70
  %v644 = vunpack.c.l.b16 %v71
  %v645 = vunpack.c.h.b16 %v71
  %v646 = vunpack.c.l.b16 %v72
  %v647 = vunpack.c.h.b16 %v72
  %v648 = vunpack.c.l.b16 %v73
  %v649 = vunpack.c.h.b16 %v73
  %v650 = vunpack.c.l.b16 %v74
  %v651 = vunpack.c.h.b16 %v74
  %v652 = vunpack.c.l.b16 %v75
  %v653 = vunpack.c.h.b16 %v75
  %v654 = vunpack.c.l.b16 %v76
  %v655 = vunpack.c.h.b16 %v76
  %v656 = vunpack.c.l.b16 %v77
  %v657 = vunpack.c.h.b16 %v77
  %v658 = vunpack.c.l.b16 %v78
  %v659 = vunpack.c.h.b16 %v78
  %v660 = vunpack.c.l.b16 %v79
  %v661 = vunpack.c.h.b16 %v79
  %v662 = vunpack.c.l.b16 %v80
  %v663 = vunpack.c.h.b16 %v80
  %v664 = vunpack.c.l.b16 %v81
  %v665 = vunpack.c.h.b16 %v81
  %v666 = vunpack.c.l.b16 %v82
  %v667 = vunpack.c.h.b16 %v82
  %v668 = vunpack.c.l.b16 %v83
  %v669 = vunpack.c.h.b16 %v83
  %v670 = vunpack.c.l.b16 %v84
  %v671 = vunpack.c.h.b16 %v84
  %v672 = vunpack.c.l.b16 %v85
  %v673 = vunpack.c.h.b16 %v85
  %v674 = vunpack.c.l.b16 %v86
  %v675 = vunpack.c.h.b16 %v86
  %v676 = vunpack.c.l.b16 %v87
  %v677 = vunpack.c.h.b16 %v87
  %v678 = vunpack.c.l.b16 %v88
  %v679 = vunpack.c.h.b16 %v88
  %v680 = vunpack.c.l.b16 %v89
  %v681 = vunpack.c.h.b16 %v89
  %v682 = vunpack.c.l.b16 %v90
  %v683 = vunpack.c.h.b16 %v90
  %v684 = vunpack.c.l.b16 %v91
  %v685 = vunpack.c.h.b16 %v91
  %v686 = vunpack.c.l.b16 %v92
  %v687 = vunpack.c.h.b16 %v92
  %v688 = vunpack.c.l.b16 %v93
  %v689 = vunpack.c.h.b16 %v93
  %v690 = vunpack.c.l.b16 %v94
  %v691 = vunpack.c.h.b16 %v94
  %v692 = vunpack.c.l.b16 %v95
  %v693 = vunpack.c.h.b16 %v95
  %v694 = vunpack.c.l.b16 %v96
  %v695 = vunpack.c.h.b16 %v96
  %v696 = vunpack.c.l.b16 %v97
  %v697 = vunpack.c.h.b16 %v97
  %v698 = vunpack.c.l.b16 %v98
  %v699 = vunpack.c.h.b16 %v98
  %v700 = vunpack.c.l.b16 %v99
  %v701 = vunpack.c.h.b16 %v99
  %v702 = vunpack.c.l.b16 %v100
  %v703 = vunpack.c.h.b16 %v100
  %v704 = vunpack.c.l.b16 %v101
  %v705 = vunpack.c.h.b16 %v101
  %v706 = vunpack.c.l.b16 %v102
  %v707 = vunpack.c.h.b16 %v102
  %v708 = vunpack.c.l.b16 %v103
  %v709 = vunpack.c.h.b16 %v103
  %v710 = vunpack.c.l.b16 %v104
  %v711 = vunpack.c.h.b16 %v104
  %v712 = vunpack.c.l.b16 %v105
  %v713 = vunpack.c.h.b16 %v105
  %v714 = vunpack.c.l.b16 %v106
  %v715 = vunpack.c.h.b16 %v106
  %v716 = vunpack.c.l.b16 %v107
  %v717 = vunpack.c.h.b16 %v107
  %v718 = vunpack.c.l.b16 %v108
  %v719 = vunpack.c.h.b16 %v108
  %v720 = vunpack.c.l.b16 %v109
  %v721 = vunpack.c.h.b16 %v109
  %v722 = vunpack.c.l.b16 %v110
  %v723 = vunpack.c.h.b16 %v110
  %v724 = vunpack.c.l.b16 %v111
  %v725 = vunpack.c.h.b16 %v111
  %v726 = vunpack.c.l.b16 %v112
  %v727 = vunpack.c.h.b16 %v112
  %v728 = vunpack.c.l.b16 %v113
  %v729 = vunpack.c.h.b16 %v113
  %v730 = vunpack.c.l.b16 %v114
  %v731 = vunpack.c.h.b16 %v114
  %v732 = vunpack.c.l.b16 %v115
  %v733 = vunpack.c.h.b16 %v115
  %v734 = vunpack.c.l.b16 %v116
  %v735 = vunpack.c.h.b16 %v116
  %v736 = vunpack.c.l.b16 %v117
  %v737 = vunpack.c.h.b16 %v117
  %v738 = vunpack.c.l.b16 %v118
  %v739 = vunpack.c.h.b16 %v118
  %v740 = vunpack.c.l.b16 %v119
  %v741 = vunpack.c.h.b16 %v119
  %v742 = vunpack.c.l.b16 %v120
  %v743 = vunpack.c.h.b16 %v120
  %v744 = vunpack.c.l.b16 %v121
  %v745 = vunpack.c.h.b16 %v121
  %v746 = vunpack.c.l.b16 %v122
  %v747 = vunpack.c.h.b16 %v122
  %v748 = vunpack.c.l.b16 %v123
  %v749 = vunpack.c.h.b16 %v123
  %v750 = vunpack.c.l.b16 %v124
  %v751 = vunpack.c.h.b16 %v124
  %v752 = vunpack.c.l.b16 %v125
  %v753 = vunpack.c.h.b16 %v125
  %v754 = vunpack.c.l.b16 %v126
  %v755 = vunpack.c.h.b16 %v126
  %v756 = vunpack.c.l.b16 %v127
  %v757 = vunpack.c.h.b16 %v127
  %v758 = vunpack.c.l.b16 %v128
  %v759 = vunpack.c.h.b16 %v128
  %v760 = vunpack.c.l.b16 %v129
  %v761 = vunpack.c.h.b16 %v129
  %v762 = vunpack.c.l.b16 %v130
  %v763 = vunpack.c.h.b16 %v130
  %v764 = vunpack.c.l.b16 %v131
  %v765 = vunpack.c.h.b16 %v131
  %v766 = vunpack.c.l.b16 %v132
  %v767 = vunpack.c.h.b16 %v132
  %v768 = vunpack.c.l.b16 %v133
  %v769 = vunpack.c.h.b16 %v133
  %v770 = vunpack.c.l.b16 %v134
  %v771 = vunpack.c.h.b16 %v134
  %v772 = vunpack.c.l.b16 %v135
  %v773 = vunpack.c.h.b16 %v135
  %v774 = vunpack.c.l.b16 %v136
  %v775 = vunpack.c.h.b16 %v136
  %v776 = vunpack.c.l.b16 %v137
  %v777 = vunpack.c.h.b16 %v137
  %v778 = vunpack.c.l.b16 %v138
  %v779 = vunpack.c.h.b16 %v138
  %v780 = vunpack.c.l.b16 %v139
  %v781 = vunpack.c.h.b16 %v139
  %v782 = vunpack.c.l.b16 %v140
  %v783 = vunpack.c.h.b16 %v140
  %v784 = vunpack.c.l.b16 %v141
  %v785 = vunpack.c.h.b16 %v141
  %v786 = vunpack.c.l.b16 %v142
  %v787 = vunpack.c.h.b16 %v142
  %v788 = vunpack.c.l.b16 %v143
  %v789 = vunpack.c.h.b16 %v143
  %v790 = vunpack.c.l.b16 %v144
  %v791 = vunpack.c.h.b16 %v144
  %v792 = vpack.c.b16 %v552, %v536
  %v793 = vpack.c.b16 %v553, %v537
  %v794 = vpack.c.b16 %v554, %v538
  %v795 = vpack.c.b16 %v555, %v539
  %v796 = vpack.c.b16 %v556, %v540
  %v797 = vpack.c.b16 %v557, %v541
  %v798 = vpack.c.b16 %v558, %v542
  %v799 = vpack.c.b16 %v559, %v543
  %v800 = vpack.c.b16 %v560, %v544
  %v801 = vpack.c.b16 %v561, %v545
  %v802 = vpack.c.b16 %v562, %v546
  %v803 = vpack.c.b16 %v563, %v547
  %v804 = vpack.c.b16 %v564, %v548
  %v805 = vpack.c.b16 %v565, %v549
  %v806 = vpack.c.b16 %v566, %v550
  %v807 = vpack.c.b16 %v567, %v551
  %v808 = vpack.c.b16 %v584, %v568
  %v809 = vpack.c.b16 %v585, %v569
  %v810 = vpack.c.b16 %v586, %v570
  %v811 = vpack.c.b16 %v587, %v571
  %v812 = vpack.c.b16 %v588, %v572
  %v813 = vpack.c.b16 %v589, %v573
  %v814 = vpack.c.b16 %v590, %v574
  %v815 = vpack.c.b16 %v591, %v575
  %v816 = vpack.c.b16 %v592, %v576
  %v817 = vpack.c.b16 %v593, %v577
  %v818 = vpack.c.b16 %v594, %v578
  %v819 = vpack.c.b16 %v595, %v579
  %v820 = vpack.c.b16 %v596, %v580
  %v821 = vpack.c.b16 %v597, %v581
  %v822 = vpack.c.b16 %v598, %v582
  %v823 = vpack.c.b16 %v599, %v583
  %v824 = vpack.c.b16 %v616, %v600
  %v825 = vpack.c.b16 %v617, %v601
  %v826 = vpack.c.b16 %v618, %v602
  %v827 = vpack.c.b16 %v619, %v603
  %v828 = vpack.c.b16 %v620, %v604
  %v829 = vpack.c.b16 %v621, %v605
  %v830 = vpack.c.b16 %v622, %v606
  %v831 = vpack.c.b16 %v623, %v607
  %v832 = vpack.c.b16 %v624, %v608
  %v833 = vpack.c.b16 %v625, %v609
  %v834 = vpack.c.b16 %v626, %v610
  %v835 = vpack.c.b16 %v627, %v611
  %v836 = vpack.c.b16 %v628, %v612
  %v837 = vpack.c.b16 %v629, %v613
  %v838 = vpack.c.b16 %v630, %v614
  %v839 = vpack.c.b16 %v631, %v615
  %v840 = vpack.c.b16 %v648, %v632
  %v841 = vpack.c.b16 %v649, %v633
  %v842 = vpack.c.b16 %v650, %v634
  %v843 = vpack.c.b16 %v651, %v635
  %v844 = vpack.c.b16 %v652, %v636
  %v845 = vpack.c.b16 %v653, %v637
  %v846 = vpack.c.b16 %v654, %v638
  %v847 = vpack.c.b16 %v655, %v639
  %v848 = vpack.c.b16 %v656, %v640
  %v849 = vpack.c.b16 %v657, %v641
  %v850 = vpack.c.b16 %v658, %v642
  %v851 = vpack.c.b16 %v659, %v643
  %v852 = vpack.c.b16 %v660, %v644
  %v853 = vpack.c.b16 %v661, %v645
  %v854 = vpack.c.b16 %v662, %v646
  %v855 = vpack.c.b16 %v663, %v647
  %v856 = vpack.c.b16 %v680, %v664
  %v857 = vpack.c.b16 %v681, %v665
  %v858 = vpack.c.b16 %v682, %v666
  %v859 = vpack.c.b16 %v683, %v667
  %v860 = vpack.c.b16 %v684, %v668
  %v861 = vpack.c.b16 %v685, %v669
  %v862 = vpack.c.b16 %v686, %v670
  %v863 = vpack.c.b16 %v687, %v671
  %v864 = vpack.c.b16 %v688, %v672
  %v865 = vpack.c.b16 %v689, %v673
  %v866 = vpack.c.b16 %v690, %v674
  %v867 = vpack.c.b16 %v691, %v675
  %v868 = vpack.c.b16 %v692, %v676
  %v869 = vpack.c.b16 %v693, %v677
  %v870 = vpack.c.b16 %v694, %v678
  %v871 = vpack.c.b16 %v695, %v679
  %v872 = vpack.c.b16 %v712, %v696
  %v873 = vpack.c.b16 %v713, %v697
  %v874 = vpack.c.b16 %v714, %v698
  %v875 = vpack.c.b16 %v715, %v699
  %v876 = vpack.c.b16 %v716, %v700
  %v877 = vpack.c.b16 %v717, %v701
  %v878 = vpack.c.b16 %v718, %v702
  %v879 = vpack.c.b16 %v719, %v703
  %v880 = vpack.c.b16 %v720, %v704
  %v881 = vpack.c.b16 %v721, %v705
  %v882 = vpack.c.b16 %v722, %v706
  %v883 = vpack.c.b16 %v723, %v707
  %v884 = vpack.c.b16 %v724, %v708
  %v885 = vpack.c.b16 %v725, %v709
  %v886 = vpack.c.b16 %v726, %v710
  %v887 = vpack.c.b16 %v727, %v711
  %v888 = vpack.c.b16 %v744, %v728
  %v889 = vpack.c.b16 %v745, %v729
  %v890 = vpack.c.b16 %v746, %v730
  %v891 = vpack.c.b16 %v747, %v731
  %v892 = vpack.c.b16 %v748, %v732
  %v893 = vpack.c.b16 %v749, %v733
  %v894 = vpack.c.b16 %v750, %v734
  %v895 = vpack.c.b16 %v751, %v735
  %v896 = vpack.c.b16 %v752, %v736
  %v897 = vpack.c.b16 %v753, %v737
  %v898 = vpack.c.b16 %v754, %v738
  %v899 = vpack.c.b16 %v755, %v739
  %v900 = vpack.c.b16 %v756, %v740
  %v901 = vpack.c.b16 %v757, %v741
  %v902 = vpack.c.b16 %v758, %v742
  %v903 = vpack.c.b16 %v759, %v743
  %v904 = vpack.c.b16 %v776, %v760
  %v905 = vpack.c.b16 %v777, %v761
  %v906 = vpack.c.b16 %v778, %v762
  %v907 = vpack.c.b16 %v779, %v763
  %v908 = vpack.c.b16 %v780, %v764
  %v909 = vpack.c.b16 %v781, %v765
  %v910 = vpack.c.b16 %v782, %v766
  %v911 = vpack.c.b16 %v783, %v767
  %v912 = vpack.c.b16 %v784, %v768
  %v913 = vpack.c.b16 %v785, %v769
  %v914 = vpack.c.b16 %v786, %v770
  %v915 = vpack.c.b16 %v787, %v771
  %v916 = vpack.c.b16 %v788, %v772
  %v917 = vpack.c.b16 %v789, %v773
  %v918 = vpack.c.b16 %v790, %v774
  %v919 = vpack.c.b16 %v791, %v775
  %v1304 = vunpack.c.l.b16 %v145
  %v1305 = vunpack.c.l.b16 %v146
  %v1306 = vunpack.c.l.b16 %v147
  %v1307 = vunpack.c.l.b16 %v148
  %v1308 = vunpack.c.l.b16 %v149
  %v1309 = vunpack.c.l.b16 %v150
  %v1310 = vunpack.c.l.b16 %v151
  %v1311 = vunpack.c.l.b16 %v152
  %v1312 = vunpack.c.l.b16 %v153
  %v1313 = vunpack.c.l.b16 %v154
  %v1314 = vunpack.c.l.b16 %v155
  %v1315 = vunpack.c.l.b16 %v156
  %v1316 = vunpack.c.l.b16 %v157
  %v1317 = vunpack.c.l.b16 %v158
  %v1318 = vunpack.c.l.b16 %v159
  %v1319 = vunpack.c.l.b16 %v160
  %v1320 = vunpack.c.l.b16 %v161
  %v1321 = vunpack.c.l.b16 %v162
  %v1322 = vunpack.c.l.b16 %v163
  %v1323 = vunpack.c.l.b16 %v164
  %v1324 = vunpack.c.l.b16 %v165
  %v1325 = vunpack.c.l.b16 %v166
  %v1326 = vunpack.c.l.b16 %v167
  %v1327 = vunpack.c.l.b16 %v168
  %v1328 = vunpack.c.l.b16 %v169
  %v1329 = vunpack.c.l.b16 %v170
  %v1330 = vunpack.c.l.b16 %v171
  %v1331 = vunpack.c.l.b16 %v172
  %v1332 = vunpack.c.l.b16 %v173
  %v1333 = vunpack.c.l.b16 %v174
  %v1334 = vunpack.c.l.b16 %v175
  %v1335 = vunpack.c.l.b16 %v176
  %v1336 = vunpack.c.l.b16 %v177
  %v1337 = vunpack.c.l.b16 %v178
  %v1338 = vunpack.c.l.b16 %v179
  %v1339 = vunpack.c.l.b16 %v180
  %v1340 = vunpack.c.l.b16 %v181
  %v1341 = vunpack.c.l.b16 %v182
  %v1342 = vunpack.c.l.b16 %v183
  %v1343 = vunpack.c.l.b16 %v184
  %v1344 = vunpack.c.l.b16 %v185
  %v1345 = vunpack.c.l.b16 %v186
  %v1346 = vunpack.c.l.b16 %v187
  %v1347 = vunpack.c.l.b16 %v188
  %v1348 = vunpack.c.l.b16 %v189
  %v1349 = vunpack.c.l.b16 %v190
  %v1350 = vunpack.c.l.b16 %v191
  %v1351 = vunpack.c.l.b16 %v192
  %v1352 = vunpack.c.l.b16 %v193
  %v1353 = vunpack.c.l.b16 %v194
  %v1354 = vunpack.c.l.b16 %v195
  %v1355 = vunpack.c.l.b16 %v196
  %v1356 = vunpack.c.l.b16 %v197
  %v1357 = vunpack.c.l.b16 %v198
  %v1358 = vunpack.c.l.b16 %v199
  %v1359 = vunpack.c.l.b16 %v200
  %v1360 = vunpack.c.l.b16 %v201
  %v1361 = vunpack.c.l.b16 %v202
  %v1362 = vunpack.c.l.b16 %v203
  %v1363 = vunpack.c.l.b16 %v204
  %v1364 = vunpack.c.l.b16 %v205
  %v1365 = vunpack.c.l.b16 %v206
  %v1366 = vunpack.c.l.b16 %v207
  %v1367 = vunpack.c.l.b16 %v208
  %v1368 = vunpack.c.l.b16 %v209
  %v1369 = vunpack.c.l.b16 %v210
  %v1370 = vunpack.c.l.b16 %v211
  %v1371 = vunpack.c.l.b16 %v212
  %v1372 = vunpack.c.l.b16 %v213
  %v1373 = vunpack.c.l.b16 %v214
  %v1374 = vunpack.c.l.b16 %v215
  %v1375 = vunpack.c.l.b16 %v216
  %v1376 = vunpack.c.l.b16 %v217
  %v1377 = vunpack.c.l.b16 %v218
  %v1378 = vunpack.c.l.b16 %v219
  %v1379 = vunpack.c.l.b16 %v220
  %v1380 = vunpack.c.l.b16 %v221
  %v1381 = vunpack.c.l.b16 %v222
  %v1382 = vunpack.c.l.b16 %v223
  %v1383 = vunpack.c.l.b16 %v224
  %v1384 = vunpack.c.l.b16 %v225
  %v1385 = vunpack.c.l.b16 %v226
  %v1386 = vunpack.c.l.b16 %v227
  %v1387 = vunpack.c.l.b16 %v228
  %v1388 = vunpack.c.l.b16 %v229
  %v1389 = vunpack.c.l.b16 %v230
  %v1390 = vunpack.c.l.b16 %v231
  %v1391 = vunpack.c.l.b16 %v232
  %v1392 = vunpack.c.l.b16 %v233
  %v1393 = vunpack.c.l.b16 %v234
  %v1394 = vunpack.c.l.b16 %v235
  %v1395 = vunpack.c.l.b16 %v236
  %v1396 = vunpack.c.l.b16 %v237
  %v1397 = vunpack.c.l.b16 %v238
  %v1398 = vunpack.c.l.b16 %v239
  %v1399 = vunpack.c.l.b16 %v240
  %v1400 = vunpack.c.l.b16 %v241
  %v1401 = vunpack.c.l.b16 %v242
  %v1402 = vunpack.c.l.b16 %v243
  %v1403 = vunpack.c.l.b16 %v244
  %v1404 = vunpack.c.l.b16 %v245
  %v1405 = vunpack.c.l.b16 %v246
  %v1406 = vunpack.c.l.b16 %v247
  %v1407 = vunpack.c.l.b16 %v248
  %v1408 = vunpack.c.l.b16 %v249
  %v1409 = vunpack.c.l.b16 %v250
  %v1410 = vunpack.c.l.b16 %v251
  %v1411 = vunpack.c.l.b16 %v252
  %v1412 = vunpack.c.l.b16 %v253
  %v1413 = vunpack.c.l.b16 %v254
  %v1414 = vunpack.c.l.b16 %v255
  %v1415 = vunpack.c.l.b16 %v256
  %v1416 = vunpack.c.l.b16 %v257
  %v1417 = vunpack.c.l.b16 %v258
  %v1418 = vunpack.c.l.b16 %v259
  %v1419 = vunpack.c.l.b16 %v260
  %v1420 = vunpack.c.l.b16 %v261
  %v1421 = vunpack.c.l.b16 %v262
  %v1422 = vunpack.c.l.b16 %v263
  %v1423 = vunpack.c.l.b16 %v264
  %v1424 = vunpack.c.l.b16 %v265
  %v1425 = vunpack.c.l.b16 %v266
  %v1426 = vunpack.c.l.b16 %v267
  %v1427 = vunpack.c.l.b16 %v268
  %v1428 = vunpack.c.l.b16 %v269
  %v1429 = vunpack.c.l.b16 %v270
  %v1430 = vunpack.c.l.b16 %v271
  %v1431 = vunpack.c.l.b16 %v272
  %v1432 = vunpack.c.l.b16 %v273
  %v1433 = vunpack.c.l.b16 %v274
  %v1434 = vunpack.c.l.b16 %v275
  %v1435 = vunpack.c.l.b16 %v276
  %v1436 = vunpack.c.l.b16 %v277
  %v1437 = vunpack.c.l.b16 %v278
  %v1438 = vunpack.c.l.b16 %v279
  %v1439 = vunpack.c.l.b16 %v280
  %v1440 = vunpack.c.l.b16 %v281
  %v1441 = vunpack.c.l.b16 %v282
  %v1442 = vunpack.c.l.b16 %v283
  %v1443 = vunpack.c.l.b16 %v284
  %v1444 = vunpack.c.l.b16 %v285
  %v1445 = vunpack.c.l.b16 %v286
  %v1446 = vunpack.c.l.b16 %v287
  %v1447 = vunpack.c.l.b16 %v288
  %v1448 = vunpack.c.l.b16 %v289
  %v1449 = vunpack.c.l.b16 %v290
  %v1450 = vunpack.c.l.b16 %v291
  %v1451 = vunpack.c.l.b16 %v292
  %v1452 = vunpack.c.l.b16 %v293
  %v1453 = vunpack.c.l.b16 %v294
  %v1454 = vunpack.c.l.b16 %v295
  %v1455 = vunpack.c.l.b16 %v296
  %v1456 = vunpack.c.l.b16 %v297
  %v1457 = vunpack.c.l.b16 %v298
  %v1458 = vunpack.c.l.b16 %v299
  %v1459 = vunpack.c.l.b16 %v300
  %v1460 = vunpack.c.l.b16 %v301
  %v1461 = vunpack.c.l.b16 %v302
  %v1462 = vunpack.c.l.b16 %v303
  %v1463 = vunpack.c.l.b16 %v304
  %v1464 = vunpack.c.l.b16 %v305
  %v1465 = vunpack.c.l.b16 %v306
  %v1466 = vunpack.c.l.b16 %v307
  %v1467 = vunpack.c.l.b16 %v308
  %v1468 = vunpack.c.l.b16 %v309
  %v1469 = vunpack.c.l.b16 %v310
  %v1470 = vunpack.c.l.b16 %v311
  %v1471 = vunpack.c.l.b16 %v312
  %v1472 = vunpack.c.l.b16 %v313
  %v1473 = vunpack.c.l.b16 %v314
  %v1474 = vunpack.c.l.b16 %v315
  %v1475 = vunpack.c.l.b16 %v316
  %v1476 = vunpack.c.l.b16 %v317
  %v1477 = vunpack.c.l.b16 %v318
  %v1478 = vunpack.c.l.b16 %v319
  %v1479 = vunpack.c.l.b16 %v320
  %v1480 = vunpack.c.l.b16 %v321
  %v1481 = vunpack.c.l.b16 %v322
  %v1482 = vunpack.c.l.b16 %v323
  %v1483 = vunpack.c.l.b16 %v324
  %v1484 = vunpack.c.l.b16 %v325
  %v1485 = vunpack.c.l.b16 %v326
  %v1486 = vunpack.c.l.b16 %v327
  %v1487 = vunpack.c.l.b16 %v328
  %v1488 = vunpack.c.l.b16 %v329
  %v1489 = vunpack.c.l.b16 %v330
  %v1490 = vunpack.c.l.b16 %v331
  %v1491 = vunpack.c.l.b16 %v332
  %v1492 = vunpack.c.l.b16 %v333
  %v1493 = vunpack.c.l.b16 %v334
  %v1494 = vunpack.c.l.b16 %v335
  %v1495 = vunpack.c.l.b16 %v336
  %v1496 = vunpack.c.l.b16 %v337
  %v1497 = vunpack.c.l.b16 %v338
  %v1498 = vunpack.c.l.b16 %v339
  %v1499 = vunpack.c.l.b16 %v340
  %v1500 = vunpack.c.l.b16 %v341
  %v1501 = vunpack.c.l.b16 %v342
  %v1502 = vunpack.c.l.b16 %v343
  %v1503 = vunpack.c.l.b16 %v344
  %v1504 = vunpack.c.l.b16 %v345
  %v1505 = vunpack.c.l.b16 %v346
  %v1506 = vunpack.c.l.b16 %v347
  %v1507 = vunpack.c.l.b16 %v348
  %v1508 = vunpack.c.l.b16 %v349
  %v1509 = vunpack.c.l.b16 %v350
  %v1510 = vunpack.c.l.b16 %v351
  %v1511 = vunpack.c.l.b16 %v352
  %v1512 = vunpack.c.l.b16 %v353
  %v1513 = vunpack.c.l.b16 %v354
  %v1514 = vunpack.c.l.b16 %v355
  %v1515 = vunpack.c.l.b16 %v356
  %v1516 = vunpack.c.l.b16 %v357
  %v1517 = vunpack.c.l.b16 %v358
  %v1518 = vunpack.c.l.b16 %v359
  %v1519 = vunpack.c.l.b16 %v360
  %v1520 = vunpack.c.l.b16 %v361
  %v1521 = vunpack.c.l.b16 %v362
  %v1522 = vunpack.c.l.b16 %v363
  %v1523 = vunpack.c.l.b16 %v364
  %v1524 = vunpack.c.l.b16 %v365
  %v1525 = vunpack.c.l.b16 %v366
  %v1526 = vunpack.c.l.b16 %v367
  %v1527 = vunpack.c.l.b16 %v368
  %v1528 = vunpack.c.l.b16 %v369
  %v1529 = vunpack.c.l.b16 %v370
  %v1530 = vunpack.c.l.b16 %v371
  %v1531 = vunpack.c.l.b16 %v372
  %v1532 = vunpack.c.l.b16 %v373
  %v1533 = vunpack.c.l.b16 %v374
  %v1534 = vunpack.c.l.b16 %v375
  %v1535 = vunpack.c.l.b16 %v376
  %v1536 = vunpack.c.l.b16 %v377
  %v1537 = vunpack.c.l.b16 %v378
  %v1538 = vunpack.c.l.b16 %v379
  %v1539 = vunpack.c.l.b16 %v380
  %v1540 = vunpack.c.l.b16 %v381
  %v1541 = vunpack.c.l.b16 %v382
  %v1542 = vunpack.c.l.b16 %v383
  %v1543 = vunpack.c.l.b16 %v384
  %v1544 = vunpack.c.l.b16 %v385
  %v1545 = vunpack.c.l.b16 %v386
  %v1546 = vunpack.c.l.b16 %v387
  %v1547 = vunpack.c.l.b16 %v388
  %v1548 = vunpack.c.l.b16 %v389
  %v1549 = vunpack.c.l.b16 %v390
  %v1550 = vunpack.c.l.b16 %v391
  %v1551 = vunpack.c.l.b16 %v392
  %v1552 = vunpack.c.l.b16 %v393
  %v1553 = vunpack.c.l.b16 %v394
  %v1554 = vunpack.c.l.b16 %v395
  %v1555 = vunpack.c.l.b16 %v396
  %v1556 = vunpack.c.l.b16 %v397
  %v1557 = vunpack.c.l.b16 %v398
  %v1558 = vunpack.c.l.b16 %v399
  %v1559 = vunpack.c.l.b16 %v400
  %v1560 = vpack.c.b16 %v1305, %v1304
  %v1561 = vpack.c.b16 %v1307, %v1306
  %v1562 = vpack.c.b16 %v1309, %v1308
  %v1563 = vpack.c.b16 %v1311, %v1310
  %v1564 = vpack.c.b16 %v1313, %v1312
  %v1565 = vpack.c.b16 %v1315, %v1314
  %v1566 = vpack.c.b16 %v1317, %v1316
  %v1567 = vpack.c.b16 %v1319, %v1318
  %v1568 = vpack.c.b16 %v1321, %v1320
  %v1569 = vpack.c.b16 %v1323, %v1322
  %v1570 = vpack.c.b16 %v1325, %v1324
  %v1571 = vpack.c.b16 %v1327, %v1326
  %v1572 = vpack.c.b16 %v1329, %v1328
  %v1573 = vpack.c.b16 %v1331, %v1330
  %v1574 = vpack.c.b16 %v1333, %v1332
  %v1575 = vpack.c.b16 %v1335, %v1334
  %v1576 = vpack.c.b16 %v1337, %v1336
  %v1577 = vpack.c.b16 %v1339, %v1338
  %v1578 = vpack.c.b16 %v1341, %v1340
  %v1579 = vpack.c.b16 %v1343, %v1342
  %v1580 = vpack.c.b16 %v1345, %v1344
  %v1581 = vpack.c.b16 %v1347, %v1346
  %v1582 = vpack.c.b16 %v1349, %v1348
  %v1583 = vpack.c.b16 %v1351, %v1350
  %v1584 = vpack.c.b16 %v1353, %v1352
  %v1585 = vpack.c.b16 %v1355, %v1354
  %v1586 = vpack.c.b16 %v1357, %v1356
  %v1587 = vpack.c.b16 %v1359, %v1358
  %v1588 = vpack.c.b16 %v1361, %v1360
  %v1589 = vpack.c.b16 %v1363, %v1362
  %v1590 = vpack.c.b16 %v1365, %v1364
  %v1591 = vpack.c.b16 %v1367, %v1366
  %v1592 = vpack.c.b16 %v1369, %v1368
  %v1593 = vpack.c.b16 %v1371, %v1370
  %v1594 = vpack.c.b16 %v1373, %v1372
  %v1595 = vpack.c.b16 %v1375, %v1374
  %v1596 = vpack.c.b16 %v1377, %v1376
  %v1597 = vpack.c.b16 %v1379, %v1378
  %v1598 = vpack.c.b16 %v1381, %v1380
  %v1599 = vpack.c.b16 %v1383, %v1382
  %v1600 = vpack.c.b16 %v1385, %v1384
  %v1601 = vpack.c.b16 %v1387, %v1386
  %v1602 = vpack.c.b16 %v1389, %v1388
  %v1603 = vpack.c.b16 %v1391, %v1390
  %v1604 = vpack.c.b16 %v1393, %v1392
  %v1605 = vpack.c.b16 %v1395, %v1394
  %v1606 = vpack.c.b16 %v1397, %v1396
  %v1607 = vpack.c.b16 %v1399, %v1398
  %v1608 = vpack.c.b16 %v1401, %v1400
  %v1609 = vpack.c.b16 %v1403, %v1402
  %v1610 = vpack.c.b16 %v1405, %v1404
  %v1611 = vpack.c.b16 %v1407, %v1406
  %v1612 = vpack.c.b16 %v1409, %v1408
  %v1613 = vpack.c.b16 %v1411, %v1410
  %v1614 = vpack.c.b16 %v1413, %v1412
  %v1615 = vpack.c.b16 %v1415, %v1414
  %v1616 = vpack.c.b16 %v1417, %v1416
  %v1617 = vpack.c.b16 %v1419, %v1418
  %v1618 = vpack.c.b16 %v1421, %v1420
  %v1619 = vpack.c.b16 %v1423, %v1422
  %v1620 = vpack.c.b16 %v1425, %v1424
  %v1621 = vpack.c.b16 %v1427, %v1426
  %v1622 = vpack.c.b16 %v1429, %v1428
  %v1623 = vpack.c.b16 %v1431, %v1430
  %v1624 = vpack.c.b16 %v1433, %v1432
  %v1625 = vpack.c.b16 %v1435, %v1434
  %v1626 = vpack.c.b16 %v1437, %v1436
  %v1627 = vpack.c.b16 %v1439, %v1438
  %v1628 = vpack.c.b16 %v1441, %v1440
  %v1629 = vpack.c.b16 %v1443, %v1442
  %v1630 = vpack.c.b16 %v1445, %v1444
  %v1631 = vpack.c.b16 %v1447, %v1446
  %v1632 = vpack.c.b16 %v1449, %v1448
  %v1633 = vpack.c.b16 %v1451, %v1450
  %v1634 = vpack.c.b16 %v1453, %v1452
  %v1635 = vpack.c.b16 %v1455, %v1454
  %v1636 = vpack.c.b16 %v1457, %v1456
  %v1637 = vpack.c.b16 %v1459, %v1458
  %v1638 = vpack.c.b16 %v1461, %v1460
  %v1639 = vpack.c.b16 %v1463, %v1462
  %v1640 = vpack.c.b16 %v1465, %v1464
  %v1641 = vpack.c.b16 %v1467, %v1466
  %v1642 = vpack.c.b16 %v1469, %v1468
  %v1643 = vpack.c.b16 %v1471, %v1470
  %v1644 = vpack.c.b16 %v1473, %v1472
  %v1645 = vpack.c.b16 %v1475, %v1474
  %v1646 = vpack.c.b16 %v1477, %v1476
  %v1647 = vpack.c.b16 %v1479, %v1478
  %v1648 = vpack.c.b16 %v1481, %v1480
  %v1649 = vpack.c.b16 %v1483, %v1482
  %v1650 = vpack.c.b16 %v1485, %v1484
  %v1651 = vpack.c.b16 %v1487, %v1486
  %v1652 = vpack.c.b16 %v1489, %v1488
  %v1653 = vpack.c.b16 %v1491, %v1490
  %v1654 = vpack.c.b16 %v1493, %v1492
  %v1655 = vpack.c.b16 %v1495, %v1494
  %v1656 = vpack.c.b16 %v1497, %v1496
  %v1657 = vpack.c.b16 %v1499, %v1498
  %v1658 = vpack.c.b16 %v1501, %v1500
  %v1659 = vpack.c.b16 %v1503, %v1502
  %v1660 = vpack.c.b16 %v1505, %v1504
  %v1661 = vpack.c.b16 %v1507, %v1506
  %v1662 = vpack.c.b16 %v1509, %v1508
  %v1663 = vpack.c.b16 %v1511, %v1510
  %v1664 = vpack.c.b16 %v1513, %v1512
  %v1665 = vpack.c.b16 %v1515, %v1514
  %v1666 = vpack.c.b16 %v1517, %v1516
  %v1667 = vpack.c.b16 %v1519, %v1518
  %v1668 = vpack.c.b16 %v1521, %v1520
  %v1669 = vpack.c.b16 %v1523, %v1522
  %v1670 = vpack.c.b16 %v1525, %v1524
  %v1671 = vpack.c.b16 %v1527, %v1526
  %v1672 = vpack.c.b16 %v1529, %v1528
  %v1673 = vpack.c.b16 %v1531, %v1530
  %v1674 = vpack.c.b16 %v1533, %v1532
  %v1675 = vpack.c.b16 %v1535, %v1534
  %v1676 = vpack.c.b16 %v1537, %v1536
  %v1677 = vpack.c.b16 %v1539, %v1538
  %v1678 = vpack.c.b16 %v1541, %v1540
  %v1679 = vpack.c.b16 %v1543, %v1542
  %v1680 = vpack.c.b16 %v1545, %v1544
  %v1681 = vpack.c.b16 %v1547, %v1546
  %v1682 = vpack.c.b16 %v1549, %v1548
  %v1683 = vpack.c.b16 %v1551, %v1550
  %v1684 = vpack.c.b16 %v1553, %v1552
  %v1685 = vpack.c.b16 %v1555, %v1554
  %v1686 = vpack.c.b16 %v1557, %v1556
  %v1687 = vpack.c.b16 %v1559, %v1558
  %1816 = vmatprep.subr.bf16.mxu0 0
  %1817 = vmatpush1.bf16.msra.mxu0 %v1560
  %1818 = vmatprep.subr.bf16.mxu0 0
  %1819 = vmatpush1.bf16.msra.mxu0 %v1561
  %1820 = vmatprep.subr.bf16.mxu0 0
  %1821 = vmatpush1.bf16.msra.mxu0 %v1562
  %1822 = vmatprep.subr.bf16.mxu0 0
  %1823 = vmatpush1.bf16.msra.mxu0 %v1563
  %1824 = vmatprep.subr.bf16.mxu0 0
  %1825 = vmatpush1.bf16.msra.mxu0 %v1564
  %1826 = vmatprep.subr.bf16.mxu0 0
  %1827 = vmatpush1.bf16.msra.mxu0 %v1565
  %1828 = vmatprep.subr.bf16.mxu0 0
  %1829 = vmatpush1.bf16.msra.mxu0 %v1566
  %1830 = vmatprep.subr.bf16.mxu0 0
  %1831 = vmatpush1.bf16.msra.mxu0 %v1567
  %1832 = vmatprep.subr.bf16.mxu0 0
  %1833 = vmatpush1.bf16.msra.mxu0 %v1568
  %1834 = vmatprep.subr.bf16.mxu0 0
  %1835 = vmatpush1.bf16.msra.mxu0 %v1569
  %1836 = vmatprep.subr.bf16.mxu0 0
  %1837 = vmatpush1.bf16.msra.mxu0 %v1570
  %1838 = vmatprep.subr.bf16.mxu0 0
  %1839 = vmatpush1.bf16.msra.mxu0 %v1571
  %1840 = vmatprep.subr.bf16.mxu0 0
  %1841 = vmatpush1.bf16.msra.mxu0 %v1572
  %1842 = vmatprep.subr.bf16.mxu0 0
  %1843 = vmatpush1.bf16.msra.mxu0 %v1573
  %1844 = vmatprep.subr.bf16.mxu0 0
  %1845 = vmatpush1.bf16.msra.mxu0 %v1574
  %1846 = vmatprep.subr.bf16.mxu0 0
  %1847 = vmatpush1.bf16.msra.mxu0 %v1575
  %1848 = vmatprep.mubr.bf16.mxu0 %v793
  %1849 = vmatmul.mubr.bf16.gmra.mrb[0].mxu0 %v792
  %v1850 = vpop.f32.mrb[0].mxu0
  %v1851 = vadd.f32 %v406, %v1850
  %v1852 = vpop.f32.mrb[0].mxu0
  %v1853 = vpop.f32.mrb[0].mxu0
  %v1854 = vadd.f32 %v406, %v1853
  %v1855 = vpop.f32.mrb[0].mxu0
  %1856 = vmatprep.mubr.bf16.mxu0 %v809
  %1857 = vmatmul.mubr.bf16.gmra.mrb[0].mxu0 %v808
  %v1858 = vpop.f32.mrb[0].mxu0
  %v1859 = vadd.f32 %v406, %v1858
  %v1860 = vpop.f32.mrb[0].mxu0
  %v1861 = vpop.f32.mrb[0].mxu0
  %v1862 = vadd.f32 %v406, %v1861
  %v1863 = vpop.f32.mrb[0].mxu0
  %1864 = vmatprep.mubr.bf16.mxu0 %v825
  %1865 = vmatmul.mubr.bf16.gmra.mrb[0].mxu0 %v824
  %v1866 = vpop.f32.mrb[0].mxu0
  %v1867 = vadd.f32 %v406, %v1866
  %v1868 = vpop.f32.mrb[0].mxu0
  %v1869 = vpop.f32.mrb[0].mxu0
  %v1870 = vadd.f32 %v406, %v1869
  %v1871 = vpop.f32.mrb[0].mxu0
  %1872 = vmatprep.mubr.bf16.mxu0 %v841
  %1873 = vmatmul.mubr.bf16.gmra.mrb[0].mxu0 %v840
  %v1874 = vpop.f32.mrb[0].mxu0
  %v1875 = vadd.f32 %v406, %v1874
  %v1876 = vpop.f32.mrb[0].mxu0
  %v1877 = vpop.f32.mrb[0].mxu0
  %v1878 = vadd.f32 %v406, %v1877
  %v1879 = vpop.f32.mrb[0].mxu0
  %1880 = vmatprep.mubr.bf16.mxu0 %v857
  %1881 = vmatmul.mubr.bf16.gmra.mrb[0].mxu0 %v856
  %v1882 = vpop.f32.mrb[0].mxu0
  %v1883 = vadd.f32 %v406, %v1882
  %v1884 = vpop.f32.mrb[0].mxu0
  %v1885 = vpop.f32.mrb[0].mxu0
  %v1886 = vadd.f32 %v406, %v1885
  %v1887 = vpop.f32.mrb[0].mxu0
  %1888 = vmatprep.mubr.bf16.mxu0 %v873
  %1889 = vmatmul.mubr.bf16.gmra.mrb[0].mxu0 %v872
  %v1890 = vpop.f32.mrb[0].mxu0
  %v1891 = vadd.f32 %v406, %v1890
  %v1892 = vpop.f32.mrb[0].mxu0
  %v1893 = vpop.f32.mrb[0].mxu0
  %v1894 = vadd.f32 %v406, %v1893
  %v1895 = vpop.f32.mrb[0].mxu0
  %1896 = vmatprep.mubr.bf16.mxu0 %v889
  %1897 = vmatmul.mubr.bf16.gmra.mrb[0].mxu0 %v888
  %v1898 = vpop.f32.mrb[0].mxu0
  %v1899 = vadd.f32 %v406, %v1898
  %v1900 = vpop.f32.mrb[0].mxu0
  %v1901 = vpop.f32.mrb[0].mxu0
  %v1902 = vadd.f32 %v406, %v1901
  %v1903 = vpop.f32.mrb[0].mxu0
  %1904 = vmatprep.mubr.bf16.mxu0 %v905
  %1905 = vmatmul.mubr.bf16.gmra.mrb[0].mxu0 %v904
  %v1906 = vpop.f32.mrb[0].mxu0
  %v1907 = vadd.f32 %v406, %v1906
  %v1908 = vpop.f32.mrb[0].mxu0
  %v1909 = vpop.f32.mrb[0].mxu0
  %v1910 = vadd.f32 %v406, %v1909
  %v1911 = vpop.f32.mrb[0].mxu0
  %1912 = vdwg.mxu0
  %1913 = vmatprep.subr.bf16.mxu0 0
  %1914 = vmatpush1.bf16.msra.mxu0 %v1576
  %1915 = vmatprep.subr.bf16.mxu0 0
  %1916 = vmatpush1.bf16.msra.mxu0 %v1577
  %1917 = vmatprep.subr.bf16.mxu0 0
  %1918 = vmatpush1.bf16.msra.mxu0 %v1578
  %1919 = vmatprep.subr.bf16.mxu0 0
  %1920 = vmatpush1.bf16.msra.mxu0 %v1579
  %1921 = vmatprep.subr.bf16.mxu0 0
  %1922 = vmatpush1.bf16.msra.mxu0 %v1580
  %1923 = vmatprep.subr.bf16.mxu0 0
  %1924 = vmatpush1.bf16.msra.mxu0 %v1581
  %1925 = vmatprep.subr.bf16.mxu0 0
  %1926 = vmatpush1.bf16.msra.mxu0 %v1582
  %1927 = vmatprep.subr.bf16.mxu0 0
  %1928 = vmatpush1.bf16.msra.mxu0 %v1583
  %1929 = vmatprep.subr.bf16.mxu0 0
  %1930 = vmatpush1.bf16.msra.mxu0 %v1584
  %1931 = vmatprep.subr.bf16.mxu0 0
  %1932 = vmatpush1.bf16.msra.mxu0 %v1585
  %1933 = vmatprep.subr.bf16.mxu0 0
  %1934 = vmatpush1.bf16.msra.mxu0 %v1586
  %1935 = vmatprep.subr.bf16.mxu0 0
  %1936 = vmatpush1.bf16.msra.mxu0 %v1587
  %1937 = vmatprep.subr.bf16.mxu0 0
  %1938 = vmatpush1.bf16.msra.mxu0 %v1588
  %1939 = vmatprep.subr.bf16.mxu0 0
  %1940 = vmatpush1.bf16.msra.mxu0 %v1589
  %1941 = vmatprep.subr.bf16.mxu0 0
  %1942 = vmatpush1.bf16.msra.mxu0 %v1590
  %1943 = vmatprep.subr.bf16.mxu0 0
  %1944 = vmatpush1.bf16.msra.mxu0 %v1591
  %1945 = vmatprep.mubr.bf16.mxu0 %v795
  %1946 = vmatmul.mubr.bf16.gmra.mrb[0].mxu0 %v794
  %v1947 = vpop.f32.mrb[0].mxu0
  %v1948 = vadd.f32 %v1851, %v1947
  %v1949 = vpop.f32.mrb[0].mxu0
  %v1950 = vpop.f32.mrb[0].mxu0
  %v1951 = vadd.f32 %v1854, %v1950
  %v1952 = vpop.f32.mrb[0].mxu0
  %1953 = vmatprep.mubr.bf16.mxu0 %v811
  %1954 = vmatmul.mubr.bf16.gmra.mrb[0].mxu0 %v810
  %v1955 = vpop.f32.mrb[0].mxu0
  %v1956 = vadd.f32 %v1859, %v1955
  %v1957 = vpop.f32.mrb[0].mxu0
  %v1958 = vpop.f32.mrb[0].mxu0
  %v1959 = vadd.f32 %v1862, %v1958
  %v1960 = vpop.f32.mrb[0].mxu0
  %1961 = vmatprep.mubr.bf16.mxu0 %v827
  %1962 = vmatmul.mubr.bf16.gmra.mrb[0].mxu0 %v826
  %v1963 = vpop.f32.mrb[0].mxu0
  %v1964 = vadd.f32 %v1867, %v1963
  %v1965 = vpop.f32.mrb[0].mxu0
  %v1966 = vpop.f32.mrb[0].mxu0
  %v1967 = vadd.f32 %v1870, %v1966
  %v1968 = vpop.f32.mrb[0].mxu0
  %1969 = vmatprep.mubr.bf16.mxu0 %v843
  %1970 = vmatmul.mubr.bf16.gmra.mrb[0].mxu0 %v842
  %v1971 = vpop.f32.mrb[0].mxu0
  %v1972 = vadd.f32 %v1875, %v1971
  %v1973 = vpop.f32.mrb[0].mxu0
  %v1974 = vpop.f32.mrb[0].mxu0
  %v1975 = vadd.f32 %v1878, %v1974
  %v1976 = vpop.f32.mrb[0].mxu0
  %1977 = vmatprep.mubr.bf16.mxu0 %v859
  %1978 = vmatmul.mubr.bf16.gmra.mrb[0].mxu0 %v858
  %v1979 = vpop.f32.mrb[0].mxu0
  %v1980 = vadd.f32 %v1883, %v1979
  %v1981 = vpop.f32.mrb[0].mxu0
  %v1982 = vpop.f32.mrb[0].mxu0
  %v1983 = vadd.f32 %v1886, %v1982
  %v1984 = vpop.f32.mrb[0].mxu0
  %1985 = vmatprep.mubr.bf16.mxu0 %v875
  %1986 = vmatmul.mubr.bf16.gmra.mrb[0].mxu0 %v874
  %v1987 = vpop.f32.mrb[0].mxu0
  %v1988 = vadd.f32 %v1891, %v1987
  %v1989 = vpop.f32.mrb[0].mxu0
  %v1990 = vpop.f32.mrb[0].mxu0
  %v1991 = vadd.f32 %v1894, %v1990
  %v1992 = vpop.f32.mrb[0].mxu0
  %1993 = vmatprep.mubr.bf16.mxu0 %v891
  %1994 = vmatmul.mubr.bf16.gmra.mrb[0].mxu0 %v890
  %v1995 = vpop.f32.mrb[0].mxu0
  %v1996 = vadd.f32 %v1899, %v1995
  %v1997 = vpop.f32.mrb[0].mxu0
  %v1998 = vpop.f32.mrb[0].mxu0
  %v1999 = vadd.f32 %v1902, %v1998
  %v2000 = vpop.f32.mrb[0].mxu0
  %2001 = vmatprep.mubr.bf16.mxu0 %v907
  %2002 = vmatmul.mubr.bf16.gmra.mrb[0].mxu0 %v906
  %v2003 = vpop.f32.mrb[0].mxu0
  %v2004 = vadd.f32 %v1907, %v2003
  %v2005 = vpop.f32.mrb[0].mxu0
  %v2006 = vpop.f32.mrb[0].mxu0
  %v2007 = vadd.f32 %v1910, %v2006
  %v2008 = vpop.f32.mrb[0].mxu0
  %2009 = vdwg.mxu0
  %2010 = vmatprep.subr.bf16.mxu0 0
  %2011 = vmatpush1.bf16.msra.mxu0 %v1592
  %2012 = vmatprep.subr.bf16.mxu0 0
  %2013 = vmatpush1.bf16.msra.mxu0 %v1593
  %2014 = vmatprep.subr.bf16.mxu0 0
  %2015 = vmatpush1.bf16.msra.mxu0 %v1594
  %2016 = vmatprep.subr.bf16.mxu0 0
  %2017 = vmatpush1.bf16.msra.mxu0 %v1595
  %2018 = vmatprep.subr.bf16.mxu0 0
  %2019 = vmatpush1.bf16.msra.mxu0 %v1596
  %2020 = vmatprep.subr.bf16.mxu0 0
  %2021 = vmatpush1.bf16.msra.mxu0 %v1597
  %2022 = vmatprep.subr.bf16.mxu0 0
  %2023 = vmatpush1.bf16.msra.mxu0 %v1598
  %2024 = vmatprep.subr.bf16.mxu0 0
  %2025 = vmatpush1.bf16.msra.mxu0 %v1599
  %2026 = vmatprep.subr.bf16.mxu0 0
  %2027 = vmatpush1.bf16.msra.mxu0 %v1600
  %2028 = vmatprep.subr.bf16.mxu0 0
  %2029 = vmatpush1.bf16.msra.mxu0 %v1601
  %2030 = vmatprep.subr.bf16.mxu0 0
  %2031 = vmatpush1.bf16.msra.mxu0 %v1602
  %2032 = vmatprep.subr.bf16.mxu0 0
  %2033 = vmatpush1.bf16.msra.mxu0 %v1603
  %2034 = vmatprep.subr.bf16.mxu0 0
  %2035 = vmatpush1.bf16.msra.mxu0 %v1604
  %2036 = vmatprep.subr.bf16.mxu0 0
  %2037 = vmatpush1.bf16.msra.mxu0 %v1605
  %2038 = vmatprep.subr.bf16.mxu0 0
  %2039 = vmatpush1.bf16.msra.mxu0 %v1606
  %2040 = vmatprep.subr.bf16.mxu0 0
  %2041 = vmatpush1.bf16.msra.mxu0 %v1607
  %2042 = vmatprep.mubr.bf16.mxu0 %v797
  %2043 = vmatmul.mubr.bf16.gmra.mrb[0].mxu0 %v796
  %v2044 = vpop.f32.mrb[0].mxu0
  %v2045 = vadd.f32 %v1948, %v2044
  %v2046 = vpop.f32.mrb[0].mxu0
  %v2047 = vpop.f32.mrb[0].mxu0
  %v2048 = vadd.f32 %v1951, %v2047
  %v2049 = vpop.f32.mrb[0].mxu0
  %2050 = vmatprep.mubr.bf16.mxu0 %v813
  %2051 = vmatmul.mubr.bf16.gmra.mrb[0].mxu0 %v812
  %v2052 = vpop.f32.mrb[0].mxu0
  %v2053 = vadd.f32 %v1956, %v2052
  %v2054 = vpop.f32.mrb[0].mxu0
  %v2055 = vpop.f32.mrb[0].mxu0
  %v2056 = vadd.f32 %v1959, %v2055
  %v2057 = vpop.f32.mrb[0].mxu0
  %2058 = vmatprep.mubr.bf16.mxu0 %v829
  %2059 = vmatmul.mubr.bf16.gmra.mrb[0].mxu0 %v828
  %v2060 = vpop.f32.mrb[0].mxu0
  %v2061 = vadd.f32 %v1964, %v2060
  %v2062 = vpop.f32.mrb[0].mxu0
  %v2063 = vpop.f32.mrb[0].mxu0
  %v2064 = vadd.f32 %v1967, %v2063
  %v2065 = vpop.f32.mrb[0].mxu0
  %2066 = vmatprep.mubr.bf16.mxu0 %v845
  %2067 = vmatmul.mubr.bf16.gmra.mrb[0].mxu0 %v844
  %v2068 = vpop.f32.mrb[0].mxu0
  %v2069 = vadd.f32 %v1972, %v2068
  %v2070 = vpop.f32.mrb[0].mxu0
  %v2071 = vpop.f32.mrb[0].mxu0
  %v2072 = vadd.f32 %v1975, %v2071
  %v2073 = vpop.f32.mrb[0].mxu0
  %2074 = vmatprep.mubr.bf16.mxu0 %v861
  %2075 = vmatmul.mubr.bf16.gmra.mrb[0].mxu0 %v860
  %v2076 = vpop.f32.mrb[0].mxu0
  %v2077 = vadd.f32 %v1980, %v2076
  %v2078 = vpop.f32.mrb[0].mxu0
  %v2079 = vpop.f32.mrb[0].mxu0
  %v2080 = vadd.f32 %v1983, %v2079
  %v2081 = vpop.f32.mrb[0].mxu0
  %2082 = vmatprep.mubr.bf16.mxu0 %v877
  %2083 = vmatmul.mubr.bf16.gmra.mrb[0].mxu0 %v876
  %v2084 = vpop.f32.mrb[0].mxu0
  %v2085 = vadd.f32 %v1988, %v2084
  %v2086 = vpop.f32.mrb[0].mxu0
  %v2087 = vpop.f32.mrb[0].mxu0
  %v2088 = vadd.f32 %v1991, %v2087
  %v2089 = vpop.f32.mrb[0].mxu0
  %2090 = vmatprep.mubr.bf16.mxu0 %v893
  %2091 = vmatmul.mubr.bf16.gmra.mrb[0].mxu0 %v892
  %v2092 = vpop.f32.mrb[0].mxu0
  %v2093 = vadd.f32 %v1996, %v2092
  %v2094 = vpop.f32.mrb[0].mxu0
  %v2095 = vpop.f32.mrb[0].mxu0
  %v2096 = vadd.f32 %v1999, %v2095
  %v2097 = vpop.f32.mrb[0].mxu0
  %2098 = vmatprep.mubr.bf16.mxu0 %v909
  %2099 = vmatmul.mubr.bf16.gmra.mrb[0].mxu0 %v908
  %v2100 = vpop.f32.mrb[0].mxu0
  %v2101 = vadd.f32 %v2004, %v2100
  %v2102 = vpop.f32.mrb[0].mxu0
  %v2103 = vpop.f32.mrb[0].mxu0
  %v2104 = vadd.f32 %v2007, %v2103
  %v2105 = vpop.f32.mrb[0].mxu0
  %2106 = vdwg.mxu0
  %2107 = vmatprep.subr.bf16.mxu0 0
  %2108 = vmatpush1.bf16.msra.mxu0 %v1608
  %2109 = vmatprep.subr.bf16.mxu0 0
  %2110 = vmatpush1.bf16.msra.mxu0 %v1609
  %2111 = vmatprep.subr.bf16.mxu0 0
  %2112 = vmatpush1.bf16.msra.mxu0 %v1610
  %2113 = vmatprep.subr.bf16.mxu0 0
  %2114 = vmatpush1.bf16.msra.mxu0 %v1611
  %2115 = vmatprep.subr.bf16.mxu0 0
  %2116 = vmatpush1.bf16.msra.mxu0 %v1612
  %2117 = vmatprep.subr.bf16.mxu0 0
  %2118 = vmatpush1.bf16.msra.mxu0 %v1613
  %2119 = vmatprep.subr.bf16.mxu0 0
  %2120 = vmatpush1.bf16.msra.mxu0 %v1614
  %2121 = vmatprep.subr.bf16.mxu0 0
  %2122 = vmatpush1.bf16.msra.mxu0 %v1615
  %2123 = vmatprep.subr.bf16.mxu0 0
  %2124 = vmatpush1.bf16.msra.mxu0 %v1616
  %2125 = vmatprep.subr.bf16.mxu0 0
  %2126 = vmatpush1.bf16.msra.mxu0 %v1617
  %2127 = vmatprep.subr.bf16.mxu0 0
  %2128 = vmatpush1.bf16.msra.mxu0 %v1618
  %2129 = vmatprep.subr.bf16.mxu0 0
  %2130 = vmatpush1.bf16.msra.mxu0 %v1619
  %2131 = vmatprep.subr.bf16.mxu0 0
  %2132 = vmatpush1.bf16.msra.mxu0 %v1620
  %2133 = vmatprep.subr.bf16.mxu0 0
  %2134 = vmatpush1.bf16.msra.mxu0 %v1621
  %2135 = vmatprep.subr.bf16.mxu0 0
  %2136 = vmatpush1.bf16.msra.mxu0 %v1622
  %2137 = vmatprep.subr.bf16.mxu0 0
  %2138 = vmatpush1.bf16.msra.mxu0 %v1623
  %2139 = vmatprep.mubr.bf16.mxu0 %v799
  %2140 = vmatmul.mubr.bf16.gmra.mrb[0].mxu0 %v798
  %v2141 = vpop.f32.mrb[0].mxu0
  %v2142 = vadd.f32 %v2045, %v2141
  %v2143 = vpop.f32.mrb[0].mxu0
  %v2144 = vpop.f32.mrb[0].mxu0
  %v2145 = vadd.f32 %v2048, %v2144
  %v2146 = vpop.f32.mrb[0].mxu0
  %2147 = vmatprep.mubr.bf16.mxu0 %v815
  %2148 = vmatmul.mubr.bf16.gmra.mrb[0].mxu0 %v814
  %v2149 = vpop.f32.mrb[0].mxu0
  %v2150 = vadd.f32 %v2053, %v2149
  %v2151 = vpop.f32.mrb[0].mxu0
  %v2152 = vpop.f32.mrb[0].mxu0
  %v2153 = vadd.f32 %v2056, %v2152
  %v2154 = vpop.f32.mrb[0].mxu0
  %2155 = vmatprep.mubr.bf16.mxu0 %v831
  %2156 = vmatmul.mubr.bf16.gmra.mrb[0].mxu0 %v830
  %v2157 = vpop.f32.mrb[0].mxu0
  %v2158 = vadd.f32 %v2061, %v2157
  %v2159 = vpop.f32.mrb[0].mxu0
  %v2160 = vpop.f32.mrb[0].mxu0
  %v2161 = vadd.f32 %v2064, %v2160
  %v2162 = vpop.f32.mrb[0].mxu0
  %2163 = vmatprep.mubr.bf16.mxu0 %v847
  %2164 = vmatmul.mubr.bf16.gmra.mrb[0].mxu0 %v846
  %v2165 = vpop.f32.mrb[0].mxu0
  %v2166 = vadd.f32 %v2069, %v2165
  %v2167 = vpop.f32.mrb[0].mxu0
  %v2168 = vpop.f32.mrb[0].mxu0
  %v2169 = vadd.f32 %v2072, %v2168
  %v2170 = vpop.f32.mrb[0].mxu0
  %2171 = vmatprep.mubr.bf16.mxu0 %v863
  %2172 = vmatmul.mubr.bf16.gmra.mrb[0].mxu0 %v862
  %v2173 = vpop.f32.mrb[0].mxu0
  %v2174 = vadd.f32 %v2077, %v2173
  %v2175 = vpop.f32.mrb[0].mxu0
  %v2176 = vpop.f32.mrb[0].mxu0
  %v2177 = vadd.f32 %v2080, %v2176
  %v2178 = vpop.f32.mrb[0].mxu0
  %2179 = vmatprep.mubr.bf16.mxu0 %v879
  %2180 = vmatmul.mubr.bf16.gmra.mrb[0].mxu0 %v878
  %v2181 = vpop.f32.mrb[0].mxu0
  %v2182 = vadd.f32 %v2085, %v2181
  %v2183 = vpop.f32.mrb[0].mxu0
  %v2184 = vpop.f32.mrb[0].mxu0
  %v2185 = vadd.f32 %v2088, %v2184
  %v2186 = vpop.f32.mrb[0].mxu0
  %2187 = vmatprep.mubr.bf16.mxu0 %v895
  %2188 = vmatmul.mubr.bf16.gmra.mrb[0].mxu0 %v894
  %v2189 = vpop.f32.mrb[0].mxu0
  %v2190 = vadd.f32 %v2093, %v2189
  %v2191 = vpop.f32.mrb[0].mxu0
  %v2192 = vpop.f32.mrb[0].mxu0
  %v2193 = vadd.f32 %v2096, %v2192
  %v2194 = vpop.f32.mrb[0].mxu0
  %2195 = vmatprep.mubr.bf16.mxu0 %v911
  %2196 = vmatmul.mubr.bf16.gmra.mrb[0].mxu0 %v910
  %v2197 = vpop.f32.mrb[0].mxu0
  %v2198 = vadd.f32 %v2101, %v2197
  %v2199 = vpop.f32.mrb[0].mxu0
  %v2200 = vpop.f32.mrb[0].mxu0
  %v2201 = vadd.f32 %v2104, %v2200
  %v2202 = vpop.f32.mrb[0].mxu0
  %2203 = vdwg.mxu0
  %2204 = vmatprep.subr.bf16.mxu0 0
  %2205 = vmatpush1.bf16.msra.mxu0 %v1624
  %2206 = vmatprep.subr.bf16.mxu0 0
  %2207 = vmatpush1.bf16.msra.mxu0 %v1625
  %2208 = vmatprep.subr.bf16.mxu0 0
  %2209 = vmatpush1.bf16.msra.mxu0 %v1626
  %2210 = vmatprep.subr.bf16.mxu0 0
  %2211 = vmatpush1.bf16.msra.mxu0 %v1627
  %2212 = vmatprep.subr.bf16.mxu0 0
  %2213 = vmatpush1.bf16.msra.mxu0 %v1628
  %2214 = vmatprep.subr.bf16.mxu0 0
  %2215 = vmatpush1.bf16.msra.mxu0 %v1629
  %2216 = vmatprep.subr.bf16.mxu0 0
  %2217 = vmatpush1.bf16.msra.mxu0 %v1630
  %2218 = vmatprep.subr.bf16.mxu0 0
  %2219 = vmatpush1.bf16.msra.mxu0 %v1631
  %2220 = vmatprep.subr.bf16.mxu0 0
  %2221 = vmatpush1.bf16.msra.mxu0 %v1632
  %2222 = vmatprep.subr.bf16.mxu0 0
  %2223 = vmatpush1.bf16.msra.mxu0 %v1633
  %2224 = vmatprep.subr.bf16.mxu0 0
  %2225 = vmatpush1.bf16.msra.mxu0 %v1634
  %2226 = vmatprep.subr.bf16.mxu0 0
  %2227 = vmatpush1.bf16.msra.mxu0 %v1635
  %2228 = vmatprep.subr.bf16.mxu0 0
  %2229 = vmatpush1.bf16.msra.mxu0 %v1636
  %2230 = vmatprep.subr.bf16.mxu0 0
  %2231 = vmatpush1.bf16.msra.mxu0 %v1637
  %2232 = vmatprep.subr.bf16.mxu0 0
  %2233 = vmatpush1.bf16.msra.mxu0 %v1638
  %2234 = vmatprep.subr.bf16.mxu0 0
  %2235 = vmatpush1.bf16.msra.mxu0 %v1639
  %2236 = vmatprep.mubr.bf16.mxu0 %v801
  %2237 = vmatmul.mubr.bf16.gmra.mrb[0].mxu0 %v800
  %v2238 = vpop.f32.mrb[0].mxu0
  %v2239 = vadd.f32 %v2142, %v2238
  %v2240 = vpop.f32.mrb[0].mxu0
  %v2241 = vpop.f32.mrb[0].mxu0
  %v2242 = vadd.f32 %v2145, %v2241
  %v2243 = vpop.f32.mrb[0].mxu0
  %2244 = vmatprep.mubr.bf16.mxu0 %v817
  %2245 = vmatmul.mubr.bf16.gmra.mrb[0].mxu0 %v816
  %v2246 = vpop.f32.mrb[0].mxu0
  %v2247 = vadd.f32 %v2150, %v2246
  %v2248 = vpop.f32.mrb[0].mxu0
  %v2249 = vpop.f32.mrb[0].mxu0
  %v2250 = vadd.f32 %v2153, %v2249
  %v2251 = vpop.f32.mrb[0].mxu0
  %2252 = vmatprep.mubr.bf16.mxu0 %v833
  %2253 = vmatmul.mubr.bf16.gmra.mrb[0].mxu0 %v832
  %v2254 = vpop.f32.mrb[0].mxu0
  %v2255 = vadd.f32 %v2158, %v2254
  %v2256 = vpop.f32.mrb[0].mxu0
  %v2257 = vpop.f32.mrb[0].mxu0
  %v2258 = vadd.f32 %v2161, %v2257
  %v2259 = vpop.f32.mrb[0].mxu0
  %2260 = vmatprep.mubr.bf16.mxu0 %v849
  %2261 = vmatmul.mubr.bf16.gmra.mrb[0].mxu0 %v848
  %v2262 = vpop.f32.mrb[0].mxu0
  %v2263 = vadd.f32 %v2166, %v2262
  %v2264 = vpop.f32.mrb[0].mxu0
  %v2265 = vpop.f32.mrb[0].mxu0
  %v2266 = vadd.f32 %v2169, %v2265
  %v2267 = vpop.f32.mrb[0].mxu0
  %2268 = vmatprep.mubr.bf16.mxu0 %v865
  %2269 = vmatmul.mubr.bf16.gmra.mrb[0].mxu0 %v864
  %v2270 = vpop.f32.mrb[0].mxu0
  %v2271 = vadd.f32 %v2174, %v2270
  %v2272 = vpop.f32.mrb[0].mxu0
  %v2273 = vpop.f32.mrb[0].mxu0
  %v2274 = vadd.f32 %v2177, %v2273
  %v2275 = vpop.f32.mrb[0].mxu0
  %2276 = vmatprep.mubr.bf16.mxu0 %v881
  %2277 = vmatmul.mubr.bf16.gmra.mrb[0].mxu0 %v880
  %v2278 = vpop.f32.mrb[0].mxu0
  %v2279 = vadd.f32 %v2182, %v2278
  %v2280 = vpop.f32.mrb[0].mxu0
  %v2281 = vpop.f32.mrb[0].mxu0
  %v2282 = vadd.f32 %v2185, %v2281
  %v2283 = vpop.f32.mrb[0].mxu0
  %2284 = vmatprep.mubr.bf16.mxu0 %v897
  %2285 = vmatmul.mubr.bf16.gmra.mrb[0].mxu0 %v896
  %v2286 = vpop.f32.mrb[0].mxu0
  %v2287 = vadd.f32 %v2190, %v2286
  %v2288 = vpop.f32.mrb[0].mxu0
  %v2289 = vpop.f32.mrb[0].mxu0
  %v2290 = vadd.f32 %v2193, %v2289
  %v2291 = vpop.f32.mrb[0].mxu0
  %2292 = vmatprep.mubr.bf16.mxu0 %v913
  %2293 = vmatmul.mubr.bf16.gmra.mrb[0].mxu0 %v912
  %v2294 = vpop.f32.mrb[0].mxu0
  %v2295 = vadd.f32 %v2198, %v2294
  %v2296 = vpop.f32.mrb[0].mxu0
  %v2297 = vpop.f32.mrb[0].mxu0
  %v2298 = vadd.f32 %v2201, %v2297
  %v2299 = vpop.f32.mrb[0].mxu0
  %2300 = vdwg.mxu0
  %2301 = vmatprep.subr.bf16.mxu0 0
  %2302 = vmatpush1.bf16.msra.mxu0 %v1640
  %2303 = vmatprep.subr.bf16.mxu0 0
  %2304 = vmatpush1.bf16.msra.mxu0 %v1641
  %2305 = vmatprep.subr.bf16.mxu0 0
  %2306 = vmatpush1.bf16.msra.mxu0 %v1642
  %2307 = vmatprep.subr.bf16.mxu0 0
  %2308 = vmatpush1.bf16.msra.mxu0 %v1643
  %2309 = vmatprep.subr.bf16.mxu0 0
  %2310 = vmatpush1.bf16.msra.mxu0 %v1644
  %2311 = vmatprep.subr.bf16.mxu0 0
  %2312 = vmatpush1.bf16.msra.mxu0 %v1645
  %2313 = vmatprep.subr.bf16.mxu0 0
  %2314 = vmatpush1.bf16.msra.mxu0 %v1646
  %2315 = vmatprep.subr.bf16.mxu0 0
  %2316 = vmatpush1.bf16.msra.mxu0 %v1647
  %2317 = vmatprep.subr.bf16.mxu0 0
  %2318 = vmatpush1.bf16.msra.mxu0 %v1648
  %2319 = vmatprep.subr.bf16.mxu0 0
  %2320 = vmatpush1.bf16.msra.mxu0 %v1649
  %2321 = vmatprep.subr.bf16.mxu0 0
  %2322 = vmatpush1.bf16.msra.mxu0 %v1650
  %2323 = vmatprep.subr.bf16.mxu0 0
  %2324 = vmatpush1.bf16.msra.mxu0 %v1651
  %2325 = vmatprep.subr.bf16.mxu0 0
  %2326 = vmatpush1.bf16.msra.mxu0 %v1652
  %2327 = vmatprep.subr.bf16.mxu0 0
  %2328 = vmatpush1.bf16.msra.mxu0 %v1653
  %2329 = vmatprep.subr.bf16.mxu0 0
  %2330 = vmatpush1.bf16.msra.mxu0 %v1654
  %2331 = vmatprep.subr.bf16.mxu0 0
  %2332 = vmatpush1.bf16.msra.mxu0 %v1655
  %2333 = vmatprep.mubr.bf16.mxu0 %v803
  %2334 = vmatmul.mubr.bf16.gmra.mrb[0].mxu0 %v802
  %v2335 = vpop.f32.mrb[0].mxu0
  %v2336 = vadd.f32 %v2239, %v2335
  %v2337 = vpop.f32.mrb[0].mxu0
  %v2338 = vpop.f32.mrb[0].mxu0
  %v2339 = vadd.f32 %v2242, %v2338
  %v2340 = vpop.f32.mrb[0].mxu0
  %2341 = vmatprep.mubr.bf16.mxu0 %v819
  %2342 = vmatmul.mubr.bf16.gmra.mrb[0].mxu0 %v818
  %v2343 = vpop.f32.mrb[0].mxu0
  %v2344 = vadd.f32 %v2247, %v2343
  %v2345 = vpop.f32.mrb[0].mxu0
  %v2346 = vpop.f32.mrb[0].mxu0
  %v2347 = vadd.f32 %v2250, %v2346
  %v2348 = vpop.f32.mrb[0].mxu0
  %2349 = vmatprep.mubr.bf16.mxu0 %v835
  %2350 = vmatmul.mubr.bf16.gmra.mrb[0].mxu0 %v834
  %v2351 = vpop.f32.mrb[0].mxu0
  %v2352 = vadd.f32 %v2255, %v2351
  %v2353 = vpop.f32.mrb[0].mxu0
  %v2354 = vpop.f32.mrb[0].mxu0
  %v2355 = vadd.f32 %v2258, %v2354
  %v2356 = vpop.f32.mrb[0].mxu0
  %2357 = vmatprep.mubr.bf16.mxu0 %v851
  %2358 = vmatmul.mubr.bf16.gmra.mrb[0].mxu0 %v850
  %v2359 = vpop.f32.mrb[0].mxu0
  %v2360 = vadd.f32 %v2263, %v2359
  %v2361 = vpop.f32.mrb[0].mxu0
  %v2362 = vpop.f32.mrb[0].mxu0
  %v2363 = vadd.f32 %v2266, %v2362
  %v2364 = vpop.f32.mrb[0].mxu0
  %2365 = vmatprep.mubr.bf16.mxu0 %v867
  %2366 = vmatmul.mubr.bf16.gmra.mrb[0].mxu0 %v866
  %v2367 = vpop.f32.mrb[0].mxu0
  %v2368 = vadd.f32 %v2271, %v2367
  %v2369 = vpop.f32.mrb[0].mxu0
  %v2370 = vpop.f32.mrb[0].mxu0
  %v2371 = vadd.f32 %v2274, %v2370
  %v2372 = vpop.f32.mrb[0].mxu0
  %2373 = vmatprep.mubr.bf16.mxu0 %v883
  %2374 = vmatmul.mubr.bf16.gmra.mrb[0].mxu0 %v882
  %v2375 = vpop.f32.mrb[0].mxu0
  %v2376 = vadd.f32 %v2279, %v2375
  %v2377 = vpop.f32.mrb[0].mxu0
  %v2378 = vpop.f32.mrb[0].mxu0
  %v2379 = vadd.f32 %v2282, %v2378
  %v2380 = vpop.f32.mrb[0].mxu0
  %2381 = vmatprep.mubr.bf16.mxu0 %v899
  %2382 = vmatmul.mubr.bf16.gmra.mrb[0].mxu0 %v898
  %v2383 = vpop.f32.mrb[0].mxu0
  %v2384 = vadd.f32 %v2287, %v2383
  %v2385 = vpop.f32.mrb[0].mxu0
  %v2386 = vpop.f32.mrb[0].mxu0
  %v2387 = vadd.f32 %v2290, %v2386
  %v2388 = vpop.f32.mrb[0].mxu0
  %2389 = vmatprep.mubr.bf16.mxu0 %v915
  %2390 = vmatmul.mubr.bf16.gmra.mrb[0].mxu0 %v914
  %v2391 = vpop.f32.mrb[0].mxu0
  %v2392 = vadd.f32 %v2295, %v2391
  %v2393 = vpop.f32.mrb[0].mxu0
  %v2394 = vpop.f32.mrb[0].mxu0
  %v2395 = vadd.f32 %v2298, %v2394
  %v2396 = vpop.f32.mrb[0].mxu0
  %2397 = vdwg.mxu0
  %2398 = vmatprep.subr.bf16.mxu0 0
  %2399 = vmatpush1.bf16.msra.mxu0 %v1656
  %2400 = vmatprep.subr.bf16.mxu0 0
  %2401 = vmatpush1.bf16.msra.mxu0 %v1657
  %2402 = vmatprep.subr.bf16.mxu0 0
  %2403 = vmatpush1.bf16.msra.mxu0 %v1658
  %2404 = vmatprep.subr.bf16.mxu0 0
  %2405 = vmatpush1.bf16.msra.mxu0 %v1659
  %2406 = vmatprep.subr.bf16.mxu0 0
  %2407 = vmatpush1.bf16.msra.mxu0 %v1660
  %2408 = vmatprep.subr.bf16.mxu0 0
  %2409 = vmatpush1.bf16.msra.mxu0 %v1661
  %2410 = vmatprep.subr.bf16.mxu0 0
  %2411 = vmatpush1.bf16.msra.mxu0 %v1662
  %2412 = vmatprep.subr.bf16.mxu0 0
  %2413 = vmatpush1.bf16.msra.mxu0 %v1663
  %2414 = vmatprep.subr.bf16.mxu0 0
  %2415 = vmatpush1.bf16.msra.mxu0 %v1664
  %2416 = vmatprep.subr.bf16.mxu0 0
  %2417 = vmatpush1.bf16.msra.mxu0 %v1665
  %2418 = vmatprep.subr.bf16.mxu0 0
  %2419 = vmatpush1.bf16.msra.mxu0 %v1666
  %2420 = vmatprep.subr.bf16.mxu0 0
  %2421 = vmatpush1.bf16.msra.mxu0 %v1667
  %2422 = vmatprep.subr.bf16.mxu0 0
  %2423 = vmatpush1.bf16.msra.mxu0 %v1668
  %2424 = vmatprep.subr.bf16.mxu0 0
  %2425 = vmatpush1.bf16.msra.mxu0 %v1669
  %2426 = vmatprep.subr.bf16.mxu0 0
  %2427 = vmatpush1.bf16.msra.mxu0 %v1670
  %2428 = vmatprep.subr.bf16.mxu0 0
  %2429 = vmatpush1.bf16.msra.mxu0 %v1671
  %2430 = vmatprep.mubr.bf16.mxu0 %v805
  %2431 = vmatmul.mubr.bf16.gmra.mrb[0].mxu0 %v804
  %v2432 = vpop.f32.mrb[0].mxu0
  %v2433 = vadd.f32 %v2336, %v2432
  %v2434 = vpop.f32.mrb[0].mxu0
  %v2435 = vpop.f32.mrb[0].mxu0
  %v2436 = vadd.f32 %v2339, %v2435
  %v2437 = vpop.f32.mrb[0].mxu0
  %2438 = vmatprep.mubr.bf16.mxu0 %v821
  %2439 = vmatmul.mubr.bf16.gmra.mrb[0].mxu0 %v820
  %v2440 = vpop.f32.mrb[0].mxu0
  %v2441 = vadd.f32 %v2344, %v2440
  %v2442 = vpop.f32.mrb[0].mxu0
  %v2443 = vpop.f32.mrb[0].mxu0
  %v2444 = vadd.f32 %v2347, %v2443
  %v2445 = vpop.f32.mrb[0].mxu0
  %2446 = vmatprep.mubr.bf16.mxu0 %v837
  %2447 = vmatmul.mubr.bf16.gmra.mrb[0].mxu0 %v836
  %v2448 = vpop.f32.mrb[0].mxu0
  %v2449 = vadd.f32 %v2352, %v2448
  %v2450 = vpop.f32.mrb[0].mxu0
  %v2451 = vpop.f32.mrb[0].mxu0
  %v2452 = vadd.f32 %v2355, %v2451
  %v2453 = vpop.f32.mrb[0].mxu0
  %2454 = vmatprep.mubr.bf16.mxu0 %v853
  %2455 = vmatmul.mubr.bf16.gmra.mrb[0].mxu0 %v852
  %v2456 = vpop.f32.mrb[0].mxu0
  %v2457 = vadd.f32 %v2360, %v2456
  %v2458 = vpop.f32.mrb[0].mxu0
  %v2459 = vpop.f32.mrb[0].mxu0
  %v2460 = vadd.f32 %v2363, %v2459
  %v2461 = vpop.f32.mrb[0].mxu0
  %2462 = vmatprep.mubr.bf16.mxu0 %v869
  %2463 = vmatmul.mubr.bf16.gmra.mrb[0].mxu0 %v868
  %v2464 = vpop.f32.mrb[0].mxu0
  %v2465 = vadd.f32 %v2368, %v2464
  %v2466 = vpop.f32.mrb[0].mxu0
  %v2467 = vpop.f32.mrb[0].mxu0
  %v2468 = vadd.f32 %v2371, %v2467
  %v2469 = vpop.f32.mrb[0].mxu0
  %2470 = vmatprep.mubr.bf16.mxu0 %v885
  %2471 = vmatmul.mubr.bf16.gmra.mrb[0].mxu0 %v884
  %v2472 = vpop.f32.mrb[0].mxu0
  %v2473 = vadd.f32 %v2376, %v2472
  %v2474 = vpop.f32.mrb[0].mxu0
  %v2475 = vpop.f32.mrb[0].mxu0
  %v2476 = vadd.f32 %v2379, %v2475
  %v2477 = vpop.f32.mrb[0].mxu0
  %2478 = vmatprep.mubr.bf16.mxu0 %v901
  %2479 = vmatmul.mubr.bf16.gmra.mrb[0].mxu0 %v900
  %v2480 = vpop.f32.mrb[0].mxu0
  %v2481 = vadd.f32 %v2384, %v2480
  %v2482 = vpop.f32.mrb[0].mxu0
  %v2483 = vpop.f32.mrb[0].mxu0
  %v2484 = vadd.f32 %v2387, %v2483
  %v2485 = vpop.f32.mrb[0].mxu0
  %2486 = vmatprep.mubr.bf16.mxu0 %v917
  %2487 = vmatmul.mubr.bf16.gmra.mrb[0].mxu0 %v916
  %v2488 = vpop.f32.mrb[0].mxu0
  %v2489 = vadd.f32 %v2392, %v2488
  %v2490 = vpop.f32.mrb[0].mxu0
  %v2491 = vpop.f32.mrb[0].mxu0
  %v2492 = vadd.f32 %v2395, %v2491
  %v2493 = vpop.f32.mrb[0].mxu0
  %2494 = vdwg.mxu0
  %2495 = vmatprep.subr.bf16.mxu0 0
  %2496 = vmatpush1.bf16.msra.mxu0 %v1672
  %2497 = vmatprep.subr.bf16.mxu0 0
  %2498 = vmatpush1.bf16.msra.mxu0 %v1673
  %2499 = vmatprep.subr.bf16.mxu0 0
  %2500 = vmatpush1.bf16.msra.mxu0 %v1674
  %2501 = vmatprep.subr.bf16.mxu0 0
  %2502 = vmatpush1.bf16.msra.mxu0 %v1675
  %2503 = vmatprep.subr.bf16.mxu0 0
  %2504 = vmatpush1.bf16.msra.mxu0 %v1676
  %2505 = vmatprep.subr.bf16.mxu0 0
  %2506 = vmatpush1.bf16.msra.mxu0 %v1677
  %2507 = vmatprep.subr.bf16.mxu0 0
  %2508 = vmatpush1.bf16.msra.mxu0 %v1678
  %2509 = vmatprep.subr.bf16.mxu0 0
  %2510 = vmatpush1.bf16.msra.mxu0 %v1679
  %2511 = vmatprep.subr.bf16.mxu0 0
  %2512 = vmatpush1.bf16.msra.mxu0 %v1680
  %2513 = vmatprep.subr.bf16.mxu0 0
  %2514 = vmatpush1.bf16.msra.mxu0 %v1681
  %2515 = vmatprep.subr.bf16.mxu0 0
  %2516 = vmatpush1.bf16.msra.mxu0 %v1682
  %2517 = vmatprep.subr.bf16.mxu0 0
  %2518 = vmatpush1.bf16.msra.mxu0 %v1683
  %2519 = vmatprep.subr.bf16.mxu0 0
  %2520 = vmatpush1.bf16.msra.mxu0 %v1684
  %2521 = vmatprep.subr.bf16.mxu0 0
  %2522 = vmatpush1.bf16.msra.mxu0 %v1685
  %2523 = vmatprep.subr.bf16.mxu0 0
  %2524 = vmatpush1.bf16.msra.mxu0 %v1686
  %2525 = vmatprep.subr.bf16.mxu0 0
  %2526 = vmatpush1.bf16.msra.mxu0 %v1687
  %2527 = vmatprep.mubr.bf16.mxu0 %v807
  %2528 = vmatmul.mubr.bf16.gmra.mrb[0].mxu0 %v806
  %v2529 = vpop.f32.mrb[0].mxu0
  %v2530 = vadd.f32 %v2433, %v2529
  %v2531 = vpop.f32.mrb[0].mxu0
  %v2532 = vpop.f32.mrb[0].mxu0
  %v2533 = vadd.f32 %v2436, %v2532
  %v2534 = vpop.f32.mrb[0].mxu0
  %2535 = vmatprep.mubr.bf16.mxu0 %v823
  %2536 = vmatmul.mubr.bf16.gmra.mrb[0].mxu0 %v822
  %v2537 = vpop.f32.mrb[0].mxu0
  %v2538 = vadd.f32 %v2441, %v2537
  %v2539 = vpop.f32.mrb[0].mxu0
  %v2540 = vpop.f32.mrb[0].mxu0
  %v2541 = vadd.f32 %v2444, %v2540
  %v2542 = vpop.f32.mrb[0].mxu0
  %2543 = vmatprep.mubr.bf16.mxu0 %v839
  %2544 = vmatmul.mubr.bf16.gmra.mrb[0].mxu0 %v838
  %v2545 = vpop.f32.mrb[0].mxu0
  %v2546 = vadd.f32 %v2449, %v2545
  %v2547 = vpop.f32.mrb[0].mxu0
  %v2548 = vpop.f32.mrb[0].mxu0
  %v2549 = vadd.f32 %v2452, %v2548
  %v2550 = vpop.f32.mrb[0].mxu0
  %2551 = vmatprep.mubr.bf16.mxu0 %v855
  %2552 = vmatmul.mubr.bf16.gmra.mrb[0].mxu0 %v854
  %v2553 = vpop.f32.mrb[0].mxu0
  %v2554 = vadd.f32 %v2457, %v2553
  %v2555 = vpop.f32.mrb[0].mxu0
  %v2556 = vpop.f32.mrb[0].mxu0
  %v2557 = vadd.f32 %v2460, %v2556
  %v2558 = vpop.f32.mrb[0].mxu0
  %2559 = vmatprep.mubr.bf16.mxu0 %v871
  %2560 = vmatmul.mubr.bf16.gmra.mrb[0].mxu0 %v870
  %v2561 = vpop.f32.mrb[0].mxu0
  %v2562 = vadd.f32 %v2465, %v2561
  %v2563 = vpop.f32.mrb[0].mxu0
  %v2564 = vpop.f32.mrb[0].mxu0
  %v2565 = vadd.f32 %v2468, %v2564
  %v2566 = vpop.f32.mrb[0].mxu0
  %2567 = vmatprep.mubr.bf16.mxu0 %v887
  %2568 = vmatmul.mubr.bf16.gmra.mrb[0].mxu0 %v886
  %v2569 = vpop.f32.mrb[0].mxu0
  %v2570 = vadd.f32 %v2473, %v2569
  %v2571 = vpop.f32.mrb[0].mxu0
  %v2572 = vpop.f32.mrb[0].mxu0
  %v2573 = vadd.f32 %v2476, %v2572
  %v2574 = vpop.f32.mrb[0].mxu0
  %2575 = vmatprep.mubr.bf16.mxu0 %v903
  %2576 = vmatmul.mubr.bf16.gmra.mrb[0].mxu0 %v902
  %v2577 = vpop.f32.mrb[0].mxu0
  %v2578 = vadd.f32 %v2481, %v2577
  %v2579 = vpop.f32.mrb[0].mxu0
  %v2580 = vpop.f32.mrb[0].mxu0
  %v2581 = vadd.f32 %v2484, %v2580
  %v2582 = vpop.f32.mrb[0].mxu0
  %2583 = vmatprep.mubr.bf16.mxu0 %v919
  %2584 = vmatmul.mubr.bf16.gmra.mrb[0].mxu0 %v918
  %v2585 = vpop.f32.mrb[0].mxu0
  %v2586 = vadd.f32 %v2489, %v2585
  %v2587 = vpop.f32.mrb[0].mxu0
  %v2588 = vpop.f32.mrb[0].mxu0
  %v2589 = vadd.f32 %v2492, %v2588
  %v2590 = vpop.f32.mrb[0].mxu0
  %2591 = vdwg.mxu0
  %v2592 = vadd.f32 %v2530, %v2533
  %v2593 = vadd.f32 %v2592, %v2538
  %v2594 = vadd.f32 %v2593, %v2541
  %v2595 = vadd.f32 %v2594, %v2546
  %v2596 = vadd.f32 %v2595, %v2549
  %v2597 = vadd.f32 %v2596, %v2554
  %v2598 = vadd.f32 %v2597, %v2557
  %v2599 = vadd.f32 %v2598, %v2562
  %v2600 = vadd.f32 %v2599, %v2565
  %v2601 = vadd.f32 %v2600, %v2570
  %v2602 = vadd.f32 %v2601, %v2573
  %v2603 = vadd.f32 %v2602, %v2578
  %v2604 = vadd.f32 %v2603, %v2581
  %v2605 = vadd.f32 %v2604, %v2586
  %v2606 = vadd.f32 %v2605, %v2589
  %v2607 = vrot.slane %v2606, 4
  %v2608 = vadd.f32 %v2606, %v2607
  %v2609 = vrot.slane %v2608, 2
  %v2610 = vadd.f32 %v2608, %v2609
  %v2611 = vrot.slane %v2610, 1
  %v2612 = vadd.f32 %v2610, %v2611
  %v2613 = vmul.f32 %v2530, %v2530
  %v2614 = vmul.f32 %v2533, %v2533
  %v2615 = vmul.f32 %v2538, %v2538
  %v2616 = vmul.f32 %v2541, %v2541
  %v2617 = vmul.f32 %v2546, %v2546
  %v2618 = vmul.f32 %v2549, %v2549
  %v2619 = vmul.f32 %v2554, %v2554
  %v2620 = vmul.f32 %v2557, %v2557
  %v2621 = vmul.f32 %v2562, %v2562
  %v2622 = vmul.f32 %v2565, %v2565
  %v2623 = vmul.f32 %v2570, %v2570
  %v2624 = vmul.f32 %v2573, %v2573
  %v2625 = vmul.f32 %v2578, %v2578
  %v2626 = vmul.f32 %v2581, %v2581
  %v2627 = vmul.f32 %v2586, %v2586
  %v2628 = vmul.f32 %v2589, %v2589
  %v2629 = vadd.f32 %v2613, %v2614
  %v2630 = vadd.f32 %v2629, %v2615
  %v2631 = vadd.f32 %v2630, %v2616
  %v2632 = vadd.f32 %v2631, %v2617
  %v2633 = vadd.f32 %v2632, %v2618
  %v2634 = vadd.f32 %v2633, %v2619
  %v2635 = vadd.f32 %v2634, %v2620
  %v2636 = vadd.f32 %v2635, %v2621
  %v2637 = vadd.f32 %v2636, %v2622
  %v2638 = vadd.f32 %v2637, %v2623
  %v2639 = vadd.f32 %v2638, %v2624
  %v2640 = vadd.f32 %v2639, %v2625
  %v2641 = vadd.f32 %v2640, %v2626
  %v2642 = vadd.f32 %v2641, %v2627
  %v2643 = vadd.f32 %v2642, %v2628
  %v2644 = vrot.slane %v2643, 4
  %v2645 = vadd.f32 %v2643, %v2644
  %v2646 = vrot.slane %v2645, 2
  %v2647 = vadd.f32 %v2645, %v2646
  %v2648 = vrot.slane %v2647, 1
  %v2649 = vadd.f32 %v2647, %v2648
  %vm2650 = vcmask 1040384
  %v2651 = vsel %vm2650, %v2612, %v2649
  %2652 = vst [vmem:[%s4] sm:$0x3] %v2651
  %v2653 = vpack.c.bf16 %v2533, %v2530
  %v2654 = vpack.c.bf16 %v2541, %v2538
  %v2655 = vpack.c.bf16 %v2549, %v2546
  %v2656 = vpack.c.bf16 %v2557, %v2554
  %v2657 = vpack.c.bf16 %v2565, %v2562
  %v2658 = vpack.c.bf16 %v2573, %v2570
  %v2659 = vpack.c.bf16 %v2581, %v2578
  %v2660 = vpack.c.bf16 %v2589, %v2586
  %v2669 = vunpack.c.l.b16 %v2653
  %v2670 = vunpack.c.h.b16 %v2653
  %v2671 = vunpack.c.l.b16 %v2654
  %v2672 = vunpack.c.h.b16 %v2654
  %v2673 = vunpack.c.l.b16 %v2655
  %v2674 = vunpack.c.h.b16 %v2655
  %v2675 = vunpack.c.l.b16 %v2656
  %v2676 = vunpack.c.h.b16 %v2656
  %v2677 = vunpack.c.l.b16 %v2657
  %v2678 = vunpack.c.h.b16 %v2657
  %v2679 = vunpack.c.l.b16 %v2658
  %v2680 = vunpack.c.h.b16 %v2658
  %v2681 = vunpack.c.l.b16 %v2659
  %v2682 = vunpack.c.h.b16 %v2659
  %v2683 = vunpack.c.l.b16 %v2660
  %v2684 = vunpack.c.h.b16 %v2660
  %v2685 = vpack.c.b16 %v2669, %v2669
  %v2686 = vpack.c.b16 %v2670, %v2670
  %v2687 = vpack.c.b16 %v2671, %v2671
  %v2688 = vpack.c.b16 %v2672, %v2672
  %v2689 = vpack.c.b16 %v2673, %v2673
  %v2690 = vpack.c.b16 %v2674, %v2674
  %v2691 = vpack.c.b16 %v2675, %v2675
  %v2692 = vpack.c.b16 %v2676, %v2676
  %v2693 = vpack.c.b16 %v2677, %v2677
  %v2694 = vpack.c.b16 %v2678, %v2678
  %v2695 = vpack.c.b16 %v2679, %v2679
  %v2696 = vpack.c.b16 %v2680, %v2680
  %v2697 = vpack.c.b16 %v2681, %v2681
  %v2698 = vpack.c.b16 %v2682, %v2682
  %v2699 = vpack.c.b16 %v2683, %v2683
  %v2700 = vpack.c.b16 %v2684, %v2684
  %2717 = vst [vmem:[%s3] sm:$0xf] %v2685
  %2718 = vst [vmem:[%s3 + $0x4] sm:$0xf] %v2686
  %2719 = vst [vmem:[%s3 + $0x8] sm:$0xf] %v2687
  %2720 = vst [vmem:[%s3 + $0xc] sm:$0xf] %v2688
  %2721 = vst [vmem:[%s3 + $0x10] sm:$0xf] %v2689
  %2722 = vst [vmem:[%s3 + $0x14] sm:$0xf] %v2690
  %2723 = vst [vmem:[%s3 + $0x18] sm:$0xf] %v2691
  %2724 = vst [vmem:[%s3 + $0x1c] sm:$0xf] %v2692
  %2725 = vst [vmem:[%s3 + $0x20] sm:$0xf] %v2693
  %2726 = vst [vmem:[%s3 + $0x24] sm:$0xf] %v2694
  %2727 = vst [vmem:[%s3 + $0x28] sm:$0xf] %v2695
  %2728 = vst [vmem:[%s3 + $0x2c] sm:$0xf] %v2696
  %2729 = vst [vmem:[%s3 + $0x30] sm:$0xf] %v2697
  %2730 = vst [vmem:[%s3 + $0x34] sm:$0xf] %v2698
  %2731 = vst [vmem:[%s3 + $0x38] sm:$0xf] %v2699
  %2732 = vst [vmem:[%s3 + $0x3c] sm:$0xf] %v2700
  // Predicated region
  $region14: #{discriminator_forward.6} parent=0 // pred_check
    _
  $region15: #{discriminator_forward.6} parent=0 // pred_check_branch
    %2734 = sbr.rel (0) target = $region17
  $region16: #{discriminator_forward.6} parent=0 // pred_region
    _
  $region17: #{discriminator_forward.6} parent=0 // pred_fallthru
    _
  // Predicated region
  $region18: #{discriminator_forward.6} parent=0 // pred_check
    _
  $region19: #{discriminator_forward.6} parent=0 // pred_check_branch
    %2736 = sbr.rel (0) target = $region21
  $region20: #{discriminator_forward.6} parent=0 // pred_region
    _
  $region21: #{discriminator_forward.6} parent=0 // pred_fallthru
    _
  // Predicated region
  $region22: #{discriminator_forward.6} parent=0 // pred_check
    _
  $region23: #{discriminator_forward.6} parent=0 // pred_check_branch
    %2738 = sbr.rel (0) target = $region25
  $region24: #{discriminator_forward.6} parent=0 // pred_region
    _
  $region25: #{discriminator_forward.6} parent=0 // pred_fallthru
    _
  // Predicated region
  $region26: #{discriminator_forward.6} parent=0 // pred_check
    _
  $region27: #{discriminator_forward.6} parent=0 // pred_check_branch
    %2740 = sbr.rel (0) target = $region29
  $region28: #{discriminator_forward.6} parent=0 // pred_region
    _
  $region29: #{discriminator_forward.6} parent=0 // pred_fallthru
    _

// kernel: discriminator_forward.8
$region0: #{discriminator_forward.8}
  #allocation0 [shape = 'u32[]', space=smem, size = 0x4, offset = 0x4, fixed_abs, tag = 'smem constant byte address 0x4 - core index']
  #allocation1 [shape = 'u32[144,128]{1,0:T(1,128)}', space=vmem, size = 0x12000, scoped, tag = 'internal scratch']
  %s0 = inlined_call_operand.vmem [shape: bf16[32,2048], index: 0, kind: input, shape index: {}]
  %s1 = inlined_call_operand.vmem [shape: bf16[2048,256], index: 1, kind: input, shape index: {}]
  %s2 = inlined_call_operand.vmem [shape: f32[1,256], index: 2, kind: input, shape index: {}]
  %s3 = inlined_call_operand.vmem [shape: bf16[32,256], index: 3, kind: output, shape index: {0}]
  %s4 = inlined_call_operand.vmem [shape: f32[1,2,256], index: 4, kind: output, shape index: {1}]
  %5 = xla_tuple %s3, %s4
  %s6 = sld [smem:[#allocation0]]
  $region131: #{discriminator_forward.8} parent=0
    _
  %s8 = ssub.s32 1, %s6
  %s9 = scalar_select 0, %s8, %s6
  $region1: #{discriminator_forward.8} parent=0
    #allocation2 [shape = 'u8[1048576]{0}', space=vmem, size = 0x100000, scoped, tag = 'input window, operand 1']
    #allocation3 [shape = 'u8[16384]{0}', space=vmem, size = 0x4000, scoped, tag = 'output window, operand 0']
    loop: start=0, step=1, limit=4
    $region2: #{discriminator_forward.8} parent=1 // loop_pre_header
      _
    $region3: #{discriminator_forward.8} parent=1 // loop_header
      %s11 = sphi 0, %s15
      %p12 = scmp.ge.s32.totalorder %s11, 4
      %s18 = sphi 0, %s30
      %s19 = sphi 0, %s26
      %s20 = sphi 0, %s18
      %s21 = sphi 0, %s19
      %s22 = sphi 0, %s20
      %s23 = sphi 0, %s21
      %s33 = sphi 0, %s35
      %s36 = sphi 0, %s33
      %s37 = sphi 0, %s36
      %s53 = sphi 0, %s37
      %s59 = sphi 0, %s61
      %s62 = sphi 0, %s59
      %s63 = sphi 0, %s62
      %s79 = sphi 0, %s63
      %s85 = sphi 0, %s87
      %s88 = sphi 0, %s85
      %s89 = sphi 0, %s88
      %s105 = sphi 0, %s89
      %s113 = sphi 0, %s115
      %s116 = sphi 0, %s113
      %s117 = sphi 0, %s116
      %s133 = sphi 0, %s117
      %s141 = sphi 0, %s143
      %s144 = sphi 0, %s141
      %s145 = sphi 0, %s144
      %s161 = sphi 0, %s145
    $region4: #{discriminator_forward.8} parent=1 // loop_header_branch
      %14 = sbr.rel (%p12) target = $region8
    $region5: #{discriminator_forward.8} parent=1 // loop_body
      %s16 = ssub.s32 %s11, 1
      %s17 = ssub.s32 %s11, 2
      %s24 = sadd.s32 1, %s19
      %p25 = scmp.ge.s32.totalorder %s24, 2
      %s26 = scalar_select %p25, 0, %s24
      %s27 = sadd.s32 1, %s18
      %s28 = scalar_select %p25, %s27, %s18
      %p29 = scmp.ge.s32.totalorder %s28, 1
      %s30 = scalar_select %p29, 0, %s28
      %s31 = ssub.s32 %s18, %s30
      %p32 = scmp.eq.s32.totalorder %s31, 0
      %s34 = sadd.s32 %s33, 1
      %s35 = scalar_select %p32, %s33, %s34
      %p38 = pneg %p32
      %p39 = scmp.eq.s32.totalorder %s11, 1
      %p40 = por %p38, %p39
      %p41 = scmp.ne.s32.totalorder %s33, %s36
      %p42 = scmp.eq.s32.totalorder %s11, 0
      %p43 = por %p41, %p42
      %p44 = scmp.ne.s32.totalorder %s33, %s36
      %p45 = scmp.eq.s32.totalorder %s16, 1
      %p46 = por %p44, %p45
      %p47 = scmp.ne.s32.totalorder %s36, %s37
      %p48 = scmp.eq.s32.totalorder %s16, 0
      %p49 = por %p47, %p48
      %p50 = scmp.ne.s32.totalorder %s36, %s37
      %p51 = scmp.eq.s32.totalorder %s17, 1
      %p52 = por %p50, %p51
      %p54 = scmp.ne.s32.totalorder %s37, %s53
      %p55 = scmp.eq.s32.totalorder %s17, 0
      %p56 = por %p54, %p55
      %s57 = ssub.s32 %s19, %s26
      %p58 = scmp.eq.s32.totalorder %s57, 0
      %s60 = sadd.s32 %s59, 1
      %s61 = scalar_select %p58, %s59, %s60
      %p64 = pneg %p58
      %p65 = scmp.eq.s32.totalorder %s11, 1
      %p66 = por %p64, %p65
      %p67 = scmp.ne.s32.totalorder %s59, %s62
      %p68 = scmp.eq.s32.totalorder %s11, 0
      %p69 = por %p67, %p68
      %p70 = scmp.ne.s32.totalorder %s59, %s62
      %p71 = scmp.eq.s32.totalorder %s16, 1
      %p72 = por %p70, %p71
      %p73 = scmp.ne.s32.totalorder %s62, %s63
      %p74 = scmp.eq.s32.totalorder %s16, 0
      %p75 = por %p73, %p74
      %p76 = scmp.ne.s32.totalorder %s62, %s63
      %p77 = scmp.eq.s32.totalorder %s17, 1
      %p78 = por %p76, %p77
      %p80 = scmp.ne.s32.totalorder %s63, %s79
      %p81 = scmp.eq.s32.totalorder %s17, 0
      %p82 = por %p80, %p81
      %s83 = ssub.s32 %s19, %s26
      %p84 = scmp.eq.s32.totalorder %s83, 0
      %s86 = sadd.s32 %s85, 1
      %s87 = scalar_select %p84, %s85, %s86
      %p90 = pneg %p84
      %p91 = scmp.eq.s32.totalorder %s11, 1
      %p92 = por %p90, %p91
      %p93 = scmp.ne.s32.totalorder %s85, %s88
      %p94 = scmp.eq.s32.totalorder %s11, 0
      %p95 = por %p93, %p94
      %p96 = scmp.ne.s32.totalorder %s85, %s88
      %p97 = scmp.eq.s32.totalorder %s16, 1
      %p98 = por %p96, %p97
      %p99 = scmp.ne.s32.totalorder %s88, %s89
      %p100 = scmp.eq.s32.totalorder %s16, 0
      %p101 = por %p99, %p100
      %p102 = scmp.ne.s32.totalorder %s88, %s89
      %p103 = scmp.eq.s32.totalorder %s17, 1
      %p104 = por %p102, %p103
      %p106 = scmp.ne.s32.totalorder %s89, %s105
      %p107 = scmp.eq.s32.totalorder %s17, 0
      %p108 = por %p106, %p107
      %s109 = ssub.s32 %s18, %s30
      %s110 = ssub.s32 %s19, %s26
      %s111 = sor.u32 %s109, %s110
      %p112 = scmp.eq.s32.totalorder %s111, 0
      %s114 = sadd.s32 %s113, 1
      %s115 = scalar_select %p112, %s113, %s114
      %p118 = pneg %p112
      %p119 = scmp.eq.s32.totalorder %s11, 1
      %p120 = por %p118, %p119
      %p121 = scmp.ne.s32.totalorder %s113, %s116
      %p122 = scmp.eq.s32.totalorder %s11, 0
      %p123 = por %p121, %p122
      %p124 = scmp.ne.s32.totalorder %s113, %s116
      %p125 = scmp.eq.s32.totalorder %s16, 1
      %p126 = por %p124, %p125
      %p127 = scmp.ne.s32.totalorder %s116, %s117
      %p128 = scmp.eq.s32.totalorder %s16, 0
      %p129 = por %p127, %p128
      %p130 = scmp.ne.s32.totalorder %s116, %s117
      %p131 = scmp.eq.s32.totalorder %s17, 1
      %p132 = por %p130, %p131
      %p134 = scmp.ne.s32.totalorder %s117, %s133
      %p135 = scmp.eq.s32.totalorder %s17, 0
      %p136 = por %p134, %p135
      %s137 = ssub.s32 %s18, %s30
      %s138 = ssub.s32 %s19, %s26
      %s139 = sor.u32 %s137, %s138
      %p140 = scmp.eq.s32.totalorder %s139, 0
      %s142 = sadd.s32 %s141, 1
      %s143 = scalar_select %p140, %s141, %s142
      %p146 = pneg %p140
      %p147 = scmp.eq.s32.totalorder %s11, 1
      %p148 = por %p146, %p147
      %p149 = scmp.ne.s32.totalorder %s141, %s144
      %p150 = scmp.eq.s32.totalorder %s11, 0
      %p151 = por %p149, %p150
      %p152 = scmp.ne.s32.totalorder %s141, %s144
      %p153 = scmp.eq.s32.totalorder %s16, 1
      %p154 = por %p152, %p153
      %p155 = scmp.ne.s32.totalorder %s144, %s145
      %p156 = scmp.eq.s32.totalorder %s16, 0
      %p157 = por %p155, %p156
      %p158 = scmp.ne.s32.totalorder %s144, %s145
      %p159 = scmp.eq.s32.totalorder %s17, 1
      %p160 = por %p158, %p159
      %p162 = scmp.ne.s32.totalorder %s145, %s161
      %p163 = scmp.eq.s32.totalorder %s17, 0
      %p164 = por %p162, %p163
      %p165 = scmp.le.s32.totalorder 1, %s11
      %p166 = scmp.lt.s32.totalorder %s11, 3
      %p167 = pnand %p165, %p166
      %p168 = pneg %p167
      // Predicated region
      $region9: #{discriminator_forward.8} parent=5 // pred_check
        _
      $region10: #{discriminator_forward.8} parent=5 // pred_check_branch
        %170 = sbr.rel (%p167) target = $region12
      $region11: #{discriminator_forward.8} parent=5 // pred_region
        %s171 = ssub.s32 %s11, 1
        // Predicated region
        $region13: #{discriminator_forward.8} parent=11 // pred_check
          %p172 = pneg %p49
        $region14: #{discriminator_forward.8} parent=11 // pred_check_branch
          %174 = sbr.rel (%p172) target = $region16
        $region15: #{discriminator_forward.8} parent=11 // pred_region
          %s175 = smul.u32 4, %s20
          %p176 = scmp.lt.s32.totalorder %s175, 3
          %s177 = scalar_select %p176, %s175, 3
          %s178 = smul.addr %s177, 16
          %s179 = smul.addr %s178, 4
          %s180 = scalar_lea.vmem %s0, %s179
          %s181 = smul.u32 4, %s20
        $region16: #{discriminator_forward.8} parent=11 // pred_fallthru
          _
      $region12: #{discriminator_forward.8} parent=5 // pred_fallthru
        _
      %p182 = scmp.lt.s32.totalorder %s11, 2
      // Predicated region
      $region17: #{discriminator_forward.8} parent=5 // pred_check
        %p183 = pneg %p182
      $region18: #{discriminator_forward.8} parent=5 // pred_check_branch
        %185 = sbr.rel (%p183) target = $region20
      $region19: #{discriminator_forward.8} parent=5 // pred_region
        // Predicated region
        $region21: #{discriminator_forward.8} parent=19 // pred_check
          %p186 = pneg %p69
        $region22: #{discriminator_forward.8} parent=19 // pred_check_branch
          %188 = sbr.rel (%p186) target = $region24
        $region23: #{discriminator_forward.8} parent=19 // pred_region
          %s189 = sand.u32 %s59, 1
          %s190 = sand.u32 %s59, 1
          %s191 = smul.addr %s190, 1024
          %s192 = scalar_lea.vmem [#allocation2], %s191
          %s193 = smul.addr %s19, 4
          %s194 = scalar_lea.vmem %s1, %s193
          // Predicated region
          $region25: #{discriminator_forward.8} parent=23 // pred_check
            _
          $region26: #{discriminator_forward.8} parent=23 // pred_check_branch
            %196 = sbr.rel (0) target = $region28
          $region27: #{discriminator_forward.8} parent=23 // pred_region
            // Predicated region
            $region29: #{discriminator_forward.8} parent=27 // pred_check
              _
            $region30: #{discriminator_forward.8} parent=27 // pred_check_branch
              %198 = sbr.rel target = $region32
            $region31: #{discriminator_forward.8} parent=27 // pred_region
              // Predicated region
              $region44: #{discriminator_forward.8} parent=31 // pred_check
                _
              $region45: #{discriminator_forward.8} parent=31 // pred_check_branch
                %723 = sbr.rel (0) target = $region47
              $region46: #{discriminator_forward.8} parent=31 // pred_region
                loop: start=0, step=1, limit=1
                $region48: #{discriminator_forward.8} parent=46 // loop_pre_header
                  _
                $region49: #{discriminator_forward.8} parent=46 // loop_header
                  %s725 = sphi 0, %s729
                  %p726 = scmp.ge.s32.totalorder %s725, 1
                  %s730 = sphi %s194, %s194
                  %s731 = sphi %s192, %s192
                $region50: #{discriminator_forward.8} parent=46 // loop_header_branch
                  %728 = sbr.rel (%p726) target = $region54
                $region51: #{discriminator_forward.8} parent=46 // loop_body
                  _
                $region52: #{discriminator_forward.8} parent=46 // loop_footer
                  %s729 = sadd.s32 1, %s725
                $region53: #{discriminator_forward.8} parent=46 // loop_footer_branch
                  %724 = sbr.rel target = $region49
                $region54: #{discriminator_forward.8} parent=46 // loop_exit
                  _
                loop: start=0, step=1, limit=1
                $region55: #{discriminator_forward.8} parent=46 // loop_pre_header
                  _
                $region56: #{discriminator_forward.8} parent=46 // loop_header
                  %s734 = sphi 0, %s738
                  %p735 = scmp.ge.s32.totalorder %s734, 1
                  %s739 = sphi %s194, %s194
                  %s740 = sphi %s192, %s192
                $region57: #{discriminator_forward.8} parent=46 // loop_header_branch
                  %737 = sbr.rel (%p735) target = $region61
                $region58: #{discriminator_forward.8} parent=46 // loop_body
                  %v741 = vld [vmem:[%s739] sm:$0xf]
                  %742 = vst [vmem:[%s740] sm:$0xf] %v741
                  %v743 = vld [vmem:[%s739 + $0x8] sm:$0xf]
                  %744 = vst [vmem:[%s740 + $0x4] sm:$0xf] %v743
                  %v745 = vld [vmem:[%s739 + $0x10] sm:$0xf]
                  %746 = vst [vmem:[%s740 + $0x8] sm:$0xf] %v745
                  %v747 = vld [vmem:[%s739 + $0x18] sm:$0xf]
                  %748 = vst [vmem:[%s740 + $0xc] sm:$0xf] %v747
                  %v749 = vld [vmem:[%s739 + $0x20] sm:$0xf]
                  %750 = vst [vmem:[%s740 + $0x10] sm:$0xf] %v749
                  %v751 = vld [vmem:[%s739 + $0x28] sm:$0xf]
                  %752 = vst [vmem:[%s740 + $0x14] sm:$0xf] %v751
                  %v753 = vld [vmem:[%s739 + $0x30] sm:$0xf]
                  %754 = vst [vmem:[%s740 + $0x18] sm:$0xf] %v753
                  %v755 = vld [vmem:[%s739 + $0x38] sm:$0xf]
                  %756 = vst [vmem:[%s740 + $0x1c] sm:$0xf] %v755
                  %v757 = vld [vmem:[%s739 + $0x40] sm:$0xf]
                  %758 = vst [vmem:[%s740 + $0x20] sm:$0xf] %v757
                  %v759 = vld [vmem:[%s739 + $0x48] sm:$0xf]
                  %760 = vst [vmem:[%s740 + $0x24] sm:$0xf] %v759
                  %v761 = vld [vmem:[%s739 + $0x50] sm:$0xf]
                  %762 = vst [vmem:[%s740 + $0x28] sm:$0xf] %v761
                  %v763 = vld [vmem:[%s739 + $0x58] sm:$0xf]
                  %764 = vst [vmem:[%s740 + $0x2c] sm:$0xf] %v763
                  %v765 = vld [vmem:[%s739 + $0x60] sm:$0xf]
                  %766 = vst [vmem:[%s740 + $0x30] sm:$0xf] %v765
                  %v767 = vld [vmem:[%s739 + $0x68] sm:$0xf]
                  %768 = vst [vmem:[%s740 + $0x34] sm:$0xf] %v767
                  %v769 = vld [vmem:[%s739 + $0x70] sm:$0xf]
                  %770 = vst [vmem:[%s740 + $0x38] sm:$0xf] %v769
                  %v771 = vld [vmem:[%s739 + $0x78] sm:$0xf]
                  %772 = vst [vmem:[%s740 + $0x3c] sm:$0xf] %v771
                  %v773 = vld [vmem:[%s739 + $0x80] sm:$0xf]
                  %774 = vst [vmem:[%s740 + $0x40] sm:$0xf] %v773
                  %v775 = vld [vmem:[%s739 + $0x88] sm:$0xf]
                  %776 = vst [vmem:[%s740 + $0x44] sm:$0xf] %v775
                  %v777 = vld [vmem:[%s739 + $0x90] sm:$0xf]
                  %778 = vst [vmem:[%s740 + $0x48] sm:$0xf] %v777
                  %v779 = vld [vmem:[%s739 + $0x98] sm:$0xf]
                  %780 = vst [vmem:[%s740 + $0x4c] sm:$0xf] %v779
                  %v781 = vld [vmem:[%s739 + $0xa0] sm:$0xf]
                  %782 = vst [vmem:[%s740 + $0x50] sm:$0xf] %v781
                  %v783 = vld [vmem:[%s739 + $0xa8] sm:$0xf]
                  %784 = vst [vmem:[%s740 + $0x54] sm:$0xf] %v783
                  %v785 = vld [vmem:[%s739 + $0xb0] sm:$0xf]
                  %786 = vst [vmem:[%s740 + $0x58] sm:$0xf] %v785
                  %v787 = vld [vmem:[%s739 + $0xb8] sm:$0xf]
                  %788 = vst [vmem:[%s740 + $0x5c] sm:$0xf] %v787
                  %v789 = vld [vmem:[%s739 + $0xc0] sm:$0xf]
                  %790 = vst [vmem:[%s740 + $0x60] sm:$0xf] %v789
                  %v791 = vld [vmem:[%s739 + $0xc8] sm:$0xf]
                  %792 = vst [vmem:[%s740 + $0x64] sm:$0xf] %v791
                  %v793 = vld [vmem:[%s739 + $0xd0] sm:$0xf]
                  %794 = vst [vmem:[%s740 + $0x68] sm:$0xf] %v793
                  %v795 = vld [vmem:[%s739 + $0xd8] sm:$0xf]
                  %796 = vst [vmem:[%s740 + $0x6c] sm:$0xf] %v795
                  %v797 = vld [vmem:[%s739 + $0xe0] sm:$0xf]
                  %798 = vst [vmem:[%s740 + $0x70] sm:$0xf] %v797
                  %v799 = vld [vmem:[%s739 + $0xe8] sm:$0xf]
                  %800 = vst [vmem:[%s740 + $0x74] sm:$0xf] %v799
                  %v801 = vld [vmem:[%s739 + $0xf0] sm:$0xf]
                  %802 = vst [vmem:[%s740 + $0x78] sm:$0xf] %v801
                  %v803 = vld [vmem:[%s739 + $0xf8] sm:$0xf]
                  %804 = vst [vmem:[%s740 + $0x7c] sm:$0xf] %v803
                  %v805 = vld [vmem:[%s739 + $0x100] sm:$0xf]
                  %806 = vst [vmem:[%s740 + $0x80] sm:$0xf] %v805
                  %v807 = vld [vmem:[%s739 + $0x108] sm:$0xf]
                  %808 = vst [vmem:[%s740 + $0x84] sm:$0xf] %v807
                  %v809 = vld [vmem:[%s739 + $0x110] sm:$0xf]
                  %810 = vst [vmem:[%s740 + $0x88] sm:$0xf] %v809
                  %v811 = vld [vmem:[%s739 + $0x118] sm:$0xf]
                  %812 = vst [vmem:[%s740 + $0x8c] sm:$0xf] %v811
                  %v813 = vld [vmem:[%s739 + $0x120] sm:$0xf]
                  %814 = vst [vmem:[%s740 + $0x90] sm:$0xf] %v813
                  %v815 = vld [vmem:[%s739 + $0x128] sm:$0xf]
                  %816 = vst [vmem:[%s740 + $0x94] sm:$0xf] %v815
                  %v817 = vld [vmem:[%s739 + $0x130] sm:$0xf]
                  %818 = vst [vmem:[%s740 + $0x98] sm:$0xf] %v817
                  %v819 = vld [vmem:[%s739 + $0x138] sm:$0xf]
                  %820 = vst [vmem:[%s740 + $0x9c] sm:$0xf] %v819
                  %v821 = vld [vmem:[%s739 + $0x140] sm:$0xf]
                  %822 = vst [vmem:[%s740 + $0xa0] sm:$0xf] %v821
                  %v823 = vld [vmem:[%s739 + $0x148] sm:$0xf]
                  %824 = vst [vmem:[%s740 + $0xa4] sm:$0xf] %v823
                  %v825 = vld [vmem:[%s739 + $0x150] sm:$0xf]
                  %826 = vst [vmem:[%s740 + $0xa8] sm:$0xf] %v825
                  %v827 = vld [vmem:[%s739 + $0x158] sm:$0xf]
                  %828 = vst [vmem:[%s740 + $0xac] sm:$0xf] %v827
                  %v829 = vld [vmem:[%s739 + $0x160] sm:$0xf]
                  %830 = vst [vmem:[%s740 + $0xb0] sm:$0xf] %v829
                  %v831 = vld [vmem:[%s739 + $0x168] sm:$0xf]
                  %832 = vst [vmem:[%s740 + $0xb4] sm:$0xf] %v831
                  %v833 = vld [vmem:[%s739 + $0x170] sm:$0xf]
                  %834 = vst [vmem:[%s740 + $0xb8] sm:$0xf] %v833
                  %v835 = vld [vmem:[%s739 + $0x178] sm:$0xf]
                  %836 = vst [vmem:[%s740 + $0xbc] sm:$0xf] %v835
                  %v837 = vld [vmem:[%s739 + $0x180] sm:$0xf]
                  %838 = vst [vmem:[%s740 + $0xc0] sm:$0xf] %v837
                  %v839 = vld [vmem:[%s739 + $0x188] sm:$0xf]
                  %840 = vst [vmem:[%s740 + $0xc4] sm:$0xf] %v839
                  %v841 = vld [vmem:[%s739 + $0x190] sm:$0xf]
                  %842 = vst [vmem:[%s740 + $0xc8] sm:$0xf] %v841
                  %v843 = vld [vmem:[%s739 + $0x198] sm:$0xf]
                  %844 = vst [vmem:[%s740 + $0xcc] sm:$0xf] %v843
                  %v845 = vld [vmem:[%s739 + $0x1a0] sm:$0xf]
                  %846 = vst [vmem:[%s740 + $0xd0] sm:$0xf] %v845
                  %v847 = vld [vmem:[%s739 + $0x1a8] sm:$0xf]
                  %848 = vst [vmem:[%s740 + $0xd4] sm:$0xf] %v847
                  %v849 = vld [vmem:[%s739 + $0x1b0] sm:$0xf]
                  %850 = vst [vmem:[%s740 + $0xd8] sm:$0xf] %v849
                  %v851 = vld [vmem:[%s739 + $0x1b8] sm:$0xf]
                  %852 = vst [vmem:[%s740 + $0xdc] sm:$0xf] %v851
                  %v853 = vld [vmem:[%s739 + $0x1c0] sm:$0xf]
                  %854 = vst [vmem:[%s740 + $0xe0] sm:$0xf] %v853
                  %v855 = vld [vmem:[%s739 + $0x1c8] sm:$0xf]
                  %856 = vst [vmem:[%s740 + $0xe4] sm:$0xf] %v855
                  %v857 = vld [vmem:[%s739 + $0x1d0] sm:$0xf]
                  %858 = vst [vmem:[%s740 + $0xe8] sm:$0xf] %v857
                  %v859 = vld [vmem:[%s739 + $0x1d8] sm:$0xf]
                  %860 = vst [vmem:[%s740 + $0xec] sm:$0xf] %v859
                  %v861 = vld [vmem:[%s739 + $0x1e0] sm:$0xf]
                  %862 = vst [vmem:[%s740 + $0xf0] sm:$0xf] %v861
                  %v863 = vld [vmem:[%s739 + $0x1e8] sm:$0xf]
                  %864 = vst [vmem:[%s740 + $0xf4] sm:$0xf] %v863
                  %v865 = vld [vmem:[%s739 + $0x1f0] sm:$0xf]
                  %866 = vst [vmem:[%s740 + $0xf8] sm:$0xf] %v865
                  %v867 = vld [vmem:[%s739 + $0x1f8] sm:$0xf]
                  %868 = vst [vmem:[%s740 + $0xfc] sm:$0xf] %v867
                  %v869 = vld [vmem:[%s739 + $0x200] sm:$0xf]
                  %870 = vst [vmem:[%s740 + $0x100] sm:$0xf] %v869
                  %v871 = vld [vmem:[%s739 + $0x208] sm:$0xf]
                  %872 = vst [vmem:[%s740 + $0x104] sm:$0xf] %v871
                  %v873 = vld [vmem:[%s739 + $0x210] sm:$0xf]
                  %874 = vst [vmem:[%s740 + $0x108] sm:$0xf] %v873
                  %v875 = vld [vmem:[%s739 + $0x218] sm:$0xf]
                  %876 = vst [vmem:[%s740 + $0x10c] sm:$0xf] %v875
                  %v877 = vld [vmem:[%s739 + $0x220] sm:$0xf]
                  %878 = vst [vmem:[%s740 + $0x110] sm:$0xf] %v877
                  %v879 = vld [vmem:[%s739 + $0x228] sm:$0xf]
                  %880 = vst [vmem:[%s740 + $0x114] sm:$0xf] %v879
                  %v881 = vld [vmem:[%s739 + $0x230] sm:$0xf]
                  %882 = vst [vmem:[%s740 + $0x118] sm:$0xf] %v881
                  %v883 = vld [vmem:[%s739 + $0x238] sm:$0xf]
                  %884 = vst [vmem:[%s740 + $0x11c] sm:$0xf] %v883
                  %v885 = vld [vmem:[%s739 + $0x240] sm:$0xf]
                  %886 = vst [vmem:[%s740 + $0x120] sm:$0xf] %v885
                  %v887 = vld [vmem:[%s739 + $0x248] sm:$0xf]
                  %888 = vst [vmem:[%s740 + $0x124] sm:$0xf] %v887
                  %v889 = vld [vmem:[%s739 + $0x250] sm:$0xf]
                  %890 = vst [vmem:[%s740 + $0x128] sm:$0xf] %v889
                  %v891 = vld [vmem:[%s739 + $0x258] sm:$0xf]
                  %892 = vst [vmem:[%s740 + $0x12c] sm:$0xf] %v891
                  %v893 = vld [vmem:[%s739 + $0x260] sm:$0xf]
                  %894 = vst [vmem:[%s740 + $0x130] sm:$0xf] %v893
                  %v895 = vld [vmem:[%s739 + $0x268] sm:$0xf]
                  %896 = vst [vmem:[%s740 + $0x134] sm:$0xf] %v895
                  %v897 = vld [vmem:[%s739 + $0x270] sm:$0xf]
                  %898 = vst [vmem:[%s740 + $0x138] sm:$0xf] %v897
                  %v899 = vld [vmem:[%s739 + $0x278] sm:$0xf]
                  %900 = vst [vmem:[%s740 + $0x13c] sm:$0xf] %v899
                  %v901 = vld [vmem:[%s739 + $0x280] sm:$0xf]
                  %902 = vst [vmem:[%s740 + $0x140] sm:$0xf] %v901
                  %v903 = vld [vmem:[%s739 + $0x288] sm:$0xf]
                  %904 = vst [vmem:[%s740 + $0x144] sm:$0xf] %v903
                  %v905 = vld [vmem:[%s739 + $0x290] sm:$0xf]
                  %906 = vst [vmem:[%s740 + $0x148] sm:$0xf] %v905
                  %v907 = vld [vmem:[%s739 + $0x298] sm:$0xf]
                  %908 = vst [vmem:[%s740 + $0x14c] sm:$0xf] %v907
                  %v909 = vld [vmem:[%s739 + $0x2a0] sm:$0xf]
                  %910 = vst [vmem:[%s740 + $0x150] sm:$0xf] %v909
                  %v911 = vld [vmem:[%s739 + $0x2a8] sm:$0xf]
                  %912 = vst [vmem:[%s740 + $0x154] sm:$0xf] %v911
                  %v913 = vld [vmem:[%s739 + $0x2b0] sm:$0xf]
                  %914 = vst [vmem:[%s740 + $0x158] sm:$0xf] %v913
                  %v915 = vld [vmem:[%s739 + $0x2b8] sm:$0xf]
                  %916 = vst [vmem:[%s740 + $0x15c] sm:$0xf] %v915
                  %v917 = vld [vmem:[%s739 + $0x2c0] sm:$0xf]
                  %918 = vst [vmem:[%s740 + $0x160] sm:$0xf] %v917
                  %v919 = vld [vmem:[%s739 + $0x2c8] sm:$0xf]
                  %920 = vst [vmem:[%s740 + $0x164] sm:$0xf] %v919
                  %v921 = vld [vmem:[%s739 + $0x2d0] sm:$0xf]
                  %922 = vst [vmem:[%s740 + $0x168] sm:$0xf] %v921
                  %v923 = vld [vmem:[%s739 + $0x2d8] sm:$0xf]
                  %924 = vst [vmem:[%s740 + $0x16c] sm:$0xf] %v923
                  %v925 = vld [vmem:[%s739 + $0x2e0] sm:$0xf]
                  %926 = vst [vmem:[%s740 + $0x170] sm:$0xf] %v925
                  %v927 = vld [vmem:[%s739 + $0x2e8] sm:$0xf]
                  %928 = vst [vmem:[%s740 + $0x174] sm:$0xf] %v927
                  %v929 = vld [vmem:[%s739 + $0x2f0] sm:$0xf]
                  %930 = vst [vmem:[%s740 + $0x178] sm:$0xf] %v929
                  %v931 = vld [vmem:[%s739 + $0x2f8] sm:$0xf]
                  %932 = vst [vmem:[%s740 + $0x17c] sm:$0xf] %v931
                  %v933 = vld [vmem:[%s739 + $0x300] sm:$0xf]
                  %934 = vst [vmem:[%s740 + $0x180] sm:$0xf] %v933
                  %v935 = vld [vmem:[%s739 + $0x308] sm:$0xf]
                  %936 = vst [vmem:[%s740 + $0x184] sm:$0xf] %v935
                  %v937 = vld [vmem:[%s739 + $0x310] sm:$0xf]
                  %938 = vst [vmem:[%s740 + $0x188] sm:$0xf] %v937
                  %v939 = vld [vmem:[%s739 + $0x318] sm:$0xf]
                  %940 = vst [vmem:[%s740 + $0x18c] sm:$0xf] %v939
                  %v941 = vld [vmem:[%s739 + $0x320] sm:$0xf]
                  %942 = vst [vmem:[%s740 + $0x190] sm:$0xf] %v941
                  %v943 = vld [vmem:[%s739 + $0x328] sm:$0xf]
                  %944 = vst [vmem:[%s740 + $0x194] sm:$0xf] %v943
                  %v945 = vld [vmem:[%s739 + $0x330] sm:$0xf]
                  %946 = vst [vmem:[%s740 + $0x198] sm:$0xf] %v945
                  %v947 = vld [vmem:[%s739 + $0x338] sm:$0xf]
                  %948 = vst [vmem:[%s740 + $0x19c] sm:$0xf] %v947
                  %v949 = vld [vmem:[%s739 + $0x340] sm:$0xf]
                  %950 = vst [vmem:[%s740 + $0x1a0] sm:$0xf] %v949
                  %v951 = vld [vmem:[%s739 + $0x348] sm:$0xf]
                  %952 = vst [vmem:[%s740 + $0x1a4] sm:$0xf] %v951
                  %v953 = vld [vmem:[%s739 + $0x350] sm:$0xf]
                  %954 = vst [vmem:[%s740 + $0x1a8] sm:$0xf] %v953
                  %v955 = vld [vmem:[%s739 + $0x358] sm:$0xf]
                  %956 = vst [vmem:[%s740 + $0x1ac] sm:$0xf] %v955
                  %v957 = vld [vmem:[%s739 + $0x360] sm:$0xf]
                  %958 = vst [vmem:[%s740 + $0x1b0] sm:$0xf] %v957
                  %v959 = vld [vmem:[%s739 + $0x368] sm:$0xf]
                  %960 = vst [vmem:[%s740 + $0x1b4] sm:$0xf] %v959
                  %v961 = vld [vmem:[%s739 + $0x370] sm:$0xf]
                  %962 = vst [vmem:[%s740 + $0x1b8] sm:$0xf] %v961
                  %v963 = vld [vmem:[%s739 + $0x378] sm:$0xf]
                  %964 = vst [vmem:[%s740 + $0x1bc] sm:$0xf] %v963
                  %v965 = vld [vmem:[%s739 + $0x380] sm:$0xf]
                  %966 = vst [vmem:[%s740 + $0x1c0] sm:$0xf] %v965
                  %v967 = vld [vmem:[%s739 + $0x388] sm:$0xf]
                  %968 = vst [vmem:[%s740 + $0x1c4] sm:$0xf] %v967
                  %v969 = vld [vmem:[%s739 + $0x390] sm:$0xf]
                  %970 = vst [vmem:[%s740 + $0x1c8] sm:$0xf] %v969
                  %v971 = vld [vmem:[%s739 + $0x398] sm:$0xf]
                  %972 = vst [vmem:[%s740 + $0x1cc] sm:$0xf] %v971
                  %v973 = vld [vmem:[%s739 + $0x3a0] sm:$0xf]
                  %974 = vst [vmem:[%s740 + $0x1d0] sm:$0xf] %v973
                  %v975 = vld [vmem:[%s739 + $0x3a8] sm:$0xf]
                  %976 = vst [vmem:[%s740 + $0x1d4] sm:$0xf] %v975
                  %v977 = vld [vmem:[%s739 + $0x3b0] sm:$0xf]
                  %978 = vst [vmem:[%s740 + $0x1d8] sm:$0xf] %v977
                  %v979 = vld [vmem:[%s739 + $0x3b8] sm:$0xf]
                  %980 = vst [vmem:[%s740 + $0x1dc] sm:$0xf] %v979
                  %v981 = vld [vmem:[%s739 + $0x3c0] sm:$0xf]
                  %982 = vst [vmem:[%s740 + $0x1e0] sm:$0xf] %v981
                  %v983 = vld [vmem:[%s739 + $0x3c8] sm:$0xf]
                  %984 = vst [vmem:[%s740 + $0x1e4] sm:$0xf] %v983
                  %v985 = vld [vmem:[%s739 + $0x3d0] sm:$0xf]
                  %986 = vst [vmem:[%s740 + $0x1e8] sm:$0xf] %v985
                  %v987 = vld [vmem:[%s739 + $0x3d8] sm:$0xf]
                  %988 = vst [vmem:[%s740 + $0x1ec] sm:$0xf] %v987
                  %v989 = vld [vmem:[%s739 + $0x3e0] sm:$0xf]
                  %990 = vst [vmem:[%s740 + $0x1f0] sm:$0xf] %v989
                  %v991 = vld [vmem:[%s739 + $0x3e8] sm:$0xf]
                  %992 = vst [vmem:[%s740 + $0x1f4] sm:$0xf] %v991
                  %v993 = vld [vmem:[%s739 + $0x3f0] sm:$0xf]
                  %994 = vst [vmem:[%s740 + $0x1f8] sm:$0xf] %v993
                  %v995 = vld [vmem:[%s739 + $0x3f8] sm:$0xf]
                  %996 = vst [vmem:[%s740 + $0x1fc] sm:$0xf] %v995
                  %v997 = vld [vmem:[%s739 + $0x400] sm:$0xf]
                  %998 = vst [vmem:[%s740 + $0x200] sm:$0xf] %v997
                  %v999 = vld [vmem:[%s739 + $0x408] sm:$0xf]
                  %1000 = vst [vmem:[%s740 + $0x204] sm:$0xf] %v999
                  %v1001 = vld [vmem:[%s739 + $0x410] sm:$0xf]
                  %1002 = vst [vmem:[%s740 + $0x208] sm:$0xf] %v1001
                  %v1003 = vld [vmem:[%s739 + $0x418] sm:$0xf]
                  %1004 = vst [vmem:[%s740 + $0x20c] sm:$0xf] %v1003
                  %v1005 = vld [vmem:[%s739 + $0x420] sm:$0xf]
                  %1006 = vst [vmem:[%s740 + $0x210] sm:$0xf] %v1005
                  %v1007 = vld [vmem:[%s739 + $0x428] sm:$0xf]
                  %1008 = vst [vmem:[%s740 + $0x214] sm:$0xf] %v1007
                  %v1009 = vld [vmem:[%s739 + $0x430] sm:$0xf]
                  %1010 = vst [vmem:[%s740 + $0x218] sm:$0xf] %v1009
                  %v1011 = vld [vmem:[%s739 + $0x438] sm:$0xf]
                  %1012 = vst [vmem:[%s740 + $0x21c] sm:$0xf] %v1011
                  %v1013 = vld [vmem:[%s739 + $0x440] sm:$0xf]
                  %1014 = vst [vmem:[%s740 + $0x220] sm:$0xf] %v1013
                  %v1015 = vld [vmem:[%s739 + $0x448] sm:$0xf]
                  %1016 = vst [vmem:[%s740 + $0x224] sm:$0xf] %v1015
                  %v1017 = vld [vmem:[%s739 + $0x450] sm:$0xf]
                  %1018 = vst [vmem:[%s740 + $0x228] sm:$0xf] %v1017
                  %v1019 = vld [vmem:[%s739 + $0x458] sm:$0xf]
                  %1020 = vst [vmem:[%s740 + $0x22c] sm:$0xf] %v1019
                  %v1021 = vld [vmem:[%s739 + $0x460] sm:$0xf]
                  %1022 = vst [vmem:[%s740 + $0x230] sm:$0xf] %v1021
                  %v1023 = vld [vmem:[%s739 + $0x468] sm:$0xf]
                  %1024 = vst [vmem:[%s740 + $0x234] sm:$0xf] %v1023
                  %v1025 = vld [vmem:[%s739 + $0x470] sm:$0xf]
                  %1026 = vst [vmem:[%s740 + $0x238] sm:$0xf] %v1025
                  %v1027 = vld [vmem:[%s739 + $0x478] sm:$0xf]
                  %1028 = vst [vmem:[%s740 + $0x23c] sm:$0xf] %v1027
                  %v1029 = vld [vmem:[%s739 + $0x480] sm:$0xf]
                  %1030 = vst [vmem:[%s740 + $0x240] sm:$0xf] %v1029
                  %v1031 = vld [vmem:[%s739 + $0x488] sm:$0xf]
                  %1032 = vst [vmem:[%s740 + $0x244] sm:$0xf] %v1031
                  %v1033 = vld [vmem:[%s739 + $0x490] sm:$0xf]
                  %1034 = vst [vmem:[%s740 + $0x248] sm:$0xf] %v1033
                  %v1035 = vld [vmem:[%s739 + $0x498] sm:$0xf]
                  %1036 = vst [vmem:[%s740 + $0x24c] sm:$0xf] %v1035
                  %v1037 = vld [vmem:[%s739 + $0x4a0] sm:$0xf]
                  %1038 = vst [vmem:[%s740 + $0x250] sm:$0xf] %v1037
                  %v1039 = vld [vmem:[%s739 + $0x4a8] sm:$0xf]
                  %1040 = vst [vmem:[%s740 + $0x254] sm:$0xf] %v1039
                  %v1041 = vld [vmem:[%s739 + $0x4b0] sm:$0xf]
                  %1042 = vst [vmem:[%s740 + $0x258] sm:$0xf] %v1041
                  %v1043 = vld [vmem:[%s739 + $0x4b8] sm:$0xf]
                  %1044 = vst [vmem:[%s740 + $0x25c] sm:$0xf] %v1043
                  %v1045 = vld [vmem:[%s739 + $0x4c0] sm:$0xf]
                  %1046 = vst [vmem:[%s740 + $0x260] sm:$0xf] %v1045
                  %v1047 = vld [vmem:[%s739 + $0x4c8] sm:$0xf]
                  %1048 = vst [vmem:[%s740 + $0x264] sm:$0xf] %v1047
                  %v1049 = vld [vmem:[%s739 + $0x4d0] sm:$0xf]
                  %1050 = vst [vmem:[%s740 + $0x268] sm:$0xf] %v1049
                  %v1051 = vld [vmem:[%s739 + $0x4d8] sm:$0xf]
                  %1052 = vst [vmem:[%s740 + $0x26c] sm:$0xf] %v1051
                  %v1053 = vld [vmem:[%s739 + $0x4e0] sm:$0xf]
                  %1054 = vst [vmem:[%s740 + $0x270] sm:$0xf] %v1053
                  %v1055 = vld [vmem:[%s739 + $0x4e8] sm:$0xf]
                  %1056 = vst [vmem:[%s740 + $0x274] sm:$0xf] %v1055
                  %v1057 = vld [vmem:[%s739 + $0x4f0] sm:$0xf]
                  %1058 = vst [vmem:[%s740 + $0x278] sm:$0xf] %v1057
                  %v1059 = vld [vmem:[%s739 + $0x4f8] sm:$0xf]
                  %1060 = vst [vmem:[%s740 + $0x27c] sm:$0xf] %v1059
                  %v1061 = vld [vmem:[%s739 + $0x500] sm:$0xf]
                  %1062 = vst [vmem:[%s740 + $0x280] sm:$0xf] %v1061
                  %v1063 = vld [vmem:[%s739 + $0x508] sm:$0xf]
                  %1064 = vst [vmem:[%s740 + $0x284] sm:$0xf] %v1063
                  %v1065 = vld [vmem:[%s739 + $0x510] sm:$0xf]
                  %1066 = vst [vmem:[%s740 + $0x288] sm:$0xf] %v1065
                  %v1067 = vld [vmem:[%s739 + $0x518] sm:$0xf]
                  %1068 = vst [vmem:[%s740 + $0x28c] sm:$0xf] %v1067
                  %v1069 = vld [vmem:[%s739 + $0x520] sm:$0xf]
                  %1070 = vst [vmem:[%s740 + $0x290] sm:$0xf] %v1069
                  %v1071 = vld [vmem:[%s739 + $0x528] sm:$0xf]
                  %1072 = vst [vmem:[%s740 + $0x294] sm:$0xf] %v1071
                  %v1073 = vld [vmem:[%s739 + $0x530] sm:$0xf]
                  %1074 = vst [vmem:[%s740 + $0x298] sm:$0xf] %v1073
                  %v1075 = vld [vmem:[%s739 + $0x538] sm:$0xf]
                  %1076 = vst [vmem:[%s740 + $0x29c] sm:$0xf] %v1075
                  %v1077 = vld [vmem:[%s739 + $0x540] sm:$0xf]
                  %1078 = vst [vmem:[%s740 + $0x2a0] sm:$0xf] %v1077
                  %v1079 = vld [vmem:[%s739 + $0x548] sm:$0xf]
                  %1080 = vst [vmem:[%s740 + $0x2a4] sm:$0xf] %v1079
                  %v1081 = vld [vmem:[%s739 + $0x550] sm:$0xf]
                  %1082 = vst [vmem:[%s740 + $0x2a8] sm:$0xf] %v1081
                  %v1083 = vld [vmem:[%s739 + $0x558] sm:$0xf]
                  %1084 = vst [vmem:[%s740 + $0x2ac] sm:$0xf] %v1083
                  %v1085 = vld [vmem:[%s739 + $0x560] sm:$0xf]
                  %1086 = vst [vmem:[%s740 + $0x2b0] sm:$0xf] %v1085
                  %v1087 = vld [vmem:[%s739 + $0x568] sm:$0xf]
                  %1088 = vst [vmem:[%s740 + $0x2b4] sm:$0xf] %v1087
                  %v1089 = vld [vmem:[%s739 + $0x570] sm:$0xf]
                  %1090 = vst [vmem:[%s740 + $0x2b8] sm:$0xf] %v1089
                  %v1091 = vld [vmem:[%s739 + $0x578] sm:$0xf]
                  %1092 = vst [vmem:[%s740 + $0x2bc] sm:$0xf] %v1091
                  %v1093 = vld [vmem:[%s739 + $0x580] sm:$0xf]
                  %1094 = vst [vmem:[%s740 + $0x2c0] sm:$0xf] %v1093
                  %v1095 = vld [vmem:[%s739 + $0x588] sm:$0xf]
                  %1096 = vst [vmem:[%s740 + $0x2c4] sm:$0xf] %v1095
                  %v1097 = vld [vmem:[%s739 + $0x590] sm:$0xf]
                  %1098 = vst [vmem:[%s740 + $0x2c8] sm:$0xf] %v1097
                  %v1099 = vld [vmem:[%s739 + $0x598] sm:$0xf]
                  %1100 = vst [vmem:[%s740 + $0x2cc] sm:$0xf] %v1099
                  %v1101 = vld [vmem:[%s739 + $0x5a0] sm:$0xf]
                  %1102 = vst [vmem:[%s740 + $0x2d0] sm:$0xf] %v1101
                  %v1103 = vld [vmem:[%s739 + $0x5a8] sm:$0xf]
                  %1104 = vst [vmem:[%s740 + $0x2d4] sm:$0xf] %v1103
                  %v1105 = vld [vmem:[%s739 + $0x5b0] sm:$0xf]
                  %1106 = vst [vmem:[%s740 + $0x2d8] sm:$0xf] %v1105
                  %v1107 = vld [vmem:[%s739 + $0x5b8] sm:$0xf]
                  %1108 = vst [vmem:[%s740 + $0x2dc] sm:$0xf] %v1107
                  %v1109 = vld [vmem:[%s739 + $0x5c0] sm:$0xf]
                  %1110 = vst [vmem:[%s740 + $0x2e0] sm:$0xf] %v1109
                  %v1111 = vld [vmem:[%s739 + $0x5c8] sm:$0xf]
                  %1112 = vst [vmem:[%s740 + $0x2e4] sm:$0xf] %v1111
                  %v1113 = vld [vmem:[%s739 + $0x5d0] sm:$0xf]
                  %1114 = vst [vmem:[%s740 + $0x2e8] sm:$0xf] %v1113
                  %v1115 = vld [vmem:[%s739 + $0x5d8] sm:$0xf]
                  %1116 = vst [vmem:[%s740 + $0x2ec] sm:$0xf] %v1115
                  %v1117 = vld [vmem:[%s739 + $0x5e0] sm:$0xf]
                  %1118 = vst [vmem:[%s740 + $0x2f0] sm:$0xf] %v1117
                  %v1119 = vld [vmem:[%s739 + $0x5e8] sm:$0xf]
                  %1120 = vst [vmem:[%s740 + $0x2f4] sm:$0xf] %v1119
                  %v1121 = vld [vmem:[%s739 + $0x5f0] sm:$0xf]
                  %1122 = vst [vmem:[%s740 + $0x2f8] sm:$0xf] %v1121
                  %v1123 = vld [vmem:[%s739 + $0x5f8] sm:$0xf]
                  %1124 = vst [vmem:[%s740 + $0x2fc] sm:$0xf] %v1123
                  %v1125 = vld [vmem:[%s739 + $0x600] sm:$0xf]
                  %1126 = vst [vmem:[%s740 + $0x300] sm:$0xf] %v1125
                  %v1127 = vld [vmem:[%s739 + $0x608] sm:$0xf]
                  %1128 = vst [vmem:[%s740 + $0x304] sm:$0xf] %v1127
                  %v1129 = vld [vmem:[%s739 + $0x610] sm:$0xf]
                  %1130 = vst [vmem:[%s740 + $0x308] sm:$0xf] %v1129
                  %v1131 = vld [vmem:[%s739 + $0x618] sm:$0xf]
                  %1132 = vst [vmem:[%s740 + $0x30c] sm:$0xf] %v1131
                  %v1133 = vld [vmem:[%s739 + $0x620] sm:$0xf]
                  %1134 = vst [vmem:[%s740 + $0x310] sm:$0xf] %v1133
                  %v1135 = vld [vmem:[%s739 + $0x628] sm:$0xf]
                  %1136 = vst [vmem:[%s740 + $0x314] sm:$0xf] %v1135
                  %v1137 = vld [vmem:[%s739 + $0x630] sm:$0xf]
                  %1138 = vst [vmem:[%s740 + $0x318] sm:$0xf] %v1137
                  %v1139 = vld [vmem:[%s739 + $0x638] sm:$0xf]
                  %1140 = vst [vmem:[%s740 + $0x31c] sm:$0xf] %v1139
                  %v1141 = vld [vmem:[%s739 + $0x640] sm:$0xf]
                  %1142 = vst [vmem:[%s740 + $0x320] sm:$0xf] %v1141
                  %v1143 = vld [vmem:[%s739 + $0x648] sm:$0xf]
                  %1144 = vst [vmem:[%s740 + $0x324] sm:$0xf] %v1143
                  %v1145 = vld [vmem:[%s739 + $0x650] sm:$0xf]
                  %1146 = vst [vmem:[%s740 + $0x328] sm:$0xf] %v1145
                  %v1147 = vld [vmem:[%s739 + $0x658] sm:$0xf]
                  %1148 = vst [vmem:[%s740 + $0x32c] sm:$0xf] %v1147
                  %v1149 = vld [vmem:[%s739 + $0x660] sm:$0xf]
                  %1150 = vst [vmem:[%s740 + $0x330] sm:$0xf] %v1149
                  %v1151 = vld [vmem:[%s739 + $0x668] sm:$0xf]
                  %1152 = vst [vmem:[%s740 + $0x334] sm:$0xf] %v1151
                  %v1153 = vld [vmem:[%s739 + $0x670] sm:$0xf]
                  %1154 = vst [vmem:[%s740 + $0x338] sm:$0xf] %v1153
                  %v1155 = vld [vmem:[%s739 + $0x678] sm:$0xf]
                  %1156 = vst [vmem:[%s740 + $0x33c] sm:$0xf] %v1155
                  %v1157 = vld [vmem:[%s739 + $0x680] sm:$0xf]
                  %1158 = vst [vmem:[%s740 + $0x340] sm:$0xf] %v1157
                  %v1159 = vld [vmem:[%s739 + $0x688] sm:$0xf]
                  %1160 = vst [vmem:[%s740 + $0x344] sm:$0xf] %v1159
                  %v1161 = vld [vmem:[%s739 + $0x690] sm:$0xf]
                  %1162 = vst [vmem:[%s740 + $0x348] sm:$0xf] %v1161
                  %v1163 = vld [vmem:[%s739 + $0x698] sm:$0xf]
                  %1164 = vst [vmem:[%s740 + $0x34c] sm:$0xf] %v1163
                  %v1165 = vld [vmem:[%s739 + $0x6a0] sm:$0xf]
                  %1166 = vst [vmem:[%s740 + $0x350] sm:$0xf] %v1165
                  %v1167 = vld [vmem:[%s739 + $0x6a8] sm:$0xf]
                  %1168 = vst [vmem:[%s740 + $0x354] sm:$0xf] %v1167
                  %v1169 = vld [vmem:[%s739 + $0x6b0] sm:$0xf]
                  %1170 = vst [vmem:[%s740 + $0x358] sm:$0xf] %v1169
                  %v1171 = vld [vmem:[%s739 + $0x6b8] sm:$0xf]
                  %1172 = vst [vmem:[%s740 + $0x35c] sm:$0xf] %v1171
                  %v1173 = vld [vmem:[%s739 + $0x6c0] sm:$0xf]
                  %1174 = vst [vmem:[%s740 + $0x360] sm:$0xf] %v1173
                  %v1175 = vld [vmem:[%s739 + $0x6c8] sm:$0xf]
                  %1176 = vst [vmem:[%s740 + $0x364] sm:$0xf] %v1175
                  %v1177 = vld [vmem:[%s739 + $0x6d0] sm:$0xf]
                  %1178 = vst [vmem:[%s740 + $0x368] sm:$0xf] %v1177
                  %v1179 = vld [vmem:[%s739 + $0x6d8] sm:$0xf]
                  %1180 = vst [vmem:[%s740 + $0x36c] sm:$0xf] %v1179
                  %v1181 = vld [vmem:[%s739 + $0x6e0] sm:$0xf]
                  %1182 = vst [vmem:[%s740 + $0x370] sm:$0xf] %v1181
                  %v1183 = vld [vmem:[%s739 + $0x6e8] sm:$0xf]
                  %1184 = vst [vmem:[%s740 + $0x374] sm:$0xf] %v1183
                  %v1185 = vld [vmem:[%s739 + $0x6f0] sm:$0xf]
                  %1186 = vst [vmem:[%s740 + $0x378] sm:$0xf] %v1185
                  %v1187 = vld [vmem:[%s739 + $0x6f8] sm:$0xf]
                  %1188 = vst [vmem:[%s740 + $0x37c] sm:$0xf] %v1187
                  %v1189 = vld [vmem:[%s739 + $0x700] sm:$0xf]
                  %1190 = vst [vmem:[%s740 + $0x380] sm:$0xf] %v1189
                  %v1191 = vld [vmem:[%s739 + $0x708] sm:$0xf]
                  %1192 = vst [vmem:[%s740 + $0x384] sm:$0xf] %v1191
                  %v1193 = vld [vmem:[%s739 + $0x710] sm:$0xf]
                  %1194 = vst [vmem:[%s740 + $0x388] sm:$0xf] %v1193
                  %v1195 = vld [vmem:[%s739 + $0x718] sm:$0xf]
                  %1196 = vst [vmem:[%s740 + $0x38c] sm:$0xf] %v1195
                  %v1197 = vld [vmem:[%s739 + $0x720] sm:$0xf]
                  %1198 = vst [vmem:[%s740 + $0x390] sm:$0xf] %v1197
                  %v1199 = vld [vmem:[%s739 + $0x728] sm:$0xf]
                  %1200 = vst [vmem:[%s740 + $0x394] sm:$0xf] %v1199
                  %v1201 = vld [vmem:[%s739 + $0x730] sm:$0xf]
                  %1202 = vst [vmem:[%s740 + $0x398] sm:$0xf] %v1201
                  %v1203 = vld [vmem:[%s739 + $0x738] sm:$0xf]
                  %1204 = vst [vmem:[%s740 + $0x39c] sm:$0xf] %v1203
                  %v1205 = vld [vmem:[%s739 + $0x740] sm:$0xf]
                  %1206 = vst [vmem:[%s740 + $0x3a0] sm:$0xf] %v1205
                  %v1207 = vld [vmem:[%s739 + $0x748] sm:$0xf]
                  %1208 = vst [vmem:[%s740 + $0x3a4] sm:$0xf] %v1207
                  %v1209 = vld [vmem:[%s739 + $0x750] sm:$0xf]
                  %1210 = vst [vmem:[%s740 + $0x3a8] sm:$0xf] %v1209
                  %v1211 = vld [vmem:[%s739 + $0x758] sm:$0xf]
                  %1212 = vst [vmem:[%s740 + $0x3ac] sm:$0xf] %v1211
                  %v1213 = vld [vmem:[%s739 + $0x760] sm:$0xf]
                  %1214 = vst [vmem:[%s740 + $0x3b0] sm:$0xf] %v1213
                  %v1215 = vld [vmem:[%s739 + $0x768] sm:$0xf]
                  %1216 = vst [vmem:[%s740 + $0x3b4] sm:$0xf] %v1215
                  %v1217 = vld [vmem:[%s739 + $0x770] sm:$0xf]
                  %1218 = vst [vmem:[%s740 + $0x3b8] sm:$0xf] %v1217
                  %v1219 = vld [vmem:[%s739 + $0x778] sm:$0xf]
                  %1220 = vst [vmem:[%s740 + $0x3bc] sm:$0xf] %v1219
                  %v1221 = vld [vmem:[%s739 + $0x780] sm:$0xf]
                  %1222 = vst [vmem:[%s740 + $0x3c0] sm:$0xf] %v1221
                  %v1223 = vld [vmem:[%s739 + $0x788] sm:$0xf]
                  %1224 = vst [vmem:[%s740 + $0x3c4] sm:$0xf] %v1223
                  %v1225 = vld [vmem:[%s739 + $0x790] sm:$0xf]
                  %1226 = vst [vmem:[%s740 + $0x3c8] sm:$0xf] %v1225
                  %v1227 = vld [vmem:[%s739 + $0x798] sm:$0xf]
                  %1228 = vst [vmem:[%s740 + $0x3cc] sm:$0xf] %v1227
                  %v1229 = vld [vmem:[%s739 + $0x7a0] sm:$0xf]
                  %1230 = vst [vmem:[%s740 + $0x3d0] sm:$0xf] %v1229
                  %v1231 = vld [vmem:[%s739 + $0x7a8] sm:$0xf]
                  %1232 = vst [vmem:[%s740 + $0x3d4] sm:$0xf] %v1231
                  %v1233 = vld [vmem:[%s739 + $0x7b0] sm:$0xf]
                  %1234 = vst [vmem:[%s740 + $0x3d8] sm:$0xf] %v1233
                  %v1235 = vld [vmem:[%s739 + $0x7b8] sm:$0xf]
                  %1236 = vst [vmem:[%s740 + $0x3dc] sm:$0xf] %v1235
                  %v1237 = vld [vmem:[%s739 + $0x7c0] sm:$0xf]
                  %1238 = vst [vmem:[%s740 + $0x3e0] sm:$0xf] %v1237
                  %v1239 = vld [vmem:[%s739 + $0x7c8] sm:$0xf]
                  %1240 = vst [vmem:[%s740 + $0x3e4] sm:$0xf] %v1239
                  %v1241 = vld [vmem:[%s739 + $0x7d0] sm:$0xf]
                  %1242 = vst [vmem:[%s740 + $0x3e8] sm:$0xf] %v1241
                  %v1243 = vld [vmem:[%s739 + $0x7d8] sm:$0xf]
                  %1244 = vst [vmem:[%s740 + $0x3ec] sm:$0xf] %v1243
                  %v1245 = vld [vmem:[%s739 + $0x7e0] sm:$0xf]
                  %1246 = vst [vmem:[%s740 + $0x3f0] sm:$0xf] %v1245
                  %v1247 = vld [vmem:[%s739 + $0x7e8] sm:$0xf]
                  %1248 = vst [vmem:[%s740 + $0x3f4] sm:$0xf] %v1247
                  %v1249 = vld [vmem:[%s739 + $0x7f0] sm:$0xf]
                  %1250 = vst [vmem:[%s740 + $0x3f8] sm:$0xf] %v1249
                  %v1251 = vld [vmem:[%s739 + $0x7f8] sm:$0xf]
                  %1252 = vst [vmem:[%s740 + $0x3fc] sm:$0xf] %v1251
                $region59: #{discriminator_forward.8} parent=46 // loop_footer
                  %s738 = sadd.s32 1, %s734
                $region60: #{discriminator_forward.8} parent=46 // loop_footer_branch
                  %733 = sbr.rel target = $region56
                $region61: #{discriminator_forward.8} parent=46 // loop_exit
                  _
              $region47: #{discriminator_forward.8} parent=31 // pred_fallthru
                _
            $region32: #{discriminator_forward.8} parent=27 // pred_fallthru
              _
            // Predicated region
            $region33: #{discriminator_forward.8} parent=27 // pred_check
              _
            $region34: #{discriminator_forward.8} parent=27 // pred_check_branch
              %200 = sbr.rel (0) target = $region36
            $region35: #{discriminator_forward.8} parent=27 // pred_region
              loop: start=0, step=1, limit=1
              $region37: #{discriminator_forward.8} parent=35 // loop_pre_header
                _
              $region38: #{discriminator_forward.8} parent=35 // loop_header
                %s203 = sphi 0, %s207
                %p204 = scmp.ge.s32.totalorder %s203, 1
                %s208 = sphi %s194, %s194
                %s209 = sphi %s192, %s192
              $region39: #{discriminator_forward.8} parent=35 // loop_header_branch
                %206 = sbr.rel (%p204) target = $region43
              $region40: #{discriminator_forward.8} parent=35 // loop_body
                %v210 = vld [vmem:[%s208] sm:$0xf]
                %211 = vst [vmem:[%s209] sm:$0xf] %v210
                %v212 = vld [vmem:[%s208 + $0x8] sm:$0xf]
                %213 = vst [vmem:[%s209 + $0x4] sm:$0xf] %v212
                %v214 = vld [vmem:[%s208 + $0x10] sm:$0xf]
                %215 = vst [vmem:[%s209 + $0x8] sm:$0xf] %v214
                %v216 = vld [vmem:[%s208 + $0x18] sm:$0xf]
                %217 = vst [vmem:[%s209 + $0xc] sm:$0xf] %v216
                %v218 = vld [vmem:[%s208 + $0x20] sm:$0xf]
                %219 = vst [vmem:[%s209 + $0x10] sm:$0xf] %v218
                %v220 = vld [vmem:[%s208 + $0x28] sm:$0xf]
                %221 = vst [vmem:[%s209 + $0x14] sm:$0xf] %v220
                %v222 = vld [vmem:[%s208 + $0x30] sm:$0xf]
                %223 = vst [vmem:[%s209 + $0x18] sm:$0xf] %v222
                %v224 = vld [vmem:[%s208 + $0x38] sm:$0xf]
                %225 = vst [vmem:[%s209 + $0x1c] sm:$0xf] %v224
                %v226 = vld [vmem:[%s208 + $0x40] sm:$0xf]
                %227 = vst [vmem:[%s209 + $0x20] sm:$0xf] %v226
                %v228 = vld [vmem:[%s208 + $0x48] sm:$0xf]
                %229 = vst [vmem:[%s209 + $0x24] sm:$0xf] %v228
                %v230 = vld [vmem:[%s208 + $0x50] sm:$0xf]
                %231 = vst [vmem:[%s209 + $0x28] sm:$0xf] %v230
                %v232 = vld [vmem:[%s208 + $0x58] sm:$0xf]
                %233 = vst [vmem:[%s209 + $0x2c] sm:$0xf] %v232
                %v234 = vld [vmem:[%s208 + $0x60] sm:$0xf]
                %235 = vst [vmem:[%s209 + $0x30] sm:$0xf] %v234
                %v236 = vld [vmem:[%s208 + $0x68] sm:$0xf]
                %237 = vst [vmem:[%s209 + $0x34] sm:$0xf] %v236
                %v238 = vld [vmem:[%s208 + $0x70] sm:$0xf]
                %239 = vst [vmem:[%s209 + $0x38] sm:$0xf] %v238
                %v240 = vld [vmem:[%s208 + $0x78] sm:$0xf]
                %241 = vst [vmem:[%s209 + $0x3c] sm:$0xf] %v240
                %v242 = vld [vmem:[%s208 + $0x80] sm:$0xf]
                %243 = vst [vmem:[%s209 + $0x40] sm:$0xf] %v242
                %v244 = vld [vmem:[%s208 + $0x88] sm:$0xf]
                %245 = vst [vmem:[%s209 + $0x44] sm:$0xf] %v244
                %v246 = vld [vmem:[%s208 + $0x90] sm:$0xf]
                %247 = vst [vmem:[%s209 + $0x48] sm:$0xf] %v246
                %v248 = vld [vmem:[%s208 + $0x98] sm:$0xf]
                %249 = vst [vmem:[%s209 + $0x4c] sm:$0xf] %v248
                %v250 = vld [vmem:[%s208 + $0xa0] sm:$0xf]
                %251 = vst [vmem:[%s209 + $0x50] sm:$0xf] %v250
                %v252 = vld [vmem:[%s208 + $0xa8] sm:$0xf]
                %253 = vst [vmem:[%s209 + $0x54] sm:$0xf] %v252
                %v254 = vld [vmem:[%s208 + $0xb0] sm:$0xf]
                %255 = vst [vmem:[%s209 + $0x58] sm:$0xf] %v254
                %v256 = vld [vmem:[%s208 + $0xb8] sm:$0xf]
                %257 = vst [vmem:[%s209 + $0x5c] sm:$0xf] %v256
                %v258 = vld [vmem:[%s208 + $0xc0] sm:$0xf]
                %259 = vst [vmem:[%s209 + $0x60] sm:$0xf] %v258
                %v260 = vld [vmem:[%s208 + $0xc8] sm:$0xf]
                %261 = vst [vmem:[%s209 + $0x64] sm:$0xf] %v260
                %v262 = vld [vmem:[%s208 + $0xd0] sm:$0xf]
                %263 = vst [vmem:[%s209 + $0x68] sm:$0xf] %v262
                %v264 = vld [vmem:[%s208 + $0xd8] sm:$0xf]
                %265 = vst [vmem:[%s209 + $0x6c] sm:$0xf] %v264
                %v266 = vld [vmem:[%s208 + $0xe0] sm:$0xf]
                %267 = vst [vmem:[%s209 + $0x70] sm:$0xf] %v266
                %v268 = vld [vmem:[%s208 + $0xe8] sm:$0xf]
                %269 = vst [vmem:[%s209 + $0x74] sm:$0xf] %v268
                %v270 = vld [vmem:[%s208 + $0xf0] sm:$0xf]
                %271 = vst [vmem:[%s209 + $0x78] sm:$0xf] %v270
                %v272 = vld [vmem:[%s208 + $0xf8] sm:$0xf]
                %273 = vst [vmem:[%s209 + $0x7c] sm:$0xf] %v272
                %v274 = vld [vmem:[%s208 + $0x100] sm:$0xf]
                %275 = vst [vmem:[%s209 + $0x80] sm:$0xf] %v274
                %v276 = vld [vmem:[%s208 + $0x108] sm:$0xf]
                %277 = vst [vmem:[%s209 + $0x84] sm:$0xf] %v276
                %v278 = vld [vmem:[%s208 + $0x110] sm:$0xf]
                %279 = vst [vmem:[%s209 + $0x88] sm:$0xf] %v278
                %v280 = vld [vmem:[%s208 + $0x118] sm:$0xf]
                %281 = vst [vmem:[%s209 + $0x8c] sm:$0xf] %v280
                %v282 = vld [vmem:[%s208 + $0x120] sm:$0xf]
                %283 = vst [vmem:[%s209 + $0x90] sm:$0xf] %v282
                %v284 = vld [vmem:[%s208 + $0x128] sm:$0xf]
                %285 = vst [vmem:[%s209 + $0x94] sm:$0xf] %v284
                %v286 = vld [vmem:[%s208 + $0x130] sm:$0xf]
                %287 = vst [vmem:[%s209 + $0x98] sm:$0xf] %v286
                %v288 = vld [vmem:[%s208 + $0x138] sm:$0xf]
                %289 = vst [vmem:[%s209 + $0x9c] sm:$0xf] %v288
                %v290 = vld [vmem:[%s208 + $0x140] sm:$0xf]
                %291 = vst [vmem:[%s209 + $0xa0] sm:$0xf] %v290
                %v292 = vld [vmem:[%s208 + $0x148] sm:$0xf]
                %293 = vst [vmem:[%s209 + $0xa4] sm:$0xf] %v292
                %v294 = vld [vmem:[%s208 + $0x150] sm:$0xf]
                %295 = vst [vmem:[%s209 + $0xa8] sm:$0xf] %v294
                %v296 = vld [vmem:[%s208 + $0x158] sm:$0xf]
                %297 = vst [vmem:[%s209 + $0xac] sm:$0xf] %v296
                %v298 = vld [vmem:[%s208 + $0x160] sm:$0xf]
                %299 = vst [vmem:[%s209 + $0xb0] sm:$0xf] %v298
                %v300 = vld [vmem:[%s208 + $0x168] sm:$0xf]
                %301 = vst [vmem:[%s209 + $0xb4] sm:$0xf] %v300
                %v302 = vld [vmem:[%s208 + $0x170] sm:$0xf]
                %303 = vst [vmem:[%s209 + $0xb8] sm:$0xf] %v302
                %v304 = vld [vmem:[%s208 + $0x178] sm:$0xf]
                %305 = vst [vmem:[%s209 + $0xbc] sm:$0xf] %v304
                %v306 = vld [vmem:[%s208 + $0x180] sm:$0xf]
                %307 = vst [vmem:[%s209 + $0xc0] sm:$0xf] %v306
                %v308 = vld [vmem:[%s208 + $0x188] sm:$0xf]
                %309 = vst [vmem:[%s209 + $0xc4] sm:$0xf] %v308
                %v310 = vld [vmem:[%s208 + $0x190] sm:$0xf]
                %311 = vst [vmem:[%s209 + $0xc8] sm:$0xf] %v310
                %v312 = vld [vmem:[%s208 + $0x198] sm:$0xf]
                %313 = vst [vmem:[%s209 + $0xcc] sm:$0xf] %v312
                %v314 = vld [vmem:[%s208 + $0x1a0] sm:$0xf]
                %315 = vst [vmem:[%s209 + $0xd0] sm:$0xf] %v314
                %v316 = vld [vmem:[%s208 + $0x1a8] sm:$0xf]
                %317 = vst [vmem:[%s209 + $0xd4] sm:$0xf] %v316
                %v318 = vld [vmem:[%s208 + $0x1b0] sm:$0xf]
                %319 = vst [vmem:[%s209 + $0xd8] sm:$0xf] %v318
                %v320 = vld [vmem:[%s208 + $0x1b8] sm:$0xf]
                %321 = vst [vmem:[%s209 + $0xdc] sm:$0xf] %v320
                %v322 = vld [vmem:[%s208 + $0x1c0] sm:$0xf]
                %323 = vst [vmem:[%s209 + $0xe0] sm:$0xf] %v322
                %v324 = vld [vmem:[%s208 + $0x1c8] sm:$0xf]
                %325 = vst [vmem:[%s209 + $0xe4] sm:$0xf] %v324
                %v326 = vld [vmem:[%s208 + $0x1d0] sm:$0xf]
                %327 = vst [vmem:[%s209 + $0xe8] sm:$0xf] %v326
                %v328 = vld [vmem:[%s208 + $0x1d8] sm:$0xf]
                %329 = vst [vmem:[%s209 + $0xec] sm:$0xf] %v328
                %v330 = vld [vmem:[%s208 + $0x1e0] sm:$0xf]
                %331 = vst [vmem:[%s209 + $0xf0] sm:$0xf] %v330
                %v332 = vld [vmem:[%s208 + $0x1e8] sm:$0xf]
                %333 = vst [vmem:[%s209 + $0xf4] sm:$0xf] %v332
                %v334 = vld [vmem:[%s208 + $0x1f0] sm:$0xf]
                %335 = vst [vmem:[%s209 + $0xf8] sm:$0xf] %v334
                %v336 = vld [vmem:[%s208 + $0x1f8] sm:$0xf]
                %337 = vst [vmem:[%s209 + $0xfc] sm:$0xf] %v336
                %v338 = vld [vmem:[%s208 + $0x200] sm:$0xf]
                %339 = vst [vmem:[%s209 + $0x100] sm:$0xf] %v338
                %v340 = vld [vmem:[%s208 + $0x208] sm:$0xf]
                %341 = vst [vmem:[%s209 + $0x104] sm:$0xf] %v340
                %v342 = vld [vmem:[%s208 + $0x210] sm:$0xf]
                %343 = vst [vmem:[%s209 + $0x108] sm:$0xf] %v342
                %v344 = vld [vmem:[%s208 + $0x218] sm:$0xf]
                %345 = vst [vmem:[%s209 + $0x10c] sm:$0xf] %v344
                %v346 = vld [vmem:[%s208 + $0x220] sm:$0xf]
                %347 = vst [vmem:[%s209 + $0x110] sm:$0xf] %v346
                %v348 = vld [vmem:[%s208 + $0x228] sm:$0xf]
                %349 = vst [vmem:[%s209 + $0x114] sm:$0xf] %v348
                %v350 = vld [vmem:[%s208 + $0x230] sm:$0xf]
                %351 = vst [vmem:[%s209 + $0x118] sm:$0xf] %v350
                %v352 = vld [vmem:[%s208 + $0x238] sm:$0xf]
                %353 = vst [vmem:[%s209 + $0x11c] sm:$0xf] %v352
                %v354 = vld [vmem:[%s208 + $0x240] sm:$0xf]
                %355 = vst [vmem:[%s209 + $0x120] sm:$0xf] %v354
                %v356 = vld [vmem:[%s208 + $0x248] sm:$0xf]
                %357 = vst [vmem:[%s209 + $0x124] sm:$0xf] %v356
                %v358 = vld [vmem:[%s208 + $0x250] sm:$0xf]
                %359 = vst [vmem:[%s209 + $0x128] sm:$0xf] %v358
                %v360 = vld [vmem:[%s208 + $0x258] sm:$0xf]
                %361 = vst [vmem:[%s209 + $0x12c] sm:$0xf] %v360
                %v362 = vld [vmem:[%s208 + $0x260] sm:$0xf]
                %363 = vst [vmem:[%s209 + $0x130] sm:$0xf] %v362
                %v364 = vld [vmem:[%s208 + $0x268] sm:$0xf]
                %365 = vst [vmem:[%s209 + $0x134] sm:$0xf] %v364
                %v366 = vld [vmem:[%s208 + $0x270] sm:$0xf]
                %367 = vst [vmem:[%s209 + $0x138] sm:$0xf] %v366
                %v368 = vld [vmem:[%s208 + $0x278] sm:$0xf]
                %369 = vst [vmem:[%s209 + $0x13c] sm:$0xf] %v368
                %v370 = vld [vmem:[%s208 + $0x280] sm:$0xf]
                %371 = vst [vmem:[%s209 + $0x140] sm:$0xf] %v370
                %v372 = vld [vmem:[%s208 + $0x288] sm:$0xf]
                %373 = vst [vmem:[%s209 + $0x144] sm:$0xf] %v372
                %v374 = vld [vmem:[%s208 + $0x290] sm:$0xf]
                %375 = vst [vmem:[%s209 + $0x148] sm:$0xf] %v374
                %v376 = vld [vmem:[%s208 + $0x298] sm:$0xf]
                %377 = vst [vmem:[%s209 + $0x14c] sm:$0xf] %v376
                %v378 = vld [vmem:[%s208 + $0x2a0] sm:$0xf]
                %379 = vst [vmem:[%s209 + $0x150] sm:$0xf] %v378
                %v380 = vld [vmem:[%s208 + $0x2a8] sm:$0xf]
                %381 = vst [vmem:[%s209 + $0x154] sm:$0xf] %v380
                %v382 = vld [vmem:[%s208 + $0x2b0] sm:$0xf]
                %383 = vst [vmem:[%s209 + $0x158] sm:$0xf] %v382
                %v384 = vld [vmem:[%s208 + $0x2b8] sm:$0xf]
                %385 = vst [vmem:[%s209 + $0x15c] sm:$0xf] %v384
                %v386 = vld [vmem:[%s208 + $0x2c0] sm:$0xf]
                %387 = vst [vmem:[%s209 + $0x160] sm:$0xf] %v386
                %v388 = vld [vmem:[%s208 + $0x2c8] sm:$0xf]
                %389 = vst [vmem:[%s209 + $0x164] sm:$0xf] %v388
                %v390 = vld [vmem:[%s208 + $0x2d0] sm:$0xf]
                %391 = vst [vmem:[%s209 + $0x168] sm:$0xf] %v390
                %v392 = vld [vmem:[%s208 + $0x2d8] sm:$0xf]
                %393 = vst [vmem:[%s209 + $0x16c] sm:$0xf] %v392
                %v394 = vld [vmem:[%s208 + $0x2e0] sm:$0xf]
                %395 = vst [vmem:[%s209 + $0x170] sm:$0xf] %v394
                %v396 = vld [vmem:[%s208 + $0x2e8] sm:$0xf]
                %397 = vst [vmem:[%s209 + $0x174] sm:$0xf] %v396
                %v398 = vld [vmem:[%s208 + $0x2f0] sm:$0xf]
                %399 = vst [vmem:[%s209 + $0x178] sm:$0xf] %v398
                %v400 = vld [vmem:[%s208 + $0x2f8] sm:$0xf]
                %401 = vst [vmem:[%s209 + $0x17c] sm:$0xf] %v400
                %v402 = vld [vmem:[%s208 + $0x300] sm:$0xf]
                %403 = vst [vmem:[%s209 + $0x180] sm:$0xf] %v402
                %v404 = vld [vmem:[%s208 + $0x308] sm:$0xf]
                %405 = vst [vmem:[%s209 + $0x184] sm:$0xf] %v404
                %v406 = vld [vmem:[%s208 + $0x310] sm:$0xf]
                %407 = vst [vmem:[%s209 + $0x188] sm:$0xf] %v406
                %v408 = vld [vmem:[%s208 + $0x318] sm:$0xf]
                %409 = vst [vmem:[%s209 + $0x18c] sm:$0xf] %v408
                %v410 = vld [vmem:[%s208 + $0x320] sm:$0xf]
                %411 = vst [vmem:[%s209 + $0x190] sm:$0xf] %v410
                %v412 = vld [vmem:[%s208 + $0x328] sm:$0xf]
                %413 = vst [vmem:[%s209 + $0x194] sm:$0xf] %v412
                %v414 = vld [vmem:[%s208 + $0x330] sm:$0xf]
                %415 = vst [vmem:[%s209 + $0x198] sm:$0xf] %v414
                %v416 = vld [vmem:[%s208 + $0x338] sm:$0xf]
                %417 = vst [vmem:[%s209 + $0x19c] sm:$0xf] %v416
                %v418 = vld [vmem:[%s208 + $0x340] sm:$0xf]
                %419 = vst [vmem:[%s209 + $0x1a0] sm:$0xf] %v418
                %v420 = vld [vmem:[%s208 + $0x348] sm:$0xf]
                %421 = vst [vmem:[%s209 + $0x1a4] sm:$0xf] %v420
                %v422 = vld [vmem:[%s208 + $0x350] sm:$0xf]
                %423 = vst [vmem:[%s209 + $0x1a8] sm:$0xf] %v422
                %v424 = vld [vmem:[%s208 + $0x358] sm:$0xf]
                %425 = vst [vmem:[%s209 + $0x1ac] sm:$0xf] %v424
                %v426 = vld [vmem:[%s208 + $0x360] sm:$0xf]
                %427 = vst [vmem:[%s209 + $0x1b0] sm:$0xf] %v426
                %v428 = vld [vmem:[%s208 + $0x368] sm:$0xf]
                %429 = vst [vmem:[%s209 + $0x1b4] sm:$0xf] %v428
                %v430 = vld [vmem:[%s208 + $0x370] sm:$0xf]
                %431 = vst [vmem:[%s209 + $0x1b8] sm:$0xf] %v430
                %v432 = vld [vmem:[%s208 + $0x378] sm:$0xf]
                %433 = vst [vmem:[%s209 + $0x1bc] sm:$0xf] %v432
                %v434 = vld [vmem:[%s208 + $0x380] sm:$0xf]
                %435 = vst [vmem:[%s209 + $0x1c0] sm:$0xf] %v434
                %v436 = vld [vmem:[%s208 + $0x388] sm:$0xf]
                %437 = vst [vmem:[%s209 + $0x1c4] sm:$0xf] %v436
                %v438 = vld [vmem:[%s208 + $0x390] sm:$0xf]
                %439 = vst [vmem:[%s209 + $0x1c8] sm:$0xf] %v438
                %v440 = vld [vmem:[%s208 + $0x398] sm:$0xf]
                %441 = vst [vmem:[%s209 + $0x1cc] sm:$0xf] %v440
                %v442 = vld [vmem:[%s208 + $0x3a0] sm:$0xf]
                %443 = vst [vmem:[%s209 + $0x1d0] sm:$0xf] %v442
                %v444 = vld [vmem:[%s208 + $0x3a8] sm:$0xf]
                %445 = vst [vmem:[%s209 + $0x1d4] sm:$0xf] %v444
                %v446 = vld [vmem:[%s208 + $0x3b0] sm:$0xf]
                %447 = vst [vmem:[%s209 + $0x1d8] sm:$0xf] %v446
                %v448 = vld [vmem:[%s208 + $0x3b8] sm:$0xf]
                %449 = vst [vmem:[%s209 + $0x1dc] sm:$0xf] %v448
                %v450 = vld [vmem:[%s208 + $0x3c0] sm:$0xf]
                %451 = vst [vmem:[%s209 + $0x1e0] sm:$0xf] %v450
                %v452 = vld [vmem:[%s208 + $0x3c8] sm:$0xf]
                %453 = vst [vmem:[%s209 + $0x1e4] sm:$0xf] %v452
                %v454 = vld [vmem:[%s208 + $0x3d0] sm:$0xf]
                %455 = vst [vmem:[%s209 + $0x1e8] sm:$0xf] %v454
                %v456 = vld [vmem:[%s208 + $0x3d8] sm:$0xf]
                %457 = vst [vmem:[%s209 + $0x1ec] sm:$0xf] %v456
                %v458 = vld [vmem:[%s208 + $0x3e0] sm:$0xf]
                %459 = vst [vmem:[%s209 + $0x1f0] sm:$0xf] %v458
                %v460 = vld [vmem:[%s208 + $0x3e8] sm:$0xf]
                %461 = vst [vmem:[%s209 + $0x1f4] sm:$0xf] %v460
                %v462 = vld [vmem:[%s208 + $0x3f0] sm:$0xf]
                %463 = vst [vmem:[%s209 + $0x1f8] sm:$0xf] %v462
                %v464 = vld [vmem:[%s208 + $0x3f8] sm:$0xf]
                %465 = vst [vmem:[%s209 + $0x1fc] sm:$0xf] %v464
                %v466 = vld [vmem:[%s208 + $0x400] sm:$0xf]
                %467 = vst [vmem:[%s209 + $0x200] sm:$0xf] %v466
                %v468 = vld [vmem:[%s208 + $0x408] sm:$0xf]
                %469 = vst [vmem:[%s209 + $0x204] sm:$0xf] %v468
                %v470 = vld [vmem:[%s208 + $0x410] sm:$0xf]
                %471 = vst [vmem:[%s209 + $0x208] sm:$0xf] %v470
                %v472 = vld [vmem:[%s208 + $0x418] sm:$0xf]
                %473 = vst [vmem:[%s209 + $0x20c] sm:$0xf] %v472
                %v474 = vld [vmem:[%s208 + $0x420] sm:$0xf]
                %475 = vst [vmem:[%s209 + $0x210] sm:$0xf] %v474
                %v476 = vld [vmem:[%s208 + $0x428] sm:$0xf]
                %477 = vst [vmem:[%s209 + $0x214] sm:$0xf] %v476
                %v478 = vld [vmem:[%s208 + $0x430] sm:$0xf]
                %479 = vst [vmem:[%s209 + $0x218] sm:$0xf] %v478
                %v480 = vld [vmem:[%s208 + $0x438] sm:$0xf]
                %481 = vst [vmem:[%s209 + $0x21c] sm:$0xf] %v480
                %v482 = vld [vmem:[%s208 + $0x440] sm:$0xf]
                %483 = vst [vmem:[%s209 + $0x220] sm:$0xf] %v482
                %v484 = vld [vmem:[%s208 + $0x448] sm:$0xf]
                %485 = vst [vmem:[%s209 + $0x224] sm:$0xf] %v484
                %v486 = vld [vmem:[%s208 + $0x450] sm:$0xf]
                %487 = vst [vmem:[%s209 + $0x228] sm:$0xf] %v486
                %v488 = vld [vmem:[%s208 + $0x458] sm:$0xf]
                %489 = vst [vmem:[%s209 + $0x22c] sm:$0xf] %v488
                %v490 = vld [vmem:[%s208 + $0x460] sm:$0xf]
                %491 = vst [vmem:[%s209 + $0x230] sm:$0xf] %v490
                %v492 = vld [vmem:[%s208 + $0x468] sm:$0xf]
                %493 = vst [vmem:[%s209 + $0x234] sm:$0xf] %v492
                %v494 = vld [vmem:[%s208 + $0x470] sm:$0xf]
                %495 = vst [vmem:[%s209 + $0x238] sm:$0xf] %v494
                %v496 = vld [vmem:[%s208 + $0x478] sm:$0xf]
                %497 = vst [vmem:[%s209 + $0x23c] sm:$0xf] %v496
                %v498 = vld [vmem:[%s208 + $0x480] sm:$0xf]
                %499 = vst [vmem:[%s209 + $0x240] sm:$0xf] %v498
                %v500 = vld [vmem:[%s208 + $0x488] sm:$0xf]
                %501 = vst [vmem:[%s209 + $0x244] sm:$0xf] %v500
                %v502 = vld [vmem:[%s208 + $0x490] sm:$0xf]
                %503 = vst [vmem:[%s209 + $0x248] sm:$0xf] %v502
                %v504 = vld [vmem:[%s208 + $0x498] sm:$0xf]
                %505 = vst [vmem:[%s209 + $0x24c] sm:$0xf] %v504
                %v506 = vld [vmem:[%s208 + $0x4a0] sm:$0xf]
                %507 = vst [vmem:[%s209 + $0x250] sm:$0xf] %v506
                %v508 = vld [vmem:[%s208 + $0x4a8] sm:$0xf]
                %509 = vst [vmem:[%s209 + $0x254] sm:$0xf] %v508
                %v510 = vld [vmem:[%s208 + $0x4b0] sm:$0xf]
                %511 = vst [vmem:[%s209 + $0x258] sm:$0xf] %v510
                %v512 = vld [vmem:[%s208 + $0x4b8] sm:$0xf]
                %513 = vst [vmem:[%s209 + $0x25c] sm:$0xf] %v512
                %v514 = vld [vmem:[%s208 + $0x4c0] sm:$0xf]
                %515 = vst [vmem:[%s209 + $0x260] sm:$0xf] %v514
                %v516 = vld [vmem:[%s208 + $0x4c8] sm:$0xf]
                %517 = vst [vmem:[%s209 + $0x264] sm:$0xf] %v516
                %v518 = vld [vmem:[%s208 + $0x4d0] sm:$0xf]
                %519 = vst [vmem:[%s209 + $0x268] sm:$0xf] %v518
                %v520 = vld [vmem:[%s208 + $0x4d8] sm:$0xf]
                %521 = vst [vmem:[%s209 + $0x26c] sm:$0xf] %v520
                %v522 = vld [vmem:[%s208 + $0x4e0] sm:$0xf]
                %523 = vst [vmem:[%s209 + $0x270] sm:$0xf] %v522
                %v524 = vld [vmem:[%s208 + $0x4e8] sm:$0xf]
                %525 = vst [vmem:[%s209 + $0x274] sm:$0xf] %v524
                %v526 = vld [vmem:[%s208 + $0x4f0] sm:$0xf]
                %527 = vst [vmem:[%s209 + $0x278] sm:$0xf] %v526
                %v528 = vld [vmem:[%s208 + $0x4f8] sm:$0xf]
                %529 = vst [vmem:[%s209 + $0x27c] sm:$0xf] %v528
                %v530 = vld [vmem:[%s208 + $0x500] sm:$0xf]
                %531 = vst [vmem:[%s209 + $0x280] sm:$0xf] %v530
                %v532 = vld [vmem:[%s208 + $0x508] sm:$0xf]
                %533 = vst [vmem:[%s209 + $0x284] sm:$0xf] %v532
                %v534 = vld [vmem:[%s208 + $0x510] sm:$0xf]
                %535 = vst [vmem:[%s209 + $0x288] sm:$0xf] %v534
                %v536 = vld [vmem:[%s208 + $0x518] sm:$0xf]
                %537 = vst [vmem:[%s209 + $0x28c] sm:$0xf] %v536
                %v538 = vld [vmem:[%s208 + $0x520] sm:$0xf]
                %539 = vst [vmem:[%s209 + $0x290] sm:$0xf] %v538
                %v540 = vld [vmem:[%s208 + $0x528] sm:$0xf]
                %541 = vst [vmem:[%s209 + $0x294] sm:$0xf] %v540
                %v542 = vld [vmem:[%s208 + $0x530] sm:$0xf]
                %543 = vst [vmem:[%s209 + $0x298] sm:$0xf] %v542
                %v544 = vld [vmem:[%s208 + $0x538] sm:$0xf]
                %545 = vst [vmem:[%s209 + $0x29c] sm:$0xf] %v544
                %v546 = vld [vmem:[%s208 + $0x540] sm:$0xf]
                %547 = vst [vmem:[%s209 + $0x2a0] sm:$0xf] %v546
                %v548 = vld [vmem:[%s208 + $0x548] sm:$0xf]
                %549 = vst [vmem:[%s209 + $0x2a4] sm:$0xf] %v548
                %v550 = vld [vmem:[%s208 + $0x550] sm:$0xf]
                %551 = vst [vmem:[%s209 + $0x2a8] sm:$0xf] %v550
                %v552 = vld [vmem:[%s208 + $0x558] sm:$0xf]
                %553 = vst [vmem:[%s209 + $0x2ac] sm:$0xf] %v552
                %v554 = vld [vmem:[%s208 + $0x560] sm:$0xf]
                %555 = vst [vmem:[%s209 + $0x2b0] sm:$0xf] %v554
                %v556 = vld [vmem:[%s208 + $0x568] sm:$0xf]
                %557 = vst [vmem:[%s209 + $0x2b4] sm:$0xf] %v556
                %v558 = vld [vmem:[%s208 + $0x570] sm:$0xf]
                %559 = vst [vmem:[%s209 + $0x2b8] sm:$0xf] %v558
                %v560 = vld [vmem:[%s208 + $0x578] sm:$0xf]
                %561 = vst [vmem:[%s209 + $0x2bc] sm:$0xf] %v560
                %v562 = vld [vmem:[%s208 + $0x580] sm:$0xf]
                %563 = vst [vmem:[%s209 + $0x2c0] sm:$0xf] %v562
                %v564 = vld [vmem:[%s208 + $0x588] sm:$0xf]
                %565 = vst [vmem:[%s209 + $0x2c4] sm:$0xf] %v564
                %v566 = vld [vmem:[%s208 + $0x590] sm:$0xf]
                %567 = vst [vmem:[%s209 + $0x2c8] sm:$0xf] %v566
                %v568 = vld [vmem:[%s208 + $0x598] sm:$0xf]
                %569 = vst [vmem:[%s209 + $0x2cc] sm:$0xf] %v568
                %v570 = vld [vmem:[%s208 + $0x5a0] sm:$0xf]
                %571 = vst [vmem:[%s209 + $0x2d0] sm:$0xf] %v570
                %v572 = vld [vmem:[%s208 + $0x5a8] sm:$0xf]
                %573 = vst [vmem:[%s209 + $0x2d4] sm:$0xf] %v572
                %v574 = vld [vmem:[%s208 + $0x5b0] sm:$0xf]
                %575 = vst [vmem:[%s209 + $0x2d8] sm:$0xf] %v574
                %v576 = vld [vmem:[%s208 + $0x5b8] sm:$0xf]
                %577 = vst [vmem:[%s209 + $0x2dc] sm:$0xf] %v576
                %v578 = vld [vmem:[%s208 + $0x5c0] sm:$0xf]
                %579 = vst [vmem:[%s209 + $0x2e0] sm:$0xf] %v578
                %v580 = vld [vmem:[%s208 + $0x5c8] sm:$0xf]
                %581 = vst [vmem:[%s209 + $0x2e4] sm:$0xf] %v580
                %v582 = vld [vmem:[%s208 + $0x5d0] sm:$0xf]
                %583 = vst [vmem:[%s209 + $0x2e8] sm:$0xf] %v582
                %v584 = vld [vmem:[%s208 + $0x5d8] sm:$0xf]
                %585 = vst [vmem:[%s209 + $0x2ec] sm:$0xf] %v584
                %v586 = vld [vmem:[%s208 + $0x5e0] sm:$0xf]
                %587 = vst [vmem:[%s209 + $0x2f0] sm:$0xf] %v586
                %v588 = vld [vmem:[%s208 + $0x5e8] sm:$0xf]
                %589 = vst [vmem:[%s209 + $0x2f4] sm:$0xf] %v588
                %v590 = vld [vmem:[%s208 + $0x5f0] sm:$0xf]
                %591 = vst [vmem:[%s209 + $0x2f8] sm:$0xf] %v590
                %v592 = vld [vmem:[%s208 + $0x5f8] sm:$0xf]
                %593 = vst [vmem:[%s209 + $0x2fc] sm:$0xf] %v592
                %v594 = vld [vmem:[%s208 + $0x600] sm:$0xf]
                %595 = vst [vmem:[%s209 + $0x300] sm:$0xf] %v594
                %v596 = vld [vmem:[%s208 + $0x608] sm:$0xf]
                %597 = vst [vmem:[%s209 + $0x304] sm:$0xf] %v596
                %v598 = vld [vmem:[%s208 + $0x610] sm:$0xf]
                %599 = vst [vmem:[%s209 + $0x308] sm:$0xf] %v598
                %v600 = vld [vmem:[%s208 + $0x618] sm:$0xf]
                %601 = vst [vmem:[%s209 + $0x30c] sm:$0xf] %v600
                %v602 = vld [vmem:[%s208 + $0x620] sm:$0xf]
                %603 = vst [vmem:[%s209 + $0x310] sm:$0xf] %v602
                %v604 = vld [vmem:[%s208 + $0x628] sm:$0xf]
                %605 = vst [vmem:[%s209 + $0x314] sm:$0xf] %v604
                %v606 = vld [vmem:[%s208 + $0x630] sm:$0xf]
                %607 = vst [vmem:[%s209 + $0x318] sm:$0xf] %v606
                %v608 = vld [vmem:[%s208 + $0x638] sm:$0xf]
                %609 = vst [vmem:[%s209 + $0x31c] sm:$0xf] %v608
                %v610 = vld [vmem:[%s208 + $0x640] sm:$0xf]
                %611 = vst [vmem:[%s209 + $0x320] sm:$0xf] %v610
                %v612 = vld [vmem:[%s208 + $0x648] sm:$0xf]
                %613 = vst [vmem:[%s209 + $0x324] sm:$0xf] %v612
                %v614 = vld [vmem:[%s208 + $0x650] sm:$0xf]
                %615 = vst [vmem:[%s209 + $0x328] sm:$0xf] %v614
                %v616 = vld [vmem:[%s208 + $0x658] sm:$0xf]
                %617 = vst [vmem:[%s209 + $0x32c] sm:$0xf] %v616
                %v618 = vld [vmem:[%s208 + $0x660] sm:$0xf]
                %619 = vst [vmem:[%s209 + $0x330] sm:$0xf] %v618
                %v620 = vld [vmem:[%s208 + $0x668] sm:$0xf]
                %621 = vst [vmem:[%s209 + $0x334] sm:$0xf] %v620
                %v622 = vld [vmem:[%s208 + $0x670] sm:$0xf]
                %623 = vst [vmem:[%s209 + $0x338] sm:$0xf] %v622
                %v624 = vld [vmem:[%s208 + $0x678] sm:$0xf]
                %625 = vst [vmem:[%s209 + $0x33c] sm:$0xf] %v624
                %v626 = vld [vmem:[%s208 + $0x680] sm:$0xf]
                %627 = vst [vmem:[%s209 + $0x340] sm:$0xf] %v626
                %v628 = vld [vmem:[%s208 + $0x688] sm:$0xf]
                %629 = vst [vmem:[%s209 + $0x344] sm:$0xf] %v628
                %v630 = vld [vmem:[%s208 + $0x690] sm:$0xf]
                %631 = vst [vmem:[%s209 + $0x348] sm:$0xf] %v630
                %v632 = vld [vmem:[%s208 + $0x698] sm:$0xf]
                %633 = vst [vmem:[%s209 + $0x34c] sm:$0xf] %v632
                %v634 = vld [vmem:[%s208 + $0x6a0] sm:$0xf]
                %635 = vst [vmem:[%s209 + $0x350] sm:$0xf] %v634
                %v636 = vld [vmem:[%s208 + $0x6a8] sm:$0xf]
                %637 = vst [vmem:[%s209 + $0x354] sm:$0xf] %v636
                %v638 = vld [vmem:[%s208 + $0x6b0] sm:$0xf]
                %639 = vst [vmem:[%s209 + $0x358] sm:$0xf] %v638
                %v640 = vld [vmem:[%s208 + $0x6b8] sm:$0xf]
                %641 = vst [vmem:[%s209 + $0x35c] sm:$0xf] %v640
                %v642 = vld [vmem:[%s208 + $0x6c0] sm:$0xf]
                %643 = vst [vmem:[%s209 + $0x360] sm:$0xf] %v642
                %v644 = vld [vmem:[%s208 + $0x6c8] sm:$0xf]
                %645 = vst [vmem:[%s209 + $0x364] sm:$0xf] %v644
                %v646 = vld [vmem:[%s208 + $0x6d0] sm:$0xf]
                %647 = vst [vmem:[%s209 + $0x368] sm:$0xf] %v646
                %v648 = vld [vmem:[%s208 + $0x6d8] sm:$0xf]
                %649 = vst [vmem:[%s209 + $0x36c] sm:$0xf] %v648
                %v650 = vld [vmem:[%s208 + $0x6e0] sm:$0xf]
                %651 = vst [vmem:[%s209 + $0x370] sm:$0xf] %v650
                %v652 = vld [vmem:[%s208 + $0x6e8] sm:$0xf]
                %653 = vst [vmem:[%s209 + $0x374] sm:$0xf] %v652
                %v654 = vld [vmem:[%s208 + $0x6f0] sm:$0xf]
                %655 = vst [vmem:[%s209 + $0x378] sm:$0xf] %v654
                %v656 = vld [vmem:[%s208 + $0x6f8] sm:$0xf]
                %657 = vst [vmem:[%s209 + $0x37c] sm:$0xf] %v656
                %v658 = vld [vmem:[%s208 + $0x700] sm:$0xf]
                %659 = vst [vmem:[%s209 + $0x380] sm:$0xf] %v658
                %v660 = vld [vmem:[%s208 + $0x708] sm:$0xf]
                %661 = vst [vmem:[%s209 + $0x384] sm:$0xf] %v660
                %v662 = vld [vmem:[%s208 + $0x710] sm:$0xf]
                %663 = vst [vmem:[%s209 + $0x388] sm:$0xf] %v662
                %v664 = vld [vmem:[%s208 + $0x718] sm:$0xf]
                %665 = vst [vmem:[%s209 + $0x38c] sm:$0xf] %v664
                %v666 = vld [vmem:[%s208 + $0x720] sm:$0xf]
                %667 = vst [vmem:[%s209 + $0x390] sm:$0xf] %v666
                %v668 = vld [vmem:[%s208 + $0x728] sm:$0xf]
                %669 = vst [vmem:[%s209 + $0x394] sm:$0xf] %v668
                %v670 = vld [vmem:[%s208 + $0x730] sm:$0xf]
                %671 = vst [vmem:[%s209 + $0x398] sm:$0xf] %v670
                %v672 = vld [vmem:[%s208 + $0x738] sm:$0xf]
                %673 = vst [vmem:[%s209 + $0x39c] sm:$0xf] %v672
                %v674 = vld [vmem:[%s208 + $0x740] sm:$0xf]
                %675 = vst [vmem:[%s209 + $0x3a0] sm:$0xf] %v674
                %v676 = vld [vmem:[%s208 + $0x748] sm:$0xf]
                %677 = vst [vmem:[%s209 + $0x3a4] sm:$0xf] %v676
                %v678 = vld [vmem:[%s208 + $0x750] sm:$0xf]
                %679 = vst [vmem:[%s209 + $0x3a8] sm:$0xf] %v678
                %v680 = vld [vmem:[%s208 + $0x758] sm:$0xf]
                %681 = vst [vmem:[%s209 + $0x3ac] sm:$0xf] %v680
                %v682 = vld [vmem:[%s208 + $0x760] sm:$0xf]
                %683 = vst [vmem:[%s209 + $0x3b0] sm:$0xf] %v682
                %v684 = vld [vmem:[%s208 + $0x768] sm:$0xf]
                %685 = vst [vmem:[%s209 + $0x3b4] sm:$0xf] %v684
                %v686 = vld [vmem:[%s208 + $0x770] sm:$0xf]
                %687 = vst [vmem:[%s209 + $0x3b8] sm:$0xf] %v686
                %v688 = vld [vmem:[%s208 + $0x778] sm:$0xf]
                %689 = vst [vmem:[%s209 + $0x3bc] sm:$0xf] %v688
                %v690 = vld [vmem:[%s208 + $0x780] sm:$0xf]
                %691 = vst [vmem:[%s209 + $0x3c0] sm:$0xf] %v690
                %v692 = vld [vmem:[%s208 + $0x788] sm:$0xf]
                %693 = vst [vmem:[%s209 + $0x3c4] sm:$0xf] %v692
                %v694 = vld [vmem:[%s208 + $0x790] sm:$0xf]
                %695 = vst [vmem:[%s209 + $0x3c8] sm:$0xf] %v694
                %v696 = vld [vmem:[%s208 + $0x798] sm:$0xf]
                %697 = vst [vmem:[%s209 + $0x3cc] sm:$0xf] %v696
                %v698 = vld [vmem:[%s208 + $0x7a0] sm:$0xf]
                %699 = vst [vmem:[%s209 + $0x3d0] sm:$0xf] %v698
                %v700 = vld [vmem:[%s208 + $0x7a8] sm:$0xf]
                %701 = vst [vmem:[%s209 + $0x3d4] sm:$0xf] %v700
                %v702 = vld [vmem:[%s208 + $0x7b0] sm:$0xf]
                %703 = vst [vmem:[%s209 + $0x3d8] sm:$0xf] %v702
                %v704 = vld [vmem:[%s208 + $0x7b8] sm:$0xf]
                %705 = vst [vmem:[%s209 + $0x3dc] sm:$0xf] %v704
                %v706 = vld [vmem:[%s208 + $0x7c0] sm:$0xf]
                %707 = vst [vmem:[%s209 + $0x3e0] sm:$0xf] %v706
                %v708 = vld [vmem:[%s208 + $0x7c8] sm:$0xf]
                %709 = vst [vmem:[%s209 + $0x3e4] sm:$0xf] %v708
                %v710 = vld [vmem:[%s208 + $0x7d0] sm:$0xf]
                %711 = vst [vmem:[%s209 + $0x3e8] sm:$0xf] %v710
                %v712 = vld [vmem:[%s208 + $0x7d8] sm:$0xf]
                %713 = vst [vmem:[%s209 + $0x3ec] sm:$0xf] %v712
                %v714 = vld [vmem:[%s208 + $0x7e0] sm:$0xf]
                %715 = vst [vmem:[%s209 + $0x3f0] sm:$0xf] %v714
                %v716 = vld [vmem:[%s208 + $0x7e8] sm:$0xf]
                %717 = vst [vmem:[%s209 + $0x3f4] sm:$0xf] %v716
                %v718 = vld [vmem:[%s208 + $0x7f0] sm:$0xf]
                %719 = vst [vmem:[%s209 + $0x3f8] sm:$0xf] %v718
                %v720 = vld [vmem:[%s208 + $0x7f8] sm:$0xf]
                %721 = vst [vmem:[%s209 + $0x3fc] sm:$0xf] %v720
              $region41: #{discriminator_forward.8} parent=35 // loop_footer
                %s207 = sadd.s32 1, %s203
              $region42: #{discriminator_forward.8} parent=35 // loop_footer_branch
                %202 = sbr.rel target = $region38
              $region43: #{discriminator_forward.8} parent=35 // loop_exit
                _
            $region36: #{discriminator_forward.8} parent=27 // pred_fallthru
              _
          $region28: #{discriminator_forward.8} parent=23 // pred_fallthru
            _
          %1253 = vnop
        $region24: #{discriminator_forward.8} parent=19 // pred_fallthru
          _
        // Predicated region
        $region62: #{discriminator_forward.8} parent=19 // pred_check
          %p1254 = pneg %p95
        $region63: #{discriminator_forward.8} parent=19 // pred_check_branch
          %1256 = sbr.rel (%p1254) target = $region65
        $region64: #{discriminator_forward.8} parent=19 // pred_region
          %p1257 = scmp.lt.s32.totalorder %s19, 1
          %s1258 = scalar_select %p1257, %s19, 1
          %s1259 = scalar_lea.vmem %s2, %s1258
        $region65: #{discriminator_forward.8} parent=19 // pred_fallthru
          _
      $region20: #{discriminator_forward.8} parent=5 // pred_fallthru
        _
      %p1260 = scmp.le.s32.totalorder 1, %s11
      %p1261 = scmp.lt.s32.totalorder %s11, 3
      %p1262 = pnand %p1260, %p1261
      %p1263 = pneg %p1262
      // Predicated region
      $region66: #{discriminator_forward.8} parent=5 // pred_check
        _
      $region67: #{discriminator_forward.8} parent=5 // pred_check_branch
        %1265 = sbr.rel (%p1262) target = $region69
      $region68: #{discriminator_forward.8} parent=5 // pred_region
        %s1266 = ssub.s32 %s11, 1
        %s1267 = sand.u32 %s62, 1
        %s1268 = sand.u32 %s62, 1
        %s1269 = smul.addr %s1268, 1024
        %s1270 = scalar_lea.vmem [#allocation2], %s1269
        // Predicated region
        $region70: #{discriminator_forward.8} parent=68 // pred_check
          %p1271 = pneg %p75
        $region71: #{discriminator_forward.8} parent=68 // pred_check_branch
          %1273 = sbr.rel (%p1271) target = $region73
        $region72: #{discriminator_forward.8} parent=68 // pred_region
          _
        $region73: #{discriminator_forward.8} parent=68 // pred_fallthru
          _
        %s1274 = smul.u32 4, %s20
        %p1275 = scmp.lt.s32.totalorder %s1274, 3
        %s1276 = scalar_select %p1275, %s1274, 3
        %s1277 = smul.addr %s1276, 16
        %s1278 = smul.addr %s1277, 4
        %s1279 = scalar_lea.vmem %s0, %s1278
        %p1280 = pneg %p49
        %p1281 = pneg %p46
        %s1282 = sand.u32 %s62, 1
        %s1283 = sand.u32 %s62, 1
        %s1284 = smul.addr %s1283, 1024
        %s1285 = scalar_lea.vmem [#allocation2], %s1284
        %p1286 = pneg %p75
        %p1287 = pneg %p72
        %p1288 = scmp.lt.s32.totalorder %s21, 1
        %s1289 = scalar_select %p1288, %s21, 1
        %s1290 = scalar_lea.vmem %s2, %s1289
        %p1291 = pneg %p101
        %p1292 = pneg %p98
        %p1293 = pneg %p129
        %p1294 = pneg %p126
        %s1295 = sand.u32 %s116, 1
        %s1296 = sand.u32 %s116, 1
        %s1297 = smul.addr %s1296, 16
        %s1298 = scalar_lea.vmem [#allocation3], %s1297
        %p1299 = pneg %p157
        %p1300 = pneg %p154
        %p1301 = scmp.lt.s32.totalorder %s20, 0
        %s1302 = scalar_select %p1301, %s20, 0
        %p1303 = scmp.lt.s32.totalorder %s21, 1
        %s1304 = scalar_select %p1303, %s21, 1
        %s1305 = smul.addr %s1302, 2
        %s1306 = sadd.s32 %s1304, %s1305
        %s1307 = smul.addr %s1306, 2
        %s1308 = scalar_lea.vmem %s4, %s1307
        %s1309 = smul.u32 4, %s20
        %p1310 = scmp.lt.s32.totalorder %s1309, 3
        %s1311 = scalar_select %p1310, %s1309, 3
        %s1312 = smul.addr %s1311, 16
        %s1313 = smul.addr %s1312, 4
        %s1314 = scalar_lea.vmem %s0, %s1313
        %s1315 = smul.u32 4, %s20
        %p1316 = scmp.lt.s32.totalorder %s21, 1
        %s1317 = scalar_select %p1316, %s21, 1
        %s1318 = scalar_lea.vmem %s2, %s1317
        %s1319 = smul.u32 4, %s20
        %p1320 = scmp.lt.s32.totalorder %s20, 0
        %s1321 = scalar_select %p1320, %s20, 0
        %p1322 = scmp.lt.s32.totalorder %s21, 1
        %s1323 = scalar_select %p1322, %s21, 1
        %s1324 = smul.addr %s1321, 2
        %s1325 = sadd.s32 %s1323, %s1324
        %s1326 = smul.addr %s1325, 2
        %s1327 = scalar_lea.vmem %s4, %s1326
        %v1329 = vld [vmem:[%s1314] sm:$0xff]
        %v1330 = vld [vmem:[%s1314 + $0x8] sm:$0xff]
        %v1331 = vld [vmem:[%s1314 + $0x10] sm:$0xff]
        %v1332 = vld [vmem:[%s1314 + $0x18] sm:$0xff]
        %v1333 = vld [vmem:[%s1314 + $0x20] sm:$0xff]
        %v1334 = vld [vmem:[%s1314 + $0x28] sm:$0xff]
        %v1335 = vld [vmem:[%s1314 + $0x30] sm:$0xff]
        %v1336 = vld [vmem:[%s1314 + $0x38] sm:$0xff]
        %v1337 = vld [vmem:[%s1314 + $0x40] sm:$0xff]
        %v1338 = vld [vmem:[%s1314 + $0x48] sm:$0xff]
        %v1339 = vld [vmem:[%s1314 + $0x50] sm:$0xff]
        %v1340 = vld [vmem:[%s1314 + $0x58] sm:$0xff]
        %v1341 = vld [vmem:[%s1314 + $0x60] sm:$0xff]
        %v1342 = vld [vmem:[%s1314 + $0x68] sm:$0xff]
        %v1343 = vld [vmem:[%s1314 + $0x70] sm:$0xff]
        %v1344 = vld [vmem:[%s1314 + $0x78] sm:$0xff]
        %v1345 = vld [vmem:[%s1314 + $0x80] sm:$0xff]
        %v1346 = vld [vmem:[%s1314 + $0x88] sm:$0xff]
        %v1347 = vld [vmem:[%s1314 + $0x90] sm:$0xff]
        %v1348 = vld [vmem:[%s1314 + $0x98] sm:$0xff]
        %v1349 = vld [vmem:[%s1314 + $0xa0] sm:$0xff]
        %v1350 = vld [vmem:[%s1314 + $0xa8] sm:$0xff]
        %v1351 = vld [vmem:[%s1314 + $0xb0] sm:$0xff]
        %v1352 = vld [vmem:[%s1314 + $0xb8] sm:$0xff]
        %v1353 = vld [vmem:[%s1314 + $0xc0] sm:$0xff]
        %v1354 = vld [vmem:[%s1314 + $0xc8] sm:$0xff]
        %v1355 = vld [vmem:[%s1314 + $0xd0] sm:$0xff]
        %v1356 = vld [vmem:[%s1314 + $0xd8] sm:$0xff]
        %v1357 = vld [vmem:[%s1314 + $0xe0] sm:$0xff]
        %v1358 = vld [vmem:[%s1314 + $0xe8] sm:$0xff]
        %v1359 = vld [vmem:[%s1314 + $0xf0] sm:$0xff]
        %v1360 = vld [vmem:[%s1314 + $0xf8] sm:$0xff]
        %v1361 = vld [vmem:[%s1270] sm:$0xf]
        %v1362 = vld [vmem:[%s1270 + $0x4] sm:$0xf]
        %v1363 = vld [vmem:[%s1270 + $0x8] sm:$0xf]
        %v1364 = vld [vmem:[%s1270 + $0xc] sm:$0xf]
        %v1365 = vld [vmem:[%s1270 + $0x10] sm:$0xf]
        %v1366 = vld [vmem:[%s1270 + $0x14] sm:$0xf]
        %v1367 = vld [vmem:[%s1270 + $0x18] sm:$0xf]
        %v1368 = vld [vmem:[%s1270 + $0x1c] sm:$0xf]
        %v1369 = vld [vmem:[%s1270 + $0x20] sm:$0xf]
        %v1370 = vld [vmem:[%s1270 + $0x24] sm:$0xf]
        %v1371 = vld [vmem:[%s1270 + $0x28] sm:$0xf]
        %v1372 = vld [vmem:[%s1270 + $0x2c] sm:$0xf]
        %v1373 = vld [vmem:[%s1270 + $0x30] sm:$0xf]
        %v1374 = vld [vmem:[%s1270 + $0x34] sm:$0xf]
        %v1375 = vld [vmem:[%s1270 + $0x38] sm:$0xf]
        %v1376 = vld [vmem:[%s1270 + $0x3c] sm:$0xf]
        %v1377 = vld [vmem:[%s1270 + $0x40] sm:$0xf]
        %v1378 = vld [vmem:[%s1270 + $0x44] sm:$0xf]
        %v1379 = vld [vmem:[%s1270 + $0x48] sm:$0xf]
        %v1380 = vld [vmem:[%s1270 + $0x4c] sm:$0xf]
        %v1381 = vld [vmem:[%s1270 + $0x50] sm:$0xf]
        %v1382 = vld [vmem:[%s1270 + $0x54] sm:$0xf]
        %v1383 = vld [vmem:[%s1270 + $0x58] sm:$0xf]
        %v1384 = vld [vmem:[%s1270 + $0x5c] sm:$0xf]
        %v1385 = vld [vmem:[%s1270 + $0x60] sm:$0xf]
        %v1386 = vld [vmem:[%s1270 + $0x64] sm:$0xf]
        %v1387 = vld [vmem:[%s1270 + $0x68] sm:$0xf]
        %v1388 = vld [vmem:[%s1270 + $0x6c] sm:$0xf]
        %v1389 = vld [vmem:[%s1270 + $0x70] sm:$0xf]
        %v1390 = vld [vmem:[%s1270 + $0x74] sm:$0xf]
        %v1391 = vld [vmem:[%s1270 + $0x78] sm:$0xf]
        %v1392 = vld [vmem:[%s1270 + $0x7c] sm:$0xf]
        %v1393 = vld [vmem:[%s1270 + $0x80] sm:$0xf]
        %v1394 = vld [vmem:[%s1270 + $0x84] sm:$0xf]
        %v1395 = vld [vmem:[%s1270 + $0x88] sm:$0xf]
        %v1396 = vld [vmem:[%s1270 + $0x8c] sm:$0xf]
        %v1397 = vld [vmem:[%s1270 + $0x90] sm:$0xf]
        %v1398 = vld [vmem:[%s1270 + $0x94] sm:$0xf]
        %v1399 = vld [vmem:[%s1270 + $0x98] sm:$0xf]
        %v1400 = vld [vmem:[%s1270 + $0x9c] sm:$0xf]
        %v1401 = vld [vmem:[%s1270 + $0xa0] sm:$0xf]
        %v1402 = vld [vmem:[%s1270 + $0xa4] sm:$0xf]
        %v1403 = vld [vmem:[%s1270 + $0xa8] sm:$0xf]
        %v1404 = vld [vmem:[%s1270 + $0xac] sm:$0xf]
        %v1405 = vld [vmem:[%s1270 + $0xb0] sm:$0xf]
        %v1406 = vld [vmem:[%s1270 + $0xb4] sm:$0xf]
        %v1407 = vld [vmem:[%s1270 + $0xb8] sm:$0xf]
        %v1408 = vld [vmem:[%s1270 + $0xbc] sm:$0xf]
        %v1409 = vld [vmem:[%s1270 + $0xc0] sm:$0xf]
        %v1410 = vld [vmem:[%s1270 + $0xc4] sm:$0xf]
        %v1411 = vld [vmem:[%s1270 + $0xc8] sm:$0xf]
        %v1412 = vld [vmem:[%s1270 + $0xcc] sm:$0xf]
        %v1413 = vld [vmem:[%s1270 + $0xd0] sm:$0xf]
        %v1414 = vld [vmem:[%s1270 + $0xd4] sm:$0xf]
        %v1415 = vld [vmem:[%s1270 + $0xd8] sm:$0xf]
        %v1416 = vld [vmem:[%s1270 + $0xdc] sm:$0xf]
        %v1417 = vld [vmem:[%s1270 + $0xe0] sm:$0xf]
        %v1418 = vld [vmem:[%s1270 + $0xe4] sm:$0xf]
        %v1419 = vld [vmem:[%s1270 + $0xe8] sm:$0xf]
        %v1420 = vld [vmem:[%s1270 + $0xec] sm:$0xf]
        %v1421 = vld [vmem:[%s1270 + $0xf0] sm:$0xf]
        %v1422 = vld [vmem:[%s1270 + $0xf4] sm:$0xf]
        %v1423 = vld [vmem:[%s1270 + $0xf8] sm:$0xf]
        %v1424 = vld [vmem:[%s1270 + $0xfc] sm:$0xf]
        %v1425 = vld [vmem:[%s1270 + $0x100] sm:$0xf]
        %v1426 = vld [vmem:[%s1270 + $0x104] sm:$0xf]
        %v1427 = vld [vmem:[%s1270 + $0x108] sm:$0xf]
        %v1428 = vld [vmem:[%s1270 + $0x10c] sm:$0xf]
        %v1429 = vld [vmem:[%s1270 + $0x110] sm:$0xf]
        %v1430 = vld [vmem:[%s1270 + $0x114] sm:$0xf]
        %v1431 = vld [vmem:[%s1270 + $0x118] sm:$0xf]
        %v1432 = vld [vmem:[%s1270 + $0x11c] sm:$0xf]
        %v1433 = vld [vmem:[%s1270 + $0x120] sm:$0xf]
        %v1434 = vld [vmem:[%s1270 + $0x124] sm:$0xf]
        %v1435 = vld [vmem:[%s1270 + $0x128] sm:$0xf]
        %v1436 = vld [vmem:[%s1270 + $0x12c] sm:$0xf]
        %v1437 = vld [vmem:[%s1270 + $0x130] sm:$0xf]
        %v1438 = vld [vmem:[%s1270 + $0x134] sm:$0xf]
        %v1439 = vld [vmem:[%s1270 + $0x138] sm:$0xf]
        %v1440 = vld [vmem:[%s1270 + $0x13c] sm:$0xf]
        %v1441 = vld [vmem:[%s1270 + $0x140] sm:$0xf]
        %v1442 = vld [vmem:[%s1270 + $0x144] sm:$0xf]
        %v1443 = vld [vmem:[%s1270 + $0x148] sm:$0xf]
        %v1444 = vld [vmem:[%s1270 + $0x14c] sm:$0xf]
        %v1445 = vld [vmem:[%s1270 + $0x150] sm:$0xf]
        %v1446 = vld [vmem:[%s1270 + $0x154] sm:$0xf]
        %v1447 = vld [vmem:[%s1270 + $0x158] sm:$0xf]
        %v1448 = vld [vmem:[%s1270 + $0x15c] sm:$0xf]
        %v1449 = vld [vmem:[%s1270 + $0x160] sm:$0xf]
        %v1450 = vld [vmem:[%s1270 + $0x164] sm:$0xf]
        %v1451 = vld [vmem:[%s1270 + $0x168] sm:$0xf]
        %v1452 = vld [vmem:[%s1270 + $0x16c] sm:$0xf]
        %v1453 = vld [vmem:[%s1270 + $0x170] sm:$0xf]
        %v1454 = vld [vmem:[%s1270 + $0x174] sm:$0xf]
        %v1455 = vld [vmem:[%s1270 + $0x178] sm:$0xf]
        %v1456 = vld [vmem:[%s1270 + $0x17c] sm:$0xf]
        %v1457 = vld [vmem:[%s1270 + $0x180] sm:$0xf]
        %v1458 = vld [vmem:[%s1270 + $0x184] sm:$0xf]
        %v1459 = vld [vmem:[%s1270 + $0x188] sm:$0xf]
        %v1460 = vld [vmem:[%s1270 + $0x18c] sm:$0xf]
        %v1461 = vld [vmem:[%s1270 + $0x190] sm:$0xf]
        %v1462 = vld [vmem:[%s1270 + $0x194] sm:$0xf]
        %v1463 = vld [vmem:[%s1270 + $0x198] sm:$0xf]
        %v1464 = vld [vmem:[%s1270 + $0x19c] sm:$0xf]
        %v1465 = vld [vmem:[%s1270 + $0x1a0] sm:$0xf]
        %v1466 = vld [vmem:[%s1270 + $0x1a4] sm:$0xf]
        %v1467 = vld [vmem:[%s1270 + $0x1a8] sm:$0xf]
        %v1468 = vld [vmem:[%s1270 + $0x1ac] sm:$0xf]
        %v1469 = vld [vmem:[%s1270 + $0x1b0] sm:$0xf]
        %v1470 = vld [vmem:[%s1270 + $0x1b4] sm:$0xf]
        %v1471 = vld [vmem:[%s1270 + $0x1b8] sm:$0xf]
        %v1472 = vld [vmem:[%s1270 + $0x1bc] sm:$0xf]
        %v1473 = vld [vmem:[%s1270 + $0x1c0] sm:$0xf]
        %v1474 = vld [vmem:[%s1270 + $0x1c4] sm:$0xf]
        %v1475 = vld [vmem:[%s1270 + $0x1c8] sm:$0xf]
        %v1476 = vld [vmem:[%s1270 + $0x1cc] sm:$0xf]
        %v1477 = vld [vmem:[%s1270 + $0x1d0] sm:$0xf]
        %v1478 = vld [vmem:[%s1270 + $0x1d4] sm:$0xf]
        %v1479 = vld [vmem:[%s1270 + $0x1d8] sm:$0xf]
        %v1480 = vld [vmem:[%s1270 + $0x1dc] sm:$0xf]
        %v1481 = vld [vmem:[%s1270 + $0x1e0] sm:$0xf]
        %v1482 = vld [vmem:[%s1270 + $0x1e4] sm:$0xf]
        %v1483 = vld [vmem:[%s1270 + $0x1e8] sm:$0xf]
        %v1484 = vld [vmem:[%s1270 + $0x1ec] sm:$0xf]
        %v1485 = vld [vmem:[%s1270 + $0x1f0] sm:$0xf]
        %v1486 = vld [vmem:[%s1270 + $0x1f4] sm:$0xf]
        %v1487 = vld [vmem:[%s1270 + $0x1f8] sm:$0xf]
        %v1488 = vld [vmem:[%s1270 + $0x1fc] sm:$0xf]
        %v1489 = vld [vmem:[%s1270 + $0x200] sm:$0xf]
        %v1490 = vld [vmem:[%s1270 + $0x204] sm:$0xf]
        %v1491 = vld [vmem:[%s1270 + $0x208] sm:$0xf]
        %v1492 = vld [vmem:[%s1270 + $0x20c] sm:$0xf]
        %v1493 = vld [vmem:[%s1270 + $0x210] sm:$0xf]
        %v1494 = vld [vmem:[%s1270 + $0x214] sm:$0xf]
        %v1495 = vld [vmem:[%s1270 + $0x218] sm:$0xf]
        %v1496 = vld [vmem:[%s1270 + $0x21c] sm:$0xf]
        %v1497 = vld [vmem:[%s1270 + $0x220] sm:$0xf]
        %v1498 = vld [vmem:[%s1270 + $0x224] sm:$0xf]
        %v1499 = vld [vmem:[%s1270 + $0x228] sm:$0xf]
        %v1500 = vld [vmem:[%s1270 + $0x22c] sm:$0xf]
        %v1501 = vld [vmem:[%s1270 + $0x230] sm:$0xf]
        %v1502 = vld [vmem:[%s1270 + $0x234] sm:$0xf]
        %v1503 = vld [vmem:[%s1270 + $0x238] sm:$0xf]
        %v1504 = vld [vmem:[%s1270 + $0x23c] sm:$0xf]
        %v1505 = vld [vmem:[%s1270 + $0x240] sm:$0xf]
        %v1506 = vld [vmem:[%s1270 + $0x244] sm:$0xf]
        %v1507 = vld [vmem:[%s1270 + $0x248] sm:$0xf]
        %v1508 = vld [vmem:[%s1270 + $0x24c] sm:$0xf]
        %v1509 = vld [vmem:[%s1270 + $0x250] sm:$0xf]
        %v1510 = vld [vmem:[%s1270 + $0x254] sm:$0xf]
        %v1511 = vld [vmem:[%s1270 + $0x258] sm:$0xf]
        %v1512 = vld [vmem:[%s1270 + $0x25c] sm:$0xf]
        %v1513 = vld [vmem:[%s1270 + $0x260] sm:$0xf]
        %v1514 = vld [vmem:[%s1270 + $0x264] sm:$0xf]
        %v1515 = vld [vmem:[%s1270 + $0x268] sm:$0xf]
        %v1516 = vld [vmem:[%s1270 + $0x26c] sm:$0xf]
        %v1517 = vld [vmem:[%s1270 + $0x270] sm:$0xf]
        %v1518 = vld [vmem:[%s1270 + $0x274] sm:$0xf]
        %v1519 = vld [vmem:[%s1270 + $0x278] sm:$0xf]
        %v1520 = vld [vmem:[%s1270 + $0x27c] sm:$0xf]
        %v1521 = vld [vmem:[%s1270 + $0x280] sm:$0xf]
        %v1522 = vld [vmem:[%s1270 + $0x284] sm:$0xf]
        %v1523 = vld [vmem:[%s1270 + $0x288] sm:$0xf]
        %v1524 = vld [vmem:[%s1270 + $0x28c] sm:$0xf]
        %v1525 = vld [vmem:[%s1270 + $0x290] sm:$0xf]
        %v1526 = vld [vmem:[%s1270 + $0x294] sm:$0xf]
        %v1527 = vld [vmem:[%s1270 + $0x298] sm:$0xf]
        %v1528 = vld [vmem:[%s1270 + $0x29c] sm:$0xf]
        %v1529 = vld [vmem:[%s1270 + $0x2a0] sm:$0xf]
        %v1530 = vld [vmem:[%s1270 + $0x2a4] sm:$0xf]
        %v1531 = vld [vmem:[%s1270 + $0x2a8] sm:$0xf]
        %v1532 = vld [vmem:[%s1270 + $0x2ac] sm:$0xf]
        %v1533 = vld [vmem:[%s1270 + $0x2b0] sm:$0xf]
        %v1534 = vld [vmem:[%s1270 + $0x2b4] sm:$0xf]
        %v1535 = vld [vmem:[%s1270 + $0x2b8] sm:$0xf]
        %v1536 = vld [vmem:[%s1270 + $0x2bc] sm:$0xf]
        %v1537 = vld [vmem:[%s1270 + $0x2c0] sm:$0xf]
        %v1538 = vld [vmem:[%s1270 + $0x2c4] sm:$0xf]
        %v1539 = vld [vmem:[%s1270 + $0x2c8] sm:$0xf]
        %v1540 = vld [vmem:[%s1270 + $0x2cc] sm:$0xf]
        %v1541 = vld [vmem:[%s1270 + $0x2d0] sm:$0xf]
        %v1542 = vld [vmem:[%s1270 + $0x2d4] sm:$0xf]
        %v1543 = vld [vmem:[%s1270 + $0x2d8] sm:$0xf]
        %v1544 = vld [vmem:[%s1270 + $0x2dc] sm:$0xf]
        %v1545 = vld [vmem:[%s1270 + $0x2e0] sm:$0xf]
        %v1546 = vld [vmem:[%s1270 + $0x2e4] sm:$0xf]
        %v1547 = vld [vmem:[%s1270 + $0x2e8] sm:$0xf]
        %v1548 = vld [vmem:[%s1270 + $0x2ec] sm:$0xf]
        %v1549 = vld [vmem:[%s1270 + $0x2f0] sm:$0xf]
        %v1550 = vld [vmem:[%s1270 + $0x2f4] sm:$0xf]
        %v1551 = vld [vmem:[%s1270 + $0x2f8] sm:$0xf]
        %v1552 = vld [vmem:[%s1270 + $0x2fc] sm:$0xf]
        %v1553 = vld [vmem:[%s1270 + $0x300] sm:$0xf]
        %v1554 = vld [vmem:[%s1270 + $0x304] sm:$0xf]
        %v1555 = vld [vmem:[%s1270 + $0x308] sm:$0xf]
        %v1556 = vld [vmem:[%s1270 + $0x30c] sm:$0xf]
        %v1557 = vld [vmem:[%s1270 + $0x310] sm:$0xf]
        %v1558 = vld [vmem:[%s1270 + $0x314] sm:$0xf]
        %v1559 = vld [vmem:[%s1270 + $0x318] sm:$0xf]
        %v1560 = vld [vmem:[%s1270 + $0x31c] sm:$0xf]
        %v1561 = vld [vmem:[%s1270 + $0x320] sm:$0xf]
        %v1562 = vld [vmem:[%s1270 + $0x324] sm:$0xf]
        %v1563 = vld [vmem:[%s1270 + $0x328] sm:$0xf]
        %v1564 = vld [vmem:[%s1270 + $0x32c] sm:$0xf]
        %v1565 = vld [vmem:[%s1270 + $0x330] sm:$0xf]
        %v1566 = vld [vmem:[%s1270 + $0x334] sm:$0xf]
        %v1567 = vld [vmem:[%s1270 + $0x338] sm:$0xf]
        %v1568 = vld [vmem:[%s1270 + $0x33c] sm:$0xf]
        %v1569 = vld [vmem:[%s1270 + $0x340] sm:$0xf]
        %v1570 = vld [vmem:[%s1270 + $0x344] sm:$0xf]
        %v1571 = vld [vmem:[%s1270 + $0x348] sm:$0xf]
        %v1572 = vld [vmem:[%s1270 + $0x34c] sm:$0xf]
        %v1573 = vld [vmem:[%s1270 + $0x350] sm:$0xf]
        %v1574 = vld [vmem:[%s1270 + $0x354] sm:$0xf]
        %v1575 = vld [vmem:[%s1270 + $0x358] sm:$0xf]
        %v1576 = vld [vmem:[%s1270 + $0x35c] sm:$0xf]
        %v1577 = vld [vmem:[%s1270 + $0x360] sm:$0xf]
        %v1578 = vld [vmem:[%s1270 + $0x364] sm:$0xf]
        %v1579 = vld [vmem:[%s1270 + $0x368] sm:$0xf]
        %v1580 = vld [vmem:[%s1270 + $0x36c] sm:$0xf]
        %v1581 = vld [vmem:[%s1270 + $0x370] sm:$0xf]
        %v1582 = vld [vmem:[%s1270 + $0x374] sm:$0xf]
        %v1583 = vld [vmem:[%s1270 + $0x378] sm:$0xf]
        %v1584 = vld [vmem:[%s1270 + $0x37c] sm:$0xf]
        %v1585 = vld [vmem:[%s1270 + $0x380] sm:$0xf]
        %v1586 = vld [vmem:[%s1270 + $0x384] sm:$0xf]
        %v1587 = vld [vmem:[%s1270 + $0x388] sm:$0xf]
        %v1588 = vld [vmem:[%s1270 + $0x38c] sm:$0xf]
        %v1589 = vld [vmem:[%s1270 + $0x390] sm:$0xf]
        %v1590 = vld [vmem:[%s1270 + $0x394] sm:$0xf]
        %v1591 = vld [vmem:[%s1270 + $0x398] sm:$0xf]
        %v1592 = vld [vmem:[%s1270 + $0x39c] sm:$0xf]
        %v1593 = vld [vmem:[%s1270 + $0x3a0] sm:$0xf]
        %v1594 = vld [vmem:[%s1270 + $0x3a4] sm:$0xf]
        %v1595 = vld [vmem:[%s1270 + $0x3a8] sm:$0xf]
        %v1596 = vld [vmem:[%s1270 + $0x3ac] sm:$0xf]
        %v1597 = vld [vmem:[%s1270 + $0x3b0] sm:$0xf]
        %v1598 = vld [vmem:[%s1270 + $0x3b4] sm:$0xf]
        %v1599 = vld [vmem:[%s1270 + $0x3b8] sm:$0xf]
        %v1600 = vld [vmem:[%s1270 + $0x3bc] sm:$0xf]
        %v1601 = vld [vmem:[%s1270 + $0x3c0] sm:$0xf]
        %v1602 = vld [vmem:[%s1270 + $0x3c4] sm:$0xf]
        %v1603 = vld [vmem:[%s1270 + $0x3c8] sm:$0xf]
        %v1604 = vld [vmem:[%s1270 + $0x3cc] sm:$0xf]
        %v1605 = vld [vmem:[%s1270 + $0x3d0] sm:$0xf]
        %v1606 = vld [vmem:[%s1270 + $0x3d4] sm:$0xf]
        %v1607 = vld [vmem:[%s1270 + $0x3d8] sm:$0xf]
        %v1608 = vld [vmem:[%s1270 + $0x3dc] sm:$0xf]
        %v1609 = vld [vmem:[%s1270 + $0x3e0] sm:$0xf]
        %v1610 = vld [vmem:[%s1270 + $0x3e4] sm:$0xf]
        %v1611 = vld [vmem:[%s1270 + $0x3e8] sm:$0xf]
        %v1612 = vld [vmem:[%s1270 + $0x3ec] sm:$0xf]
        %v1613 = vld [vmem:[%s1270 + $0x3f0] sm:$0xf]
        %v1614 = vld [vmem:[%s1270 + $0x3f4] sm:$0xf]
        %v1615 = vld [vmem:[%s1270 + $0x3f8] sm:$0xf]
        %v1616 = vld [vmem:[%s1270 + $0x3fc] sm:$0xf]
        %v1617 = vld [vmem:[%s1318] sm:$0x1]
        %v1619 = vlaneseq
        %v1620 = vshrl.u32 %v1619, 7
        %v1621 = vsub.s32 0, %v1620
        %v1622 = vrot.slane %v1617, %v1621
        %v1656 = vunpack.c.l.b16 %v1329
        %v1657 = vunpack.c.h.b16 %v1329
        %v1658 = vunpack.c.l.b16 %v1330
        %v1659 = vunpack.c.h.b16 %v1330
        %v1660 = vunpack.c.l.b16 %v1331
        %v1661 = vunpack.c.h.b16 %v1331
        %v1662 = vunpack.c.l.b16 %v1332
        %v1663 = vunpack.c.h.b16 %v1332
        %v1664 = vunpack.c.l.b16 %v1333
        %v1665 = vunpack.c.h.b16 %v1333
        %v1666 = vunpack.c.l.b16 %v1334
        %v1667 = vunpack.c.h.b16 %v1334
        %v1668 = vunpack.c.l.b16 %v1335
        %v1669 = vunpack.c.h.b16 %v1335
        %v1670 = vunpack.c.l.b16 %v1336
        %v1671 = vunpack.c.h.b16 %v1336
        %v1672 = vunpack.c.l.b16 %v1337
        %v1673 = vunpack.c.h.b16 %v1337
        %v1674 = vunpack.c.l.b16 %v1338
        %v1675 = vunpack.c.h.b16 %v1338
        %v1676 = vunpack.c.l.b16 %v1339
        %v1677 = vunpack.c.h.b16 %v1339
        %v1678 = vunpack.c.l.b16 %v1340
        %v1679 = vunpack.c.h.b16 %v1340
        %v1680 = vunpack.c.l.b16 %v1341
        %v1681 = vunpack.c.h.b16 %v1341
        %v1682 = vunpack.c.l.b16 %v1342
        %v1683 = vunpack.c.h.b16 %v1342
        %v1684 = vunpack.c.l.b16 %v1343
        %v1685 = vunpack.c.h.b16 %v1343
        %v1686 = vunpack.c.l.b16 %v1344
        %v1687 = vunpack.c.h.b16 %v1344
        %v1688 = vunpack.c.l.b16 %v1345
        %v1689 = vunpack.c.h.b16 %v1345
        %v1690 = vunpack.c.l.b16 %v1346
        %v1691 = vunpack.c.h.b16 %v1346
        %v1692 = vunpack.c.l.b16 %v1347
        %v1693 = vunpack.c.h.b16 %v1347
        %v1694 = vunpack.c.l.b16 %v1348
        %v1695 = vunpack.c.h.b16 %v1348
        %v1696 = vunpack.c.l.b16 %v1349
        %v1697 = vunpack.c.h.b16 %v1349
        %v1698 = vunpack.c.l.b16 %v1350
        %v1699 = vunpack.c.h.b16 %v1350
        %v1700 = vunpack.c.l.b16 %v1351
        %v1701 = vunpack.c.h.b16 %v1351
        %v1702 = vunpack.c.l.b16 %v1352
        %v1703 = vunpack.c.h.b16 %v1352
        %v1704 = vunpack.c.l.b16 %v1353
        %v1705 = vunpack.c.h.b16 %v1353
        %v1706 = vunpack.c.l.b16 %v1354
        %v1707 = vunpack.c.h.b16 %v1354
        %v1708 = vunpack.c.l.b16 %v1355
        %v1709 = vunpack.c.h.b16 %v1355
        %v1710 = vunpack.c.l.b16 %v1356
        %v1711 = vunpack.c.h.b16 %v1356
        %v1712 = vunpack.c.l.b16 %v1357
        %v1713 = vunpack.c.h.b16 %v1357
        %v1714 = vunpack.c.l.b16 %v1358
        %v1715 = vunpack.c.h.b16 %v1358
        %v1716 = vunpack.c.l.b16 %v1359
        %v1717 = vunpack.c.h.b16 %v1359
        %v1718 = vunpack.c.l.b16 %v1360
        %v1719 = vunpack.c.h.b16 %v1360
        %v1720 = vpack.c.b16 %v1672, %v1656
        %v1721 = vpack.c.b16 %v1673, %v1657
        %v1722 = vpack.c.b16 %v1674, %v1658
        %v1723 = vpack.c.b16 %v1675, %v1659
        %v1724 = vpack.c.b16 %v1676, %v1660
        %v1725 = vpack.c.b16 %v1677, %v1661
        %v1726 = vpack.c.b16 %v1678, %v1662
        %v1727 = vpack.c.b16 %v1679, %v1663
        %v1728 = vpack.c.b16 %v1680, %v1664
        %v1729 = vpack.c.b16 %v1681, %v1665
        %v1730 = vpack.c.b16 %v1682, %v1666
        %v1731 = vpack.c.b16 %v1683, %v1667
        %v1732 = vpack.c.b16 %v1684, %v1668
        %v1733 = vpack.c.b16 %v1685, %v1669
        %v1734 = vpack.c.b16 %v1686, %v1670
        %v1735 = vpack.c.b16 %v1687, %v1671
        %v1736 = vpack.c.b16 %v1704, %v1688
        %v1737 = vpack.c.b16 %v1705, %v1689
        %v1738 = vpack.c.b16 %v1706, %v1690
        %v1739 = vpack.c.b16 %v1707, %v1691
        %v1740 = vpack.c.b16 %v1708, %v1692
        %v1741 = vpack.c.b16 %v1709, %v1693
        %v1742 = vpack.c.b16 %v1710, %v1694
        %v1743 = vpack.c.b16 %v1711, %v1695
        %v1744 = vpack.c.b16 %v1712, %v1696
        %v1745 = vpack.c.b16 %v1713, %v1697
        %v1746 = vpack.c.b16 %v1714, %v1698
        %v1747 = vpack.c.b16 %v1715, %v1699
        %v1748 = vpack.c.b16 %v1716, %v1700
        %v1749 = vpack.c.b16 %v1717, %v1701
        %v1750 = vpack.c.b16 %v1718, %v1702
        %v1751 = vpack.c.b16 %v1719, %v1703
        %v2040 = vunpack.c.l.b16 %v1361
        %v2041 = vunpack.c.l.b16 %v1362
        %v2042 = vunpack.c.l.b16 %v1363
        %v2043 = vunpack.c.l.b16 %v1364
        %v2044 = vunpack.c.l.b16 %v1365
        %v2045 = vunpack.c.l.b16 %v1366
        %v2046 = vunpack.c.l.b16 %v1367
        %v2047 = vunpack.c.l.b16 %v1368
        %v2048 = vunpack.c.l.b16 %v1369
        %v2049 = vunpack.c.l.b16 %v1370
        %v2050 = vunpack.c.l.b16 %v1371
        %v2051 = vunpack.c.l.b16 %v1372
        %v2052 = vunpack.c.l.b16 %v1373
        %v2053 = vunpack.c.l.b16 %v1374
        %v2054 = vunpack.c.l.b16 %v1375
        %v2055 = vunpack.c.l.b16 %v1376
        %v2056 = vunpack.c.l.b16 %v1377
        %v2057 = vunpack.c.l.b16 %v1378
        %v2058 = vunpack.c.l.b16 %v1379
        %v2059 = vunpack.c.l.b16 %v1380
        %v2060 = vunpack.c.l.b16 %v1381
        %v2061 = vunpack.c.l.b16 %v1382
        %v2062 = vunpack.c.l.b16 %v1383
        %v2063 = vunpack.c.l.b16 %v1384
        %v2064 = vunpack.c.l.b16 %v1385
        %v2065 = vunpack.c.l.b16 %v1386
        %v2066 = vunpack.c.l.b16 %v1387
        %v2067 = vunpack.c.l.b16 %v1388
        %v2068 = vunpack.c.l.b16 %v1389
        %v2069 = vunpack.c.l.b16 %v1390
        %v2070 = vunpack.c.l.b16 %v1391
        %v2071 = vunpack.c.l.b16 %v1392
        %v2072 = vunpack.c.l.b16 %v1393
        %v2073 = vunpack.c.l.b16 %v1394
        %v2074 = vunpack.c.l.b16 %v1395
        %v2075 = vunpack.c.l.b16 %v1396
        %v2076 = vunpack.c.l.b16 %v1397
        %v2077 = vunpack.c.l.b16 %v1398
        %v2078 = vunpack.c.l.b16 %v1399
        %v2079 = vunpack.c.l.b16 %v1400
        %v2080 = vunpack.c.l.b16 %v1401
        %v2081 = vunpack.c.l.b16 %v1402
        %v2082 = vunpack.c.l.b16 %v1403
        %v2083 = vunpack.c.l.b16 %v1404
        %v2084 = vunpack.c.l.b16 %v1405
        %v2085 = vunpack.c.l.b16 %v1406
        %v2086 = vunpack.c.l.b16 %v1407
        %v2087 = vunpack.c.l.b16 %v1408
        %v2088 = vunpack.c.l.b16 %v1409
        %v2089 = vunpack.c.l.b16 %v1410
        %v2090 = vunpack.c.l.b16 %v1411
        %v2091 = vunpack.c.l.b16 %v1412
        %v2092 = vunpack.c.l.b16 %v1413
        %v2093 = vunpack.c.l.b16 %v1414
        %v2094 = vunpack.c.l.b16 %v1415
        %v2095 = vunpack.c.l.b16 %v1416
        %v2096 = vunpack.c.l.b16 %v1417
        %v2097 = vunpack.c.l.b16 %v1418
        %v2098 = vunpack.c.l.b16 %v1419
        %v2099 = vunpack.c.l.b16 %v1420
        %v2100 = vunpack.c.l.b16 %v1421
        %v2101 = vunpack.c.l.b16 %v1422
        %v2102 = vunpack.c.l.b16 %v1423
        %v2103 = vunpack.c.l.b16 %v1424
        %v2104 = vunpack.c.l.b16 %v1425
        %v2105 = vunpack.c.l.b16 %v1426
        %v2106 = vunpack.c.l.b16 %v1427
        %v2107 = vunpack.c.l.b16 %v1428
        %v2108 = vunpack.c.l.b16 %v1429
        %v2109 = vunpack.c.l.b16 %v1430
        %v2110 = vunpack.c.l.b16 %v1431
        %v2111 = vunpack.c.l.b16 %v1432
        %v2112 = vunpack.c.l.b16 %v1433
        %v2113 = vunpack.c.l.b16 %v1434
        %v2114 = vunpack.c.l.b16 %v1435
        %v2115 = vunpack.c.l.b16 %v1436
        %v2116 = vunpack.c.l.b16 %v1437
        %v2117 = vunpack.c.l.b16 %v1438
        %v2118 = vunpack.c.l.b16 %v1439
        %v2119 = vunpack.c.l.b16 %v1440
        %v2120 = vunpack.c.l.b16 %v1441
        %v2121 = vunpack.c.l.b16 %v1442
        %v2122 = vunpack.c.l.b16 %v1443
        %v2123 = vunpack.c.l.b16 %v1444
        %v2124 = vunpack.c.l.b16 %v1445
        %v2125 = vunpack.c.l.b16 %v1446
        %v2126 = vunpack.c.l.b16 %v1447
        %v2127 = vunpack.c.l.b16 %v1448
        %v2128 = vunpack.c.l.b16 %v1449
        %v2129 = vunpack.c.l.b16 %v1450
        %v2130 = vunpack.c.l.b16 %v1451
        %v2131 = vunpack.c.l.b16 %v1452
        %v2132 = vunpack.c.l.b16 %v1453
        %v2133 = vunpack.c.l.b16 %v1454
        %v2134 = vunpack.c.l.b16 %v1455
        %v2135 = vunpack.c.l.b16 %v1456
        %v2136 = vunpack.c.l.b16 %v1457
        %v2137 = vunpack.c.l.b16 %v1458
        %v2138 = vunpack.c.l.b16 %v1459
        %v2139 = vunpack.c.l.b16 %v1460
        %v2140 = vunpack.c.l.b16 %v1461
        %v2141 = vunpack.c.l.b16 %v1462
        %v2142 = vunpack.c.l.b16 %v1463
        %v2143 = vunpack.c.l.b16 %v1464
        %v2144 = vunpack.c.l.b16 %v1465
        %v2145 = vunpack.c.l.b16 %v1466
        %v2146 = vunpack.c.l.b16 %v1467
        %v2147 = vunpack.c.l.b16 %v1468
        %v2148 = vunpack.c.l.b16 %v1469
        %v2149 = vunpack.c.l.b16 %v1470
        %v2150 = vunpack.c.l.b16 %v1471
        %v2151 = vunpack.c.l.b16 %v1472
        %v2152 = vunpack.c.l.b16 %v1473
        %v2153 = vunpack.c.l.b16 %v1474
        %v2154 = vunpack.c.l.b16 %v1475
        %v2155 = vunpack.c.l.b16 %v1476
        %v2156 = vunpack.c.l.b16 %v1477
        %v2157 = vunpack.c.l.b16 %v1478
        %v2158 = vunpack.c.l.b16 %v1479
        %v2159 = vunpack.c.l.b16 %v1480
        %v2160 = vunpack.c.l.b16 %v1481
        %v2161 = vunpack.c.l.b16 %v1482
        %v2162 = vunpack.c.l.b16 %v1483
        %v2163 = vunpack.c.l.b16 %v1484
        %v2164 = vunpack.c.l.b16 %v1485
        %v2165 = vunpack.c.l.b16 %v1486
        %v2166 = vunpack.c.l.b16 %v1487
        %v2167 = vunpack.c.l.b16 %v1488
        %v2168 = vunpack.c.l.b16 %v1489
        %v2169 = vunpack.c.l.b16 %v1490
        %v2170 = vunpack.c.l.b16 %v1491
        %v2171 = vunpack.c.l.b16 %v1492
        %v2172 = vunpack.c.l.b16 %v1493
        %v2173 = vunpack.c.l.b16 %v1494
        %v2174 = vunpack.c.l.b16 %v1495
        %v2175 = vunpack.c.l.b16 %v1496
        %v2176 = vunpack.c.l.b16 %v1497
        %v2177 = vunpack.c.l.b16 %v1498
        %v2178 = vunpack.c.l.b16 %v1499
        %v2179 = vunpack.c.l.b16 %v1500
        %v2180 = vunpack.c.l.b16 %v1501
        %v2181 = vunpack.c.l.b16 %v1502
        %v2182 = vunpack.c.l.b16 %v1503
        %v2183 = vunpack.c.l.b16 %v1504
        %v2184 = vunpack.c.l.b16 %v1505
        %v2185 = vunpack.c.l.b16 %v1506
        %v2186 = vunpack.c.l.b16 %v1507
        %v2187 = vunpack.c.l.b16 %v1508
        %v2188 = vunpack.c.l.b16 %v1509
        %v2189 = vunpack.c.l.b16 %v1510
        %v2190 = vunpack.c.l.b16 %v1511
        %v2191 = vunpack.c.l.b16 %v1512
        %v2192 = vunpack.c.l.b16 %v1513
        %v2193 = vunpack.c.l.b16 %v1514
        %v2194 = vunpack.c.l.b16 %v1515
        %v2195 = vunpack.c.l.b16 %v1516
        %v2196 = vunpack.c.l.b16 %v1517
        %v2197 = vunpack.c.l.b16 %v1518
        %v2198 = vunpack.c.l.b16 %v1519
        %v2199 = vunpack.c.l.b16 %v1520
        %v2200 = vunpack.c.l.b16 %v1521
        %v2201 = vunpack.c.l.b16 %v1522
        %v2202 = vunpack.c.l.b16 %v1523
        %v2203 = vunpack.c.l.b16 %v1524
        %v2204 = vunpack.c.l.b16 %v1525
        %v2205 = vunpack.c.l.b16 %v1526
        %v2206 = vunpack.c.l.b16 %v1527
        %v2207 = vunpack.c.l.b16 %v1528
        %v2208 = vunpack.c.l.b16 %v1529
        %v2209 = vunpack.c.l.b16 %v1530
        %v2210 = vunpack.c.l.b16 %v1531
        %v2211 = vunpack.c.l.b16 %v1532
        %v2212 = vunpack.c.l.b16 %v1533
        %v2213 = vunpack.c.l.b16 %v1534
        %v2214 = vunpack.c.l.b16 %v1535
        %v2215 = vunpack.c.l.b16 %v1536
        %v2216 = vunpack.c.l.b16 %v1537
        %v2217 = vunpack.c.l.b16 %v1538
        %v2218 = vunpack.c.l.b16 %v1539
        %v2219 = vunpack.c.l.b16 %v1540
        %v2220 = vunpack.c.l.b16 %v1541
        %v2221 = vunpack.c.l.b16 %v1542
        %v2222 = vunpack.c.l.b16 %v1543
        %v2223 = vunpack.c.l.b16 %v1544
        %v2224 = vunpack.c.l.b16 %v1545
        %v2225 = vunpack.c.l.b16 %v1546
        %v2226 = vunpack.c.l.b16 %v1547
        %v2227 = vunpack.c.l.b16 %v1548
        %v2228 = vunpack.c.l.b16 %v1549
        %v2229 = vunpack.c.l.b16 %v1550
        %v2230 = vunpack.c.l.b16 %v1551
        %v2231 = vunpack.c.l.b16 %v1552
        %v2232 = vunpack.c.l.b16 %v1553
        %v2233 = vunpack.c.l.b16 %v1554
        %v2234 = vunpack.c.l.b16 %v1555
        %v2235 = vunpack.c.l.b16 %v1556
        %v2236 = vunpack.c.l.b16 %v1557
        %v2237 = vunpack.c.l.b16 %v1558
        %v2238 = vunpack.c.l.b16 %v1559
        %v2239 = vunpack.c.l.b16 %v1560
        %v2240 = vunpack.c.l.b16 %v1561
        %v2241 = vunpack.c.l.b16 %v1562
        %v2242 = vunpack.c.l.b16 %v1563
        %v2243 = vunpack.c.l.b16 %v1564
        %v2244 = vunpack.c.l.b16 %v1565
        %v2245 = vunpack.c.l.b16 %v1566
        %v2246 = vunpack.c.l.b16 %v1567
        %v2247 = vunpack.c.l.b16 %v1568
        %v2248 = vunpack.c.l.b16 %v1569
        %v2249 = vunpack.c.l.b16 %v1570
        %v2250 = vunpack.c.l.b16 %v1571
        %v2251 = vunpack.c.l.b16 %v1572
        %v2252 = vunpack.c.l.b16 %v1573
        %v2253 = vunpack.c.l.b16 %v1574
        %v2254 = vunpack.c.l.b16 %v1575
        %v2255 = vunpack.c.l.b16 %v1576
        %v2256 = vunpack.c.l.b16 %v1577
        %v2257 = vunpack.c.l.b16 %v1578
        %v2258 = vunpack.c.l.b16 %v1579
        %v2259 = vunpack.c.l.b16 %v1580
        %v2260 = vunpack.c.l.b16 %v1581
        %v2261 = vunpack.c.l.b16 %v1582
        %v2262 = vunpack.c.l.b16 %v1583
        %v2263 = vunpack.c.l.b16 %v1584
        %v2264 = vunpack.c.l.b16 %v1585
        %v2265 = vunpack.c.l.b16 %v1586
        %v2266 = vunpack.c.l.b16 %v1587
        %v2267 = vunpack.c.l.b16 %v1588
        %v2268 = vunpack.c.l.b16 %v1589
        %v2269 = vunpack.c.l.b16 %v1590
        %v2270 = vunpack.c.l.b16 %v1591
        %v2271 = vunpack.c.l.b16 %v1592
        %v2272 = vunpack.c.l.b16 %v1593
        %v2273 = vunpack.c.l.b16 %v1594
        %v2274 = vunpack.c.l.b16 %v1595
        %v2275 = vunpack.c.l.b16 %v1596
        %v2276 = vunpack.c.l.b16 %v1597
        %v2277 = vunpack.c.l.b16 %v1598
        %v2278 = vunpack.c.l.b16 %v1599
        %v2279 = vunpack.c.l.b16 %v1600
        %v2280 = vunpack.c.l.b16 %v1601
        %v2281 = vunpack.c.l.b16 %v1602
        %v2282 = vunpack.c.l.b16 %v1603
        %v2283 = vunpack.c.l.b16 %v1604
        %v2284 = vunpack.c.l.b16 %v1605
        %v2285 = vunpack.c.l.b16 %v1606
        %v2286 = vunpack.c.l.b16 %v1607
        %v2287 = vunpack.c.l.b16 %v1608
        %v2288 = vunpack.c.l.b16 %v1609
        %v2289 = vunpack.c.l.b16 %v1610
        %v2290 = vunpack.c.l.b16 %v1611
        %v2291 = vunpack.c.l.b16 %v1612
        %v2292 = vunpack.c.l.b16 %v1613
        %v2293 = vunpack.c.l.b16 %v1614
        %v2294 = vunpack.c.l.b16 %v1615
        %v2295 = vunpack.c.l.b16 %v1616
        %v2296 = vpack.c.b16 %v2041, %v2040
        %v2297 = vpack.c.b16 %v2043, %v2042
        %v2298 = vpack.c.b16 %v2045, %v2044
        %v2299 = vpack.c.b16 %v2047, %v2046
        %v2300 = vpack.c.b16 %v2049, %v2048
        %v2301 = vpack.c.b16 %v2051, %v2050
        %v2302 = vpack.c.b16 %v2053, %v2052
        %v2303 = vpack.c.b16 %v2055, %v2054
        %v2304 = vpack.c.b16 %v2057, %v2056
        %v2305 = vpack.c.b16 %v2059, %v2058
        %v2306 = vpack.c.b16 %v2061, %v2060
        %v2307 = vpack.c.b16 %v2063, %v2062
        %v2308 = vpack.c.b16 %v2065, %v2064
        %v2309 = vpack.c.b16 %v2067, %v2066
        %v2310 = vpack.c.b16 %v2069, %v2068
        %v2311 = vpack.c.b16 %v2071, %v2070
        %v2312 = vpack.c.b16 %v2073, %v2072
        %v2313 = vpack.c.b16 %v2075, %v2074
        %v2314 = vpack.c.b16 %v2077, %v2076
        %v2315 = vpack.c.b16 %v2079, %v2078
        %v2316 = vpack.c.b16 %v2081, %v2080
        %v2317 = vpack.c.b16 %v2083, %v2082
        %v2318 = vpack.c.b16 %v2085, %v2084
        %v2319 = vpack.c.b16 %v2087, %v2086
        %v2320 = vpack.c.b16 %v2089, %v2088
        %v2321 = vpack.c.b16 %v2091, %v2090
        %v2322 = vpack.c.b16 %v2093, %v2092
        %v2323 = vpack.c.b16 %v2095, %v2094
        %v2324 = vpack.c.b16 %v2097, %v2096
        %v2325 = vpack.c.b16 %v2099, %v2098
        %v2326 = vpack.c.b16 %v2101, %v2100
        %v2327 = vpack.c.b16 %v2103, %v2102
        %v2328 = vpack.c.b16 %v2105, %v2104
        %v2329 = vpack.c.b16 %v2107, %v2106
        %v2330 = vpack.c.b16 %v2109, %v2108
        %v2331 = vpack.c.b16 %v2111, %v2110
        %v2332 = vpack.c.b16 %v2113, %v2112
        %v2333 = vpack.c.b16 %v2115, %v2114
        %v2334 = vpack.c.b16 %v2117, %v2116
        %v2335 = vpack.c.b16 %v2119, %v2118
        %v2336 = vpack.c.b16 %v2121, %v2120
        %v2337 = vpack.c.b16 %v2123, %v2122
        %v2338 = vpack.c.b16 %v2125, %v2124
        %v2339 = vpack.c.b16 %v2127, %v2126
        %v2340 = vpack.c.b16 %v2129, %v2128
        %v2341 = vpack.c.b16 %v2131, %v2130
        %v2342 = vpack.c.b16 %v2133, %v2132
        %v2343 = vpack.c.b16 %v2135, %v2134
        %v2344 = vpack.c.b16 %v2137, %v2136
        %v2345 = vpack.c.b16 %v2139, %v2138
        %v2346 = vpack.c.b16 %v2141, %v2140
        %v2347 = vpack.c.b16 %v2143, %v2142
        %v2348 = vpack.c.b16 %v2145, %v2144
        %v2349 = vpack.c.b16 %v2147, %v2146
        %v2350 = vpack.c.b16 %v2149, %v2148
        %v2351 = vpack.c.b16 %v2151, %v2150
        %v2352 = vpack.c.b16 %v2153, %v2152
        %v2353 = vpack.c.b16 %v2155, %v2154
        %v2354 = vpack.c.b16 %v2157, %v2156
        %v2355 = vpack.c.b16 %v2159, %v2158
        %v2356 = vpack.c.b16 %v2161, %v2160
        %v2357 = vpack.c.b16 %v2163, %v2162
        %v2358 = vpack.c.b16 %v2165, %v2164
        %v2359 = vpack.c.b16 %v2167, %v2166
        %v2360 = vpack.c.b16 %v2169, %v2168
        %v2361 = vpack.c.b16 %v2171, %v2170
        %v2362 = vpack.c.b16 %v2173, %v2172
        %v2363 = vpack.c.b16 %v2175, %v2174
        %v2364 = vpack.c.b16 %v2177, %v2176
        %v2365 = vpack.c.b16 %v2179, %v2178
        %v2366 = vpack.c.b16 %v2181, %v2180
        %v2367 = vpack.c.b16 %v2183, %v2182
        %v2368 = vpack.c.b16 %v2185, %v2184
        %v2369 = vpack.c.b16 %v2187, %v2186
        %v2370 = vpack.c.b16 %v2189, %v2188
        %v2371 = vpack.c.b16 %v2191, %v2190
        %v2372 = vpack.c.b16 %v2193, %v2192
        %v2373 = vpack.c.b16 %v2195, %v2194
        %v2374 = vpack.c.b16 %v2197, %v2196
        %v2375 = vpack.c.b16 %v2199, %v2198
        %v2376 = vpack.c.b16 %v2201, %v2200
        %v2377 = vpack.c.b16 %v2203, %v2202
        %v2378 = vpack.c.b16 %v2205, %v2204
        %v2379 = vpack.c.b16 %v2207, %v2206
        %v2380 = vpack.c.b16 %v2209, %v2208
        %v2381 = vpack.c.b16 %v2211, %v2210
        %v2382 = vpack.c.b16 %v2213, %v2212
        %v2383 = vpack.c.b16 %v2215, %v2214
        %v2384 = vpack.c.b16 %v2217, %v2216
        %v2385 = vpack.c.b16 %v2219, %v2218
        %v2386 = vpack.c.b16 %v2221, %v2220
        %v2387 = vpack.c.b16 %v2223, %v2222
        %v2388 = vpack.c.b16 %v2225, %v2224
        %v2389 = vpack.c.b16 %v2227, %v2226
        %v2390 = vpack.c.b16 %v2229, %v2228
        %v2391 = vpack.c.b16 %v2231, %v2230
        %v2392 = vpack.c.b16 %v2233, %v2232
        %v2393 = vpack.c.b16 %v2235, %v2234
        %v2394 = vpack.c.b16 %v2237, %v2236
        %v2395 = vpack.c.b16 %v2239, %v2238
        %v2396 = vpack.c.b16 %v2241, %v2240
        %v2397 = vpack.c.b16 %v2243, %v2242
        %v2398 = vpack.c.b16 %v2245, %v2244
        %v2399 = vpack.c.b16 %v2247, %v2246
        %v2400 = vpack.c.b16 %v2249, %v2248
        %v2401 = vpack.c.b16 %v2251, %v2250
        %v2402 = vpack.c.b16 %v2253, %v2252
        %v2403 = vpack.c.b16 %v2255, %v2254
        %v2404 = vpack.c.b16 %v2257, %v2256
        %v2405 = vpack.c.b16 %v2259, %v2258
        %v2406 = vpack.c.b16 %v2261, %v2260
        %v2407 = vpack.c.b16 %v2263, %v2262
        %v2408 = vpack.c.b16 %v2265, %v2264
        %v2409 = vpack.c.b16 %v2267, %v2266
        %v2410 = vpack.c.b16 %v2269, %v2268
        %v2411 = vpack.c.b16 %v2271, %v2270
        %v2412 = vpack.c.b16 %v2273, %v2272
        %v2413 = vpack.c.b16 %v2275, %v2274
        %v2414 = vpack.c.b16 %v2277, %v2276
        %v2415 = vpack.c.b16 %v2279, %v2278
        %v2416 = vpack.c.b16 %v2281, %v2280
        %v2417 = vpack.c.b16 %v2283, %v2282
        %v2418 = vpack.c.b16 %v2285, %v2284
        %v2419 = vpack.c.b16 %v2287, %v2286
        %v2420 = vpack.c.b16 %v2289, %v2288
        %v2421 = vpack.c.b16 %v2291, %v2290
        %v2422 = vpack.c.b16 %v2293, %v2292
        %v2423 = vpack.c.b16 %v2295, %v2294
        %2552 = vmatprep.subr.bf16.mxu0 0
        %2553 = vmatpush1.bf16.msra.mxu0 %v2296
        %2554 = vmatprep.subr.bf16.mxu0 0
        %2555 = vmatpush1.bf16.msra.mxu0 %v2297
        %2556 = vmatprep.subr.bf16.mxu0 0
        %2557 = vmatpush1.bf16.msra.mxu0 %v2298
        %2558 = vmatprep.subr.bf16.mxu0 0
        %2559 = vmatpush1.bf16.msra.mxu0 %v2299
        %2560 = vmatprep.subr.bf16.mxu0 0
        %2561 = vmatpush1.bf16.msra.mxu0 %v2300
        %2562 = vmatprep.subr.bf16.mxu0 0
        %2563 = vmatpush1.bf16.msra.mxu0 %v2301
        %2564 = vmatprep.subr.bf16.mxu0 0
        %2565 = vmatpush1.bf16.msra.mxu0 %v2302
        %2566 = vmatprep.subr.bf16.mxu0 0
        %2567 = vmatpush1.bf16.msra.mxu0 %v2303
        %2568 = vmatprep.subr.bf16.mxu0 0
        %2569 = vmatpush1.bf16.msra.mxu0 %v2304
        %2570 = vmatprep.subr.bf16.mxu0 0
        %2571 = vmatpush1.bf16.msra.mxu0 %v2305
        %2572 = vmatprep.subr.bf16.mxu0 0
        %2573 = vmatpush1.bf16.msra.mxu0 %v2306
        %2574 = vmatprep.subr.bf16.mxu0 0
        %2575 = vmatpush1.bf16.msra.mxu0 %v2307
        %2576 = vmatprep.subr.bf16.mxu0 0
        %2577 = vmatpush1.bf16.msra.mxu0 %v2308
        %2578 = vmatprep.subr.bf16.mxu0 0
        %2579 = vmatpush1.bf16.msra.mxu0 %v2309
        %2580 = vmatprep.subr.bf16.mxu0 0
        %2581 = vmatpush1.bf16.msra.mxu0 %v2310
        %2582 = vmatprep.subr.bf16.mxu0 0
        %2583 = vmatpush1.bf16.msra.mxu0 %v2311
        %2584 = vmatprep.mubr.bf16.mxu0 %v1721
        %2585 = vmatmul.mubr.bf16.gmra.mrb[0].mxu0 %v1720
        %v2586 = vpop.f32.mrb[0].mxu0
        %v2587 = vadd.f32 %v1622, %v2586
        %v2588 = vpop.f32.mrb[0].mxu0
        %v2589 = vpop.f32.mrb[0].mxu0
        %v2590 = vadd.f32 %v1622, %v2589
        %v2591 = vpop.f32.mrb[0].mxu0
        %2592 = vmatprep.mubr.bf16.mxu0 %v1737
        %2593 = vmatmul.mubr.bf16.gmra.mrb[0].mxu0 %v1736
        %v2594 = vpop.f32.mrb[0].mxu0
        %v2595 = vadd.f32 %v1622, %v2594
        %v2596 = vpop.f32.mrb[0].mxu0
        %v2597 = vpop.f32.mrb[0].mxu0
        %v2598 = vadd.f32 %v1622, %v2597
        %v2599 = vpop.f32.mrb[0].mxu0
        %2600 = vdwg.mxu0
        %2601 = vmatprep.subr.bf16.mxu0 0
        %2602 = vmatpush1.bf16.msra.mxu0 %v2312
        %2603 = vmatprep.subr.bf16.mxu0 0
        %2604 = vmatpush1.bf16.msra.mxu0 %v2313
        %2605 = vmatprep.subr.bf16.mxu0 0
        %2606 = vmatpush1.bf16.msra.mxu0 %v2314
        %2607 = vmatprep.subr.bf16.mxu0 0
        %2608 = vmatpush1.bf16.msra.mxu0 %v2315
        %2609 = vmatprep.subr.bf16.mxu0 0
        %2610 = vmatpush1.bf16.msra.mxu0 %v2316
        %2611 = vmatprep.subr.bf16.mxu0 0
        %2612 = vmatpush1.bf16.msra.mxu0 %v2317
        %2613 = vmatprep.subr.bf16.mxu0 0
        %2614 = vmatpush1.bf16.msra.mxu0 %v2318
        %2615 = vmatprep.subr.bf16.mxu0 0
        %2616 = vmatpush1.bf16.msra.mxu0 %v2319
        %2617 = vmatprep.subr.bf16.mxu0 0
        %2618 = vmatpush1.bf16.msra.mxu0 %v2320
        %2619 = vmatprep.subr.bf16.mxu0 0
        %2620 = vmatpush1.bf16.msra.mxu0 %v2321
        %2621 = vmatprep.subr.bf16.mxu0 0
        %2622 = vmatpush1.bf16.msra.mxu0 %v2322
        %2623 = vmatprep.subr.bf16.mxu0 0
        %2624 = vmatpush1.bf16.msra.mxu0 %v2323
        %2625 = vmatprep.subr.bf16.mxu0 0
        %2626 = vmatpush1.bf16.msra.mxu0 %v2324
        %2627 = vmatprep.subr.bf16.mxu0 0
        %2628 = vmatpush1.bf16.msra.mxu0 %v2325
        %2629 = vmatprep.subr.bf16.mxu0 0
        %2630 = vmatpush1.bf16.msra.mxu0 %v2326
        %2631 = vmatprep.subr.bf16.mxu0 0
        %2632 = vmatpush1.bf16.msra.mxu0 %v2327
        %2633 = vmatprep.mubr.bf16.mxu0 %v1723
        %2634 = vmatmul.mubr.bf16.gmra.mrb[0].mxu0 %v1722
        %v2635 = vpop.f32.mrb[0].mxu0
        %v2636 = vadd.f32 %v2587, %v2635
        %v2637 = vpop.f32.mrb[0].mxu0
        %v2638 = vpop.f32.mrb[0].mxu0
        %v2639 = vadd.f32 %v2590, %v2638
        %v2640 = vpop.f32.mrb[0].mxu0
        %2641 = vmatprep.mubr.bf16.mxu0 %v1739
        %2642 = vmatmul.mubr.bf16.gmra.mrb[0].mxu0 %v1738
        %v2643 = vpop.f32.mrb[0].mxu0
        %v2644 = vadd.f32 %v2595, %v2643
        %v2645 = vpop.f32.mrb[0].mxu0
        %v2646 = vpop.f32.mrb[0].mxu0
        %v2647 = vadd.f32 %v2598, %v2646
        %v2648 = vpop.f32.mrb[0].mxu0
        %2649 = vdwg.mxu0
        %2650 = vmatprep.subr.bf16.mxu0 0
        %2651 = vmatpush1.bf16.msra.mxu0 %v2328
        %2652 = vmatprep.subr.bf16.mxu0 0
        %2653 = vmatpush1.bf16.msra.mxu0 %v2329
        %2654 = vmatprep.subr.bf16.mxu0 0
        %2655 = vmatpush1.bf16.msra.mxu0 %v2330
        %2656 = vmatprep.subr.bf16.mxu0 0
        %2657 = vmatpush1.bf16.msra.mxu0 %v2331
        %2658 = vmatprep.subr.bf16.mxu0 0
        %2659 = vmatpush1.bf16.msra.mxu0 %v2332
        %2660 = vmatprep.subr.bf16.mxu0 0
        %2661 = vmatpush1.bf16.msra.mxu0 %v2333
        %2662 = vmatprep.subr.bf16.mxu0 0
        %2663 = vmatpush1.bf16.msra.mxu0 %v2334
        %2664 = vmatprep.subr.bf16.mxu0 0
        %2665 = vmatpush1.bf16.msra.mxu0 %v2335
        %2666 = vmatprep.subr.bf16.mxu0 0
        %2667 = vmatpush1.bf16.msra.mxu0 %v2336
        %2668 = vmatprep.subr.bf16.mxu0 0
        %2669 = vmatpush1.bf16.msra.mxu0 %v2337
        %2670 = vmatprep.subr.bf16.mxu0 0
        %2671 = vmatpush1.bf16.msra.mxu0 %v2338
        %2672 = vmatprep.subr.bf16.mxu0 0
        %2673 = vmatpush1.bf16.msra.mxu0 %v2339
        %2674 = vmatprep.subr.bf16.mxu0 0
        %2675 = vmatpush1.bf16.msra.mxu0 %v2340
        %2676 = vmatprep.subr.bf16.mxu0 0
        %2677 = vmatpush1.bf16.msra.mxu0 %v2341
        %2678 = vmatprep.subr.bf16.mxu0 0
        %2679 = vmatpush1.bf16.msra.mxu0 %v2342
        %2680 = vmatprep.subr.bf16.mxu0 0
        %2681 = vmatpush1.bf16.msra.mxu0 %v2343
        %2682 = vmatprep.mubr.bf16.mxu0 %v1725
        %2683 = vmatmul.mubr.bf16.gmra.mrb[0].mxu0 %v1724
        %v2684 = vpop.f32.mrb[0].mxu0
        %v2685 = vadd.f32 %v2636, %v2684
        %v2686 = vpop.f32.mrb[0].mxu0
        %v2687 = vpop.f32.mrb[0].mxu0
        %v2688 = vadd.f32 %v2639, %v2687
        %v2689 = vpop.f32.mrb[0].mxu0
        %2690 = vmatprep.mubr.bf16.mxu0 %v1741
        %2691 = vmatmul.mubr.bf16.gmra.mrb[0].mxu0 %v1740
        %v2692 = vpop.f32.mrb[0].mxu0
        %v2693 = vadd.f32 %v2644, %v2692
        %v2694 = vpop.f32.mrb[0].mxu0
        %v2695 = vpop.f32.mrb[0].mxu0
        %v2696 = vadd.f32 %v2647, %v2695
        %v2697 = vpop.f32.mrb[0].mxu0
        %2698 = vdwg.mxu0
        %2699 = vmatprep.subr.bf16.mxu0 0
        %2700 = vmatpush1.bf16.msra.mxu0 %v2344
        %2701 = vmatprep.subr.bf16.mxu0 0
        %2702 = vmatpush1.bf16.msra.mxu0 %v2345
        %2703 = vmatprep.subr.bf16.mxu0 0
        %2704 = vmatpush1.bf16.msra.mxu0 %v2346
        %2705 = vmatprep.subr.bf16.mxu0 0
        %2706 = vmatpush1.bf16.msra.mxu0 %v2347
        %2707 = vmatprep.subr.bf16.mxu0 0
        %2708 = vmatpush1.bf16.msra.mxu0 %v2348
        %2709 = vmatprep.subr.bf16.mxu0 0
        %2710 = vmatpush1.bf16.msra.mxu0 %v2349
        %2711 = vmatprep.subr.bf16.mxu0 0
        %2712 = vmatpush1.bf16.msra.mxu0 %v2350
        %2713 = vmatprep.subr.bf16.mxu0 0
        %2714 = vmatpush1.bf16.msra.mxu0 %v2351
        %2715 = vmatprep.subr.bf16.mxu0 0
        %2716 = vmatpush1.bf16.msra.mxu0 %v2352
        %2717 = vmatprep.subr.bf16.mxu0 0
        %2718 = vmatpush1.bf16.msra.mxu0 %v2353
        %2719 = vmatprep.subr.bf16.mxu0 0
        %2720 = vmatpush1.bf16.msra.mxu0 %v2354
        %2721 = vmatprep.subr.bf16.mxu0 0
        %2722 = vmatpush1.bf16.msra.mxu0 %v2355
        %2723 = vmatprep.subr.bf16.mxu0 0
        %2724 = vmatpush1.bf16.msra.mxu0 %v2356
        %2725 = vmatprep.subr.bf16.mxu0 0
        %2726 = vmatpush1.bf16.msra.mxu0 %v2357
        %2727 = vmatprep.subr.bf16.mxu0 0
        %2728 = vmatpush1.bf16.msra.mxu0 %v2358
        %2729 = vmatprep.subr.bf16.mxu0 0
        %2730 = vmatpush1.bf16.msra.mxu0 %v2359
        %2731 = vmatprep.mubr.bf16.mxu0 %v1727
        %2732 = vmatmul.mubr.bf16.gmra.mrb[0].mxu0 %v1726
        %v2733 = vpop.f32.mrb[0].mxu0
        %v2734 = vadd.f32 %v2685, %v2733
        %v2735 = vpop.f32.mrb[0].mxu0
        %v2736 = vpop.f32.mrb[0].mxu0
        %v2737 = vadd.f32 %v2688, %v2736
        %v2738 = vpop.f32.mrb[0].mxu0
        %2739 = vmatprep.mubr.bf16.mxu0 %v1743
        %2740 = vmatmul.mubr.bf16.gmra.mrb[0].mxu0 %v1742
        %v2741 = vpop.f32.mrb[0].mxu0
        %v2742 = vadd.f32 %v2693, %v2741
        %v2743 = vpop.f32.mrb[0].mxu0
        %v2744 = vpop.f32.mrb[0].mxu0
        %v2745 = vadd.f32 %v2696, %v2744
        %v2746 = vpop.f32.mrb[0].mxu0
        %2747 = vdwg.mxu0
        %2748 = vmatprep.subr.bf16.mxu0 0
        %2749 = vmatpush1.bf16.msra.mxu0 %v2360
        %2750 = vmatprep.subr.bf16.mxu0 0
        %2751 = vmatpush1.bf16.msra.mxu0 %v2361
        %2752 = vmatprep.subr.bf16.mxu0 0
        %2753 = vmatpush1.bf16.msra.mxu0 %v2362
        %2754 = vmatprep.subr.bf16.mxu0 0
        %2755 = vmatpush1.bf16.msra.mxu0 %v2363
        %2756 = vmatprep.subr.bf16.mxu0 0
        %2757 = vmatpush1.bf16.msra.mxu0 %v2364
        %2758 = vmatprep.subr.bf16.mxu0 0
        %2759 = vmatpush1.bf16.msra.mxu0 %v2365
        %2760 = vmatprep.subr.bf16.mxu0 0
        %2761 = vmatpush1.bf16.msra.mxu0 %v2366
        %2762 = vmatprep.subr.bf16.mxu0 0
        %2763 = vmatpush1.bf16.msra.mxu0 %v2367
        %2764 = vmatprep.subr.bf16.mxu0 0
        %2765 = vmatpush1.bf16.msra.mxu0 %v2368
        %2766 = vmatprep.subr.bf16.mxu0 0
        %2767 = vmatpush1.bf16.msra.mxu0 %v2369
        %2768 = vmatprep.subr.bf16.mxu0 0
        %2769 = vmatpush1.bf16.msra.mxu0 %v2370
        %2770 = vmatprep.subr.bf16.mxu0 0
        %2771 = vmatpush1.bf16.msra.mxu0 %v2371
        %2772 = vmatprep.subr.bf16.mxu0 0
        %2773 = vmatpush1.bf16.msra.mxu0 %v2372
        %2774 = vmatprep.subr.bf16.mxu0 0
        %2775 = vmatpush1.bf16.msra.mxu0 %v2373
        %2776 = vmatprep.subr.bf16.mxu0 0
        %2777 = vmatpush1.bf16.msra.mxu0 %v2374
        %2778 = vmatprep.subr.bf16.mxu0 0
        %2779 = vmatpush1.bf16.msra.mxu0 %v2375
        %2780 = vmatprep.mubr.bf16.mxu0 %v1729
        %2781 = vmatmul.mubr.bf16.gmra.mrb[0].mxu0 %v1728
        %v2782 = vpop.f32.mrb[0].mxu0
        %v2783 = vadd.f32 %v2734, %v2782
        %v2784 = vpop.f32.mrb[0].mxu0
        %v2785 = vpop.f32.mrb[0].mxu0
        %v2786 = vadd.f32 %v2737, %v2785
        %v2787 = vpop.f32.mrb[0].mxu0
        %2788 = vmatprep.mubr.bf16.mxu0 %v1745
        %2789 = vmatmul.mubr.bf16.gmra.mrb[0].mxu0 %v1744
        %v2790 = vpop.f32.mrb[0].mxu0
        %v2791 = vadd.f32 %v2742, %v2790
        %v2792 = vpop.f32.mrb[0].mxu0
        %v2793 = vpop.f32.mrb[0].mxu0
        %v2794 = vadd.f32 %v2745, %v2793
        %v2795 = vpop.f32.mrb[0].mxu0
        %2796 = vdwg.mxu0
        %2797 = vmatprep.subr.bf16.mxu0 0
        %2798 = vmatpush1.bf16.msra.mxu0 %v2376
        %2799 = vmatprep.subr.bf16.mxu0 0
        %2800 = vmatpush1.bf16.msra.mxu0 %v2377
        %2801 = vmatprep.subr.bf16.mxu0 0
        %2802 = vmatpush1.bf16.msra.mxu0 %v2378
        %2803 = vmatprep.subr.bf16.mxu0 0
        %2804 = vmatpush1.bf16.msra.mxu0 %v2379
        %2805 = vmatprep.subr.bf16.mxu0 0
        %2806 = vmatpush1.bf16.msra.mxu0 %v2380
        %2807 = vmatprep.subr.bf16.mxu0 0
        %2808 = vmatpush1.bf16.msra.mxu0 %v2381
        %2809 = vmatprep.subr.bf16.mxu0 0
        %2810 = vmatpush1.bf16.msra.mxu0 %v2382
        %2811 = vmatprep.subr.bf16.mxu0 0
        %2812 = vmatpush1.bf16.msra.mxu0 %v2383
        %2813 = vmatprep.subr.bf16.mxu0 0
        %2814 = vmatpush1.bf16.msra.mxu0 %v2384
        %2815 = vmatprep.subr.bf16.mxu0 0
        %2816 = vmatpush1.bf16.msra.mxu0 %v2385
        %2817 = vmatprep.subr.bf16.mxu0 0
        %2818 = vmatpush1.bf16.msra.mxu0 %v2386
        %2819 = vmatprep.subr.bf16.mxu0 0
        %2820 = vmatpush1.bf16.msra.mxu0 %v2387
        %2821 = vmatprep.subr.bf16.mxu0 0
        %2822 = vmatpush1.bf16.msra.mxu0 %v2388
        %2823 = vmatprep.subr.bf16.mxu0 0
        %2824 = vmatpush1.bf16.msra.mxu0 %v2389
        %2825 = vmatprep.subr.bf16.mxu0 0
        %2826 = vmatpush1.bf16.msra.mxu0 %v2390
        %2827 = vmatprep.subr.bf16.mxu0 0
        %2828 = vmatpush1.bf16.msra.mxu0 %v2391
        %2829 = vmatprep.mubr.bf16.mxu0 %v1731
        %2830 = vmatmul.mubr.bf16.gmra.mrb[0].mxu0 %v1730
        %v2831 = vpop.f32.mrb[0].mxu0
        %v2832 = vadd.f32 %v2783, %v2831
        %v2833 = vpop.f32.mrb[0].mxu0
        %v2834 = vpop.f32.mrb[0].mxu0
        %v2835 = vadd.f32 %v2786, %v2834
        %v2836 = vpop.f32.mrb[0].mxu0
        %2837 = vmatprep.mubr.bf16.mxu0 %v1747
        %2838 = vmatmul.mubr.bf16.gmra.mrb[0].mxu0 %v1746
        %v2839 = vpop.f32.mrb[0].mxu0
        %v2840 = vadd.f32 %v2791, %v2839
        %v2841 = vpop.f32.mrb[0].mxu0
        %v2842 = vpop.f32.mrb[0].mxu0
        %v2843 = vadd.f32 %v2794, %v2842
        %v2844 = vpop.f32.mrb[0].mxu0
        %2845 = vdwg.mxu0
        %2846 = vmatprep.subr.bf16.mxu0 0
        %2847 = vmatpush1.bf16.msra.mxu0 %v2392
        %2848 = vmatprep.subr.bf16.mxu0 0
        %2849 = vmatpush1.bf16.msra.mxu0 %v2393
        %2850 = vmatprep.subr.bf16.mxu0 0
        %2851 = vmatpush1.bf16.msra.mxu0 %v2394
        %2852 = vmatprep.subr.bf16.mxu0 0
        %2853 = vmatpush1.bf16.msra.mxu0 %v2395
        %2854 = vmatprep.subr.bf16.mxu0 0
        %2855 = vmatpush1.bf16.msra.mxu0 %v2396
        %2856 = vmatprep.subr.bf16.mxu0 0
        %2857 = vmatpush1.bf16.msra.mxu0 %v2397
        %2858 = vmatprep.subr.bf16.mxu0 0
        %2859 = vmatpush1.bf16.msra.mxu0 %v2398
        %2860 = vmatprep.subr.bf16.mxu0 0
        %2861 = vmatpush1.bf16.msra.mxu0 %v2399
        %2862 = vmatprep.subr.bf16.mxu0 0
        %2863 = vmatpush1.bf16.msra.mxu0 %v2400
        %2864 = vmatprep.subr.bf16.mxu0 0
        %2865 = vmatpush1.bf16.msra.mxu0 %v2401
        %2866 = vmatprep.subr.bf16.mxu0 0
        %2867 = vmatpush1.bf16.msra.mxu0 %v2402
        %2868 = vmatprep.subr.bf16.mxu0 0
        %2869 = vmatpush1.bf16.msra.mxu0 %v2403
        %2870 = vmatprep.subr.bf16.mxu0 0
        %2871 = vmatpush1.bf16.msra.mxu0 %v2404
        %2872 = vmatprep.subr.bf16.mxu0 0
        %2873 = vmatpush1.bf16.msra.mxu0 %v2405
        %2874 = vmatprep.subr.bf16.mxu0 0
        %2875 = vmatpush1.bf16.msra.mxu0 %v2406
        %2876 = vmatprep.subr.bf16.mxu0 0
        %2877 = vmatpush1.bf16.msra.mxu0 %v2407
        %2878 = vmatprep.mubr.bf16.mxu0 %v1733
        %2879 = vmatmul.mubr.bf16.gmra.mrb[0].mxu0 %v1732
        %v2880 = vpop.f32.mrb[0].mxu0
        %v2881 = vadd.f32 %v2832, %v2880
        %v2882 = vpop.f32.mrb[0].mxu0
        %v2883 = vpop.f32.mrb[0].mxu0
        %v2884 = vadd.f32 %v2835, %v2883
        %v2885 = vpop.f32.mrb[0].mxu0
        %2886 = vmatprep.mubr.bf16.mxu0 %v1749
        %2887 = vmatmul.mubr.bf16.gmra.mrb[0].mxu0 %v1748
        %v2888 = vpop.f32.mrb[0].mxu0
        %v2889 = vadd.f32 %v2840, %v2888
        %v2890 = vpop.f32.mrb[0].mxu0
        %v2891 = vpop.f32.mrb[0].mxu0
        %v2892 = vadd.f32 %v2843, %v2891
        %v2893 = vpop.f32.mrb[0].mxu0
        %2894 = vdwg.mxu0
        %2895 = vmatprep.subr.bf16.mxu0 0
        %2896 = vmatpush1.bf16.msra.mxu0 %v2408
        %2897 = vmatprep.subr.bf16.mxu0 0
        %2898 = vmatpush1.bf16.msra.mxu0 %v2409
        %2899 = vmatprep.subr.bf16.mxu0 0
        %2900 = vmatpush1.bf16.msra.mxu0 %v2410
        %2901 = vmatprep.subr.bf16.mxu0 0
        %2902 = vmatpush1.bf16.msra.mxu0 %v2411
        %2903 = vmatprep.subr.bf16.mxu0 0
        %2904 = vmatpush1.bf16.msra.mxu0 %v2412
        %2905 = vmatprep.subr.bf16.mxu0 0
        %2906 = vmatpush1.bf16.msra.mxu0 %v2413
        %2907 = vmatprep.subr.bf16.mxu0 0
        %2908 = vmatpush1.bf16.msra.mxu0 %v2414
        %2909 = vmatprep.subr.bf16.mxu0 0
        %2910 = vmatpush1.bf16.msra.mxu0 %v2415
        %2911 = vmatprep.subr.bf16.mxu0 0
        %2912 = vmatpush1.bf16.msra.mxu0 %v2416
        %2913 = vmatprep.subr.bf16.mxu0 0
        %2914 = vmatpush1.bf16.msra.mxu0 %v2417
        %2915 = vmatprep.subr.bf16.mxu0 0
        %2916 = vmatpush1.bf16.msra.mxu0 %v2418
        %2917 = vmatprep.subr.bf16.mxu0 0
        %2918 = vmatpush1.bf16.msra.mxu0 %v2419
        %2919 = vmatprep.subr.bf16.mxu0 0
        %2920 = vmatpush1.bf16.msra.mxu0 %v2420
        %2921 = vmatprep.subr.bf16.mxu0 0
        %2922 = vmatpush1.bf16.msra.mxu0 %v2421
        %2923 = vmatprep.subr.bf16.mxu0 0
        %2924 = vmatpush1.bf16.msra.mxu0 %v2422
        %2925 = vmatprep.subr.bf16.mxu0 0
        %2926 = vmatpush1.bf16.msra.mxu0 %v2423
        %2927 = vmatprep.mubr.bf16.mxu0 %v1735
        %2928 = vmatmul.mubr.bf16.gmra.mrb[0].mxu0 %v1734
        %v2929 = vpop.f32.mrb[0].mxu0
        %v2930 = vadd.f32 %v2881, %v2929
        %v2931 = vpop.f32.mrb[0].mxu0
        %v2932 = vpop.f32.mrb[0].mxu0
        %v2933 = vadd.f32 %v2884, %v2932
        %v2934 = vpop.f32.mrb[0].mxu0
        %2935 = vmatprep.mubr.bf16.mxu0 %v1751
        %2936 = vmatmul.mubr.bf16.gmra.mrb[0].mxu0 %v1750
        %v2937 = vpop.f32.mrb[0].mxu0
        %v2938 = vadd.f32 %v2889, %v2937
        %v2939 = vpop.f32.mrb[0].mxu0
        %v2940 = vpop.f32.mrb[0].mxu0
        %v2941 = vadd.f32 %v2892, %v2940
        %v2942 = vpop.f32.mrb[0].mxu0
        %2943 = vdwg.mxu0
        %v2944 = vadd.f32 %v2930, %v2933
        %v2945 = vadd.f32 %v2944, %v2938
        %v2946 = vadd.f32 %v2945, %v2941
        %v2947 = vrot.slane %v2946, 4
        %v2948 = vadd.f32 %v2946, %v2947
        %v2949 = vrot.slane %v2948, 2
        %v2950 = vadd.f32 %v2948, %v2949
        %v2951 = vrot.slane %v2950, 1
        %v2952 = vadd.f32 %v2950, %v2951
        %v2953 = vmul.f32 %v2930, %v2930
        %v2954 = vmul.f32 %v2933, %v2933
        %v2955 = vmul.f32 %v2938, %v2938
        %v2956 = vmul.f32 %v2941, %v2941
        %v2957 = vadd.f32 %v2953, %v2954
        %v2958 = vadd.f32 %v2957, %v2955
        %v2959 = vadd.f32 %v2958, %v2956
        %v2960 = vrot.slane %v2959, 4
        %v2961 = vadd.f32 %v2959, %v2960
        %v2962 = vrot.slane %v2961, 2
        %v2963 = vadd.f32 %v2961, %v2962
        %v2964 = vrot.slane %v2963, 1
        %v2965 = vadd.f32 %v2963, %v2964
        %vm2966 = vcmask 1040384
        %v2967 = vsel %vm2966, %v2952, %v2965
        %2968 = vst [vmem:[%s1327] sm:$0x3] %v2967
        %v2969 = vpack.c.bf16 %v2933, %v2930
        %v2970 = vpack.c.bf16 %v2941, %v2938
        %v2973 = vunpack.c.l.b16 %v2969
        %v2974 = vunpack.c.h.b16 %v2969
        %v2975 = vunpack.c.l.b16 %v2970
        %v2976 = vunpack.c.h.b16 %v2970
        %v2977 = vpack.c.b16 %v2973, %v2973
        %v2978 = vpack.c.b16 %v2974, %v2974
        %v2979 = vpack.c.b16 %v2975, %v2975
        %v2980 = vpack.c.b16 %v2976, %v2976
        %2985 = vst [vmem:[%s1298] sm:$0xf] %v2977
        %2986 = vst [vmem:[%s1298 + $0x4] sm:$0xf] %v2978
        %2987 = vst [vmem:[%s1298 + $0x8] sm:$0xf] %v2979
        %2988 = vst [vmem:[%s1298 + $0xc] sm:$0xf] %v2980
        %s2989 = sand.u32 %s116, 1
        %s2990 = sand.u32 %s116, 1
        %s2991 = smul.addr %s2990, 16
        %s2992 = scalar_lea.vmem [#allocation3], %s2991
        %p2993 = scmp.lt.s32.totalorder %s20, 0
        %s2994 = scalar_select %p2993, %s20, 0
        %p2995 = scmp.lt.s32.totalorder %s21, 1
        %s2996 = scalar_select %p2995, %s21, 1
        %s2997 = smul.addr %s2994, 2
        %s2998 = sadd.s32 %s2996, %s2997
        %s2999 = smul.addr %s2998, 2
        %s3000 = scalar_lea.vmem %s4, %s2999
        // Predicated region
        $region74: #{discriminator_forward.8} parent=68 // pred_check
          %p3001 = pneg %p126
        $region75: #{discriminator_forward.8} parent=68 // pred_check_branch
          %3003 = sbr.rel (%p3001) target = $region77
        $region76: #{discriminator_forward.8} parent=68 // pred_region
          %s3004 = smul.u32 4, %s20
          %s3005 = smul.addr %s3004, 2
          %s3006 = sadd.s32 %s21, %s3005
          %s3007 = smul.addr %s3006, 4
          %s3008 = scalar_lea.vmem %s3, %s3007
          // Predicated region
          $region78: #{discriminator_forward.8} parent=76 // pred_check
            _
          $region79: #{discriminator_forward.8} parent=76 // pred_check_branch
            %3010 = sbr.rel (0) target = $region81
          $region80: #{discriminator_forward.8} parent=76 // pred_region
            // Predicated region
            $region82: #{discriminator_forward.8} parent=80 // pred_check
              _
            $region83: #{discriminator_forward.8} parent=80 // pred_check_branch
              %3012 = sbr.rel target = $region85
            $region84: #{discriminator_forward.8} parent=80 // pred_region
              // Predicated region
              $region97: #{discriminator_forward.8} parent=84 // pred_check
                _
              $region98: #{discriminator_forward.8} parent=84 // pred_check_branch
                %3033 = sbr.rel (0) target = $region100
              $region99: #{discriminator_forward.8} parent=84 // pred_region
                loop: start=0, step=1, limit=1
                $region101: #{discriminator_forward.8} parent=99 // loop_pre_header
                  _
                $region102: #{discriminator_forward.8} parent=99 // loop_header
                  %s3035 = sphi 0, %s3039
                  %p3036 = scmp.ge.s32.totalorder %s3035, 1
                  %s3040 = sphi %s2992, %s2992
                  %s3041 = sphi %s3008, %s3008
                $region103: #{discriminator_forward.8} parent=99 // loop_header_branch
                  %3038 = sbr.rel (%p3036) target = $region107
                $region104: #{discriminator_forward.8} parent=99 // loop_body
                  _
                $region105: #{discriminator_forward.8} parent=99 // loop_footer
                  %s3039 = sadd.s32 1, %s3035
                $region106: #{discriminator_forward.8} parent=99 // loop_footer_branch
                  %3034 = sbr.rel target = $region102
                $region107: #{discriminator_forward.8} parent=99 // loop_exit
                  _
                loop: start=0, step=1, limit=1
                $region108: #{discriminator_forward.8} parent=99 // loop_pre_header
                  _
                $region109: #{discriminator_forward.8} parent=99 // loop_header
                  %s3044 = sphi 0, %s3048
                  %p3045 = scmp.ge.s32.totalorder %s3044, 1
                  %s3049 = sphi %s2992, %s2992
                  %s3050 = sphi %s3008, %s3008
                $region110: #{discriminator_forward.8} parent=99 // loop_header_branch
                  %3047 = sbr.rel (%p3045) target = $region114
                $region111: #{discriminator_forward.8} parent=99 // loop_body
                  %v3051 = vld [vmem:[%s3049] sm:$0xf]
                  %3052 = vst [vmem:[%s3050] sm:$0xf] %v3051
                  %v3053 = vld [vmem:[%s3049 + $0x4] sm:$0xf]
                  %3054 = vst [vmem:[%s3050 + $0x8] sm:$0xf] %v3053
                  %v3055 = vld [vmem:[%s3049 + $0x8] sm:$0xf]
                  %3056 = vst [vmem:[%s3050 + $0x10] sm:$0xf] %v3055
                  %v3057 = vld [vmem:[%s3049 + $0xc] sm:$0xf]
                  %3058 = vst [vmem:[%s3050 + $0x18] sm:$0xf] %v3057
                $region112: #{discriminator_forward.8} parent=99 // loop_footer
                  %s3048 = sadd.s32 1, %s3044
                $region113: #{discriminator_forward.8} parent=99 // loop_footer_branch
                  %3043 = sbr.rel target = $region109
                $region114: #{discriminator_forward.8} parent=99 // loop_exit
                  _
              $region100: #{discriminator_forward.8} parent=84 // pred_fallthru
                _
            $region85: #{discriminator_forward.8} parent=80 // pred_fallthru
              _
            // Predicated region
            $region86: #{discriminator_forward.8} parent=80 // pred_check
              _
            $region87: #{discriminator_forward.8} parent=80 // pred_check_branch
              %3014 = sbr.rel (0) target = $region89
            $region88: #{discriminator_forward.8} parent=80 // pred_region
              loop: start=0, step=1, limit=1
              $region90: #{discriminator_forward.8} parent=88 // loop_pre_header
                _
              $region91: #{discriminator_forward.8} parent=88 // loop_header
                %s3017 = sphi 0, %s3021
                %p3018 = scmp.ge.s32.totalorder %s3017, 1
                %s3022 = sphi %s2992, %s2992
                %s3023 = sphi %s3008, %s3008
              $region92: #{discriminator_forward.8} parent=88 // loop_header_branch
                %3020 = sbr.rel (%p3018) target = $region96
              $region93: #{discriminator_forward.8} parent=88 // loop_body
                %v3024 = vld [vmem:[%s3022] sm:$0xf]
                %3025 = vst [vmem:[%s3023] sm:$0xf] %v3024
                %v3026 = vld [vmem:[%s3022 + $0x4] sm:$0xf]
                %3027 = vst [vmem:[%s3023 + $0x8] sm:$0xf] %v3026
                %v3028 = vld [vmem:[%s3022 + $0x8] sm:$0xf]
                %3029 = vst [vmem:[%s3023 + $0x10] sm:$0xf] %v3028
                %v3030 = vld [vmem:[%s3022 + $0xc] sm:$0xf]
                %3031 = vst [vmem:[%s3023 + $0x18] sm:$0xf] %v3030
              $region94: #{discriminator_forward.8} parent=88 // loop_footer
                %s3021 = sadd.s32 1, %s3017
              $region95: #{discriminator_forward.8} parent=88 // loop_footer_branch
                %3016 = sbr.rel target = $region91
              $region96: #{discriminator_forward.8} parent=88 // loop_exit
                _
            $region89: #{discriminator_forward.8} parent=80 // pred_fallthru
              _
          $region81: #{discriminator_forward.8} parent=76 // pred_fallthru
            _
          %3059 = vnop
        $region77: #{discriminator_forward.8} parent=68 // pred_fallthru
          _
        // Predicated region
        $region115: #{discriminator_forward.8} parent=68 // pred_check
          %p3060 = pneg %p154
        $region116: #{discriminator_forward.8} parent=68 // pred_check_branch
          %3062 = sbr.rel (%p3060) target = $region118
        $region117: #{discriminator_forward.8} parent=68 // pred_region
          _
        $region118: #{discriminator_forward.8} parent=68 // pred_fallthru
          _
      $region69: #{discriminator_forward.8} parent=5 // pred_fallthru
        _
      %p3063 = scmp.le.s32.totalorder 2, %s11
      // Predicated region
      $region119: #{discriminator_forward.8} parent=5 // pred_check
        %p3064 = pneg %p3063
      $region120: #{discriminator_forward.8} parent=5 // pred_check_branch
        %3066 = sbr.rel (%p3064) target = $region122
      $region121: #{discriminator_forward.8} parent=5 // pred_region
        %s3067 = ssub.s32 %s11, 2
        // Predicated region
        $region123: #{discriminator_forward.8} parent=121 // pred_check
          %p3068 = pneg %p132
        $region124: #{discriminator_forward.8} parent=121 // pred_check_branch
          %3070 = sbr.rel (%p3068) target = $region126
        $region125: #{discriminator_forward.8} parent=121 // pred_region
          %s3071 = sand.u32 %s117, 1
          %s3072 = sand.u32 %s117, 1
          %s3073 = smul.addr %s3072, 16
          %s3074 = scalar_lea.vmem [#allocation3], %s3073
        $region126: #{discriminator_forward.8} parent=121 // pred_fallthru
          _
        // Predicated region
        $region127: #{discriminator_forward.8} parent=121 // pred_check
          %p3075 = pneg %p160
        $region128: #{discriminator_forward.8} parent=121 // pred_check_branch
          %3077 = sbr.rel (%p3075) target = $region130
        $region129: #{discriminator_forward.8} parent=121 // pred_region
          %p3078 = scmp.lt.s32.totalorder %s22, 0
          %s3079 = scalar_select %p3078, %s22, 0
          %p3080 = scmp.lt.s32.totalorder %s23, 1
          %s3081 = scalar_select %p3080, %s23, 1
          %s3082 = smul.addr %s3079, 2
          %s3083 = sadd.s32 %s3081, %s3082
          %s3084 = smul.addr %s3083, 2
          %s3085 = scalar_lea.vmem %s4, %s3084
        $region130: #{discriminator_forward.8} parent=121 // pred_fallthru
          _
      $region122: #{discriminator_forward.8} parent=5 // pred_fallthru
        _
    $region6: #{discriminator_forward.8} parent=1 // loop_footer
      %s15 = sadd.s32 1, %s11
    $region7: #{discriminator_forward.8} parent=1 // loop_footer_branch
      %10 = sbr.rel target = $region3
    $region8: #{discriminator_forward.8} parent=1 // loop_exit
      _

// kernel: discriminator_forward.9
$region0: #{discriminator_forward.9}
  #allocation0 [shape = 'u32[]', space=smem, size = 0x4, offset = 0x4, fixed_abs, tag = 'smem constant byte address 0x4 - core index']
  #allocation1 [shape = 'u32[144,128]{1,0:T(1,128)}', space=vmem, size = 0x12000, scoped, tag = 'internal scratch']
  %s0 = inlined_call_operand.vmem [shape: bf16[8,4096], index: 0, kind: input, shape index: {}]
  %s1 = inlined_call_operand.vmem [shape: f32[1,2,4096], index: 1, kind: input, shape index: {}]
  %s2 = inlined_call_operand.vmem [shape: f32[1,4096], index: 2, kind: input, shape index: {}]
  %s3 = inlined_call_operand.vmem [shape: f32[1,4096], index: 3, kind: input, shape index: {}]
  %s4 = inlined_call_operand.vmem [shape: bf16[4096,128], index: 4, kind: input, shape index: {}]
  %s5 = inlined_call_operand.vmem [shape: f32[1,128], index: 5, kind: input, shape index: {}]
  %s6 = inlined_call_operand.vmem [shape: f32[8,128], index: 6, kind: output, shape index: {}]
  %s7 = sld [smem:[#allocation0]]
  $region34: #{discriminator_forward.9} parent=0
    _
  %s9 = ssub.s32 1, %s7
  %s10 = scalar_select 0, %s9, %s7
  // Predicated region
  $region2: #{discriminator_forward.9} parent=0 // pred_check
    _
  $region3: #{discriminator_forward.9} parent=0 // pred_check_branch
    %12 = sbr.rel (0) target = $region5
  $region4: #{discriminator_forward.9} parent=0 // pred_region
    _
  $region5: #{discriminator_forward.9} parent=0 // pred_fallthru
    _
  // Predicated region
  $region6: #{discriminator_forward.9} parent=0 // pred_check
    _
  $region7: #{discriminator_forward.9} parent=0 // pred_check_branch
    %14 = sbr.rel (0) target = $region9
  $region8: #{discriminator_forward.9} parent=0 // pred_region
    _
  $region9: #{discriminator_forward.9} parent=0 // pred_fallthru
    _
  // Predicated region
  $region10: #{discriminator_forward.9} parent=0 // pred_check
    _
  $region11: #{discriminator_forward.9} parent=0 // pred_check_branch
    %16 = sbr.rel (0) target = $region13
  $region12: #{discriminator_forward.9} parent=0 // pred_region
    _
  $region13: #{discriminator_forward.9} parent=0 // pred_fallthru
    _
  // Predicated region
  $region14: #{discriminator_forward.9} parent=0 // pred_check
    _
  $region15: #{discriminator_forward.9} parent=0 // pred_check_branch
    %18 = sbr.rel (0) target = $region17
  $region16: #{discriminator_forward.9} parent=0 // pred_region
    _
  $region17: #{discriminator_forward.9} parent=0 // pred_fallthru
    _
  // Predicated region
  $region18: #{discriminator_forward.9} parent=0 // pred_check
    _
  $region19: #{discriminator_forward.9} parent=0 // pred_check_branch
    %20 = sbr.rel (0) target = $region21
  $region20: #{discriminator_forward.9} parent=0 // pred_region
    _
  $region21: #{discriminator_forward.9} parent=0 // pred_fallthru
    _
  // Predicated region
  $region22: #{discriminator_forward.9} parent=0 // pred_check
    _
  $region23: #{discriminator_forward.9} parent=0 // pred_check_branch
    %22 = sbr.rel (0) target = $region25
  $region24: #{discriminator_forward.9} parent=0 // pred_region
    _
  $region25: #{discriminator_forward.9} parent=0 // pred_fallthru
    _
  %v24 = vld [vmem:[%s1] sm:$0xff]
  %v25 = vld [vmem:[%s1 + $0x8] sm:$0xff]
  %v26 = vld [vmem:[%s1 + $0x10] sm:$0xff]
  %v27 = vld [vmem:[%s1 + $0x18] sm:$0xff]
  %v28 = vld [vmem:[%s1 + $0x20] sm:$0xff]
  %v29 = vld [vmem:[%s1 + $0x28] sm:$0xff]
  %v30 = vld [vmem:[%s1 + $0x30] sm:$0xff]
  %v31 = vld [vmem:[%s1 + $0x38] sm:$0xff]
  %v32 = vadd.f32 %v24, 0.0
  %v33 = vadd.f32 %v25, 0.0
  %v34 = vadd.f32 %v26, 0.0
  %v35 = vadd.f32 %v27, 0.0
  %v36 = vadd.f32 %v28, 0.0
  %v37 = vadd.f32 %v29, 0.0
  %v38 = vadd.f32 %v30, 0.0
  %v39 = vadd.f32 %v31, 0.0
  %v40 = vmul.f32 %v32, 0.03125
  %v41 = vmul.f32 %v33, 0.03125
  %v42 = vmul.f32 %v34, 0.03125
  %v43 = vmul.f32 %v35, 0.03125
  %v44 = vmul.f32 %v36, 0.03125
  %v45 = vmul.f32 %v37, 0.03125
  %v46 = vmul.f32 %v38, 0.03125
  %v47 = vmul.f32 %v39, 0.03125
  %v48 = vmul.f32 %v40, %v40
  %v49 = vmul.f32 %v41, %v41
  %v50 = vmul.f32 %v42, %v42
  %v51 = vmul.f32 %v43, %v43
  %v52 = vmul.f32 %v44, %v44
  %v53 = vmul.f32 %v45, %v45
  %v54 = vmul.f32 %v46, %v46
  %v55 = vmul.f32 %v47, %v47
  %v64 = vrot.slane %v48, 7
  %v65 = vrot.slane %v49, 7
  %v66 = vrot.slane %v50, 7
  %v67 = vrot.slane %v51, 7
  %v68 = vrot.slane %v52, 7
  %v69 = vrot.slane %v53, 7
  %v70 = vrot.slane %v54, 7
  %v71 = vrot.slane %v55, 7
  %v80 = vsub.f32 %v40, %v64
  %v81 = vsub.f32 %v41, %v65
  %v82 = vsub.f32 %v42, %v66
  %v83 = vsub.f32 %v43, %v67
  %v84 = vsub.f32 %v44, %v68
  %v85 = vsub.f32 %v45, %v69
  %v86 = vsub.f32 %v46, %v70
  %v87 = vsub.f32 %v47, %v71
  %v88 = vld [vmem:[%s2] sm:$0xff]
  %v89 = vld [vmem:[%s2 + $0x8] sm:$0xff]
  %v90 = vld [vmem:[%s2 + $0x10] sm:$0xff]
  %v91 = vld [vmem:[%s2 + $0x18] sm:$0xff]
  %v92 = vadd.f32 %v80, 1e-05
  %v93 = vadd.f32 %v81, 1e-05
  %v94 = vadd.f32 %v82, 1e-05
  %v95 = vadd.f32 %v83, 1e-05
  %v96 = vadd.f32 %v84, 1e-05
  %v97 = vadd.f32 %v85, 1e-05
  %v98 = vadd.f32 %v86, 1e-05
  %v99 = vadd.f32 %v87, 1e-05
  %v100 = vrsqrt.pop %v92
  %v101 = vrsqrt.pop %v93
  %v102 = vrsqrt.pop %v94
  %v103 = vrsqrt.pop %v95
  %v104 = vrsqrt.pop %v96
  %v105 = vrsqrt.pop %v97
  %v106 = vrsqrt.pop %v98
  %v107 = vrsqrt.pop %v99
  %v117 = vunpack.c.l.s4 1966171168
  %v118 = vunpack.c.0.s8 %v117
  %v119 = vlaneseq
  %v120 = vshrl.u32 %v119, 7
  %v121 = vsub.s32 %v118, %v120
  %v122 = vrot.slane %v100, %v121
  %v124 = vunpack.c.l.s4 1966171168
  %v125 = vunpack.c.0.s8 %v124
  %v126 = vlaneseq
  %v127 = vshrl.u32 %v126, 7
  %v128 = vsub.s32 %v125, %v127
  %v129 = vrot.slane %v101, %v128
  %v130 = vcombine.high %v122, %v129
  %v132 = vunpack.c.l.s4 1966171168
  %v133 = vunpack.c.0.s8 %v132
  %v134 = vlaneseq
  %v135 = vshrl.u32 %v134, 7
  %v136 = vsub.s32 %v133, %v135
  %v137 = vrot.slane %v102, %v136
  %v139 = vunpack.c.l.s4 1966171168
  %v140 = vunpack.c.0.s8 %v139
  %v141 = vlaneseq
  %v142 = vshrl.u32 %v141, 7
  %v143 = vsub.s32 %v140, %v142
  %v144 = vrot.slane %v103, %v143
  %v145 = vcombine.high %v137, %v144
  %v147 = vunpack.c.l.s4 1966171168
  %v148 = vunpack.c.0.s8 %v147
  %v149 = vlaneseq
  %v150 = vshrl.u32 %v149, 7
  %v151 = vsub.s32 %v148, %v150
  %v152 = vrot.slane %v104, %v151
  %v154 = vunpack.c.l.s4 1966171168
  %v155 = vunpack.c.0.s8 %v154
  %v156 = vlaneseq
  %v157 = vshrl.u32 %v156, 7
  %v158 = vsub.s32 %v155, %v157
  %v159 = vrot.slane %v105, %v158
  %v160 = vcombine.high %v152, %v159
  %v162 = vunpack.c.l.s4 1966171168
  %v163 = vunpack.c.0.s8 %v162
  %v164 = vlaneseq
  %v165 = vshrl.u32 %v164, 7
  %v166 = vsub.s32 %v163, %v165
  %v167 = vrot.slane %v106, %v166
  %v169 = vunpack.c.l.s4 1966171168
  %v170 = vunpack.c.0.s8 %v169
  %v171 = vlaneseq
  %v172 = vshrl.u32 %v171, 7
  %v173 = vsub.s32 %v170, %v172
  %v174 = vrot.slane %v107, %v173
  %v175 = vcombine.high %v167, %v174
  %v180 = vmul.f32 %v88, %v130
  %v181 = vmul.f32 %v89, %v145
  %v182 = vmul.f32 %v90, %v160
  %v183 = vmul.f32 %v91, %v175
  %v184 = vld [vmem:[%s3] sm:$0xff]
  %v185 = vld [vmem:[%s3 + $0x8] sm:$0xff]
  %v186 = vld [vmem:[%s3 + $0x10] sm:$0xff]
  %v187 = vld [vmem:[%s3 + $0x18] sm:$0xff]
  %v193 = vunpack.c.l.s4 857870592
  %v194 = vunpack.c.0.s8 %v193
  %v195 = vlaneseq
  %v196 = vshrl.u32 %v195, 7
  %v197 = vsub.s32 %v194, %v196
  %v198 = vrot.slane %v180, %v197
  %v200 = vunpack.c.l.s4 2003195204
  %v201 = vunpack.c.0.s8 %v200
  %v202 = vlaneseq
  %v203 = vshrl.u32 %v202, 7
  %v204 = vsub.s32 %v201, %v203
  %v205 = vrot.slane %v180, %v204
  %v207 = vunpack.c.l.s4 857870592
  %v208 = vunpack.c.0.s8 %v207
  %v209 = vlaneseq
  %v210 = vshrl.u32 %v209, 7
  %v211 = vsub.s32 %v208, %v210
  %v212 = vrot.slane %v181, %v211
  %v214 = vunpack.c.l.s4 2003195204
  %v215 = vunpack.c.0.s8 %v214
  %v216 = vlaneseq
  %v217 = vshrl.u32 %v216, 7
  %v218 = vsub.s32 %v215, %v217
  %v219 = vrot.slane %v181, %v218
  %v221 = vunpack.c.l.s4 857870592
  %v222 = vunpack.c.0.s8 %v221
  %v223 = vlaneseq
  %v224 = vshrl.u32 %v223, 7
  %v225 = vsub.s32 %v222, %v224
  %v226 = vrot.slane %v182, %v225
  %v228 = vunpack.c.l.s4 2003195204
  %v229 = vunpack.c.0.s8 %v228
  %v230 = vlaneseq
  %v231 = vshrl.u32 %v230, 7
  %v232 = vsub.s32 %v229, %v231
  %v233 = vrot.slane %v182, %v232
  %v235 = vunpack.c.l.s4 857870592
  %v236 = vunpack.c.0.s8 %v235
  %v237 = vlaneseq
  %v238 = vshrl.u32 %v237, 7
  %v239 = vsub.s32 %v236, %v238
  %v240 = vrot.slane %v183, %v239
  %v242 = vunpack.c.l.s4 2003195204
  %v243 = vunpack.c.0.s8 %v242
  %v244 = vlaneseq
  %v245 = vshrl.u32 %v244, 7
  %v246 = vsub.s32 %v243, %v245
  %v247 = vrot.slane %v183, %v246
  %v256 = vmul.f32 %v40, %v198
  %v257 = vmul.f32 %v41, %v205
  %v258 = vmul.f32 %v42, %v212
  %v259 = vmul.f32 %v43, %v219
  %v260 = vmul.f32 %v44, %v226
  %v261 = vmul.f32 %v45, %v233
  %v262 = vmul.f32 %v46, %v240
  %v263 = vmul.f32 %v47, %v247
  %v273 = vunpack.c.l.s4 1966171168
  %v274 = vunpack.c.0.s8 %v273
  %v275 = vlaneseq
  %v276 = vshrl.u32 %v275, 7
  %v277 = vsub.s32 %v274, %v276
  %v278 = vrot.slane %v256, %v277
  %v280 = vunpack.c.l.s4 1966171168
  %v281 = vunpack.c.0.s8 %v280
  %v282 = vlaneseq
  %v283 = vshrl.u32 %v282, 7
  %v284 = vsub.s32 %v281, %v283
  %v285 = vrot.slane %v257, %v284
  %v286 = vcombine.low %v278, %v285
  %v288 = vunpack.c.l.s4 1966171168
  %v289 = vunpack.c.0.s8 %v288
  %v290 = vlaneseq
  %v291 = vshrl.u32 %v290, 7
  %v292 = vsub.s32 %v289, %v291
  %v293 = vrot.slane %v258, %v292
  %v295 = vunpack.c.l.s4 1966171168
  %v296 = vunpack.c.0.s8 %v295
  %v297 = vlaneseq
  %v298 = vshrl.u32 %v297, 7
  %v299 = vsub.s32 %v296, %v298
  %v300 = vrot.slane %v259, %v299
  %v301 = vcombine.low %v293, %v300
  %v303 = vunpack.c.l.s4 1966171168
  %v304 = vunpack.c.0.s8 %v303
  %v305 = vlaneseq
  %v306 = vshrl.u32 %v305, 7
  %v307 = vsub.s32 %v304, %v306
  %v308 = vrot.slane %v260, %v307
  %v310 = vunpack.c.l.s4 1966171168
  %v311 = vunpack.c.0.s8 %v310
  %v312 = vlaneseq
  %v313 = vshrl.u32 %v312, 7
  %v314 = vsub.s32 %v311, %v313
  %v315 = vrot.slane %v261, %v314
  %v316 = vcombine.low %v308, %v315
  %v318 = vunpack.c.l.s4 1966171168
  %v319 = vunpack.c.0.s8 %v318
  %v320 = vlaneseq
  %v321 = vshrl.u32 %v320, 7
  %v322 = vsub.s32 %v319, %v321
  %v323 = vrot.slane %v262, %v322
  %v325 = vunpack.c.l.s4 1966171168
  %v326 = vunpack.c.0.s8 %v325
  %v327 = vlaneseq
  %v328 = vshrl.u32 %v327, 7
  %v329 = vsub.s32 %v326, %v328
  %v330 = vrot.slane %v263, %v329
  %v331 = vcombine.low %v323, %v330
  %v336 = vsub.f32 %v184, %v286
  %v337 = vsub.f32 %v185, %v301
  %v338 = vsub.f32 %v186, %v316
  %v339 = vsub.f32 %v187, %v331
  %v340 = vld [vmem:[%s0] sm:$0xff]
  %v341 = vld [vmem:[%s0 + $0x8] sm:$0xff]
  %v342 = vld [vmem:[%s0 + $0x10] sm:$0xff]
  %v343 = vld [vmem:[%s0 + $0x18] sm:$0xff]
  %v344 = vld [vmem:[%s0 + $0x20] sm:$0xff]
  %v345 = vld [vmem:[%s0 + $0x28] sm:$0xff]
  %v346 = vld [vmem:[%s0 + $0x30] sm:$0xff]
  %v347 = vld [vmem:[%s0 + $0x38] sm:$0xff]
  %v348 = vld [vmem:[%s0 + $0x40] sm:$0xff]
  %v349 = vld [vmem:[%s0 + $0x48] sm:$0xff]
  %v350 = vld [vmem:[%s0 + $0x50] sm:$0xff]
  %v351 = vld [vmem:[%s0 + $0x58] sm:$0xff]
  %v352 = vld [vmem:[%s0 + $0x60] sm:$0xff]
  %v353 = vld [vmem:[%s0 + $0x68] sm:$0xff]
  %v354 = vld [vmem:[%s0 + $0x70] sm:$0xff]
  %v355 = vld [vmem:[%s0 + $0x78] sm:$0xff]
  %v356 = vunpack.c.l.bf16 %v340
  %v357 = vunpack.c.h.bf16 %v340
  %v358 = vunpack.c.l.bf16 %v341
  %v359 = vunpack.c.h.bf16 %v341
  %v360 = vunpack.c.l.bf16 %v342
  %v361 = vunpack.c.h.bf16 %v342
  %v362 = vunpack.c.l.bf16 %v343
  %v363 = vunpack.c.h.bf16 %v343
  %v364 = vunpack.c.l.bf16 %v344
  %v365 = vunpack.c.h.bf16 %v344
  %v366 = vunpack.c.l.bf16 %v345
  %v367 = vunpack.c.h.bf16 %v345
  %v368 = vunpack.c.l.bf16 %v346
  %v369 = vunpack.c.h.bf16 %v346
  %v370 = vunpack.c.l.bf16 %v347
  %v371 = vunpack.c.h.bf16 %v347
  %v372 = vunpack.c.l.bf16 %v348
  %v373 = vunpack.c.h.bf16 %v348
  %v374 = vunpack.c.l.bf16 %v349
  %v375 = vunpack.c.h.bf16 %v349
  %v376 = vunpack.c.l.bf16 %v350
  %v377 = vunpack.c.h.bf16 %v350
  %v378 = vunpack.c.l.bf16 %v351
  %v379 = vunpack.c.h.bf16 %v351
  %v380 = vunpack.c.l.bf16 %v352
  %v381 = vunpack.c.h.bf16 %v352
  %v382 = vunpack.c.l.bf16 %v353
  %v383 = vunpack.c.h.bf16 %v353
  %v384 = vunpack.c.l.bf16 %v354
  %v385 = vunpack.c.h.bf16 %v354
  %v386 = vunpack.c.l.bf16 %v355
  %v387 = vunpack.c.h.bf16 %v355
  %v388 = vlaneseq
  %v389 = vshrl.u32 %v388, 7
  %v390 = vsub.s32 0, %v389
  %v391 = vrot.slane %v180, %v390
  %v392 = vlaneseq
  %v393 = vshrl.u32 %v392, 7
  %v394 = vsub.s32 1, %v393
  %v395 = vrot.slane %v180, %v394
  %v396 = vlaneseq
  %v397 = vshrl.u32 %v396, 7
  %v398 = vsub.s32 2, %v397
  %v399 = vrot.slane %v180, %v398
  %v400 = vlaneseq
  %v401 = vshrl.u32 %v400, 7
  %v402 = vsub.s32 3, %v401
  %v403 = vrot.slane %v180, %v402
  %v404 = vlaneseq
  %v405 = vshrl.u32 %v404, 7
  %v406 = vsub.s32 4, %v405
  %v407 = vrot.slane %v180, %v406
  %v408 = vlaneseq
  %v409 = vshrl.u32 %v408, 7
  %v410 = vsub.s32 5, %v409
  %v411 = vrot.slane %v180, %v410
  %v412 = vlaneseq
  %v413 = vshrl.u32 %v412, 7
  %v414 = vsub.s32 6, %v413
  %v415 = vrot.slane %v180, %v414
  %v416 = vlaneseq
  %v417 = vshrl.u32 %v416, 7
  %v418 = vsub.s32 7, %v417
  %v419 = vrot.slane %v180, %v418
  %v420 = vlaneseq
  %v421 = vshrl.u32 %v420, 7
  %v422 = vsub.s32 0, %v421
  %v423 = vrot.slane %v181, %v422
  %v424 = vlaneseq
  %v425 = vshrl.u32 %v424, 7
  %v426 = vsub.s32 1, %v425
  %v427 = vrot.slane %v181, %v426
  %v428 = vlaneseq
  %v429 = vshrl.u32 %v428, 7
  %v430 = vsub.s32 2, %v429
  %v431 = vrot.slane %v181, %v430
  %v432 = vlaneseq
  %v433 = vshrl.u32 %v432, 7
  %v434 = vsub.s32 3, %v433
  %v435 = vrot.slane %v181, %v434
  %v436 = vlaneseq
  %v437 = vshrl.u32 %v436, 7
  %v438 = vsub.s32 4, %v437
  %v439 = vrot.slane %v181, %v438
  %v440 = vlaneseq
  %v441 = vshrl.u32 %v440, 7
  %v442 = vsub.s32 5, %v441
  %v443 = vrot.slane %v181, %v442
  %v444 = vlaneseq
  %v445 = vshrl.u32 %v444, 7
  %v446 = vsub.s32 6, %v445
  %v447 = vrot.slane %v181, %v446
  %v448 = vlaneseq
  %v449 = vshrl.u32 %v448, 7
  %v450 = vsub.s32 7, %v449
  %v451 = vrot.slane %v181, %v450
  %v452 = vlaneseq
  %v453 = vshrl.u32 %v452, 7
  %v454 = vsub.s32 0, %v453
  %v455 = vrot.slane %v182, %v454
  %v456 = vlaneseq
  %v457 = vshrl.u32 %v456, 7
  %v458 = vsub.s32 1, %v457
  %v459 = vrot.slane %v182, %v458
  %v460 = vlaneseq
  %v461 = vshrl.u32 %v460, 7
  %v462 = vsub.s32 2, %v461
  %v463 = vrot.slane %v182, %v462
  %v464 = vlaneseq
  %v465 = vshrl.u32 %v464, 7
  %v466 = vsub.s32 3, %v465
  %v467 = vrot.slane %v182, %v466
  %v468 = vlaneseq
  %v469 = vshrl.u32 %v468, 7
  %v470 = vsub.s32 4, %v469
  %v471 = vrot.slane %v182, %v470
  %v472 = vlaneseq
  %v473 = vshrl.u32 %v472, 7
  %v474 = vsub.s32 5, %v473
  %v475 = vrot.slane %v182, %v474
  %v476 = vlaneseq
  %v477 = vshrl.u32 %v476, 7
  %v478 = vsub.s32 6, %v477
  %v479 = vrot.slane %v182, %v478
  %v480 = vlaneseq
  %v481 = vshrl.u32 %v480, 7
  %v482 = vsub.s32 7, %v481
  %v483 = vrot.slane %v182, %v482
  %v484 = vlaneseq
  %v485 = vshrl.u32 %v484, 7
  %v486 = vsub.s32 0, %v485
  %v487 = vrot.slane %v183, %v486
  %v488 = vlaneseq
  %v489 = vshrl.u32 %v488, 7
  %v490 = vsub.s32 1, %v489
  %v491 = vrot.slane %v183, %v490
  %v492 = vlaneseq
  %v493 = vshrl.u32 %v492, 7
  %v494 = vsub.s32 2, %v493
  %v495 = vrot.slane %v183, %v494
  %v496 = vlaneseq
  %v497 = vshrl.u32 %v496, 7
  %v498 = vsub.s32 3, %v497
  %v499 = vrot.slane %v183, %v498
  %v500 = vlaneseq
  %v501 = vshrl.u32 %v500, 7
  %v502 = vsub.s32 4, %v501
  %v503 = vrot.slane %v183, %v502
  %v504 = vlaneseq
  %v505 = vshrl.u32 %v504, 7
  %v506 = vsub.s32 5, %v505
  %v507 = vrot.slane %v183, %v506
  %v508 = vlaneseq
  %v509 = vshrl.u32 %v508, 7
  %v510 = vsub.s32 6, %v509
  %v511 = vrot.slane %v183, %v510
  %v512 = vlaneseq
  %v513 = vshrl.u32 %v512, 7
  %v514 = vsub.s32 7, %v513
  %v515 = vrot.slane %v183, %v514
  %v548 = vmul.f32 %v356, %v391
  %v549 = vmul.f32 %v357, %v395
  %v550 = vmul.f32 %v358, %v399
  %v551 = vmul.f32 %v359, %v403
  %v552 = vmul.f32 %v360, %v407
  %v553 = vmul.f32 %v361, %v411
  %v554 = vmul.f32 %v362, %v415
  %v555 = vmul.f32 %v363, %v419
  %v556 = vmul.f32 %v364, %v423
  %v557 = vmul.f32 %v365, %v427
  %v558 = vmul.f32 %v366, %v431
  %v559 = vmul.f32 %v367, %v435
  %v560 = vmul.f32 %v368, %v439
  %v561 = vmul.f32 %v369, %v443
  %v562 = vmul.f32 %v370, %v447
  %v563 = vmul.f32 %v371, %v451
  %v564 = vmul.f32 %v372, %v455
  %v565 = vmul.f32 %v373, %v459
  %v566 = vmul.f32 %v374, %v463
  %v567 = vmul.f32 %v375, %v467
  %v568 = vmul.f32 %v376, %v471
  %v569 = vmul.f32 %v377, %v475
  %v570 = vmul.f32 %v378, %v479
  %v571 = vmul.f32 %v379, %v483
  %v572 = vmul.f32 %v380, %v487
  %v573 = vmul.f32 %v381, %v491
  %v574 = vmul.f32 %v382, %v495
  %v575 = vmul.f32 %v383, %v499
  %v576 = vmul.f32 %v384, %v503
  %v577 = vmul.f32 %v385, %v507
  %v578 = vmul.f32 %v386, %v511
  %v579 = vmul.f32 %v387, %v515
  %v584 = vlaneseq
  %v585 = vshrl.u32 %v584, 7
  %v586 = vsub.s32 0, %v585
  %v587 = vrot.slane %v336, %v586
  %v588 = vlaneseq
  %v589 = vshrl.u32 %v588, 7
  %v590 = vsub.s32 1, %v589
  %v591 = vrot.slane %v336, %v590
  %v592 = vlaneseq
  %v593 = vshrl.u32 %v592, 7
  %v594 = vsub.s32 2, %v593
  %v595 = vrot.slane %v336, %v594
  %v596 = vlaneseq
  %v597 = vshrl.u32 %v596, 7
  %v598 = vsub.s32 3, %v597
  %v599 = vrot.slane %v336, %v598
  %v600 = vlaneseq
  %v601 = vshrl.u32 %v600, 7
  %v602 = vsub.s32 4, %v601
  %v603 = vrot.slane %v336, %v602
  %v604 = vlaneseq
  %v605 = vshrl.u32 %v604, 7
  %v606 = vsub.s32 5, %v605
  %v607 = vrot.slane %v336, %v606
  %v608 = vlaneseq
  %v609 = vshrl.u32 %v608, 7
  %v610 = vsub.s32 6, %v609
  %v611 = vrot.slane %v336, %v610
  %v612 = vlaneseq
  %v613 = vshrl.u32 %v612, 7
  %v614 = vsub.s32 7, %v613
  %v615 = vrot.slane %v336, %v614
  %v616 = vlaneseq
  %v617 = vshrl.u32 %v616, 7
  %v618 = vsub.s32 0, %v617
  %v619 = vrot.slane %v337, %v618
  %v620 = vlaneseq
  %v621 = vshrl.u32 %v620, 7
  %v622 = vsub.s32 1, %v621
  %v623 = vrot.slane %v337, %v622
  %v624 = vlaneseq
  %v625 = vshrl.u32 %v624, 7
  %v626 = vsub.s32 2, %v625
  %v627 = vrot.slane %v337, %v626
  %v628 = vlaneseq
  %v629 = vshrl.u32 %v628, 7
  %v630 = vsub.s32 3, %v629
  %v631 = vrot.slane %v337, %v630
  %v632 = vlaneseq
  %v633 = vshrl.u32 %v632, 7
  %v634 = vsub.s32 4, %v633
  %v635 = vrot.slane %v337, %v634
  %v636 = vlaneseq
  %v637 = vshrl.u32 %v636, 7
  %v638 = vsub.s32 5, %v637
  %v639 = vrot.slane %v337, %v638
  %v640 = vlaneseq
  %v641 = vshrl.u32 %v640, 7
  %v642 = vsub.s32 6, %v641
  %v643 = vrot.slane %v337, %v642
  %v644 = vlaneseq
  %v645 = vshrl.u32 %v644, 7
  %v646 = vsub.s32 7, %v645
  %v647 = vrot.slane %v337, %v646
  %v648 = vlaneseq
  %v649 = vshrl.u32 %v648, 7
  %v650 = vsub.s32 0, %v649
  %v651 = vrot.slane %v338, %v650
  %v652 = vlaneseq
  %v653 = vshrl.u32 %v652, 7
  %v654 = vsub.s32 1, %v653
  %v655 = vrot.slane %v338, %v654
  %v656 = vlaneseq
  %v657 = vshrl.u32 %v656, 7
  %v658 = vsub.s32 2, %v657
  %v659 = vrot.slane %v338, %v658
  %v660 = vlaneseq
  %v661 = vshrl.u32 %v660, 7
  %v662 = vsub.s32 3, %v661
  %v663 = vrot.slane %v338, %v662
  %v664 = vlaneseq
  %v665 = vshrl.u32 %v664, 7
  %v666 = vsub.s32 4, %v665
  %v667 = vrot.slane %v338, %v666
  %v668 = vlaneseq
  %v669 = vshrl.u32 %v668, 7
  %v670 = vsub.s32 5, %v669
  %v671 = vrot.slane %v338, %v670
  %v672 = vlaneseq
  %v673 = vshrl.u32 %v672, 7
  %v674 = vsub.s32 6, %v673
  %v675 = vrot.slane %v338, %v674
  %v676 = vlaneseq
  %v677 = vshrl.u32 %v676, 7
  %v678 = vsub.s32 7, %v677
  %v679 = vrot.slane %v338, %v678
  %v680 = vlaneseq
  %v681 = vshrl.u32 %v680, 7
  %v682 = vsub.s32 0, %v681
  %v683 = vrot.slane %v339, %v682
  %v684 = vlaneseq
  %v685 = vshrl.u32 %v684, 7
  %v686 = vsub.s32 1, %v685
  %v687 = vrot.slane %v339, %v686
  %v688 = vlaneseq
  %v689 = vshrl.u32 %v688, 7
  %v690 = vsub.s32 2, %v689
  %v691 = vrot.slane %v339, %v690
  %v692 = vlaneseq
  %v693 = vshrl.u32 %v692, 7
  %v694 = vsub.s32 3, %v693
  %v695 = vrot.slane %v339, %v694
  %v696 = vlaneseq
  %v697 = vshrl.u32 %v696, 7
  %v698 = vsub.s32 4, %v697
  %v699 = vrot.slane %v339, %v698
  %v700 = vlaneseq
  %v701 = vshrl.u32 %v700, 7
  %v702 = vsub.s32 5, %v701
  %v703 = vrot.slane %v339, %v702
  %v704 = vlaneseq
  %v705 = vshrl.u32 %v704, 7
  %v706 = vsub.s32 6, %v705
  %v707 = vrot.slane %v339, %v706
  %v708 = vlaneseq
  %v709 = vshrl.u32 %v708, 7
  %v710 = vsub.s32 7, %v709
  %v711 = vrot.slane %v339, %v710
  %v744 = vadd.f32 %v548, %v587
  %v745 = vadd.f32 %v549, %v591
  %v746 = vadd.f32 %v550, %v595
  %v747 = vadd.f32 %v551, %v599
  %v748 = vadd.f32 %v552, %v603
  %v749 = vadd.f32 %v553, %v607
  %v750 = vadd.f32 %v554, %v611
  %v751 = vadd.f32 %v555, %v615
  %v752 = vadd.f32 %v556, %v619
  %v753 = vadd.f32 %v557, %v623
  %v754 = vadd.f32 %v558, %v627
  %v755 = vadd.f32 %v559, %v631
  %v756 = vadd.f32 %v560, %v635
  %v757 = vadd.f32 %v561, %v639
  %v758 = vadd.f32 %v562, %v643
  %v759 = vadd.f32 %v563, %v647
  %v760 = vadd.f32 %v564, %v651
  %v761 = vadd.f32 %v565, %v655
  %v762 = vadd.f32 %v566, %v659
  %v763 = vadd.f32 %v567, %v663
  %v764 = vadd.f32 %v568, %v667
  %v765 = vadd.f32 %v569, %v671
  %v766 = vadd.f32 %v570, %v675
  %v767 = vadd.f32 %v571, %v679
  %v768 = vadd.f32 %v572, %v683
  %v769 = vadd.f32 %v573, %v687
  %v770 = vadd.f32 %v574, %v691
  %v771 = vadd.f32 %v575, %v695
  %v772 = vadd.f32 %v576, %v699
  %v773 = vadd.f32 %v577, %v703
  %v774 = vadd.f32 %v578, %v707
  %v775 = vadd.f32 %v579, %v711
  %vm776 = vcmp.ge.f32.partialorder %v744, 0.0
  %vm777 = vcmp.ge.f32.partialorder %v745, 0.0
  %vm778 = vcmp.ge.f32.partialorder %v746, 0.0
  %vm779 = vcmp.ge.f32.partialorder %v747, 0.0
  %vm780 = vcmp.ge.f32.partialorder %v748, 0.0
  %vm781 = vcmp.ge.f32.partialorder %v749, 0.0
  %vm782 = vcmp.ge.f32.partialorder %v750, 0.0
  %vm783 = vcmp.ge.f32.partialorder %v751, 0.0
  %vm784 = vcmp.ge.f32.partialorder %v752, 0.0
  %vm785 = vcmp.ge.f32.partialorder %v753, 0.0
  %vm786 = vcmp.ge.f32.partialorder %v754, 0.0
  %vm787 = vcmp.ge.f32.partialorder %v755, 0.0
  %vm788 = vcmp.ge.f32.partialorder %v756, 0.0
  %vm789 = vcmp.ge.f32.partialorder %v757, 0.0
  %vm790 = vcmp.ge.f32.partialorder %v758, 0.0
  %vm791 = vcmp.ge.f32.partialorder %v759, 0.0
  %vm792 = vcmp.ge.f32.partialorder %v760, 0.0
  %vm793 = vcmp.ge.f32.partialorder %v761, 0.0
  %vm794 = vcmp.ge.f32.partialorder %v762, 0.0
  %vm795 = vcmp.ge.f32.partialorder %v763, 0.0
  %vm796 = vcmp.ge.f32.partialorder %v764, 0.0
  %vm797 = vcmp.ge.f32.partialorder %v765, 0.0
  %vm798 = vcmp.ge.f32.partialorder %v766, 0.0
  %vm799 = vcmp.ge.f32.partialorder %v767, 0.0
  %vm800 = vcmp.ge.f32.partialorder %v768, 0.0
  %vm801 = vcmp.ge.f32.partialorder %v769, 0.0
  %vm802 = vcmp.ge.f32.partialorder %v770, 0.0
  %vm803 = vcmp.ge.f32.partialorder %v771, 0.0
  %vm804 = vcmp.ge.f32.partialorder %v772, 0.0
  %vm805 = vcmp.ge.f32.partialorder %v773, 0.0
  %vm806 = vcmp.ge.f32.partialorder %v774, 0.0
  %vm807 = vcmp.ge.f32.partialorder %v775, 0.0
  %v808 = vmul.f32 %v744, 0.2
  %v809 = vmul.f32 %v745, 0.2
  %v810 = vmul.f32 %v746, 0.2
  %v811 = vmul.f32 %v747, 0.2
  %v812 = vmul.f32 %v748, 0.2
  %v813 = vmul.f32 %v749, 0.2
  %v814 = vmul.f32 %v750, 0.2
  %v815 = vmul.f32 %v751, 0.2
  %v816 = vmul.f32 %v752, 0.2
  %v817 = vmul.f32 %v753, 0.2
  %v818 = vmul.f32 %v754, 0.2
  %v819 = vmul.f32 %v755, 0.2
  %v820 = vmul.f32 %v756, 0.2
  %v821 = vmul.f32 %v757, 0.2
  %v822 = vmul.f32 %v758, 0.2
  %v823 = vmul.f32 %v759, 0.2
  %v824 = vmul.f32 %v760, 0.2
  %v825 = vmul.f32 %v761, 0.2
  %v826 = vmul.f32 %v762, 0.2
  %v827 = vmul.f32 %v763, 0.2
  %v828 = vmul.f32 %v764, 0.2
  %v829 = vmul.f32 %v765, 0.2
  %v830 = vmul.f32 %v766, 0.2
  %v831 = vmul.f32 %v767, 0.2
  %v832 = vmul.f32 %v768, 0.2
  %v833 = vmul.f32 %v769, 0.2
  %v834 = vmul.f32 %v770, 0.2
  %v835 = vmul.f32 %v771, 0.2
  %v836 = vmul.f32 %v772, 0.2
  %v837 = vmul.f32 %v773, 0.2
  %v838 = vmul.f32 %v774, 0.2
  %v839 = vmul.f32 %v775, 0.2
  %v840 = vsel %vm776, %v744, %v808
  %v841 = vsel %vm777, %v745, %v809
  %v842 = vsel %vm778, %v746, %v810
  %v843 = vsel %vm779, %v747, %v811
  %v844 = vsel %vm780, %v748, %v812
  %v845 = vsel %vm781, %v749, %v813
  %v846 = vsel %vm782, %v750, %v814
  %v847 = vsel %vm783, %v751, %v815
  %v848 = vsel %vm784, %v752, %v816
  %v849 = vsel %vm785, %v753, %v817
  %v850 = vsel %vm786, %v754, %v818
  %v851 = vsel %vm787, %v755, %v819
  %v852 = vsel %vm788, %v756, %v820
  %v853 = vsel %vm789, %v757, %v821
  %v854 = vsel %vm790, %v758, %v822
  %v855 = vsel %vm791, %v759, %v823
  %v856 = vsel %vm792, %v760, %v824
  %v857 = vsel %vm793, %v761, %v825
  %v858 = vsel %vm794, %v762, %v826
  %v859 = vsel %vm795, %v763, %v827
  %v860 = vsel %vm796, %v764, %v828
  %v861 = vsel %vm797, %v765, %v829
  %v862 = vsel %vm798, %v766, %v830
  %v863 = vsel %vm799, %v767, %v831
  %v864 = vsel %vm800, %v768, %v832
  %v865 = vsel %vm801, %v769, %v833
  %v866 = vsel %vm802, %v770, %v834
  %v867 = vsel %vm803, %v771, %v835
  %v868 = vsel %vm804, %v772, %v836
  %v869 = vsel %vm805, %v773, %v837
  %v870 = vsel %vm806, %v774, %v838
  %v871 = vsel %vm807, %v775, %v839
  %v872 = vpack.c.bf16 %v840, %v840
  %v873 = vpack.c.bf16 %v841, %v841
  %v874 = vpack.c.bf16 %v842, %v842
  %v875 = vpack.c.bf16 %v843, %v843
  %v876 = vpack.c.bf16 %v844, %v844
  %v877 = vpack.c.bf16 %v845, %v845
  %v878 = vpack.c.bf16 %v846, %v846
  %v879 = vpack.c.bf16 %v847, %v847
  %v880 = vpack.c.bf16 %v848, %v848
  %v881 = vpack.c.bf16 %v849, %v849
  %v882 = vpack.c.bf16 %v850, %v850
  %v883 = vpack.c.bf16 %v851, %v851
  %v884 = vpack.c.bf16 %v852, %v852
  %v885 = vpack.c.bf16 %v853, %v853
  %v886 = vpack.c.bf16 %v854, %v854
  %v887 = vpack.c.bf16 %v855, %v855
  %v888 = vpack.c.bf16 %v856, %v856
  %v889 = vpack.c.bf16 %v857, %v857
  %v890 = vpack.c.bf16 %v858, %v858
  %v891 = vpack.c.bf16 %v859, %v859
  %v892 = vpack.c.bf16 %v860, %v860
  %v893 = vpack.c.bf16 %v861, %v861
  %v894 = vpack.c.bf16 %v862, %v862
  %v895 = vpack.c.bf16 %v863, %v863
  %v896 = vpack.c.bf16 %v864, %v864
  %v897 = vpack.c.bf16 %v865, %v865
  %v898 = vpack.c.bf16 %v866, %v866
  %v899 = vpack.c.bf16 %v867, %v867
  %v900 = vpack.c.bf16 %v868, %v868
  %v901 = vpack.c.bf16 %v869, %v869
  %v902 = vpack.c.bf16 %v870, %v870
  %v903 = vpack.c.bf16 %v871, %v871
  %v904 = vld [vmem:[%s4] sm:$0xf]
  %v905 = vld [vmem:[%s4 + $0x4] sm:$0xf]
  %v906 = vld [vmem:[%s4 + $0x8] sm:$0xf]
  %v907 = vld [vmem:[%s4 + $0xc] sm:$0xf]
  %v908 = vld [vmem:[%s4 + $0x10] sm:$0xf]
  %v909 = vld [vmem:[%s4 + $0x14] sm:$0xf]
  %v910 = vld [vmem:[%s4 + $0x18] sm:$0xf]
  %v911 = vld [vmem:[%s4 + $0x1c] sm:$0xf]
  %v912 = vld [vmem:[%s4 + $0x20] sm:$0xf]
  %v913 = vld [vmem:[%s4 + $0x24] sm:$0xf]
  %v914 = vld [vmem:[%s4 + $0x28] sm:$0xf]
  %v915 = vld [vmem:[%s4 + $0x2c] sm:$0xf]
  %v916 = vld [vmem:[%s4 + $0x30] sm:$0xf]
  %v917 = vld [vmem:[%s4 + $0x34] sm:$0xf]
  %v918 = vld [vmem:[%s4 + $0x38] sm:$0xf]
  %v919 = vld [vmem:[%s4 + $0x3c] sm:$0xf]
  %v920 = vld [vmem:[%s4 + $0x40] sm:$0xf]
  %v921 = vld [vmem:[%s4 + $0x44] sm:$0xf]
  %v922 = vld [vmem:[%s4 + $0x48] sm:$0xf]
  %v923 = vld [vmem:[%s4 + $0x4c] sm:$0xf]
  %v924 = vld [vmem:[%s4 + $0x50] sm:$0xf]
  %v925 = vld [vmem:[%s4 + $0x54] sm:$0xf]
  %v926 = vld [vmem:[%s4 + $0x58] sm:$0xf]
  %v927 = vld [vmem:[%s4 + $0x5c] sm:$0xf]
  %v928 = vld [vmem:[%s4 + $0x60] sm:$0xf]
  %v929 = vld [vmem:[%s4 + $0x64] sm:$0xf]
  %v930 = vld [vmem:[%s4 + $0x68] sm:$0xf]
  %v931 = vld [vmem:[%s4 + $0x6c] sm:$0xf]
  %v932 = vld [vmem:[%s4 + $0x70] sm:$0xf]
  %v933 = vld [vmem:[%s4 + $0x74] sm:$0xf]
  %v934 = vld [vmem:[%s4 + $0x78] sm:$0xf]
  %v935 = vld [vmem:[%s4 + $0x7c] sm:$0xf]
  %v936 = vld [vmem:[%s4 + $0x80] sm:$0xf]
  %v937 = vld [vmem:[%s4 + $0x84] sm:$0xf]
  %v938 = vld [vmem:[%s4 + $0x88] sm:$0xf]
  %v939 = vld [vmem:[%s4 + $0x8c] sm:$0xf]
  %v940 = vld [vmem:[%s4 + $0x90] sm:$0xf]
  %v941 = vld [vmem:[%s4 + $0x94] sm:$0xf]
  %v942 = vld [vmem:[%s4 + $0x98] sm:$0xf]
  %v943 = vld [vmem:[%s4 + $0x9c] sm:$0xf]
  %v944 = vld [vmem:[%s4 + $0xa0] sm:$0xf]
  %v945 = vld [vmem:[%s4 + $0xa4] sm:$0xf]
  %v946 = vld [vmem:[%s4 + $0xa8] sm:$0xf]
  %v947 = vld [vmem:[%s4 + $0xac] sm:$0xf]
  %v948 = vld [vmem:[%s4 + $0xb0] sm:$0xf]
  %v949 = vld [vmem:[%s4 + $0xb4] sm:$0xf]
  %v950 = vld [vmem:[%s4 + $0xb8] sm:$0xf]
  %v951 = vld [vmem:[%s4 + $0xbc] sm:$0xf]
  %v952 = vld [vmem:[%s4 + $0xc0] sm:$0xf]
  %v953 = vld [vmem:[%s4 + $0xc4] sm:$0xf]
  %v954 = vld [vmem:[%s4 + $0xc8] sm:$0xf]
  %v955 = vld [vmem:[%s4 + $0xcc] sm:$0xf]
  %v956 = vld [vmem:[%s4 + $0xd0] sm:$0xf]
  %v957 = vld [vmem:[%s4 + $0xd4] sm:$0xf]
  %v958 = vld [vmem:[%s4 + $0xd8] sm:$0xf]
  %v959 = vld [vmem:[%s4 + $0xdc] sm:$0xf]
  %v960 = vld [vmem:[%s4 + $0xe0] sm:$0xf]
  %v961 = vld [vmem:[%s4 + $0xe4] sm:$0xf]
  %v962 = vld [vmem:[%s4 + $0xe8] sm:$0xf]
  %v963 = vld [vmem:[%s4 + $0xec] sm:$0xf]
  %v964 = vld [vmem:[%s4 + $0xf0] sm:$0xf]
  %v965 = vld [vmem:[%s4 + $0xf4] sm:$0xf]
  %v966 = vld [vmem:[%s4 + $0xf8] sm:$0xf]
  %v967 = vld [vmem:[%s4 + $0xfc] sm:$0xf]
  %v968 = vld [vmem:[%s4 + $0x100] sm:$0xf]
  %v969 = vld [vmem:[%s4 + $0x104] sm:$0xf]
  %v970 = vld [vmem:[%s4 + $0x108] sm:$0xf]
  %v971 = vld [vmem:[%s4 + $0x10c] sm:$0xf]
  %v972 = vld [vmem:[%s4 + $0x110] sm:$0xf]
  %v973 = vld [vmem:[%s4 + $0x114] sm:$0xf]
  %v974 = vld [vmem:[%s4 + $0x118] sm:$0xf]
  %v975 = vld [vmem:[%s4 + $0x11c] sm:$0xf]
  %v976 = vld [vmem:[%s4 + $0x120] sm:$0xf]
  %v977 = vld [vmem:[%s4 + $0x124] sm:$0xf]
  %v978 = vld [vmem:[%s4 + $0x128] sm:$0xf]
  %v979 = vld [vmem:[%s4 + $0x12c] sm:$0xf]
  %v980 = vld [vmem:[%s4 + $0x130] sm:$0xf]
  %v981 = vld [vmem:[%s4 + $0x134] sm:$0xf]
  %v982 = vld [vmem:[%s4 + $0x138] sm:$0xf]
  %v983 = vld [vmem:[%s4 + $0x13c] sm:$0xf]
  %v984 = vld [vmem:[%s4 + $0x140] sm:$0xf]
  %v985 = vld [vmem:[%s4 + $0x144] sm:$0xf]
  %v986 = vld [vmem:[%s4 + $0x148] sm:$0xf]
  %v987 = vld [vmem:[%s4 + $0x14c] sm:$0xf]
  %v988 = vld [vmem:[%s4 + $0x150] sm:$0xf]
  %v989 = vld [vmem:[%s4 + $0x154] sm:$0xf]
  %v990 = vld [vmem:[%s4 + $0x158] sm:$0xf]
  %v991 = vld [vmem:[%s4 + $0x15c] sm:$0xf]
  %v992 = vld [vmem:[%s4 + $0x160] sm:$0xf]
  %v993 = vld [vmem:[%s4 + $0x164] sm:$0xf]
  %v994 = vld [vmem:[%s4 + $0x168] sm:$0xf]
  %v995 = vld [vmem:[%s4 + $0x16c] sm:$0xf]
  %v996 = vld [vmem:[%s4 + $0x170] sm:$0xf]
  %v997 = vld [vmem:[%s4 + $0x174] sm:$0xf]
  %v998 = vld [vmem:[%s4 + $0x178] sm:$0xf]
  %v999 = vld [vmem:[%s4 + $0x17c] sm:$0xf]
  %v1000 = vld [vmem:[%s4 + $0x180] sm:$0xf]
  %v1001 = vld [vmem:[%s4 + $0x184] sm:$0xf]
  %v1002 = vld [vmem:[%s4 + $0x188] sm:$0xf]
  %v1003 = vld [vmem:[%s4 + $0x18c] sm:$0xf]
  %v1004 = vld [vmem:[%s4 + $0x190] sm:$0xf]
  %v1005 = vld [vmem:[%s4 + $0x194] sm:$0xf]
  %v1006 = vld [vmem:[%s4 + $0x198] sm:$0xf]
  %v1007 = vld [vmem:[%s4 + $0x19c] sm:$0xf]
  %v1008 = vld [vmem:[%s4 + $0x1a0] sm:$0xf]
  %v1009 = vld [vmem:[%s4 + $0x1a4] sm:$0xf]
  %v1010 = vld [vmem:[%s4 + $0x1a8] sm:$0xf]
  %v1011 = vld [vmem:[%s4 + $0x1ac] sm:$0xf]
  %v1012 = vld [vmem:[%s4 + $0x1b0] sm:$0xf]
  %v1013 = vld [vmem:[%s4 + $0x1b4] sm:$0xf]
  %v1014 = vld [vmem:[%s4 + $0x1b8] sm:$0xf]
  %v1015 = vld [vmem:[%s4 + $0x1bc] sm:$0xf]
  %v1016 = vld [vmem:[%s4 + $0x1c0] sm:$0xf]
  %v1017 = vld [vmem:[%s4 + $0x1c4] sm:$0xf]
  %v1018 = vld [vmem:[%s4 + $0x1c8] sm:$0xf]
  %v1019 = vld [vmem:[%s4 + $0x1cc] sm:$0xf]
  %v1020 = vld [vmem:[%s4 + $0x1d0] sm:$0xf]
  %v1021 = vld [vmem:[%s4 + $0x1d4] sm:$0xf]
  %v1022 = vld [vmem:[%s4 + $0x1d8] sm:$0xf]
  %v1023 = vld [vmem:[%s4 + $0x1dc] sm:$0xf]
  %v1024 = vld [vmem:[%s4 + $0x1e0] sm:$0xf]
  %v1025 = vld [vmem:[%s4 + $0x1e4] sm:$0xf]
  %v1026 = vld [vmem:[%s4 + $0x1e8] sm:$0xf]
  %v1027 = vld [vmem:[%s4 + $0x1ec] sm:$0xf]
  %v1028 = vld [vmem:[%s4 + $0x1f0] sm:$0xf]
  %v1029 = vld [vmem:[%s4 + $0x1f4] sm:$0xf]
  %v1030 = vld [vmem:[%s4 + $0x1f8] sm:$0xf]
  %v1031 = vld [vmem:[%s4 + $0x1fc] sm:$0xf]
  %v1032 = vld [vmem:[%s4 + $0x200] sm:$0xf]
  %v1033 = vld [vmem:[%s4 + $0x204] sm:$0xf]
  %v1034 = vld [vmem:[%s4 + $0x208] sm:$0xf]
  %v1035 = vld [vmem:[%s4 + $0x20c] sm:$0xf]
  %v1036 = vld [vmem:[%s4 + $0x210] sm:$0xf]
  %v1037 = vld [vmem:[%s4 + $0x214] sm:$0xf]
  %v1038 = vld [vmem:[%s4 + $0x218] sm:$0xf]
  %v1039 = vld [vmem:[%s4 + $0x21c] sm:$0xf]
  %v1040 = vld [vmem:[%s4 + $0x220] sm:$0xf]
  %v1041 = vld [vmem:[%s4 + $0x224] sm:$0xf]
  %v1042 = vld [vmem:[%s4 + $0x228] sm:$0xf]
  %v1043 = vld [vmem:[%s4 + $0x22c] sm:$0xf]
  %v1044 = vld [vmem:[%s4 + $0x230] sm:$0xf]
  %v1045 = vld [vmem:[%s4 + $0x234] sm:$0xf]
  %v1046 = vld [vmem:[%s4 + $0x238] sm:$0xf]
  %v1047 = vld [vmem:[%s4 + $0x23c] sm:$0xf]
  %v1048 = vld [vmem:[%s4 + $0x240] sm:$0xf]
  %v1049 = vld [vmem:[%s4 + $0x244] sm:$0xf]
  %v1050 = vld [vmem:[%s4 + $0x248] sm:$0xf]
  %v1051 = vld [vmem:[%s4 + $0x24c] sm:$0xf]
  %v1052 = vld [vmem:[%s4 + $0x250] sm:$0xf]
  %v1053 = vld [vmem:[%s4 + $0x254] sm:$0xf]
  %v1054 = vld [vmem:[%s4 + $0x258] sm:$0xf]
  %v1055 = vld [vmem:[%s4 + $0x25c] sm:$0xf]
  %v1056 = vld [vmem:[%s4 + $0x260] sm:$0xf]
  %v1057 = vld [vmem:[%s4 + $0x264] sm:$0xf]
  %v1058 = vld [vmem:[%s4 + $0x268] sm:$0xf]
  %v1059 = vld [vmem:[%s4 + $0x26c] sm:$0xf]
  %v1060 = vld [vmem:[%s4 + $0x270] sm:$0xf]
  %v1061 = vld [vmem:[%s4 + $0x274] sm:$0xf]
  %v1062 = vld [vmem:[%s4 + $0x278] sm:$0xf]
  %v1063 = vld [vmem:[%s4 + $0x27c] sm:$0xf]
  %v1064 = vld [vmem:[%s4 + $0x280] sm:$0xf]
  %v1065 = vld [vmem:[%s4 + $0x284] sm:$0xf]
  %v1066 = vld [vmem:[%s4 + $0x288] sm:$0xf]
  %v1067 = vld [vmem:[%s4 + $0x28c] sm:$0xf]
  %v1068 = vld [vmem:[%s4 + $0x290] sm:$0xf]
  %v1069 = vld [vmem:[%s4 + $0x294] sm:$0xf]
  %v1070 = vld [vmem:[%s4 + $0x298] sm:$0xf]
  %v1071 = vld [vmem:[%s4 + $0x29c] sm:$0xf]
  %v1072 = vld [vmem:[%s4 + $0x2a0] sm:$0xf]
  %v1073 = vld [vmem:[%s4 + $0x2a4] sm:$0xf]
  %v1074 = vld [vmem:[%s4 + $0x2a8] sm:$0xf]
  %v1075 = vld [vmem:[%s4 + $0x2ac] sm:$0xf]
  %v1076 = vld [vmem:[%s4 + $0x2b0] sm:$0xf]
  %v1077 = vld [vmem:[%s4 + $0x2b4] sm:$0xf]
  %v1078 = vld [vmem:[%s4 + $0x2b8] sm:$0xf]
  %v1079 = vld [vmem:[%s4 + $0x2bc] sm:$0xf]
  %v1080 = vld [vmem:[%s4 + $0x2c0] sm:$0xf]
  %v1081 = vld [vmem:[%s4 + $0x2c4] sm:$0xf]
  %v1082 = vld [vmem:[%s4 + $0x2c8] sm:$0xf]
  %v1083 = vld [vmem:[%s4 + $0x2cc] sm:$0xf]
  %v1084 = vld [vmem:[%s4 + $0x2d0] sm:$0xf]
  %v1085 = vld [vmem:[%s4 + $0x2d4] sm:$0xf]
  %v1086 = vld [vmem:[%s4 + $0x2d8] sm:$0xf]
  %v1087 = vld [vmem:[%s4 + $0x2dc] sm:$0xf]
  %v1088 = vld [vmem:[%s4 + $0x2e0] sm:$0xf]
  %v1089 = vld [vmem:[%s4 + $0x2e4] sm:$0xf]
  %v1090 = vld [vmem:[%s4 + $0x2e8] sm:$0xf]
  %v1091 = vld [vmem:[%s4 + $0x2ec] sm:$0xf]
  %v1092 = vld [vmem:[%s4 + $0x2f0] sm:$0xf]
  %v1093 = vld [vmem:[%s4 + $0x2f4] sm:$0xf]
  %v1094 = vld [vmem:[%s4 + $0x2f8] sm:$0xf]
  %v1095 = vld [vmem:[%s4 + $0x2fc] sm:$0xf]
  %v1096 = vld [vmem:[%s4 + $0x300] sm:$0xf]
  %v1097 = vld [vmem:[%s4 + $0x304] sm:$0xf]
  %v1098 = vld [vmem:[%s4 + $0x308] sm:$0xf]
  %v1099 = vld [vmem:[%s4 + $0x30c] sm:$0xf]
  %v1100 = vld [vmem:[%s4 + $0x310] sm:$0xf]
  %v1101 = vld [vmem:[%s4 + $0x314] sm:$0xf]
  %v1102 = vld [vmem:[%s4 + $0x318] sm:$0xf]
  %v1103 = vld [vmem:[%s4 + $0x31c] sm:$0xf]
  %v1104 = vld [vmem:[%s4 + $0x320] sm:$0xf]
  %v1105 = vld [vmem:[%s4 + $0x324] sm:$0xf]
  %v1106 = vld [vmem:[%s4 + $0x328] sm:$0xf]
  %v1107 = vld [vmem:[%s4 + $0x32c] sm:$0xf]
  %v1108 = vld [vmem:[%s4 + $0x330] sm:$0xf]
  %v1109 = vld [vmem:[%s4 + $0x334] sm:$0xf]
  %v1110 = vld [vmem:[%s4 + $0x338] sm:$0xf]
  %v1111 = vld [vmem:[%s4 + $0x33c] sm:$0xf]
  %v1112 = vld [vmem:[%s4 + $0x340] sm:$0xf]
  %v1113 = vld [vmem:[%s4 + $0x344] sm:$0xf]
  %v1114 = vld [vmem:[%s4 + $0x348] sm:$0xf]
  %v1115 = vld [vmem:[%s4 + $0x34c] sm:$0xf]
  %v1116 = vld [vmem:[%s4 + $0x350] sm:$0xf]
  %v1117 = vld [vmem:[%s4 + $0x354] sm:$0xf]
  %v1118 = vld [vmem:[%s4 + $0x358] sm:$0xf]
  %v1119 = vld [vmem:[%s4 + $0x35c] sm:$0xf]
  %v1120 = vld [vmem:[%s4 + $0x360] sm:$0xf]
  %v1121 = vld [vmem:[%s4 + $0x364] sm:$0xf]
  %v1122 = vld [vmem:[%s4 + $0x368] sm:$0xf]
  %v1123 = vld [vmem:[%s4 + $0x36c] sm:$0xf]
  %v1124 = vld [vmem:[%s4 + $0x370] sm:$0xf]
  %v1125 = vld [vmem:[%s4 + $0x374] sm:$0xf]
  %v1126 = vld [vmem:[%s4 + $0x378] sm:$0xf]
  %v1127 = vld [vmem:[%s4 + $0x37c] sm:$0xf]
  %v1128 = vld [vmem:[%s4 + $0x380] sm:$0xf]
  %v1129 = vld [vmem:[%s4 + $0x384] sm:$0xf]
  %v1130 = vld [vmem:[%s4 + $0x388] sm:$0xf]
  %v1131 = vld [vmem:[%s4 + $0x38c] sm:$0xf]
  %v1132 = vld [vmem:[%s4 + $0x390] sm:$0xf]
  %v1133 = vld [vmem:[%s4 + $0x394] sm:$0xf]
  %v1134 = vld [vmem:[%s4 + $0x398] sm:$0xf]
  %v1135 = vld [vmem:[%s4 + $0x39c] sm:$0xf]
  %v1136 = vld [vmem:[%s4 + $0x3a0] sm:$0xf]
  %v1137 = vld [vmem:[%s4 + $0x3a4] sm:$0xf]
  %v1138 = vld [vmem:[%s4 + $0x3a8] sm:$0xf]
  %v1139 = vld [vmem:[%s4 + $0x3ac] sm:$0xf]
  %v1140 = vld [vmem:[%s4 + $0x3b0] sm:$0xf]
  %v1141 = vld [vmem:[%s4 + $0x3b4] sm:$0xf]
  %v1142 = vld [vmem:[%s4 + $0x3b8] sm:$0xf]
  %v1143 = vld [vmem:[%s4 + $0x3bc] sm:$0xf]
  %v1144 = vld [vmem:[%s4 + $0x3c0] sm:$0xf]
  %v1145 = vld [vmem:[%s4 + $0x3c4] sm:$0xf]
  %v1146 = vld [vmem:[%s4 + $0x3c8] sm:$0xf]
  %v1147 = vld [vmem:[%s4 + $0x3cc] sm:$0xf]
  %v1148 = vld [vmem:[%s4 + $0x3d0] sm:$0xf]
  %v1149 = vld [vmem:[%s4 + $0x3d4] sm:$0xf]
  %v1150 = vld [vmem:[%s4 + $0x3d8] sm:$0xf]
  %v1151 = vld [vmem:[%s4 + $0x3dc] sm:$0xf]
  %v1152 = vld [vmem:[%s4 + $0x3e0] sm:$0xf]
  %v1153 = vld [vmem:[%s4 + $0x3e4] sm:$0xf]
  %v1154 = vld [vmem:[%s4 + $0x3e8] sm:$0xf]
  %v1155 = vld [vmem:[%s4 + $0x3ec] sm:$0xf]
  %v1156 = vld [vmem:[%s4 + $0x3f0] sm:$0xf]
  %v1157 = vld [vmem:[%s4 + $0x3f4] sm:$0xf]
  %v1158 = vld [vmem:[%s4 + $0x3f8] sm:$0xf]
  %v1159 = vld [vmem:[%s4 + $0x3fc] sm:$0xf]
  %v1160 = vld [vmem:[%s4 + $0x400] sm:$0xf]
  %v1161 = vld [vmem:[%s4 + $0x404] sm:$0xf]
  %v1162 = vld [vmem:[%s4 + $0x408] sm:$0xf]
  %v1163 = vld [vmem:[%s4 + $0x40c] sm:$0xf]
  %v1164 = vld [vmem:[%s4 + $0x410] sm:$0xf]
  %v1165 = vld [vmem:[%s4 + $0x414] sm:$0xf]
  %v1166 = vld [vmem:[%s4 + $0x418] sm:$0xf]
  %v1167 = vld [vmem:[%s4 + $0x41c] sm:$0xf]
  %v1168 = vld [vmem:[%s4 + $0x420] sm:$0xf]
  %v1169 = vld [vmem:[%s4 + $0x424] sm:$0xf]
  %v1170 = vld [vmem:[%s4 + $0x428] sm:$0xf]
  %v1171 = vld [vmem:[%s4 + $0x42c] sm:$0xf]
  %v1172 = vld [vmem:[%s4 + $0x430] sm:$0xf]
  %v1173 = vld [vmem:[%s4 + $0x434] sm:$0xf]
  %v1174 = vld [vmem:[%s4 + $0x438] sm:$0xf]
  %v1175 = vld [vmem:[%s4 + $0x43c] sm:$0xf]
  %v1176 = vld [vmem:[%s4 + $0x440] sm:$0xf]
  %v1177 = vld [vmem:[%s4 + $0x444] sm:$0xf]
  %v1178 = vld [vmem:[%s4 + $0x448] sm:$0xf]
  %v1179 = vld [vmem:[%s4 + $0x44c] sm:$0xf]
  %v1180 = vld [vmem:[%s4 + $0x450] sm:$0xf]
  %v1181 = vld [vmem:[%s4 + $0x454] sm:$0xf]
  %v1182 = vld [vmem:[%s4 + $0x458] sm:$0xf]
  %v1183 = vld [vmem:[%s4 + $0x45c] sm:$0xf]
  %v1184 = vld [vmem:[%s4 + $0x460] sm:$0xf]
  %v1185 = vld [vmem:[%s4 + $0x464] sm:$0xf]
  %v1186 = vld [vmem:[%s4 + $0x468] sm:$0xf]
  %v1187 = vld [vmem:[%s4 + $0x46c] sm:$0xf]
  %v1188 = vld [vmem:[%s4 + $0x470] sm:$0xf]
  %v1189 = vld [vmem:[%s4 + $0x474] sm:$0xf]
  %v1190 = vld [vmem:[%s4 + $0x478] sm:$0xf]
  %v1191 = vld [vmem:[%s4 + $0x47c] sm:$0xf]
  %v1192 = vld [vmem:[%s4 + $0x480] sm:$0xf]
  %v1193 = vld [vmem:[%s4 + $0x484] sm:$0xf]
  %v1194 = vld [vmem:[%s4 + $0x488] sm:$0xf]
  %v1195 = vld [vmem:[%s4 + $0x48c] sm:$0xf]
  %v1196 = vld [vmem:[%s4 + $0x490] sm:$0xf]
  %v1197 = vld [vmem:[%s4 + $0x494] sm:$0xf]
  %v1198 = vld [vmem:[%s4 + $0x498] sm:$0xf]
  %v1199 = vld [vmem:[%s4 + $0x49c] sm:$0xf]
  %v1200 = vld [vmem:[%s4 + $0x4a0] sm:$0xf]
  %v1201 = vld [vmem:[%s4 + $0x4a4] sm:$0xf]
  %v1202 = vld [vmem:[%s4 + $0x4a8] sm:$0xf]
  %v1203 = vld [vmem:[%s4 + $0x4ac] sm:$0xf]
  %v1204 = vld [vmem:[%s4 + $0x4b0] sm:$0xf]
  %v1205 = vld [vmem:[%s4 + $0x4b4] sm:$0xf]
  %v1206 = vld [vmem:[%s4 + $0x4b8] sm:$0xf]
  %v1207 = vld [vmem:[%s4 + $0x4bc] sm:$0xf]
  %v1208 = vld [vmem:[%s4 + $0x4c0] sm:$0xf]
  %v1209 = vld [vmem:[%s4 + $0x4c4] sm:$0xf]
  %v1210 = vld [vmem:[%s4 + $0x4c8] sm:$0xf]
  %v1211 = vld [vmem:[%s4 + $0x4cc] sm:$0xf]
  %v1212 = vld [vmem:[%s4 + $0x4d0] sm:$0xf]
  %v1213 = vld [vmem:[%s4 + $0x4d4] sm:$0xf]
  %v1214 = vld [vmem:[%s4 + $0x4d8] sm:$0xf]
  %v1215 = vld [vmem:[%s4 + $0x4dc] sm:$0xf]
  %v1216 = vld [vmem:[%s4 + $0x4e0] sm:$0xf]
  %v1217 = vld [vmem:[%s4 + $0x4e4] sm:$0xf]
  %v1218 = vld [vmem:[%s4 + $0x4e8] sm:$0xf]
  %v1219 = vld [vmem:[%s4 + $0x4ec] sm:$0xf]
  %v1220 = vld [vmem:[%s4 + $0x4f0] sm:$0xf]
  %v1221 = vld [vmem:[%s4 + $0x4f4] sm:$0xf]
  %v1222 = vld [vmem:[%s4 + $0x4f8] sm:$0xf]
  %v1223 = vld [vmem:[%s4 + $0x4fc] sm:$0xf]
  %v1224 = vld [vmem:[%s4 + $0x500] sm:$0xf]
  %v1225 = vld [vmem:[%s4 + $0x504] sm:$0xf]
  %v1226 = vld [vmem:[%s4 + $0x508] sm:$0xf]
  %v1227 = vld [vmem:[%s4 + $0x50c] sm:$0xf]
  %v1228 = vld [vmem:[%s4 + $0x510] sm:$0xf]
  %v1229 = vld [vmem:[%s4 + $0x514] sm:$0xf]
  %v1230 = vld [vmem:[%s4 + $0x518] sm:$0xf]
  %v1231 = vld [vmem:[%s4 + $0x51c] sm:$0xf]
  %v1232 = vld [vmem:[%s4 + $0x520] sm:$0xf]
  %v1233 = vld [vmem:[%s4 + $0x524] sm:$0xf]
  %v1234 = vld [vmem:[%s4 + $0x528] sm:$0xf]
  %v1235 = vld [vmem:[%s4 + $0x52c] sm:$0xf]
  %v1236 = vld [vmem:[%s4 + $0x530] sm:$0xf]
  %v1237 = vld [vmem:[%s4 + $0x534] sm:$0xf]
  %v1238 = vld [vmem:[%s4 + $0x538] sm:$0xf]
  %v1239 = vld [vmem:[%s4 + $0x53c] sm:$0xf]
  %v1240 = vld [vmem:[%s4 + $0x540] sm:$0xf]
  %v1241 = vld [vmem:[%s4 + $0x544] sm:$0xf]
  %v1242 = vld [vmem:[%s4 + $0x548] sm:$0xf]
  %v1243 = vld [vmem:[%s4 + $0x54c] sm:$0xf]
  %v1244 = vld [vmem:[%s4 + $0x550] sm:$0xf]
  %v1245 = vld [vmem:[%s4 + $0x554] sm:$0xf]
  %v1246 = vld [vmem:[%s4 + $0x558] sm:$0xf]
  %v1247 = vld [vmem:[%s4 + $0x55c] sm:$0xf]
  %v1248 = vld [vmem:[%s4 + $0x560] sm:$0xf]
  %v1249 = vld [vmem:[%s4 + $0x564] sm:$0xf]
  %v1250 = vld [vmem:[%s4 + $0x568] sm:$0xf]
  %v1251 = vld [vmem:[%s4 + $0x56c] sm:$0xf]
  %v1252 = vld [vmem:[%s4 + $0x570] sm:$0xf]
  %v1253 = vld [vmem:[%s4 + $0x574] sm:$0xf]
  %v1254 = vld [vmem:[%s4 + $0x578] sm:$0xf]
  %v1255 = vld [vmem:[%s4 + $0x57c] sm:$0xf]
  %v1256 = vld [vmem:[%s4 + $0x580] sm:$0xf]
  %v1257 = vld [vmem:[%s4 + $0x584] sm:$0xf]
  %v1258 = vld [vmem:[%s4 + $0x588] sm:$0xf]
  %v1259 = vld [vmem:[%s4 + $0x58c] sm:$0xf]
  %v1260 = vld [vmem:[%s4 + $0x590] sm:$0xf]
  %v1261 = vld [vmem:[%s4 + $0x594] sm:$0xf]
  %v1262 = vld [vmem:[%s4 + $0x598] sm:$0xf]
  %v1263 = vld [vmem:[%s4 + $0x59c] sm:$0xf]
  %v1264 = vld [vmem:[%s4 + $0x5a0] sm:$0xf]
  %v1265 = vld [vmem:[%s4 + $0x5a4] sm:$0xf]
  %v1266 = vld [vmem:[%s4 + $0x5a8] sm:$0xf]
  %v1267 = vld [vmem:[%s4 + $0x5ac] sm:$0xf]
  %v1268 = vld [vmem:[%s4 + $0x5b0] sm:$0xf]
  %v1269 = vld [vmem:[%s4 + $0x5b4] sm:$0xf]
  %v1270 = vld [vmem:[%s4 + $0x5b8] sm:$0xf]
  %v1271 = vld [vmem:[%s4 + $0x5bc] sm:$0xf]
  %v1272 = vld [vmem:[%s4 + $0x5c0] sm:$0xf]
  %v1273 = vld [vmem:[%s4 + $0x5c4] sm:$0xf]
  %v1274 = vld [vmem:[%s4 + $0x5c8] sm:$0xf]
  %v1275 = vld [vmem:[%s4 + $0x5cc] sm:$0xf]
  %v1276 = vld [vmem:[%s4 + $0x5d0] sm:$0xf]
  %v1277 = vld [vmem:[%s4 + $0x5d4] sm:$0xf]
  %v1278 = vld [vmem:[%s4 + $0x5d8] sm:$0xf]
  %v1279 = vld [vmem:[%s4 + $0x5dc] sm:$0xf]
  %v1280 = vld [vmem:[%s4 + $0x5e0] sm:$0xf]
  %v1281 = vld [vmem:[%s4 + $0x5e4] sm:$0xf]
  %v1282 = vld [vmem:[%s4 + $0x5e8] sm:$0xf]
  %v1283 = vld [vmem:[%s4 + $0x5ec] sm:$0xf]
  %v1284 = vld [vmem:[%s4 + $0x5f0] sm:$0xf]
  %v1285 = vld [vmem:[%s4 + $0x5f4] sm:$0xf]
  %v1286 = vld [vmem:[%s4 + $0x5f8] sm:$0xf]
  %v1287 = vld [vmem:[%s4 + $0x5fc] sm:$0xf]
  %v1288 = vld [vmem:[%s4 + $0x600] sm:$0xf]
  %v1289 = vld [vmem:[%s4 + $0x604] sm:$0xf]
  %v1290 = vld [vmem:[%s4 + $0x608] sm:$0xf]
  %v1291 = vld [vmem:[%s4 + $0x60c] sm:$0xf]
  %v1292 = vld [vmem:[%s4 + $0x610] sm:$0xf]
  %v1293 = vld [vmem:[%s4 + $0x614] sm:$0xf]
  %v1294 = vld [vmem:[%s4 + $0x618] sm:$0xf]
  %v1295 = vld [vmem:[%s4 + $0x61c] sm:$0xf]
  %v1296 = vld [vmem:[%s4 + $0x620] sm:$0xf]
  %v1297 = vld [vmem:[%s4 + $0x624] sm:$0xf]
  %v1298 = vld [vmem:[%s4 + $0x628] sm:$0xf]
  %v1299 = vld [vmem:[%s4 + $0x62c] sm:$0xf]
  %v1300 = vld [vmem:[%s4 + $0x630] sm:$0xf]
  %v1301 = vld [vmem:[%s4 + $0x634] sm:$0xf]
  %v1302 = vld [vmem:[%s4 + $0x638] sm:$0xf]
  %v1303 = vld [vmem:[%s4 + $0x63c] sm:$0xf]
  %v1304 = vld [vmem:[%s4 + $0x640] sm:$0xf]
  %v1305 = vld [vmem:[%s4 + $0x644] sm:$0xf]
  %v1306 = vld [vmem:[%s4 + $0x648] sm:$0xf]
  %v1307 = vld [vmem:[%s4 + $0x64c] sm:$0xf]
  %v1308 = vld [vmem:[%s4 + $0x650] sm:$0xf]
  %v1309 = vld [vmem:[%s4 + $0x654] sm:$0xf]
  %v1310 = vld [vmem:[%s4 + $0x658] sm:$0xf]
  %v1311 = vld [vmem:[%s4 + $0x65c] sm:$0xf]
  %v1312 = vld [vmem:[%s4 + $0x660] sm:$0xf]
  %v1313 = vld [vmem:[%s4 + $0x664] sm:$0xf]
  %v1314 = vld [vmem:[%s4 + $0x668] sm:$0xf]
  %v1315 = vld [vmem:[%s4 + $0x66c] sm:$0xf]
  %v1316 = vld [vmem:[%s4 + $0x670] sm:$0xf]
  %v1317 = vld [vmem:[%s4 + $0x674] sm:$0xf]
  %v1318 = vld [vmem:[%s4 + $0x678] sm:$0xf]
  %v1319 = vld [vmem:[%s4 + $0x67c] sm:$0xf]
  %v1320 = vld [vmem:[%s4 + $0x680] sm:$0xf]
  %v1321 = vld [vmem:[%s4 + $0x684] sm:$0xf]
  %v1322 = vld [vmem:[%s4 + $0x688] sm:$0xf]
  %v1323 = vld [vmem:[%s4 + $0x68c] sm:$0xf]
  %v1324 = vld [vmem:[%s4 + $0x690] sm:$0xf]
  %v1325 = vld [vmem:[%s4 + $0x694] sm:$0xf]
  %v1326 = vld [vmem:[%s4 + $0x698] sm:$0xf]
  %v1327 = vld [vmem:[%s4 + $0x69c] sm:$0xf]
  %v1328 = vld [vmem:[%s4 + $0x6a0] sm:$0xf]
  %v1329 = vld [vmem:[%s4 + $0x6a4] sm:$0xf]
  %v1330 = vld [vmem:[%s4 + $0x6a8] sm:$0xf]
  %v1331 = vld [vmem:[%s4 + $0x6ac] sm:$0xf]
  %v1332 = vld [vmem:[%s4 + $0x6b0] sm:$0xf]
  %v1333 = vld [vmem:[%s4 + $0x6b4] sm:$0xf]
  %v1334 = vld [vmem:[%s4 + $0x6b8] sm:$0xf]
  %v1335 = vld [vmem:[%s4 + $0x6bc] sm:$0xf]
  %v1336 = vld [vmem:[%s4 + $0x6c0] sm:$0xf]
  %v1337 = vld [vmem:[%s4 + $0x6c4] sm:$0xf]
  %v1338 = vld [vmem:[%s4 + $0x6c8] sm:$0xf]
  %v1339 = vld [vmem:[%s4 + $0x6cc] sm:$0xf]
  %v1340 = vld [vmem:[%s4 + $0x6d0] sm:$0xf]
  %v1341 = vld [vmem:[%s4 + $0x6d4] sm:$0xf]
  %v1342 = vld [vmem:[%s4 + $0x6d8] sm:$0xf]
  %v1343 = vld [vmem:[%s4 + $0x6dc] sm:$0xf]
  %v1344 = vld [vmem:[%s4 + $0x6e0] sm:$0xf]
  %v1345 = vld [vmem:[%s4 + $0x6e4] sm:$0xf]
  %v1346 = vld [vmem:[%s4 + $0x6e8] sm:$0xf]
  %v1347 = vld [vmem:[%s4 + $0x6ec] sm:$0xf]
  %v1348 = vld [vmem:[%s4 + $0x6f0] sm:$0xf]
  %v1349 = vld [vmem:[%s4 + $0x6f4] sm:$0xf]
  %v1350 = vld [vmem:[%s4 + $0x6f8] sm:$0xf]
  %v1351 = vld [vmem:[%s4 + $0x6fc] sm:$0xf]
  %v1352 = vld [vmem:[%s4 + $0x700] sm:$0xf]
  %v1353 = vld [vmem:[%s4 + $0x704] sm:$0xf]
  %v1354 = vld [vmem:[%s4 + $0x708] sm:$0xf]
  %v1355 = vld [vmem:[%s4 + $0x70c] sm:$0xf]
  %v1356 = vld [vmem:[%s4 + $0x710] sm:$0xf]
  %v1357 = vld [vmem:[%s4 + $0x714] sm:$0xf]
  %v1358 = vld [vmem:[%s4 + $0x718] sm:$0xf]
  %v1359 = vld [vmem:[%s4 + $0x71c] sm:$0xf]
  %v1360 = vld [vmem:[%s4 + $0x720] sm:$0xf]
  %v1361 = vld [vmem:[%s4 + $0x724] sm:$0xf]
  %v1362 = vld [vmem:[%s4 + $0x728] sm:$0xf]
  %v1363 = vld [vmem:[%s4 + $0x72c] sm:$0xf]
  %v1364 = vld [vmem:[%s4 + $0x730] sm:$0xf]
  %v1365 = vld [vmem:[%s4 + $0x734] sm:$0xf]
  %v1366 = vld [vmem:[%s4 + $0x738] sm:$0xf]
  %v1367 = vld [vmem:[%s4 + $0x73c] sm:$0xf]
  %v1368 = vld [vmem:[%s4 + $0x740] sm:$0xf]
  %v1369 = vld [vmem:[%s4 + $0x744] sm:$0xf]
  %v1370 = vld [vmem:[%s4 + $0x748] sm:$0xf]
  %v1371 = vld [vmem:[%s4 + $0x74c] sm:$0xf]
  %v1372 = vld [vmem:[%s4 + $0x750] sm:$0xf]
  %v1373 = vld [vmem:[%s4 + $0x754] sm:$0xf]
  %v1374 = vld [vmem:[%s4 + $0x758] sm:$0xf]
  %v1375 = vld [vmem:[%s4 + $0x75c] sm:$0xf]
  %v1376 = vld [vmem:[%s4 + $0x760] sm:$0xf]
  %v1377 = vld [vmem:[%s4 + $0x764] sm:$0xf]
  %v1378 = vld [vmem:[%s4 + $0x768] sm:$0xf]
  %v1379 = vld [vmem:[%s4 + $0x76c] sm:$0xf]
  %v1380 = vld [vmem:[%s4 + $0x770] sm:$0xf]
  %v1381 = vld [vmem:[%s4 + $0x774] sm:$0xf]
  %v1382 = vld [vmem:[%s4 + $0x778] sm:$0xf]
  %v1383 = vld [vmem:[%s4 + $0x77c] sm:$0xf]
  %v1384 = vld [vmem:[%s4 + $0x780] sm:$0xf]
  %v1385 = vld [vmem:[%s4 + $0x784] sm:$0xf]
  %v1386 = vld [vmem:[%s4 + $0x788] sm:$0xf]
  %v1387 = vld [vmem:[%s4 + $0x78c] sm:$0xf]
  %v1388 = vld [vmem:[%s4 + $0x790] sm:$0xf]
  %v1389 = vld [vmem:[%s4 + $0x794] sm:$0xf]
  %v1390 = vld [vmem:[%s4 + $0x798] sm:$0xf]
  %v1391 = vld [vmem:[%s4 + $0x79c] sm:$0xf]
  %v1392 = vld [vmem:[%s4 + $0x7a0] sm:$0xf]
  %v1393 = vld [vmem:[%s4 + $0x7a4] sm:$0xf]
  %v1394 = vld [vmem:[%s4 + $0x7a8] sm:$0xf]
  %v1395 = vld [vmem:[%s4 + $0x7ac] sm:$0xf]
  %v1396 = vld [vmem:[%s4 + $0x7b0] sm:$0xf]
  %v1397 = vld [vmem:[%s4 + $0x7b4] sm:$0xf]
  %v1398 = vld [vmem:[%s4 + $0x7b8] sm:$0xf]
  %v1399 = vld [vmem:[%s4 + $0x7bc] sm:$0xf]
  %v1400 = vld [vmem:[%s4 + $0x7c0] sm:$0xf]
  %v1401 = vld [vmem:[%s4 + $0x7c4] sm:$0xf]
  %v1402 = vld [vmem:[%s4 + $0x7c8] sm:$0xf]
  %v1403 = vld [vmem:[%s4 + $0x7cc] sm:$0xf]
  %v1404 = vld [vmem:[%s4 + $0x7d0] sm:$0xf]
  %v1405 = vld [vmem:[%s4 + $0x7d4] sm:$0xf]
  %v1406 = vld [vmem:[%s4 + $0x7d8] sm:$0xf]
  %v1407 = vld [vmem:[%s4 + $0x7dc] sm:$0xf]
  %v1408 = vld [vmem:[%s4 + $0x7e0] sm:$0xf]
  %v1409 = vld [vmem:[%s4 + $0x7e4] sm:$0xf]
  %v1410 = vld [vmem:[%s4 + $0x7e8] sm:$0xf]
  %v1411 = vld [vmem:[%s4 + $0x7ec] sm:$0xf]
  %v1412 = vld [vmem:[%s4 + $0x7f0] sm:$0xf]
  %v1413 = vld [vmem:[%s4 + $0x7f4] sm:$0xf]
  %v1414 = vld [vmem:[%s4 + $0x7f8] sm:$0xf]
  %v1415 = vld [vmem:[%s4 + $0x7fc] sm:$0xf]
  %v1416 = vld [vmem:[%s5] sm:$0x1]
  %v1418 = vlaneseq
  %v1419 = vshrl.u32 %v1418, 7
  %v1420 = vsub.s32 0, %v1419
  %v1421 = vrot.slane %v1416, %v1420
  %v1935 = vunpack.c.l.b16 %v904
  %v1936 = vunpack.c.l.b16 %v905
  %v1937 = vunpack.c.l.b16 %v906
  %v1938 = vunpack.c.l.b16 %v907
  %v1939 = vunpack.c.l.b16 %v908
  %v1940 = vunpack.c.l.b16 %v909
  %v1941 = vunpack.c.l.b16 %v910
  %v1942 = vunpack.c.l.b16 %v911
  %v1943 = vunpack.c.l.b16 %v912
  %v1944 = vunpack.c.l.b16 %v913
  %v1945 = vunpack.c.l.b16 %v914
  %v1946 = vunpack.c.l.b16 %v915
  %v1947 = vunpack.c.l.b16 %v916
  %v1948 = vunpack.c.l.b16 %v917
  %v1949 = vunpack.c.l.b16 %v918
  %v1950 = vunpack.c.l.b16 %v919
  %v1951 = vunpack.c.l.b16 %v920
  %v1952 = vunpack.c.l.b16 %v921
  %v1953 = vunpack.c.l.b16 %v922
  %v1954 = vunpack.c.l.b16 %v923
  %v1955 = vunpack.c.l.b16 %v924
  %v1956 = vunpack.c.l.b16 %v925
  %v1957 = vunpack.c.l.b16 %v926
  %v1958 = vunpack.c.l.b16 %v927
  %v1959 = vunpack.c.l.b16 %v928
  %v1960 = vunpack.c.l.b16 %v929
  %v1961 = vunpack.c.l.b16 %v930
  %v1962 = vunpack.c.l.b16 %v931
  %v1963 = vunpack.c.l.b16 %v932
  %v1964 = vunpack.c.l.b16 %v933
  %v1965 = vunpack.c.l.b16 %v934
  %v1966 = vunpack.c.l.b16 %v935
  %v1967 = vunpack.c.l.b16 %v936
  %v1968 = vunpack.c.l.b16 %v937
  %v1969 = vunpack.c.l.b16 %v938
  %v1970 = vunpack.c.l.b16 %v939
  %v1971 = vunpack.c.l.b16 %v940
  %v1972 = vunpack.c.l.b16 %v941
  %v1973 = vunpack.c.l.b16 %v942
  %v1974 = vunpack.c.l.b16 %v943
  %v1975 = vunpack.c.l.b16 %v944
  %v1976 = vunpack.c.l.b16 %v945
  %v1977 = vunpack.c.l.b16 %v946
  %v1978 = vunpack.c.l.b16 %v947
  %v1979 = vunpack.c.l.b16 %v948
  %v1980 = vunpack.c.l.b16 %v949
  %v1981 = vunpack.c.l.b16 %v950
  %v1982 = vunpack.c.l.b16 %v951
  %v1983 = vunpack.c.l.b16 %v952
  %v1984 = vunpack.c.l.b16 %v953
  %v1985 = vunpack.c.l.b16 %v954
  %v1986 = vunpack.c.l.b16 %v955
  %v1987 = vunpack.c.l.b16 %v956
  %v1988 = vunpack.c.l.b16 %v957
  %v1989 = vunpack.c.l.b16 %v958
  %v1990 = vunpack.c.l.b16 %v959
  %v1991 = vunpack.c.l.b16 %v960
  %v1992 = vunpack.c.l.b16 %v961
  %v1993 = vunpack.c.l.b16 %v962
  %v1994 = vunpack.c.l.b16 %v963
  %v1995 = vunpack.c.l.b16 %v964
  %v1996 = vunpack.c.l.b16 %v965
  %v1997 = vunpack.c.l.b16 %v966
  %v1998 = vunpack.c.l.b16 %v967
  %v1999 = vunpack.c.l.b16 %v968
  %v2000 = vunpack.c.l.b16 %v969
  %v2001 = vunpack.c.l.b16 %v970
  %v2002 = vunpack.c.l.b16 %v971
  %v2003 = vunpack.c.l.b16 %v972
  %v2004 = vunpack.c.l.b16 %v973
  %v2005 = vunpack.c.l.b16 %v974
  %v2006 = vunpack.c.l.b16 %v975
  %v2007 = vunpack.c.l.b16 %v976
  %v2008 = vunpack.c.l.b16 %v977
  %v2009 = vunpack.c.l.b16 %v978
  %v2010 = vunpack.c.l.b16 %v979
  %v2011 = vunpack.c.l.b16 %v980
  %v2012 = vunpack.c.l.b16 %v981
  %v2013 = vunpack.c.l.b16 %v982
  %v2014 = vunpack.c.l.b16 %v983
  %v2015 = vunpack.c.l.b16 %v984
  %v2016 = vunpack.c.l.b16 %v985
  %v2017 = vunpack.c.l.b16 %v986
  %v2018 = vunpack.c.l.b16 %v987
  %v2019 = vunpack.c.l.b16 %v988
  %v2020 = vunpack.c.l.b16 %v989
  %v2021 = vunpack.c.l.b16 %v990
  %v2022 = vunpack.c.l.b16 %v991
  %v2023 = vunpack.c.l.b16 %v992
  %v2024 = vunpack.c.l.b16 %v993
  %v2025 = vunpack.c.l.b16 %v994
  %v2026 = vunpack.c.l.b16 %v995
  %v2027 = vunpack.c.l.b16 %v996
  %v2028 = vunpack.c.l.b16 %v997
  %v2029 = vunpack.c.l.b16 %v998
  %v2030 = vunpack.c.l.b16 %v999
  %v2031 = vunpack.c.l.b16 %v1000
  %v2032 = vunpack.c.l.b16 %v1001
  %v2033 = vunpack.c.l.b16 %v1002
  %v2034 = vunpack.c.l.b16 %v1003
  %v2035 = vunpack.c.l.b16 %v1004
  %v2036 = vunpack.c.l.b16 %v1005
  %v2037 = vunpack.c.l.b16 %v1006
  %v2038 = vunpack.c.l.b16 %v1007
  %v2039 = vunpack.c.l.b16 %v1008
  %v2040 = vunpack.c.l.b16 %v1009
  %v2041 = vunpack.c.l.b16 %v1010
  %v2042 = vunpack.c.l.b16 %v1011
  %v2043 = vunpack.c.l.b16 %v1012
  %v2044 = vunpack.c.l.b16 %v1013
  %v2045 = vunpack.c.l.b16 %v1014
  %v2046 = vunpack.c.l.b16 %v1015
  %v2047 = vunpack.c.l.b16 %v1016
  %v2048 = vunpack.c.l.b16 %v1017
  %v2049 = vunpack.c.l.b16 %v1018
  %v2050 = vunpack.c.l.b16 %v1019
  %v2051 = vunpack.c.l.b16 %v1020
  %v2052 = vunpack.c.l.b16 %v1021
  %v2053 = vunpack.c.l.b16 %v1022
  %v2054 = vunpack.c.l.b16 %v1023
  %v2055 = vunpack.c.l.b16 %v1024
  %v2056 = vunpack.c.l.b16 %v1025
  %v2057 = vunpack.c.l.b16 %v1026
  %v2058 = vunpack.c.l.b16 %v1027
  %v2059 = vunpack.c.l.b16 %v1028
  %v2060 = vunpack.c.l.b16 %v1029
  %v2061 = vunpack.c.l.b16 %v1030
  %v2062 = vunpack.c.l.b16 %v1031
  %v2063 = vunpack.c.l.b16 %v1032
  %v2064 = vunpack.c.l.b16 %v1033
  %v2065 = vunpack.c.l.b16 %v1034
  %v2066 = vunpack.c.l.b16 %v1035
  %v2067 = vunpack.c.l.b16 %v1036
  %v2068 = vunpack.c.l.b16 %v1037
  %v2069 = vunpack.c.l.b16 %v1038
  %v2070 = vunpack.c.l.b16 %v1039
  %v2071 = vunpack.c.l.b16 %v1040
  %v2072 = vunpack.c.l.b16 %v1041
  %v2073 = vunpack.c.l.b16 %v1042
  %v2074 = vunpack.c.l.b16 %v1043
  %v2075 = vunpack.c.l.b16 %v1044
  %v2076 = vunpack.c.l.b16 %v1045
  %v2077 = vunpack.c.l.b16 %v1046
  %v2078 = vunpack.c.l.b16 %v1047
  %v2079 = vunpack.c.l.b16 %v1048
  %v2080 = vunpack.c.l.b16 %v1049
  %v2081 = vunpack.c.l.b16 %v1050
  %v2082 = vunpack.c.l.b16 %v1051
  %v2083 = vunpack.c.l.b16 %v1052
  %v2084 = vunpack.c.l.b16 %v1053
  %v2085 = vunpack.c.l.b16 %v1054
  %v2086 = vunpack.c.l.b16 %v1055
  %v2087 = vunpack.c.l.b16 %v1056
  %v2088 = vunpack.c.l.b16 %v1057
  %v2089 = vunpack.c.l.b16 %v1058
  %v2090 = vunpack.c.l.b16 %v1059
  %v2091 = vunpack.c.l.b16 %v1060
  %v2092 = vunpack.c.l.b16 %v1061
  %v2093 = vunpack.c.l.b16 %v1062
  %v2094 = vunpack.c.l.b16 %v1063
  %v2095 = vunpack.c.l.b16 %v1064
  %v2096 = vunpack.c.l.b16 %v1065
  %v2097 = vunpack.c.l.b16 %v1066
  %v2098 = vunpack.c.l.b16 %v1067
  %v2099 = vunpack.c.l.b16 %v1068
  %v2100 = vunpack.c.l.b16 %v1069
  %v2101 = vunpack.c.l.b16 %v1070
  %v2102 = vunpack.c.l.b16 %v1071
  %v2103 = vunpack.c.l.b16 %v1072
  %v2104 = vunpack.c.l.b16 %v1073
  %v2105 = vunpack.c.l.b16 %v1074
  %v2106 = vunpack.c.l.b16 %v1075
  %v2107 = vunpack.c.l.b16 %v1076
  %v2108 = vunpack.c.l.b16 %v1077
  %v2109 = vunpack.c.l.b16 %v1078
  %v2110 = vunpack.c.l.b16 %v1079
  %v2111 = vunpack.c.l.b16 %v1080
  %v2112 = vunpack.c.l.b16 %v1081
  %v2113 = vunpack.c.l.b16 %v1082
  %v2114 = vunpack.c.l.b16 %v1083
  %v2115 = vunpack.c.l.b16 %v1084
  %v2116 = vunpack.c.l.b16 %v1085
  %v2117 = vunpack.c.l.b16 %v1086
  %v2118 = vunpack.c.l.b16 %v1087
  %v2119 = vunpack.c.l.b16 %v1088
  %v2120 = vunpack.c.l.b16 %v1089
  %v2121 = vunpack.c.l.b16 %v1090
  %v2122 = vunpack.c.l.b16 %v1091
  %v2123 = vunpack.c.l.b16 %v1092
  %v2124 = vunpack.c.l.b16 %v1093
  %v2125 = vunpack.c.l.b16 %v1094
  %v2126 = vunpack.c.l.b16 %v1095
  %v2127 = vunpack.c.l.b16 %v1096
  %v2128 = vunpack.c.l.b16 %v1097
  %v2129 = vunpack.c.l.b16 %v1098
  %v2130 = vunpack.c.l.b16 %v1099
  %v2131 = vunpack.c.l.b16 %v1100
  %v2132 = vunpack.c.l.b16 %v1101
  %v2133 = vunpack.c.l.b16 %v1102
  %v2134 = vunpack.c.l.b16 %v1103
  %v2135 = vunpack.c.l.b16 %v1104
  %v2136 = vunpack.c.l.b16 %v1105
  %v2137 = vunpack.c.l.b16 %v1106
  %v2138 = vunpack.c.l.b16 %v1107
  %v2139 = vunpack.c.l.b16 %v1108
  %v2140 = vunpack.c.l.b16 %v1109
  %v2141 = vunpack.c.l.b16 %v1110
  %v2142 = vunpack.c.l.b16 %v1111
  %v2143 = vunpack.c.l.b16 %v1112
  %v2144 = vunpack.c.l.b16 %v1113
  %v2145 = vunpack.c.l.b16 %v1114
  %v2146 = vunpack.c.l.b16 %v1115
  %v2147 = vunpack.c.l.b16 %v1116
  %v2148 = vunpack.c.l.b16 %v1117
  %v2149 = vunpack.c.l.b16 %v1118
  %v2150 = vunpack.c.l.b16 %v1119
  %v2151 = vunpack.c.l.b16 %v1120
  %v2152 = vunpack.c.l.b16 %v1121
  %v2153 = vunpack.c.l.b16 %v1122
  %v2154 = vunpack.c.l.b16 %v1123
  %v2155 = vunpack.c.l.b16 %v1124
  %v2156 = vunpack.c.l.b16 %v1125
  %v2157 = vunpack.c.l.b16 %v1126
  %v2158 = vunpack.c.l.b16 %v1127
  %v2159 = vunpack.c.l.b16 %v1128
  %v2160 = vunpack.c.l.b16 %v1129
  %v2161 = vunpack.c.l.b16 %v1130
  %v2162 = vunpack.c.l.b16 %v1131
  %v2163 = vunpack.c.l.b16 %v1132
  %v2164 = vunpack.c.l.b16 %v1133
  %v2165 = vunpack.c.l.b16 %v1134
  %v2166 = vunpack.c.l.b16 %v1135
  %v2167 = vunpack.c.l.b16 %v1136
  %v2168 = vunpack.c.l.b16 %v1137
  %v2169 = vunpack.c.l.b16 %v1138
  %v2170 = vunpack.c.l.b16 %v1139
  %v2171 = vunpack.c.l.b16 %v1140
  %v2172 = vunpack.c.l.b16 %v1141
  %v2173 = vunpack.c.l.b16 %v1142
  %v2174 = vunpack.c.l.b16 %v1143
  %v2175 = vunpack.c.l.b16 %v1144
  %v2176 = vunpack.c.l.b16 %v1145
  %v2177 = vunpack.c.l.b16 %v1146
  %v2178 = vunpack.c.l.b16 %v1147
  %v2179 = vunpack.c.l.b16 %v1148
  %v2180 = vunpack.c.l.b16 %v1149
  %v2181 = vunpack.c.l.b16 %v1150
  %v2182 = vunpack.c.l.b16 %v1151
  %v2183 = vunpack.c.l.b16 %v1152
  %v2184 = vunpack.c.l.b16 %v1153
  %v2185 = vunpack.c.l.b16 %v1154
  %v2186 = vunpack.c.l.b16 %v1155
  %v2187 = vunpack.c.l.b16 %v1156
  %v2188 = vunpack.c.l.b16 %v1157
  %v2189 = vunpack.c.l.b16 %v1158
  %v2190 = vunpack.c.l.b16 %v1159
  %v2191 = vunpack.c.l.b16 %v1160
  %v2192 = vunpack.c.l.b16 %v1161
  %v2193 = vunpack.c.l.b16 %v1162
  %v2194 = vunpack.c.l.b16 %v1163
  %v2195 = vunpack.c.l.b16 %v1164
  %v2196 = vunpack.c.l.b16 %v1165
  %v2197 = vunpack.c.l.b16 %v1166
  %v2198 = vunpack.c.l.b16 %v1167
  %v2199 = vunpack.c.l.b16 %v1168
  %v2200 = vunpack.c.l.b16 %v1169
  %v2201 = vunpack.c.l.b16 %v1170
  %v2202 = vunpack.c.l.b16 %v1171
  %v2203 = vunpack.c.l.b16 %v1172
  %v2204 = vunpack.c.l.b16 %v1173
  %v2205 = vunpack.c.l.b16 %v1174
  %v2206 = vunpack.c.l.b16 %v1175
  %v2207 = vunpack.c.l.b16 %v1176
  %v2208 = vunpack.c.l.b16 %v1177
  %v2209 = vunpack.c.l.b16 %v1178
  %v2210 = vunpack.c.l.b16 %v1179
  %v2211 = vunpack.c.l.b16 %v1180
  %v2212 = vunpack.c.l.b16 %v1181
  %v2213 = vunpack.c.l.b16 %v1182
  %v2214 = vunpack.c.l.b16 %v1183
  %v2215 = vunpack.c.l.b16 %v1184
  %v2216 = vunpack.c.l.b16 %v1185
  %v2217 = vunpack.c.l.b16 %v1186
  %v2218 = vunpack.c.l.b16 %v1187
  %v2219 = vunpack.c.l.b16 %v1188
  %v2220 = vunpack.c.l.b16 %v1189
  %v2221 = vunpack.c.l.b16 %v1190
  %v2222 = vunpack.c.l.b16 %v1191
  %v2223 = vunpack.c.l.b16 %v1192
  %v2224 = vunpack.c.l.b16 %v1193
  %v2225 = vunpack.c.l.b16 %v1194
  %v2226 = vunpack.c.l.b16 %v1195
  %v2227 = vunpack.c.l.b16 %v1196
  %v2228 = vunpack.c.l.b16 %v1197
  %v2229 = vunpack.c.l.b16 %v1198
  %v2230 = vunpack.c.l.b16 %v1199
  %v2231 = vunpack.c.l.b16 %v1200
  %v2232 = vunpack.c.l.b16 %v1201
  %v2233 = vunpack.c.l.b16 %v1202
  %v2234 = vunpack.c.l.b16 %v1203
  %v2235 = vunpack.c.l.b16 %v1204
  %v2236 = vunpack.c.l.b16 %v1205
  %v2237 = vunpack.c.l.b16 %v1206
  %v2238 = vunpack.c.l.b16 %v1207
  %v2239 = vunpack.c.l.b16 %v1208
  %v2240 = vunpack.c.l.b16 %v1209
  %v2241 = vunpack.c.l.b16 %v1210
  %v2242 = vunpack.c.l.b16 %v1211
  %v2243 = vunpack.c.l.b16 %v1212
  %v2244 = vunpack.c.l.b16 %v1213
  %v2245 = vunpack.c.l.b16 %v1214
  %v2246 = vunpack.c.l.b16 %v1215
  %v2247 = vunpack.c.l.b16 %v1216
  %v2248 = vunpack.c.l.b16 %v1217
  %v2249 = vunpack.c.l.b16 %v1218
  %v2250 = vunpack.c.l.b16 %v1219
  %v2251 = vunpack.c.l.b16 %v1220
  %v2252 = vunpack.c.l.b16 %v1221
  %v2253 = vunpack.c.l.b16 %v1222
  %v2254 = vunpack.c.l.b16 %v1223
  %v2255 = vunpack.c.l.b16 %v1224
  %v2256 = vunpack.c.l.b16 %v1225
  %v2257 = vunpack.c.l.b16 %v1226
  %v2258 = vunpack.c.l.b16 %v1227
  %v2259 = vunpack.c.l.b16 %v1228
  %v2260 = vunpack.c.l.b16 %v1229
  %v2261 = vunpack.c.l.b16 %v1230
  %v2262 = vunpack.c.l.b16 %v1231
  %v2263 = vunpack.c.l.b16 %v1232
  %v2264 = vunpack.c.l.b16 %v1233
  %v2265 = vunpack.c.l.b16 %v1234
  %v2266 = vunpack.c.l.b16 %v1235
  %v2267 = vunpack.c.l.b16 %v1236
  %v2268 = vunpack.c.l.b16 %v1237
  %v2269 = vunpack.c.l.b16 %v1238
  %v2270 = vunpack.c.l.b16 %v1239
  %v2271 = vunpack.c.l.b16 %v1240
  %v2272 = vunpack.c.l.b16 %v1241
  %v2273 = vunpack.c.l.b16 %v1242
  %v2274 = vunpack.c.l.b16 %v1243
  %v2275 = vunpack.c.l.b16 %v1244
  %v2276 = vunpack.c.l.b16 %v1245
  %v2277 = vunpack.c.l.b16 %v1246
  %v2278 = vunpack.c.l.b16 %v1247
  %v2279 = vunpack.c.l.b16 %v1248
  %v2280 = vunpack.c.l.b16 %v1249
  %v2281 = vunpack.c.l.b16 %v1250
  %v2282 = vunpack.c.l.b16 %v1251
  %v2283 = vunpack.c.l.b16 %v1252
  %v2284 = vunpack.c.l.b16 %v1253
  %v2285 = vunpack.c.l.b16 %v1254
  %v2286 = vunpack.c.l.b16 %v1255
  %v2287 = vunpack.c.l.b16 %v1256
  %v2288 = vunpack.c.l.b16 %v1257
  %v2289 = vunpack.c.l.b16 %v1258
  %v2290 = vunpack.c.l.b16 %v1259
  %v2291 = vunpack.c.l.b16 %v1260
  %v2292 = vunpack.c.l.b16 %v1261
  %v2293 = vunpack.c.l.b16 %v1262
  %v2294 = vunpack.c.l.b16 %v1263
  %v2295 = vunpack.c.l.b16 %v1264
  %v2296 = vunpack.c.l.b16 %v1265
  %v2297 = vunpack.c.l.b16 %v1266
  %v2298 = vunpack.c.l.b16 %v1267
  %v2299 = vunpack.c.l.b16 %v1268
  %v2300 = vunpack.c.l.b16 %v1269
  %v2301 = vunpack.c.l.b16 %v1270
  %v2302 = vunpack.c.l.b16 %v1271
  %v2303 = vunpack.c.l.b16 %v1272
  %v2304 = vunpack.c.l.b16 %v1273
  %v2305 = vunpack.c.l.b16 %v1274
  %v2306 = vunpack.c.l.b16 %v1275
  %v2307 = vunpack.c.l.b16 %v1276
  %v2308 = vunpack.c.l.b16 %v1277
  %v2309 = vunpack.c.l.b16 %v1278
  %v2310 = vunpack.c.l.b16 %v1279
  %v2311 = vunpack.c.l.b16 %v1280
  %v2312 = vunpack.c.l.b16 %v1281
  %v2313 = vunpack.c.l.b16 %v1282
  %v2314 = vunpack.c.l.b16 %v1283
  %v2315 = vunpack.c.l.b16 %v1284
  %v2316 = vunpack.c.l.b16 %v1285
  %v2317 = vunpack.c.l.b16 %v1286
  %v2318 = vunpack.c.l.b16 %v1287
  %v2319 = vunpack.c.l.b16 %v1288
  %v2320 = vunpack.c.l.b16 %v1289
  %v2321 = vunpack.c.l.b16 %v1290
  %v2322 = vunpack.c.l.b16 %v1291
  %v2323 = vunpack.c.l.b16 %v1292
  %v2324 = vunpack.c.l.b16 %v1293
  %v2325 = vunpack.c.l.b16 %v1294
  %v2326 = vunpack.c.l.b16 %v1295
  %v2327 = vunpack.c.l.b16 %v1296
  %v2328 = vunpack.c.l.b16 %v1297
  %v2329 = vunpack.c.l.b16 %v1298
  %v2330 = vunpack.c.l.b16 %v1299
  %v2331 = vunpack.c.l.b16 %v1300
  %v2332 = vunpack.c.l.b16 %v1301
  %v2333 = vunpack.c.l.b16 %v1302
  %v2334 = vunpack.c.l.b16 %v1303
  %v2335 = vunpack.c.l.b16 %v1304
  %v2336 = vunpack.c.l.b16 %v1305
  %v2337 = vunpack.c.l.b16 %v1306
  %v2338 = vunpack.c.l.b16 %v1307
  %v2339 = vunpack.c.l.b16 %v1308
  %v2340 = vunpack.c.l.b16 %v1309
  %v2341 = vunpack.c.l.b16 %v1310
  %v2342 = vunpack.c.l.b16 %v1311
  %v2343 = vunpack.c.l.b16 %v1312
  %v2344 = vunpack.c.l.b16 %v1313
  %v2345 = vunpack.c.l.b16 %v1314
  %v2346 = vunpack.c.l.b16 %v1315
  %v2347 = vunpack.c.l.b16 %v1316
  %v2348 = vunpack.c.l.b16 %v1317
  %v2349 = vunpack.c.l.b16 %v1318
  %v2350 = vunpack.c.l.b16 %v1319
  %v2351 = vunpack.c.l.b16 %v1320
  %v2352 = vunpack.c.l.b16 %v1321
  %v2353 = vunpack.c.l.b16 %v1322
  %v2354 = vunpack.c.l.b16 %v1323
  %v2355 = vunpack.c.l.b16 %v1324
  %v2356 = vunpack.c.l.b16 %v1325
  %v2357 = vunpack.c.l.b16 %v1326
  %v2358 = vunpack.c.l.b16 %v1327
  %v2359 = vunpack.c.l.b16 %v1328
  %v2360 = vunpack.c.l.b16 %v1329
  %v2361 = vunpack.c.l.b16 %v1330
  %v2362 = vunpack.c.l.b16 %v1331
  %v2363 = vunpack.c.l.b16 %v1332
  %v2364 = vunpack.c.l.b16 %v1333
  %v2365 = vunpack.c.l.b16 %v1334
  %v2366 = vunpack.c.l.b16 %v1335
  %v2367 = vunpack.c.l.b16 %v1336
  %v2368 = vunpack.c.l.b16 %v1337
  %v2369 = vunpack.c.l.b16 %v1338
  %v2370 = vunpack.c.l.b16 %v1339
  %v2371 = vunpack.c.l.b16 %v1340
  %v2372 = vunpack.c.l.b16 %v1341
  %v2373 = vunpack.c.l.b16 %v1342
  %v2374 = vunpack.c.l.b16 %v1343
  %v2375 = vunpack.c.l.b16 %v1344
  %v2376 = vunpack.c.l.b16 %v1345
  %v2377 = vunpack.c.l.b16 %v1346
  %v2378 = vunpack.c.l.b16 %v1347
  %v2379 = vunpack.c.l.b16 %v1348
  %v2380 = vunpack.c.l.b16 %v1349
  %v2381 = vunpack.c.l.b16 %v1350
  %v2382 = vunpack.c.l.b16 %v1351
  %v2383 = vunpack.c.l.b16 %v1352
  %v2384 = vunpack.c.l.b16 %v1353
  %v2385 = vunpack.c.l.b16 %v1354
  %v2386 = vunpack.c.l.b16 %v1355
  %v2387 = vunpack.c.l.b16 %v1356
  %v2388 = vunpack.c.l.b16 %v1357
  %v2389 = vunpack.c.l.b16 %v1358
  %v2390 = vunpack.c.l.b16 %v1359
  %v2391 = vunpack.c.l.b16 %v1360
  %v2392 = vunpack.c.l.b16 %v1361
  %v2393 = vunpack.c.l.b16 %v1362
  %v2394 = vunpack.c.l.b16 %v1363
  %v2395 = vunpack.c.l.b16 %v1364
  %v2396 = vunpack.c.l.b16 %v1365
  %v2397 = vunpack.c.l.b16 %v1366
  %v2398 = vunpack.c.l.b16 %v1367
  %v2399 = vunpack.c.l.b16 %v1368
  %v2400 = vunpack.c.l.b16 %v1369
  %v2401 = vunpack.c.l.b16 %v1370
  %v2402 = vunpack.c.l.b16 %v1371
  %v2403 = vunpack.c.l.b16 %v1372
  %v2404 = vunpack.c.l.b16 %v1373
  %v2405 = vunpack.c.l.b16 %v1374
  %v2406 = vunpack.c.l.b16 %v1375
  %v2407 = vunpack.c.l.b16 %v1376
  %v2408 = vunpack.c.l.b16 %v1377
  %v2409 = vunpack.c.l.b16 %v1378
  %v2410 = vunpack.c.l.b16 %v1379
  %v2411 = vunpack.c.l.b16 %v1380
  %v2412 = vunpack.c.l.b16 %v1381
  %v2413 = vunpack.c.l.b16 %v1382
  %v2414 = vunpack.c.l.b16 %v1383
  %v2415 = vunpack.c.l.b16 %v1384
  %v2416 = vunpack.c.l.b16 %v1385
  %v2417 = vunpack.c.l.b16 %v1386
  %v2418 = vunpack.c.l.b16 %v1387
  %v2419 = vunpack.c.l.b16 %v1388
  %v2420 = vunpack.c.l.b16 %v1389
  %v2421 = vunpack.c.l.b16 %v1390
  %v2422 = vunpack.c.l.b16 %v1391
  %v2423 = vunpack.c.l.b16 %v1392
  %v2424 = vunpack.c.l.b16 %v1393
  %v2425 = vunpack.c.l.b16 %v1394
  %v2426 = vunpack.c.l.b16 %v1395
  %v2427 = vunpack.c.l.b16 %v1396
  %v2428 = vunpack.c.l.b16 %v1397
  %v2429 = vunpack.c.l.b16 %v1398
  %v2430 = vunpack.c.l.b16 %v1399
  %v2431 = vunpack.c.l.b16 %v1400
  %v2432 = vunpack.c.l.b16 %v1401
  %v2433 = vunpack.c.l.b16 %v1402
  %v2434 = vunpack.c.l.b16 %v1403
  %v2435 = vunpack.c.l.b16 %v1404
  %v2436 = vunpack.c.l.b16 %v1405
  %v2437 = vunpack.c.l.b16 %v1406
  %v2438 = vunpack.c.l.b16 %v1407
  %v2439 = vunpack.c.l.b16 %v1408
  %v2440 = vunpack.c.l.b16 %v1409
  %v2441 = vunpack.c.l.b16 %v1410
  %v2442 = vunpack.c.l.b16 %v1411
  %v2443 = vunpack.c.l.b16 %v1412
  %v2444 = vunpack.c.l.b16 %v1413
  %v2445 = vunpack.c.l.b16 %v1414
  %v2446 = vunpack.c.l.b16 %v1415
  %v2447 = vpack.c.b16 %v1936, %v1935
  %v2448 = vpack.c.b16 %v1938, %v1937
  %v2449 = vpack.c.b16 %v1940, %v1939
  %v2450 = vpack.c.b16 %v1942, %v1941
  %v2451 = vpack.c.b16 %v1944, %v1943
  %v2452 = vpack.c.b16 %v1946, %v1945
  %v2453 = vpack.c.b16 %v1948, %v1947
  %v2454 = vpack.c.b16 %v1950, %v1949
  %v2455 = vpack.c.b16 %v1952, %v1951
  %v2456 = vpack.c.b16 %v1954, %v1953
  %v2457 = vpack.c.b16 %v1956, %v1955
  %v2458 = vpack.c.b16 %v1958, %v1957
  %v2459 = vpack.c.b16 %v1960, %v1959
  %v2460 = vpack.c.b16 %v1962, %v1961
  %v2461 = vpack.c.b16 %v1964, %v1963
  %v2462 = vpack.c.b16 %v1966, %v1965
  %v2463 = vpack.c.b16 %v1968, %v1967
  %v2464 = vpack.c.b16 %v1970, %v1969
  %v2465 = vpack.c.b16 %v1972, %v1971
  %v2466 = vpack.c.b16 %v1974, %v1973
  %v2467 = vpack.c.b16 %v1976, %v1975
  %v2468 = vpack.c.b16 %v1978, %v1977
  %v2469 = vpack.c.b16 %v1980, %v1979
  %v2470 = vpack.c.b16 %v1982, %v1981
  %v2471 = vpack.c.b16 %v1984, %v1983
  %v2472 = vpack.c.b16 %v1986, %v1985
  %v2473 = vpack.c.b16 %v1988, %v1987
  %v2474 = vpack.c.b16 %v1990, %v1989
  %v2475 = vpack.c.b16 %v1992, %v1991
  %v2476 = vpack.c.b16 %v1994, %v1993
  %v2477 = vpack.c.b16 %v1996, %v1995
  %v2478 = vpack.c.b16 %v1998, %v1997
  %v2479 = vpack.c.b16 %v2000, %v1999
  %v2480 = vpack.c.b16 %v2002, %v2001
  %v2481 = vpack.c.b16 %v2004, %v2003
  %v2482 = vpack.c.b16 %v2006, %v2005
  %v2483 = vpack.c.b16 %v2008, %v2007
  %v2484 = vpack.c.b16 %v2010, %v2009
  %v2485 = vpack.c.b16 %v2012, %v2011
  %v2486 = vpack.c.b16 %v2014, %v2013
  %v2487 = vpack.c.b16 %v2016, %v2015
  %v2488 = vpack.c.b16 %v2018, %v2017
  %v2489 = vpack.c.b16 %v2020, %v2019
  %v2490 = vpack.c.b16 %v2022, %v2021
  %v2491 = vpack.c.b16 %v2024, %v2023
  %v2492 = vpack.c.b16 %v2026, %v2025
  %v2493 = vpack.c.b16 %v2028, %v2027
  %v2494 = vpack.c.b16 %v2030, %v2029
  %v2495 = vpack.c.b16 %v2032, %v2031
  %v2496 = vpack.c.b16 %v2034, %v2033
  %v2497 = vpack.c.b16 %v2036, %v2035
  %v2498 = vpack.c.b16 %v2038, %v2037
  %v2499 = vpack.c.b16 %v2040, %v2039
  %v2500 = vpack.c.b16 %v2042, %v2041
  %v2501 = vpack.c.b16 %v2044, %v2043
  %v2502 = vpack.c.b16 %v2046, %v2045
  %v2503 = vpack.c.b16 %v2048, %v2047
  %v2504 = vpack.c.b16 %v2050, %v2049
  %v2505 = vpack.c.b16 %v2052, %v2051
  %v2506 = vpack.c.b16 %v2054, %v2053
  %v2507 = vpack.c.b16 %v2056, %v2055
  %v2508 = vpack.c.b16 %v2058, %v2057
  %v2509 = vpack.c.b16 %v2060, %v2059
  %v2510 = vpack.c.b16 %v2062, %v2061
  %v2511 = vpack.c.b16 %v2064, %v2063
  %v2512 = vpack.c.b16 %v2066, %v2065
  %v2513 = vpack.c.b16 %v2068, %v2067
  %v2514 = vpack.c.b16 %v2070, %v2069
  %v2515 = vpack.c.b16 %v2072, %v2071
  %v2516 = vpack.c.b16 %v2074, %v2073
  %v2517 = vpack.c.b16 %v2076, %v2075
  %v2518 = vpack.c.b16 %v2078, %v2077
  %v2519 = vpack.c.b16 %v2080, %v2079
  %v2520 = vpack.c.b16 %v2082, %v2081
  %v2521 = vpack.c.b16 %v2084, %v2083
  %v2522 = vpack.c.b16 %v2086, %v2085
  %v2523 = vpack.c.b16 %v2088, %v2087
  %v2524 = vpack.c.b16 %v2090, %v2089
  %v2525 = vpack.c.b16 %v2092, %v2091
  %v2526 = vpack.c.b16 %v2094, %v2093
  %v2527 = vpack.c.b16 %v2096, %v2095
  %v2528 = vpack.c.b16 %v2098, %v2097
  %v2529 = vpack.c.b16 %v2100, %v2099
  %v2530 = vpack.c.b16 %v2102, %v2101
  %v2531 = vpack.c.b16 %v2104, %v2103
  %v2532 = vpack.c.b16 %v2106, %v2105
  %v2533 = vpack.c.b16 %v2108, %v2107
  %v2534 = vpack.c.b16 %v2110, %v2109
  %v2535 = vpack.c.b16 %v2112, %v2111
  %v2536 = vpack.c.b16 %v2114, %v2113
  %v2537 = vpack.c.b16 %v2116, %v2115
  %v2538 = vpack.c.b16 %v2118, %v2117
  %v2539 = vpack.c.b16 %v2120, %v2119
  %v2540 = vpack.c.b16 %v2122, %v2121
  %v2541 = vpack.c.b16 %v2124, %v2123
  %v2542 = vpack.c.b16 %v2126, %v2125
  %v2543 = vpack.c.b16 %v2128, %v2127
  %v2544 = vpack.c.b16 %v2130, %v2129
  %v2545 = vpack.c.b16 %v2132, %v2131
  %v2546 = vpack.c.b16 %v2134, %v2133
  %v2547 = vpack.c.b16 %v2136, %v2135
  %v2548 = vpack.c.b16 %v2138, %v2137
  %v2549 = vpack.c.b16 %v2140, %v2139
  %v2550 = vpack.c.b16 %v2142, %v2141
  %v2551 = vpack.c.b16 %v2144, %v2143
  %v2552 = vpack.c.b16 %v2146, %v2145
  %v2553 = vpack.c.b16 %v2148, %v2147
  %v2554 = vpack.c.b16 %v2150, %v2149
  %v2555 = vpack.c.b16 %v2152, %v2151
  %v2556 = vpack.c.b16 %v2154, %v2153
  %v2557 = vpack.c.b16 %v2156, %v2155
  %v2558 = vpack.c.b16 %v2158, %v2157
  %v2559 = vpack.c.b16 %v2160, %v2159
  %v2560 = vpack.c.b16 %v2162, %v2161
  %v2561 = vpack.c.b16 %v2164, %v2163
  %v2562 = vpack.c.b16 %v2166, %v2165
  %v2563 = vpack.c.b16 %v2168, %v2167
  %v2564 = vpack.c.b16 %v2170, %v2169
  %v2565 = vpack.c.b16 %v2172, %v2171
  %v2566 = vpack.c.b16 %v2174, %v2173
  %v2567 = vpack.c.b16 %v2176, %v2175
  %v2568 = vpack.c.b16 %v2178, %v2177
  %v2569 = vpack.c.b16 %v2180, %v2179
  %v2570 = vpack.c.b16 %v2182, %v2181
  %v2571 = vpack.c.b16 %v2184, %v2183
  %v2572 = vpack.c.b16 %v2186, %v2185
  %v2573 = vpack.c.b16 %v2188, %v2187
  %v2574 = vpack.c.b16 %v2190, %v2189
  %v2575 = vpack.c.b16 %v2192, %v2191
  %v2576 = vpack.c.b16 %v2194, %v2193
  %v2577 = vpack.c.b16 %v2196, %v2195
  %v2578 = vpack.c.b16 %v2198, %v2197
  %v2579 = vpack.c.b16 %v2200, %v2199
  %v2580 = vpack.c.b16 %v2202, %v2201
  %v2581 = vpack.c.b16 %v2204, %v2203
  %v2582 = vpack.c.b16 %v2206, %v2205
  %v2583 = vpack.c.b16 %v2208, %v2207
  %v2584 = vpack.c.b16 %v2210, %v2209
  %v2585 = vpack.c.b16 %v2212, %v2211
  %v2586 = vpack.c.b16 %v2214, %v2213
  %v2587 = vpack.c.b16 %v2216, %v2215
  %v2588 = vpack.c.b16 %v2218, %v2217
  %v2589 = vpack.c.b16 %v2220, %v2219
  %v2590 = vpack.c.b16 %v2222, %v2221
  %v2591 = vpack.c.b16 %v2224, %v2223
  %v2592 = vpack.c.b16 %v2226, %v2225
  %v2593 = vpack.c.b16 %v2228, %v2227
  %v2594 = vpack.c.b16 %v2230, %v2229
  %v2595 = vpack.c.b16 %v2232, %v2231
  %v2596 = vpack.c.b16 %v2234, %v2233
  %v2597 = vpack.c.b16 %v2236, %v2235
  %v2598 = vpack.c.b16 %v2238, %v2237
  %v2599 = vpack.c.b16 %v2240, %v2239
  %v2600 = vpack.c.b16 %v2242, %v2241
  %v2601 = vpack.c.b16 %v2244, %v2243
  %v2602 = vpack.c.b16 %v2246, %v2245
  %v2603 = vpack.c.b16 %v2248, %v2247
  %v2604 = vpack.c.b16 %v2250, %v2249
  %v2605 = vpack.c.b16 %v2252, %v2251
  %v2606 = vpack.c.b16 %v2254, %v2253
  %v2607 = vpack.c.b16 %v2256, %v2255
  %v2608 = vpack.c.b16 %v2258, %v2257
  %v2609 = vpack.c.b16 %v2260, %v2259
  %v2610 = vpack.c.b16 %v2262, %v2261
  %v2611 = vpack.c.b16 %v2264, %v2263
  %v2612 = vpack.c.b16 %v2266, %v2265
  %v2613 = vpack.c.b16 %v2268, %v2267
  %v2614 = vpack.c.b16 %v2270, %v2269
  %v2615 = vpack.c.b16 %v2272, %v2271
  %v2616 = vpack.c.b16 %v2274, %v2273
  %v2617 = vpack.c.b16 %v2276, %v2275
  %v2618 = vpack.c.b16 %v2278, %v2277
  %v2619 = vpack.c.b16 %v2280, %v2279
  %v2620 = vpack.c.b16 %v2282, %v2281
  %v2621 = vpack.c.b16 %v2284, %v2283
  %v2622 = vpack.c.b16 %v2286, %v2285
  %v2623 = vpack.c.b16 %v2288, %v2287
  %v2624 = vpack.c.b16 %v2290, %v2289
  %v2625 = vpack.c.b16 %v2292, %v2291
  %v2626 = vpack.c.b16 %v2294, %v2293
  %v2627 = vpack.c.b16 %v2296, %v2295
  %v2628 = vpack.c.b16 %v2298, %v2297
  %v2629 = vpack.c.b16 %v2300, %v2299
  %v2630 = vpack.c.b16 %v2302, %v2301
  %v2631 = vpack.c.b16 %v2304, %v2303
  %v2632 = vpack.c.b16 %v2306, %v2305
  %v2633 = vpack.c.b16 %v2308, %v2307
  %v2634 = vpack.c.b16 %v2310, %v2309
  %v2635 = vpack.c.b16 %v2312, %v2311
  %v2636 = vpack.c.b16 %v2314, %v2313
  %v2637 = vpack.c.b16 %v2316, %v2315
  %v2638 = vpack.c.b16 %v2318, %v2317
  %v2639 = vpack.c.b16 %v2320, %v2319
  %v2640 = vpack.c.b16 %v2322, %v2321
  %v2641 = vpack.c.b16 %v2324, %v2323
  %v2642 = vpack.c.b16 %v2326, %v2325
  %v2643 = vpack.c.b16 %v2328, %v2327
  %v2644 = vpack.c.b16 %v2330, %v2329
  %v2645 = vpack.c.b16 %v2332, %v2331
  %v2646 = vpack.c.b16 %v2334, %v2333
  %v2647 = vpack.c.b16 %v2336, %v2335
  %v2648 = vpack.c.b16 %v2338, %v2337
  %v2649 = vpack.c.b16 %v2340, %v2339
  %v2650 = vpack.c.b16 %v2342, %v2341
  %v2651 = vpack.c.b16 %v2344, %v2343
  %v2652 = vpack.c.b16 %v2346, %v2345
  %v2653 = vpack.c.b16 %v2348, %v2347
  %v2654 = vpack.c.b16 %v2350, %v2349
  %v2655 = vpack.c.b16 %v2352, %v2351
  %v2656 = vpack.c.b16 %v2354, %v2353
  %v2657 = vpack.c.b16 %v2356, %v2355
  %v2658 = vpack.c.b16 %v2358, %v2357
  %v2659 = vpack.c.b16 %v2360, %v2359
  %v2660 = vpack.c.b16 %v2362, %v2361
  %v2661 = vpack.c.b16 %v2364, %v2363
  %v2662 = vpack.c.b16 %v2366, %v2365
  %v2663 = vpack.c.b16 %v2368, %v2367
  %v2664 = vpack.c.b16 %v2370, %v2369
  %v2665 = vpack.c.b16 %v2372, %v2371
  %v2666 = vpack.c.b16 %v2374, %v2373
  %v2667 = vpack.c.b16 %v2376, %v2375
  %v2668 = vpack.c.b16 %v2378, %v2377
  %v2669 = vpack.c.b16 %v2380, %v2379
  %v2670 = vpack.c.b16 %v2382, %v2381
  %v2671 = vpack.c.b16 %v2384, %v2383
  %v2672 = vpack.c.b16 %v2386, %v2385
  %v2673 = vpack.c.b16 %v2388, %v2387
  %v2674 = vpack.c.b16 %v2390, %v2389
  %v2675 = vpack.c.b16 %v2392, %v2391
  %v2676 = vpack.c.b16 %v2394, %v2393
  %v2677 = vpack.c.b16 %v2396, %v2395
  %v2678 = vpack.c.b16 %v2398, %v2397
  %v2679 = vpack.c.b16 %v2400, %v2399
  %v2680 = vpack.c.b16 %v2402, %v2401
  %v2681 = vpack.c.b16 %v2404, %v2403
  %v2682 = vpack.c.b16 %v2406, %v2405
  %v2683 = vpack.c.b16 %v2408, %v2407
  %v2684 = vpack.c.b16 %v2410, %v2409
  %v2685 = vpack.c.b16 %v2412, %v2411
  %v2686 = vpack.c.b16 %v2414, %v2413
  %v2687 = vpack.c.b16 %v2416, %v2415
  %v2688 = vpack.c.b16 %v2418, %v2417
  %v2689 = vpack.c.b16 %v2420, %v2419
  %v2690 = vpack.c.b16 %v2422, %v2421
  %v2691 = vpack.c.b16 %v2424, %v2423
  %v2692 = vpack.c.b16 %v2426, %v2425
  %v2693 = vpack.c.b16 %v2428, %v2427
  %v2694 = vpack.c.b16 %v2430, %v2429
  %v2695 = vpack.c.b16 %v2432, %v2431
  %v2696 = vpack.c.b16 %v2434, %v2433
  %v2697 = vpack.c.b16 %v2436, %v2435
  %v2698 = vpack.c.b16 %v2438, %v2437
  %v2699 = vpack.c.b16 %v2440, %v2439
  %v2700 = vpack.c.b16 %v2442, %v2441
  %v2701 = vpack.c.b16 %v2444, %v2443
  %v2702 = vpack.c.b16 %v2446, %v2445
  %2959 = vmatprep.subr.bf16.mxu0 0
  %2960 = vmatpush1.bf16.msra.mxu0 %v2447
  %2961 = vmatprep.subr.bf16.mxu0 0
  %2962 = vmatpush1.bf16.msra.mxu0 %v2448
  %2963 = vmatprep.subr.bf16.mxu0 0
  %2964 = vmatpush1.bf16.msra.mxu0 %v2449
  %2965 = vmatprep.subr.bf16.mxu0 0
  %2966 = vmatpush1.bf16.msra.mxu0 %v2450
  %2967 = vmatprep.subr.bf16.mxu0 0
  %2968 = vmatpush1.bf16.msra.mxu0 %v2451
  %2969 = vmatprep.subr.bf16.mxu0 0
  %2970 = vmatpush1.bf16.msra.mxu0 %v2452
  %2971 = vmatprep.subr.bf16.mxu0 0
  %2972 = vmatpush1.bf16.msra.mxu0 %v2453
  %2973 = vmatprep.subr.bf16.mxu0 0
  %2974 = vmatpush1.bf16.msra.mxu0 %v2454
  %2975 = vmatprep.subr.bf16.mxu0 0
  %2976 = vmatpush1.bf16.msra.mxu0 %v2455
  %2977 = vmatprep.subr.bf16.mxu0 0
  %2978 = vmatpush1.bf16.msra.mxu0 %v2456
  %2979 = vmatprep.subr.bf16.mxu0 0
  %2980 = vmatpush1.bf16.msra.mxu0 %v2457
  %2981 = vmatprep.subr.bf16.mxu0 0
  %2982 = vmatpush1.bf16.msra.mxu0 %v2458
  %2983 = vmatprep.subr.bf16.mxu0 0
  %2984 = vmatpush1.bf16.msra.mxu0 %v2459
  %2985 = vmatprep.subr.bf16.mxu0 0
  %2986 = vmatpush1.bf16.msra.mxu0 %v2460
  %2987 = vmatprep.subr.bf16.mxu0 0
  %2988 = vmatpush1.bf16.msra.mxu0 %v2461
  %2989 = vmatprep.subr.bf16.mxu0 0
  %2990 = vmatpush1.bf16.msra.mxu0 %v2462
  %2991 = vmatprep.mubr.bf16.mxu0 %v873
  %2992 = vmatmul.mubr.bf16.gmra.mrb[0].mxu0 %v872
  %v2993 = vpop.f32.mrb[0].mxu0
  %v2994 = vadd.f32 %v1421, %v2993
  %v2995 = vpop.f32.mrb[0].mxu0
  %v2996 = vpop.f32.mrb[0].mxu0
  %v2997 = vpop.f32.mrb[0].mxu0
  %2998 = vdwg.mxu0
  %2999 = vmatprep.subr.bf16.mxu0 0
  %3000 = vmatpush1.bf16.msra.mxu0 %v2463
  %3001 = vmatprep.subr.bf16.mxu0 0
  %3002 = vmatpush1.bf16.msra.mxu0 %v2464
  %3003 = vmatprep.subr.bf16.mxu0 0
  %3004 = vmatpush1.bf16.msra.mxu0 %v2465
  %3005 = vmatprep.subr.bf16.mxu0 0
  %3006 = vmatpush1.bf16.msra.mxu0 %v2466
  %3007 = vmatprep.subr.bf16.mxu0 0
  %3008 = vmatpush1.bf16.msra.mxu0 %v2467
  %3009 = vmatprep.subr.bf16.mxu0 0
  %3010 = vmatpush1.bf16.msra.mxu0 %v2468
  %3011 = vmatprep.subr.bf16.mxu0 0
  %3012 = vmatpush1.bf16.msra.mxu0 %v2469
  %3013 = vmatprep.subr.bf16.mxu0 0
  %3014 = vmatpush1.bf16.msra.mxu0 %v2470
  %3015 = vmatprep.subr.bf16.mxu0 0
  %3016 = vmatpush1.bf16.msra.mxu0 %v2471
  %3017 = vmatprep.subr.bf16.mxu0 0
  %3018 = vmatpush1.bf16.msra.mxu0 %v2472
  %3019 = vmatprep.subr.bf16.mxu0 0
  %3020 = vmatpush1.bf16.msra.mxu0 %v2473
  %3021 = vmatprep.subr.bf16.mxu0 0
  %3022 = vmatpush1.bf16.msra.mxu0 %v2474
  %3023 = vmatprep.subr.bf16.mxu0 0
  %3024 = vmatpush1.bf16.msra.mxu0 %v2475
  %3025 = vmatprep.subr.bf16.mxu0 0
  %3026 = vmatpush1.bf16.msra.mxu0 %v2476
  %3027 = vmatprep.subr.bf16.mxu0 0
  %3028 = vmatpush1.bf16.msra.mxu0 %v2477
  %3029 = vmatprep.subr.bf16.mxu0 0
  %3030 = vmatpush1.bf16.msra.mxu0 %v2478
  %3031 = vmatprep.mubr.bf16.mxu0 %v875
  %3032 = vmatmul.mubr.bf16.gmra.mrb[0].mxu0 %v874
  %v3033 = vpop.f32.mrb[0].mxu0
  %v3034 = vadd.f32 %v2994, %v3033
  %v3035 = vpop.f32.mrb[0].mxu0
  %v3036 = vpop.f32.mrb[0].mxu0
  %v3037 = vpop.f32.mrb[0].mxu0
  %3038 = vdwg.mxu0
  %3039 = vmatprep.subr.bf16.mxu0 0
  %3040 = vmatpush1.bf16.msra.mxu0 %v2479
  %3041 = vmatprep.subr.bf16.mxu0 0
  %3042 = vmatpush1.bf16.msra.mxu0 %v2480
  %3043 = vmatprep.subr.bf16.mxu0 0
  %3044 = vmatpush1.bf16.msra.mxu0 %v2481
  %3045 = vmatprep.subr.bf16.mxu0 0
  %3046 = vmatpush1.bf16.msra.mxu0 %v2482
  %3047 = vmatprep.subr.bf16.mxu0 0
  %3048 = vmatpush1.bf16.msra.mxu0 %v2483
  %3049 = vmatprep.subr.bf16.mxu0 0
  %3050 = vmatpush1.bf16.msra.mxu0 %v2484
  %3051 = vmatprep.subr.bf16.mxu0 0
  %3052 = vmatpush1.bf16.msra.mxu0 %v2485
  %3053 = vmatprep.subr.bf16.mxu0 0
  %3054 = vmatpush1.bf16.msra.mxu0 %v2486
  %3055 = vmatprep.subr.bf16.mxu0 0
  %3056 = vmatpush1.bf16.msra.mxu0 %v2487
  %3057 = vmatprep.subr.bf16.mxu0 0
  %3058 = vmatpush1.bf16.msra.mxu0 %v2488
  %3059 = vmatprep.subr.bf16.mxu0 0
  %3060 = vmatpush1.bf16.msra.mxu0 %v2489
  %3061 = vmatprep.subr.bf16.mxu0 0
  %3062 = vmatpush1.bf16.msra.mxu0 %v2490
  %3063 = vmatprep.subr.bf16.mxu0 0
  %3064 = vmatpush1.bf16.msra.mxu0 %v2491
  %3065 = vmatprep.subr.bf16.mxu0 0
  %3066 = vmatpush1.bf16.msra.mxu0 %v2492
  %3067 = vmatprep.subr.bf16.mxu0 0
  %3068 = vmatpush1.bf16.msra.mxu0 %v2493
  %3069 = vmatprep.subr.bf16.mxu0 0
  %3070 = vmatpush1.bf16.msra.mxu0 %v2494
  %3071 = vmatprep.mubr.bf16.mxu0 %v877
  %3072 = vmatmul.mubr.bf16.gmra.mrb[0].mxu0 %v876
  %v3073 = vpop.f32.mrb[0].mxu0
  %v3074 = vadd.f32 %v3034, %v3073
  %v3075 = vpop.f32.mrb[0].mxu0
  %v3076 = vpop.f32.mrb[0].mxu0
  %v3077 = vpop.f32.mrb[0].mxu0
  %3078 = vdwg.mxu0
  %3079 = vmatprep.subr.bf16.mxu0 0
  %3080 = vmatpush1.bf16.msra.mxu0 %v2495
  %3081 = vmatprep.subr.bf16.mxu0 0
  %3082 = vmatpush1.bf16.msra.mxu0 %v2496
  %3083 = vmatprep.subr.bf16.mxu0 0
  %3084 = vmatpush1.bf16.msra.mxu0 %v2497
  %3085 = vmatprep.subr.bf16.mxu0 0
  %3086 = vmatpush1.bf16.msra.mxu0 %v2498
  %3087 = vmatprep.subr.bf16.mxu0 0
  %3088 = vmatpush1.bf16.msra.mxu0 %v2499
  %3089 = vmatprep.subr.bf16.mxu0 0
  %3090 = vmatpush1.bf16.msra.mxu0 %v2500
  %3091 = vmatprep.subr.bf16.mxu0 0
  %3092 = vmatpush1.bf16.msra.mxu0 %v2501
  %3093 = vmatprep.subr.bf16.mxu0 0
  %3094 = vmatpush1.bf16.msra.mxu0 %v2502
  %3095 = vmatprep.subr.bf16.mxu0 0
  %3096 = vmatpush1.bf16.msra.mxu0 %v2503
  %3097 = vmatprep.subr.bf16.mxu0 0
  %3098 = vmatpush1.bf16.msra.mxu0 %v2504
  %3099 = vmatprep.subr.bf16.mxu0 0
  %3100 = vmatpush1.bf16.msra.mxu0 %v2505
  %3101 = vmatprep.subr.bf16.mxu0 0
  %3102 = vmatpush1.bf16.msra.mxu0 %v2506
  %3103 = vmatprep.subr.bf16.mxu0 0
  %3104 = vmatpush1.bf16.msra.mxu0 %v2507
  %3105 = vmatprep.subr.bf16.mxu0 0
  %3106 = vmatpush1.bf16.msra.mxu0 %v2508
  %3107 = vmatprep.subr.bf16.mxu0 0
  %3108 = vmatpush1.bf16.msra.mxu0 %v2509
  %3109 = vmatprep.subr.bf16.mxu0 0
  %3110 = vmatpush1.bf16.msra.mxu0 %v2510
  %3111 = vmatprep.mubr.bf16.mxu0 %v879
  %3112 = vmatmul.mubr.bf16.gmra.mrb[0].mxu0 %v878
  %v3113 = vpop.f32.mrb[0].mxu0
  %v3114 = vadd.f32 %v3074, %v3113
  %v3115 = vpop.f32.mrb[0].mxu0
  %v3116 = vpop.f32.mrb[0].mxu0
  %v3117 = vpop.f32.mrb[0].mxu0
  %3118 = vdwg.mxu0
  %3119 = vmatprep.subr.bf16.mxu0 0
  %3120 = vmatpush1.bf16.msra.mxu0 %v2511
  %3121 = vmatprep.subr.bf16.mxu0 0
  %3122 = vmatpush1.bf16.msra.mxu0 %v2512
  %3123 = vmatprep.subr.bf16.mxu0 0
  %3124 = vmatpush1.bf16.msra.mxu0 %v2513
  %3125 = vmatprep.subr.bf16.mxu0 0
  %3126 = vmatpush1.bf16.msra.mxu0 %v2514
  %3127 = vmatprep.subr.bf16.mxu0 0
  %3128 = vmatpush1.bf16.msra.mxu0 %v2515
  %3129 = vmatprep.subr.bf16.mxu0 0
  %3130 = vmatpush1.bf16.msra.mxu0 %v2516
  %3131 = vmatprep.subr.bf16.mxu0 0
  %3132 = vmatpush1.bf16.msra.mxu0 %v2517
  %3133 = vmatprep.subr.bf16.mxu0 0
  %3134 = vmatpush1.bf16.msra.mxu0 %v2518
  %3135 = vmatprep.subr.bf16.mxu0 0
  %3136 = vmatpush1.bf16.msra.mxu0 %v2519
  %3137 = vmatprep.subr.bf16.mxu0 0
  %3138 = vmatpush1.bf16.msra.mxu0 %v2520
  %3139 = vmatprep.subr.bf16.mxu0 0
  %3140 = vmatpush1.bf16.msra.mxu0 %v2521
  %3141 = vmatprep.subr.bf16.mxu0 0
  %3142 = vmatpush1.bf16.msra.mxu0 %v2522
  %3143 = vmatprep.subr.bf16.mxu0 0
  %3144 = vmatpush1.bf16.msra.mxu0 %v2523
  %3145 = vmatprep.subr.bf16.mxu0 0
  %3146 = vmatpush1.bf16.msra.mxu0 %v2524
  %3147 = vmatprep.subr.bf16.mxu0 0
  %3148 = vmatpush1.bf16.msra.mxu0 %v2525
  %3149 = vmatprep.subr.bf16.mxu0 0
  %3150 = vmatpush1.bf16.msra.mxu0 %v2526
  %3151 = vmatprep.mubr.bf16.mxu0 %v881
  %3152 = vmatmul.mubr.bf16.gmra.mrb[0].mxu0 %v880
  %v3153 = vpop.f32.mrb[0].mxu0
  %v3154 = vadd.f32 %v3114, %v3153
  %v3155 = vpop.f32.mrb[0].mxu0
  %v3156 = vpop.f32.mrb[0].mxu0
  %v3157 = vpop.f32.mrb[0].mxu0
  %3158 = vdwg.mxu0
  %3159 = vmatprep.subr.bf16.mxu0 0
  %3160 = vmatpush1.bf16.msra.mxu0 %v2527
  %3161 = vmatprep.subr.bf16.mxu0 0
  %3162 = vmatpush1.bf16.msra.mxu0 %v2528
  %3163 = vmatprep.subr.bf16.mxu0 0
  %3164 = vmatpush1.bf16.msra.mxu0 %v2529
  %3165 = vmatprep.subr.bf16.mxu0 0
  %3166 = vmatpush1.bf16.msra.mxu0 %v2530
  %3167 = vmatprep.subr.bf16.mxu0 0
  %3168 = vmatpush1.bf16.msra.mxu0 %v2531
  %3169 = vmatprep.subr.bf16.mxu0 0
  %3170 = vmatpush1.bf16.msra.mxu0 %v2532
  %3171 = vmatprep.subr.bf16.mxu0 0
  %3172 = vmatpush1.bf16.msra.mxu0 %v2533
  %3173 = vmatprep.subr.bf16.mxu0 0
  %3174 = vmatpush1.bf16.msra.mxu0 %v2534
  %3175 = vmatprep.subr.bf16.mxu0 0
  %3176 = vmatpush1.bf16.msra.mxu0 %v2535
  %3177 = vmatprep.subr.bf16.mxu0 0
  %3178 = vmatpush1.bf16.msra.mxu0 %v2536
  %3179 = vmatprep.subr.bf16.mxu0 0
  %3180 = vmatpush1.bf16.msra.mxu0 %v2537
  %3181 = vmatprep.subr.bf16.mxu0 0
  %3182 = vmatpush1.bf16.msra.mxu0 %v2538
  %3183 = vmatprep.subr.bf16.mxu0 0
  %3184 = vmatpush1.bf16.msra.mxu0 %v2539
  %3185 = vmatprep.subr.bf16.mxu0 0
  %3186 = vmatpush1.bf16.msra.mxu0 %v2540
  %3187 = vmatprep.subr.bf16.mxu0 0
  %3188 = vmatpush1.bf16.msra.mxu0 %v2541
  %3189 = vmatprep.subr.bf16.mxu0 0
  %3190 = vmatpush1.bf16.msra.mxu0 %v2542
  %3191 = vmatprep.mubr.bf16.mxu0 %v883
  %3192 = vmatmul.mubr.bf16.gmra.mrb[0].mxu0 %v882
  %v3193 = vpop.f32.mrb[0].mxu0
  %v3194 = vadd.f32 %v3154, %v3193
  %v3195 = vpop.f32.mrb[0].mxu0
  %v3196 = vpop.f32.mrb[0].mxu0
  %v3197 = vpop.f32.mrb[0].mxu0
  %3198 = vdwg.mxu0
  %3199 = vmatprep.subr.bf16.mxu0 0
  %3200 = vmatpush1.bf16.msra.mxu0 %v2543
  %3201 = vmatprep.subr.bf16.mxu0 0
  %3202 = vmatpush1.bf16.msra.mxu0 %v2544
  %3203 = vmatprep.subr.bf16.mxu0 0
  %3204 = vmatpush1.bf16.msra.mxu0 %v2545
  %3205 = vmatprep.subr.bf16.mxu0 0
  %3206 = vmatpush1.bf16.msra.mxu0 %v2546
  %3207 = vmatprep.subr.bf16.mxu0 0
  %3208 = vmatpush1.bf16.msra.mxu0 %v2547
  %3209 = vmatprep.subr.bf16.mxu0 0
  %3210 = vmatpush1.bf16.msra.mxu0 %v2548
  %3211 = vmatprep.subr.bf16.mxu0 0
  %3212 = vmatpush1.bf16.msra.mxu0 %v2549
  %3213 = vmatprep.subr.bf16.mxu0 0
  %3214 = vmatpush1.bf16.msra.mxu0 %v2550
  %3215 = vmatprep.subr.bf16.mxu0 0
  %3216 = vmatpush1.bf16.msra.mxu0 %v2551
  %3217 = vmatprep.subr.bf16.mxu0 0
  %3218 = vmatpush1.bf16.msra.mxu0 %v2552
  %3219 = vmatprep.subr.bf16.mxu0 0
  %3220 = vmatpush1.bf16.msra.mxu0 %v2553
  %3221 = vmatprep.subr.bf16.mxu0 0
  %3222 = vmatpush1.bf16.msra.mxu0 %v2554
  %3223 = vmatprep.subr.bf16.mxu0 0
  %3224 = vmatpush1.bf16.msra.mxu0 %v2555
  %3225 = vmatprep.subr.bf16.mxu0 0
  %3226 = vmatpush1.bf16.msra.mxu0 %v2556
  %3227 = vmatprep.subr.bf16.mxu0 0
  %3228 = vmatpush1.bf16.msra.mxu0 %v2557
  %3229 = vmatprep.subr.bf16.mxu0 0
  %3230 = vmatpush1.bf16.msra.mxu0 %v2558
  %3231 = vmatprep.mubr.bf16.mxu0 %v885
  %3232 = vmatmul.mubr.bf16.gmra.mrb[0].mxu0 %v884
  %v3233 = vpop.f32.mrb[0].mxu0
  %v3234 = vadd.f32 %v3194, %v3233
  %v3235 = vpop.f32.mrb[0].mxu0
  %v3236 = vpop.f32.mrb[0].mxu0
  %v3237 = vpop.f32.mrb[0].mxu0
  %3238 = vdwg.mxu0
  %3239 = vmatprep.subr.bf16.mxu0 0
  %3240 = vmatpush1.bf16.msra.mxu0 %v2559
  %3241 = vmatprep.subr.bf16.mxu0 0
  %3242 = vmatpush1.bf16.msra.mxu0 %v2560
  %3243 = vmatprep.subr.bf16.mxu0 0
  %3244 = vmatpush1.bf16.msra.mxu0 %v2561
  %3245 = vmatprep.subr.bf16.mxu0 0
  %3246 = vmatpush1.bf16.msra.mxu0 %v2562
  %3247 = vmatprep.subr.bf16.mxu0 0
  %3248 = vmatpush1.bf16.msra.mxu0 %v2563
  %3249 = vmatprep.subr.bf16.mxu0 0
  %3250 = vmatpush1.bf16.msra.mxu0 %v2564
  %3251 = vmatprep.subr.bf16.mxu0 0
  %3252 = vmatpush1.bf16.msra.mxu0 %v2565
  %3253 = vmatprep.subr.bf16.mxu0 0
  %3254 = vmatpush1.bf16.msra.mxu0 %v2566
  %3255 = vmatprep.subr.bf16.mxu0 0
  %3256 = vmatpush1.bf16.msra.mxu0 %v2567
  %3257 = vmatprep.subr.bf16.mxu0 0
  %3258 = vmatpush1.bf16.msra.mxu0 %v2568
  %3259 = vmatprep.subr.bf16.mxu0 0
  %3260 = vmatpush1.bf16.msra.mxu0 %v2569
  %3261 = vmatprep.subr.bf16.mxu0 0
  %3262 = vmatpush1.bf16.msra.mxu0 %v2570
  %3263 = vmatprep.subr.bf16.mxu0 0
  %3264 = vmatpush1.bf16.msra.mxu0 %v2571
  %3265 = vmatprep.subr.bf16.mxu0 0
  %3266 = vmatpush1.bf16.msra.mxu0 %v2572
  %3267 = vmatprep.subr.bf16.mxu0 0
  %3268 = vmatpush1.bf16.msra.mxu0 %v2573
  %3269 = vmatprep.subr.bf16.mxu0 0
  %3270 = vmatpush1.bf16.msra.mxu0 %v2574
  %3271 = vmatprep.mubr.bf16.mxu0 %v887
  %3272 = vmatmul.mubr.bf16.gmra.mrb[0].mxu0 %v886
  %v3273 = vpop.f32.mrb[0].mxu0
  %v3274 = vadd.f32 %v3234, %v3273
  %v3275 = vpop.f32.mrb[0].mxu0
  %v3276 = vpop.f32.mrb[0].mxu0
  %v3277 = vpop.f32.mrb[0].mxu0
  %3278 = vdwg.mxu0
  %3279 = vmatprep.subr.bf16.mxu0 0
  %3280 = vmatpush1.bf16.msra.mxu0 %v2575
  %3281 = vmatprep.subr.bf16.mxu0 0
  %3282 = vmatpush1.bf16.msra.mxu0 %v2576
  %3283 = vmatprep.subr.bf16.mxu0 0
  %3284 = vmatpush1.bf16.msra.mxu0 %v2577
  %3285 = vmatprep.subr.bf16.mxu0 0
  %3286 = vmatpush1.bf16.msra.mxu0 %v2578
  %3287 = vmatprep.subr.bf16.mxu0 0
  %3288 = vmatpush1.bf16.msra.mxu0 %v2579
  %3289 = vmatprep.subr.bf16.mxu0 0
  %3290 = vmatpush1.bf16.msra.mxu0 %v2580
  %3291 = vmatprep.subr.bf16.mxu0 0
  %3292 = vmatpush1.bf16.msra.mxu0 %v2581
  %3293 = vmatprep.subr.bf16.mxu0 0
  %3294 = vmatpush1.bf16.msra.mxu0 %v2582
  %3295 = vmatprep.subr.bf16.mxu0 0
  %3296 = vmatpush1.bf16.msra.mxu0 %v2583
  %3297 = vmatprep.subr.bf16.mxu0 0
  %3298 = vmatpush1.bf16.msra.mxu0 %v2584
  %3299 = vmatprep.subr.bf16.mxu0 0
  %3300 = vmatpush1.bf16.msra.mxu0 %v2585
  %3301 = vmatprep.subr.bf16.mxu0 0
  %3302 = vmatpush1.bf16.msra.mxu0 %v2586
  %3303 = vmatprep.subr.bf16.mxu0 0
  %3304 = vmatpush1.bf16.msra.mxu0 %v2587
  %3305 = vmatprep.subr.bf16.mxu0 0
  %3306 = vmatpush1.bf16.msra.mxu0 %v2588
  %3307 = vmatprep.subr.bf16.mxu0 0
  %3308 = vmatpush1.bf16.msra.mxu0 %v2589
  %3309 = vmatprep.subr.bf16.mxu0 0
  %3310 = vmatpush1.bf16.msra.mxu0 %v2590
  %3311 = vmatprep.mubr.bf16.mxu0 %v889
  %3312 = vmatmul.mubr.bf16.gmra.mrb[0].mxu0 %v888
  %v3313 = vpop.f32.mrb[0].mxu0
  %v3314 = vadd.f32 %v3274, %v3313
  %v3315 = vpop.f32.mrb[0].mxu0
  %v3316 = vpop.f32.mrb[0].mxu0
  %v3317 = vpop.f32.mrb[0].mxu0
  %3318 = vdwg.mxu0
  %3319 = vmatprep.subr.bf16.mxu0 0
  %3320 = vmatpush1.bf16.msra.mxu0 %v2591
  %3321 = vmatprep.subr.bf16.mxu0 0
  %3322 = vmatpush1.bf16.msra.mxu0 %v2592
  %3323 = vmatprep.subr.bf16.mxu0 0
  %3324 = vmatpush1.bf16.msra.mxu0 %v2593
  %3325 = vmatprep.subr.bf16.mxu0 0
  %3326 = vmatpush1.bf16.msra.mxu0 %v2594
  %3327 = vmatprep.subr.bf16.mxu0 0
  %3328 = vmatpush1.bf16.msra.mxu0 %v2595
  %3329 = vmatprep.subr.bf16.mxu0 0
  %3330 = vmatpush1.bf16.msra.mxu0 %v2596
  %3331 = vmatprep.subr.bf16.mxu0 0
  %3332 = vmatpush1.bf16.msra.mxu0 %v2597
  %3333 = vmatprep.subr.bf16.mxu0 0
  %3334 = vmatpush1.bf16.msra.mxu0 %v2598
  %3335 = vmatprep.subr.bf16.mxu0 0
  %3336 = vmatpush1.bf16.msra.mxu0 %v2599
  %3337 = vmatprep.subr.bf16.mxu0 0
  %3338 = vmatpush1.bf16.msra.mxu0 %v2600
  %3339 = vmatprep.subr.bf16.mxu0 0
  %3340 = vmatpush1.bf16.msra.mxu0 %v2601
  %3341 = vmatprep.subr.bf16.mxu0 0
  %3342 = vmatpush1.bf16.msra.mxu0 %v2602
  %3343 = vmatprep.subr.bf16.mxu0 0
  %3344 = vmatpush1.bf16.msra.mxu0 %v2603
  %3345 = vmatprep.subr.bf16.mxu0 0
  %3346 = vmatpush1.bf16.msra.mxu0 %v2604
  %3347 = vmatprep.subr.bf16.mxu0 0
  %3348 = vmatpush1.bf16.msra.mxu0 %v2605
  %3349 = vmatprep.subr.bf16.mxu0 0
  %3350 = vmatpush1.bf16.msra.mxu0 %v2606
  %3351 = vmatprep.mubr.bf16.mxu0 %v891
  %3352 = vmatmul.mubr.bf16.gmra.mrb[0].mxu0 %v890
  %v3353 = vpop.f32.mrb[0].mxu0
  %v3354 = vadd.f32 %v3314, %v3353
  %v3355 = vpop.f32.mrb[0].mxu0
  %v3356 = vpop.f32.mrb[0].mxu0
  %v3357 = vpop.f32.mrb[0].mxu0
  %3358 = vdwg.mxu0
  %3359 = vmatprep.subr.bf16.mxu0 0
  %3360 = vmatpush1.bf16.msra.mxu0 %v2607
  %3361 = vmatprep.subr.bf16.mxu0 0
  %3362 = vmatpush1.bf16.msra.mxu0 %v2608
  %3363 = vmatprep.subr.bf16.mxu0 0
  %3364 = vmatpush1.bf16.msra.mxu0 %v2609
  %3365 = vmatprep.subr.bf16.mxu0 0
  %3366 = vmatpush1.bf16.msra.mxu0 %v2610
  %3367 = vmatprep.subr.bf16.mxu0 0
  %3368 = vmatpush1.bf16.msra.mxu0 %v2611
  %3369 = vmatprep.subr.bf16.mxu0 0
  %3370 = vmatpush1.bf16.msra.mxu0 %v2612
  %3371 = vmatprep.subr.bf16.mxu0 0
  %3372 = vmatpush1.bf16.msra.mxu0 %v2613
  %3373 = vmatprep.subr.bf16.mxu0 0
  %3374 = vmatpush1.bf16.msra.mxu0 %v2614
  %3375 = vmatprep.subr.bf16.mxu0 0
  %3376 = vmatpush1.bf16.msra.mxu0 %v2615
  %3377 = vmatprep.subr.bf16.mxu0 0
  %3378 = vmatpush1.bf16.msra.mxu0 %v2616
  %3379 = vmatprep.subr.bf16.mxu0 0
  %3380 = vmatpush1.bf16.msra.mxu0 %v2617
  %3381 = vmatprep.subr.bf16.mxu0 0
  %3382 = vmatpush1.bf16.msra.mxu0 %v2618
  %3383 = vmatprep.subr.bf16.mxu0 0
  %3384 = vmatpush1.bf16.msra.mxu0 %v2619
  %3385 = vmatprep.subr.bf16.mxu0 0
  %3386 = vmatpush1.bf16.msra.mxu0 %v2620
  %3387 = vmatprep.subr.bf16.mxu0 0
  %3388 = vmatpush1.bf16.msra.mxu0 %v2621
  %3389 = vmatprep.subr.bf16.mxu0 0
  %3390 = vmatpush1.bf16.msra.mxu0 %v2622
  %3391 = vmatprep.mubr.bf16.mxu0 %v893
  %3392 = vmatmul.mubr.bf16.gmra.mrb[0].mxu0 %v892
  %v3393 = vpop.f32.mrb[0].mxu0
  %v3394 = vadd.f32 %v3354, %v3393
  %v3395 = vpop.f32.mrb[0].mxu0
  %v3396 = vpop.f32.mrb[0].mxu0
  %v3397 = vpop.f32.mrb[0].mxu0
  %3398 = vdwg.mxu0
  %3399 = vmatprep.subr.bf16.mxu0 0
  %3400 = vmatpush1.bf16.msra.mxu0 %v2623
  %3401 = vmatprep.subr.bf16.mxu0 0
  %3402 = vmatpush1.bf16.msra.mxu0 %v2624
  %3403 = vmatprep.subr.bf16.mxu0 0
  %3404 = vmatpush1.bf16.msra.mxu0 %v2625
  %3405 = vmatprep.subr.bf16.mxu0 0
  %3406 = vmatpush1.bf16.msra.mxu0 %v2626
  %3407 = vmatprep.subr.bf16.mxu0 0
  %3408 = vmatpush1.bf16.msra.mxu0 %v2627
  %3409 = vmatprep.subr.bf16.mxu0 0
  %3410 = vmatpush1.bf16.msra.mxu0 %v2628
  %3411 = vmatprep.subr.bf16.mxu0 0
  %3412 = vmatpush1.bf16.msra.mxu0 %v2629
  %3413 = vmatprep.subr.bf16.mxu0 0
  %3414 = vmatpush1.bf16.msra.mxu0 %v2630
  %3415 = vmatprep.subr.bf16.mxu0 0
  %3416 = vmatpush1.bf16.msra.mxu0 %v2631
  %3417 = vmatprep.subr.bf16.mxu0 0
  %3418 = vmatpush1.bf16.msra.mxu0 %v2632
  %3419 = vmatprep.subr.bf16.mxu0 0
  %3420 = vmatpush1.bf16.msra.mxu0 %v2633
  %3421 = vmatprep.subr.bf16.mxu0 0
  %3422 = vmatpush1.bf16.msra.mxu0 %v2634
  %3423 = vmatprep.subr.bf16.mxu0 0
  %3424 = vmatpush1.bf16.msra.mxu0 %v2635
  %3425 = vmatprep.subr.bf16.mxu0 0
  %3426 = vmatpush1.bf16.msra.mxu0 %v2636
  %3427 = vmatprep.subr.bf16.mxu0 0
  %3428 = vmatpush1.bf16.msra.mxu0 %v2637
  %3429 = vmatprep.subr.bf16.mxu0 0
  %3430 = vmatpush1.bf16.msra.mxu0 %v2638
  %3431 = vmatprep.mubr.bf16.mxu0 %v895
  %3432 = vmatmul.mubr.bf16.gmra.mrb[0].mxu0 %v894
  %v3433 = vpop.f32.mrb[0].mxu0
  %v3434 = vadd.f32 %v3394, %v3433
  %v3435 = vpop.f32.mrb[0].mxu0
  %v3436 = vpop.f32.mrb[0].mxu0
  %v3437 = vpop.f32.mrb[0].mxu0
  %3438 = vdwg.mxu0
  %3439 = vmatprep.subr.bf16.mxu0 0
  %3440 = vmatpush1.bf16.msra.mxu0 %v2639
  %3441 = vmatprep.subr.bf16.mxu0 0
  %3442 = vmatpush1.bf16.msra.mxu0 %v2640
  %3443 = vmatprep.subr.bf16.mxu0 0
  %3444 = vmatpush1.bf16.msra.mxu0 %v2641
  %3445 = vmatprep.subr.bf16.mxu0 0
  %3446 = vmatpush1.bf16.msra.mxu0 %v2642
  %3447 = vmatprep.subr.bf16.mxu0 0
  %3448 = vmatpush1.bf16.msra.mxu0 %v2643
  %3449 = vmatprep.subr.bf16.mxu0 0
  %3450 = vmatpush1.bf16.msra.mxu0 %v2644
  %3451 = vmatprep.subr.bf16.mxu0 0
  %3452 = vmatpush1.bf16.msra.mxu0 %v2645
  %3453 = vmatprep.subr.bf16.mxu0 0
  %3454 = vmatpush1.bf16.msra.mxu0 %v2646
  %3455 = vmatprep.subr.bf16.mxu0 0
  %3456 = vmatpush1.bf16.msra.mxu0 %v2647
  %3457 = vmatprep.subr.bf16.mxu0 0
  %3458 = vmatpush1.bf16.msra.mxu0 %v2648
  %3459 = vmatprep.subr.bf16.mxu0 0
  %3460 = vmatpush1.bf16.msra.mxu0 %v2649
  %3461 = vmatprep.subr.bf16.mxu0 0
  %3462 = vmatpush1.bf16.msra.mxu0 %v2650
  %3463 = vmatprep.subr.bf16.mxu0 0
  %3464 = vmatpush1.bf16.msra.mxu0 %v2651
  %3465 = vmatprep.subr.bf16.mxu0 0
  %3466 = vmatpush1.bf16.msra.mxu0 %v2652
  %3467 = vmatprep.subr.bf16.mxu0 0
  %3468 = vmatpush1.bf16.msra.mxu0 %v2653
  %3469 = vmatprep.subr.bf16.mxu0 0
  %3470 = vmatpush1.bf16.msra.mxu0 %v2654
  %3471 = vmatprep.mubr.bf16.mxu0 %v897
  %3472 = vmatmul.mubr.bf16.gmra.mrb[0].mxu0 %v896
  %v3473 = vpop.f32.mrb[0].mxu0
  %v3474 = vadd.f32 %v3434, %v3473
  %v3475 = vpop.f32.mrb[0].mxu0
  %v3476 = vpop.f32.mrb[0].mxu0
  %v3477 = vpop.f32.mrb[0].mxu0
  %3478 = vdwg.mxu0
  %3479 = vmatprep.subr.bf16.mxu0 0
  %3480 = vmatpush1.bf16.msra.mxu0 %v2655
  %3481 = vmatprep.subr.bf16.mxu0 0
  %3482 = vmatpush1.bf16.msra.mxu0 %v2656
  %3483 = vmatprep.subr.bf16.mxu0 0
  %3484 = vmatpush1.bf16.msra.mxu0 %v2657
  %3485 = vmatprep.subr.bf16.mxu0 0
  %3486 = vmatpush1.bf16.msra.mxu0 %v2658
  %3487 = vmatprep.subr.bf16.mxu0 0
  %3488 = vmatpush1.bf16.msra.mxu0 %v2659
  %3489 = vmatprep.subr.bf16.mxu0 0
  %3490 = vmatpush1.bf16.msra.mxu0 %v2660
  %3491 = vmatprep.subr.bf16.mxu0 0
  %3492 = vmatpush1.bf16.msra.mxu0 %v2661
  %3493 = vmatprep.subr.bf16.mxu0 0
  %3494 = vmatpush1.bf16.msra.mxu0 %v2662
  %3495 = vmatprep.subr.bf16.mxu0 0
  %3496 = vmatpush1.bf16.msra.mxu0 %v2663
  %3497 = vmatprep.subr.bf16.mxu0 0
  %3498 = vmatpush1.bf16.msra.mxu0 %v2664
  %3499 = vmatprep.subr.bf16.mxu0 0
  %3500 = vmatpush1.bf16.msra.mxu0 %v2665
  %3501 = vmatprep.subr.bf16.mxu0 0
  %3502 = vmatpush1.bf16.msra.mxu0 %v2666
  %3503 = vmatprep.subr.bf16.mxu0 0
  %3504 = vmatpush1.bf16.msra.mxu0 %v2667
  %3505 = vmatprep.subr.bf16.mxu0 0
  %3506 = vmatpush1.bf16.msra.mxu0 %v2668
  %3507 = vmatprep.subr.bf16.mxu0 0
  %3508 = vmatpush1.bf16.msra.mxu0 %v2669
  %3509 = vmatprep.subr.bf16.mxu0 0
  %3510 = vmatpush1.bf16.msra.mxu0 %v2670
  %3511 = vmatprep.mubr.bf16.mxu0 %v899
  %3512 = vmatmul.mubr.bf16.gmra.mrb[0].mxu0 %v898
  %v3513 = vpop.f32.mrb[0].mxu0
  %v3514 = vadd.f32 %v3474, %v3513
  %v3515 = vpop.f32.mrb[0].mxu0
  %v3516 = vpop.f32.mrb[0].mxu0
  %v3517 = vpop.f32.mrb[0].mxu0
  %3518 = vdwg.mxu0
  %3519 = vmatprep.subr.bf16.mxu0 0
  %3520 = vmatpush1.bf16.msra.mxu0 %v2671
  %3521 = vmatprep.subr.bf16.mxu0 0
  %3522 = vmatpush1.bf16.msra.mxu0 %v2672
  %3523 = vmatprep.subr.bf16.mxu0 0
  %3524 = vmatpush1.bf16.msra.mxu0 %v2673
  %3525 = vmatprep.subr.bf16.mxu0 0
  %3526 = vmatpush1.bf16.msra.mxu0 %v2674
  %3527 = vmatprep.subr.bf16.mxu0 0
  %3528 = vmatpush1.bf16.msra.mxu0 %v2675
  %3529 = vmatprep.subr.bf16.mxu0 0
  %3530 = vmatpush1.bf16.msra.mxu0 %v2676
  %3531 = vmatprep.subr.bf16.mxu0 0
  %3532 = vmatpush1.bf16.msra.mxu0 %v2677
  %3533 = vmatprep.subr.bf16.mxu0 0
  %3534 = vmatpush1.bf16.msra.mxu0 %v2678
  %3535 = vmatprep.subr.bf16.mxu0 0
  %3536 = vmatpush1.bf16.msra.mxu0 %v2679
  %3537 = vmatprep.subr.bf16.mxu0 0
  %3538 = vmatpush1.bf16.msra.mxu0 %v2680
  %3539 = vmatprep.subr.bf16.mxu0 0
  %3540 = vmatpush1.bf16.msra.mxu0 %v2681
  %3541 = vmatprep.subr.bf16.mxu0 0
  %3542 = vmatpush1.bf16.msra.mxu0 %v2682
  %3543 = vmatprep.subr.bf16.mxu0 0
  %3544 = vmatpush1.bf16.msra.mxu0 %v2683
  %3545 = vmatprep.subr.bf16.mxu0 0
  %3546 = vmatpush1.bf16.msra.mxu0 %v2684
  %3547 = vmatprep.subr.bf16.mxu0 0
  %3548 = vmatpush1.bf16.msra.mxu0 %v2685
  %3549 = vmatprep.subr.bf16.mxu0 0
  %3550 = vmatpush1.bf16.msra.mxu0 %v2686
  %3551 = vmatprep.mubr.bf16.mxu0 %v901
  %3552 = vmatmul.mubr.bf16.gmra.mrb[0].mxu0 %v900
  %v3553 = vpop.f32.mrb[0].mxu0
  %v3554 = vadd.f32 %v3514, %v3553
  %v3555 = vpop.f32.mrb[0].mxu0
  %v3556 = vpop.f32.mrb[0].mxu0
  %v3557 = vpop.f32.mrb[0].mxu0
  %3558 = vdwg.mxu0
  %3559 = vmatprep.subr.bf16.mxu0 0
  %3560 = vmatpush1.bf16.msra.mxu0 %v2687
  %3561 = vmatprep.subr.bf16.mxu0 0
  %3562 = vmatpush1.bf16.msra.mxu0 %v2688
  %3563 = vmatprep.subr.bf16.mxu0 0
  %3564 = vmatpush1.bf16.msra.mxu0 %v2689
  %3565 = vmatprep.subr.bf16.mxu0 0
  %3566 = vmatpush1.bf16.msra.mxu0 %v2690
  %3567 = vmatprep.subr.bf16.mxu0 0
  %3568 = vmatpush1.bf16.msra.mxu0 %v2691
  %3569 = vmatprep.subr.bf16.mxu0 0
  %3570 = vmatpush1.bf16.msra.mxu0 %v2692
  %3571 = vmatprep.subr.bf16.mxu0 0
  %3572 = vmatpush1.bf16.msra.mxu0 %v2693
  %3573 = vmatprep.subr.bf16.mxu0 0
  %3574 = vmatpush1.bf16.msra.mxu0 %v2694
  %3575 = vmatprep.subr.bf16.mxu0 0
  %3576 = vmatpush1.bf16.msra.mxu0 %v2695
  %3577 = vmatprep.subr.bf16.mxu0 0
  %3578 = vmatpush1.bf16.msra.mxu0 %v2696
  %3579 = vmatprep.subr.bf16.mxu0 0
  %3580 = vmatpush1.bf16.msra.mxu0 %v2697
  %3581 = vmatprep.subr.bf16.mxu0 0
  %3582 = vmatpush1.bf16.msra.mxu0 %v2698
  %3583 = vmatprep.subr.bf16.mxu0 0
  %3584 = vmatpush1.bf16.msra.mxu0 %v2699
  %3585 = vmatprep.subr.bf16.mxu0 0
  %3586 = vmatpush1.bf16.msra.mxu0 %v2700
  %3587 = vmatprep.subr.bf16.mxu0 0
  %3588 = vmatpush1.bf16.msra.mxu0 %v2701
  %3589 = vmatprep.subr.bf16.mxu0 0
  %3590 = vmatpush1.bf16.msra.mxu0 %v2702
  %3591 = vmatprep.mubr.bf16.mxu0 %v903
  %3592 = vmatmul.mubr.bf16.gmra.mrb[0].mxu0 %v902
  %v3593 = vpop.f32.mrb[0].mxu0
  %v3594 = vadd.f32 %v3554, %v3593
  %v3595 = vpop.f32.mrb[0].mxu0
  %v3596 = vpop.f32.mrb[0].mxu0
  %v3597 = vpop.f32.mrb[0].mxu0
  %3598 = vdwg.mxu0
  %3599 = vst [vmem:[%s6] sm:$0xff] %v3594
  // Predicated region
  $region26: #{discriminator_forward.9} parent=0 // pred_check
    _
  $region27: #{discriminator_forward.9} parent=0 // pred_check_branch
    %3601 = sbr.rel (0) target = $region29
  $region28: #{discriminator_forward.9} parent=0 // pred_region
    _
  $region29: #{discriminator_forward.9} parent=0 // pred_fallthru
    _
  // Predicated region
  $region30: #{discriminator_forward.9} parent=0 // pred_check
    _
  $region31: #{discriminator_forward.9} parent=0 // pred_check_branch
    %3603 = sbr.rel (0) target = $region33
  $region32: #{discriminator_forward.9} parent=0 // pred_region
    _
  $region33: #{discriminator_forward.9} parent=0 // pred_fallthru
    _

</llo_original>
